<compile_context>
chip_gen: v7x
topology: tpu7x:2x2x1
jax: 0.10.0
libtpu: 0.0.40
codegen_flags: <defaults>
</compile_context>

<pallas_src>
import numpy as np
import jax
import jax.numpy as jnp
from jax.experimental import pallas as pl
from jax.experimental.pallas import tpu as pltpu

# ---- small synthetic "Wav2Vec2-BERT" hyper-parameters -----------------------
FRAME_LEN = 64
HOP = 32
N_FREQ = 32
N_MEL = 16
STACK = 2
FEAT_DIM = N_MEL * STACK          # 32
HIDDEN = 32
FF_DIM = 64
NUM_HEADS = 4
HEAD_DIM = HIDDEN // NUM_HEADS    # 8
NUM_LAYERS = 2
CONV_KERNEL = 5
LN_EPS = 1e-5
NEG_INF = -1e9
_LANES = 128


# ---- static row layouts for the two packed weight slabs ----------------------
def _build_layouts():
    wl, vl = {}, {}
    wrow = 0

    def addw(key, r, c):
        nonlocal wrow
        wl[key] = (wrow, r, c)
        wrow += r

    addw("fp_w", FEAT_DIM, HIDDEN)
    for l in range(NUM_LAYERS):
        addw(("f1_w1", l), HIDDEN, FF_DIM)
        addw(("f1_w2", l), FF_DIM, HIDDEN)
        addw(("at_wq_t", l), HIDDEN, HIDDEN)   # rows hd*8.. = head hd, transposed
        addw(("at_wk_t", l), HIDDEN, HIDDEN)
        addw(("at_wv_t", l), HIDDEN, HIDDEN)
        addw(("at_wo", l), HIDDEN, HIDDEN)     # rows hd*8.. = head hd contraction rows
        addw(("cv_pw1a", l), HIDDEN, HIDDEN)   # GLU "value" half
        addw(("cv_pw1g", l), HIDDEN, HIDDEN)   # GLU "gate"  half
        addw(("cv_pw2", l), HIDDEN, HIDDEN)
        addw(("f2_w1", l), HIDDEN, FF_DIM)
        addw(("f2_w2", l), FF_DIM, HIDDEN)
    wrows = ((wrow + 7) // 8) * 8

    vrow = 0

    def addv(key, r, c):
        nonlocal vrow
        vl[key] = (vrow, r, c)
        vrow += r

    addv("dft2", 2 * FRAME_LEN, 4 * N_FREQ)     # (128,128) even|odd block-diag DFT
    addv("mel2p", 4 * N_FREQ, FEAT_DIM)          # (128,32) mel proj on squared spectrum
    addv("window2", 1, 2 * FRAME_LEN)
    addv("fp_ln_g", 1, FEAT_DIM)
    addv("fp_ln_b", 1, FEAT_DIM)
    addv("fp_b", 1, HIDDEN)
    for l in range(NUM_LAYERS):
        for nm, c in (("f1_ln_g", HIDDEN), ("f1_ln_b", HIDDEN),
                      ("f1_b1", FF_DIM), ("f1_b2", HIDDEN),
                      ("at_ln_g", HIDDEN), ("at_ln_b", HIDDEN),
                      ("at_bq", HIDDEN), ("at_bk", HIDDEN),
                      ("at_bv", HIDDEN), ("at_bo", HIDDEN),
                      ("cv_ln1_g", HIDDEN), ("cv_ln1_b", HIDDEN),
                      ("cv_pb1a", HIDDEN), ("cv_pb1g", HIDDEN)):
            addv((nm, l), 1, c)
        addv(("cv_dw", l), CONV_KERNEL, HIDDEN)
        for nm, c in (("cv_ln2_g", HIDDEN), ("cv_ln2_b", HIDDEN), ("cv_pb2", HIDDEN),
                      ("f2_ln_g", HIDDEN), ("f2_ln_b", HIDDEN),
                      ("f2_b1", FF_DIM), ("f2_b2", HIDDEN),
                      ("fl_g", HIDDEN), ("fl_b", HIDDEN)):
            addv((nm, l), 1, c)
    vrows = ((vrow + 7) // 8) * 8
    return wl, wrows, vl, vrows


W_LAYOUT, W_ROWS, V_LAYOUT, V_ROWS = _build_layouts()


def _layernorm(x, gamma, beta):
    mu = jnp.mean(x, axis=-1, keepdims=True)
    var = jnp.mean((x - mu) ** 2, axis=-1, keepdims=True)
    return (x - mu) * jax.lax.rsqrt(var + LN_EPS) * gamma + beta


# ---- the fused kernel ---------------------------------------------------------
def _w2v2bert_fused_kernel(nvf_ref, frames_ref, w_ref, v_ref, out_ref):
    bf16 = jnp.bfloat16
    f32 = jnp.float32

    def wblk(key, row0=0, nrows=None):
        off, r, c = W_LAYOUT[key]
        n = r if nrows is None else nrows
        return w_ref[off + row0:off + row0 + n, :c]

    def vblk(key):
        off, r, c = V_LAYOUT[key]
        return v_ref[off:off + r, :c]

    b = pl.program_id(0)
    nv = nvf_ref[b]                      # int32: number of valid (unstacked) frames
    frames = frames_ref[0]               # (S, 128) f32, [even frame | odd frame]
    S = frames.shape[0]

    # ---- all masks rebuilt on-VPU from iota + the SMEM scalar (no mask DMAs) ----
    si = jax.lax.broadcasted_iota(jnp.int32, (S, 1), 0)
    li = jax.lax.broadcasted_iota(jnp.int32, (1, S), 1)
    mcol = (2 * si + 1 < nv).astype(f32)                           # stacked-pos validity
    key_bias = jnp.where(2 * li + 1 < nv, 0.0, NEG_INF).astype(f32)
    si32 = jax.lax.broadcasted_iota(jnp.int32, (S, FEAT_DIM), 0)
    li32 = jax.lax.broadcasted_iota(jnp.int32, (S, FEAT_DIM), 1)
    fidx = 2 * si32 + (li32 >= N_MEL).astype(jnp.int32)
    msk32 = (fidx < nv).astype(f32)                                 # per-mel-column mask

    # ---- log-mel frontend (even|odd fused; mel proj uses full 128-deep contraction) ----
    xw = frames * vblk("window2")
    spec = jnp.dot(xw, vblk("dft2"), preferred_element_type=f32)    # (S, 128)
    sq = spec * spec
    mel = jnp.dot(sq, vblk("mel2p"), preferred_element_type=f32)    # (S, 32) = [mel_e|mel_o]
    logmel = jnp.log(mel + 1e-6)

    # ---- per-utterance CMVN over valid frames (even + odd pooled) ----
    inv_n = 1.0 / jnp.maximum(jnp.minimum(nv, 2 * S), 1).astype(f32)
    colsum = jnp.sum(logmel * msk32, axis=0, keepdims=True)         # (1, 32)
    mean16 = (colsum[:, :N_MEL] + colsum[:, N_MEL:]) * inv_n
    mean = jnp.concatenate([mean16, mean16], axis=1)
    d = logmel - mean
    sqsum = jnp.sum(d * d * msk32, axis=0, keepdims=True)
    var16 = (sqsum[:, :N_MEL] + sqsum[:, N_MEL:]) * inv_n
    var = jnp.concatenate([var16, var16], axis=1)
    feats = d * jax.lax.rsqrt(var + 1e-7) * msk32                   # (S, FEAT_DIM)

    # ---- feature projection ----
    h = _layernorm(feats, vblk("fp_ln_g"), vblk("fp_ln_b"))
    h = jnp.dot(h.astype(bf16), wblk("fp_w"), preferred_element_type=f32) + vblk("fp_b")
    h = h * mcol

    # depthwise-conv edge masks (rolls wrap around; mask out the wrapped rows)
    pad = (CONV_KERNEL - 1) // 2
    tap_mask = {}
    for k in range(CONV_KERNEL):
        shift = pad - k
        if shift > 0:
            tap_mask[k] = (si >= shift).astype(f32)
        elif shift < 0:
            tap_mask[k] = (si < S + shift).astype(f32)

    def ffn_half(x, l, pre):
        t = _layernorm(x, vblk((pre + "_ln_g", l)), vblk((pre + "_ln_b", l)))
        t = jnp.dot(t.astype(bf16), wblk((pre + "_w1", l)),
                    preferred_element_type=f32) + vblk((pre + "_b1", l))
        t = t * jax.nn.sigmoid(t)                                    # swish
        # 0.5 half-step residual scale folded into w2/b2 at pack time
        t = jnp.dot(t.astype(bf16), wblk((pre + "_w2", l)),
                    preferred_element_type=f32) + vblk((pre + "_b2", l))
        return x + t

    dims = (((1,), (1,)), ((), ()))   # contract last dim of both operands

    for l in range(NUM_LAYERS):
        # -- half-step FFN 1 --
        h = ffn_half(h, l, "f1")

        # -- MHSA: per-head weights sliced on sublanes from the slab, phase-split --
        xn = _layernorm(h, vblk(("at_ln_g", l)), vblk(("at_ln_b", l)))
        xnb = xn.astype(bf16)
        bq = vblk(("at_bq", l))
        bk = vblk(("at_bk", l))
        bv = vblk(("at_bv", l))
        qs, ks, vs = [], [], []
        for hd in range(NUM_HEADS):                                  # phase 1: Q/K/V
            r0 = hd * HEAD_DIM
            qs.append(jax.lax.dot_general(xnb, wblk(("at_wq_t", l), r0, HEAD_DIM),
                                          dims, preferred_element_type=f32)
                      + bq[:, r0:r0 + HEAD_DIM])
            ks.append(jax.lax.dot_general(xnb, wblk(("at_wk_t", l), r0, HEAD_DIM),
                                          dims, preferred_element_type=f32)
                      + bk[:, r0:r0 + HEAD_DIM])
            vs.append(jax.lax.dot_general(xnb, wblk(("at_wv_t", l), r0, HEAD_DIM),
                                          dims, preferred_element_type=f32)
                      + bv[:, r0:r0 + HEAD_DIM])
        scores = [jax.lax.dot_general(qs[hd].astype(bf16), ks[hd].astype(bf16),
                                      dims, preferred_element_type=f32) + key_bias
                  for hd in range(NUM_HEADS)]                        # phase 2: QK^T
        probs = []
        for s in scores:                                             # phase 3: softmax
            s = s - jnp.max(s, axis=-1, keepdims=True)
            e = jnp.exp(s)
            probs.append(e * pl.reciprocal(jnp.sum(e, axis=-1, keepdims=True), approx=True))
        att = None
        for hd in range(NUM_HEADS):                                  # phase 4: PV + Wo
            ctx = jnp.dot(probs[hd].astype(bf16), vs[hd].astype(bf16),
                          preferred_element_type=f32)                # (S, HD)
            o = jnp.dot(ctx.astype(bf16), wblk(("at_wo", l), hd * HEAD_DIM, HEAD_DIM),
                        preferred_element_type=f32)                  # (S, H)
            att = o if att is None else att + o
        h = h + att + vblk(("at_bo", l))

        # -- conv module (split-GLU pointwise, roll-based depthwise taps, LN, swish, pw) --
        xn = _layernorm(h, vblk(("cv_ln1_g", l)), vblk(("cv_ln1_b", l)))
        xnb = xn.astype(bf16)
        ga = jnp.dot(xnb, wblk(("cv_pw1a", l)),
                     preferred_element_type=f32) + vblk(("cv_pb1a", l))
        gg = jnp.dot(xnb, wblk(("cv_pw1g", l)),
                     preferred_element_type=f32) + vblk(("cv_pb1g", l))
        glu = ga * jax.nn.sigmoid(gg)
        glu = glu * mcol                           # zero padded frames pre-conv
        dw = vblk(("cv_dw", l))                    # (K, H)
        acc = glu * dw[pad:pad + 1, :]             # center tap (shift 0)
        for k in range(CONV_KERNEL):
            if k == pad:
                continue
            tap = pltpu.roll(glu, shift=(pad - k) % S, axis=0) * tap_mask[k]
            acc = acc + tap * dw[k:k + 1, :]
        cn = _layernorm(acc, vblk(("cv_ln2_g", l)), vblk(("cv_ln2_b", l)))
        cn = cn * jax.nn.sigmoid(cn)
        h = h + jnp.dot(cn.astype(bf16), wblk(("cv_pw2", l)),
                        preferred_element_type=f32) + vblk(("cv_pb2", l))

        # -- half-step FFN 2 + per-layer final LN --
        h = ffn_half(h, l, "f2")
        h = _layernorm(h, vblk(("fl_g", l)), vblk(("fl_b", l)))

    # TODO(synk): lane-dense (S*H/128, 128) output slab for realistic S.
    out_ref[0] = h.astype(jnp.float32)


# ---- deterministic parameter / constant construction -------------------------
def build_frontend_consts():
    n = np.arange(FRAME_LEN, dtype=np.float64)
    window = 0.5 - 0.5 * np.cos(2.0 * np.pi * n / (FRAME_LEN - 1))
    k = np.arange(N_FREQ, dtype=np.float64)
    ang = 2.0 * np.pi * np.outer(n, k) / FRAME_LEN
    dft = np.concatenate([np.cos(ang), -np.sin(ang)], axis=1)          # (64, 64)
    pts = np.linspace(0.0, N_FREQ - 1, N_MEL + 2)
    bins = np.arange(N_FREQ, dtype=np.float64)[:, None]
    left, ctr, right = pts[None, :N_MEL], pts[None, 1:N_MEL + 1], pts[None, 2:]
    up = (bins - left) / np.maximum(ctr - left, 1e-6)
    down = (right - bins) / np.maximum(right - ctr, 1e-6)
    mel_fb = np.maximum(0.0, np.minimum(up, down))                     # (32, 16)

    window2 = np.concatenate([window, window])[None, :]                # (1, 128)
    dft2 = np.zeros((2 * FRAME_LEN, 4 * N_FREQ))
    dft2[:FRAME_LEN, :2 * N_FREQ] = dft
    dft2[FRAME_LEN:, 2 * N_FREQ:] = dft
    # mel projection applied to the *squared* spectrum (re^2 + im^2 folded in),
    # so the contraction is the full 128 lanes and no spectrum slicing is needed.
    mel2p = np.zeros((4 * N_FREQ, FEAT_DIM))
    mel2p[0:N_FREQ, :N_MEL] = mel_fb
    mel2p[N_FREQ:2 * N_FREQ, :N_MEL] = mel_fb
    mel2p[2 * N_FREQ:3 * N_FREQ, N_MEL:] = mel_fb
    mel2p[3 * N_FREQ:, N_MEL:] = mel_fb
    return {"window2": window2, "dft2": dft2, "mel2p": mel2p}


def init_params(key):
    kit = iter(jax.random.split(key, 64))

    def w(shape, scale=0.02):
        return scale * jax.random.normal(next(kit), shape, dtype=jnp.float32)

    ones = lambda s: jnp.ones(s, jnp.float32)
    zeros = lambda s: jnp.zeros(s, jnp.float32)

    def ffn_params():
        return dict(ln_g=ones((1, HIDDEN)), ln_b=zeros((1, HIDDEN)),
                    w1=w((HIDDEN, FF_DIM)), b1=zeros((1, FF_DIM)),
                    w2=w((FF_DIM, HIDDEN)), b2=zeros((1, HIDDEN)))

    params = {
        "fp_ln_g": ones((1, FEAT_DIM)), "fp_ln_b": zeros((1, FEAT_DIM)),
        "fp_w": w((FEAT_DIM, HIDDEN)), "fp_b": zeros((1, HIDDEN)),
        "layers": [],
    }
    for _ in range(NUM_LAYERS):
        params["layers"].append(dict(
            ffn1=ffn_params(),
            attn=dict(ln_g=ones((1, HIDDEN)), ln_b=zeros((1, HIDDEN)),
                      wq=w((HIDDEN, HIDDEN)), bq=zeros((1, HIDDEN)),
                      wk=w((HIDDEN, HIDDEN)), bk=zeros((1, HIDDEN)),
                      wv=w((HIDDEN, HIDDEN)), bv=zeros((1, HIDDEN)),
                      wo=w((HIDDEN, HIDDEN)), bo=zeros((1, HIDDEN))),
            conv=dict(ln1_g=ones((1, HIDDEN)), ln1_b=zeros((1, HIDDEN)),
                      wpw1=w((HIDDEN, 2 * HIDDEN)), bpw1=zeros((1, 2 * HIDDEN)),
                      dw=w((CONV_KERNEL, HIDDEN)),
                      ln2_g=ones((1, HIDDEN)), ln2_b=zeros((1, HIDDEN)),
                      wpw2=w((HIDDEN, HIDDEN)), bpw2=zeros((1, HIDDEN))),
            ffn2=ffn_params(),
            ln_g=ones((1, HIDDEN)), ln_b=zeros((1, HIDDEN)),
        ))
    return params


def pack_params(params, consts):
    """Pack every weight into two slabs: bf16 matmul weights + f32 LN/bias/consts.
    QKV are stored per-head transposed (sublane-aligned head blocks), 1/sqrt(hd)
    folded into Wq/bq, 0.5 half-step FFN scale folded into W2/b2, GLU pointwise
    weight split into value/gate halves."""
    wslab = np.zeros((W_ROWS, _LANES), np.float32)
    vslab = np.zeros((V_ROWS, _LANES), np.float32)

    def putw(key, arr):
        off, r, c = W_LAYOUT[key]
        a = np.asarray(arr, np.float32)
        assert a.shape == (r, c), (key, a.shape, (r, c))
        wslab[off:off + r, :c] = a

    def putv(key, arr):
        off, r, c = V_LAYOUT[key]
        a = np.asarray(arr, np.float32).reshape(r, c)
        vslab[off:off + r, :c] = a

    putv("dft2", consts["dft2"])
    putv("mel2p", consts["mel2p"])
    putv("window2", consts["window2"])
    putv("fp_ln_g", params["fp_ln_g"])
    putv("fp_ln_b", params["fp_ln_b"])
    putv("fp_b", params["fp_b"])
    putw("fp_w", params["fp_w"])

    scale = 1.0 / (HEAD_DIM ** 0.5)
    for l, lp in enumerate(params["layers"]):
        f1, at, cv, f2 = lp["ffn1"], lp["attn"], lp["conv"], lp["ffn2"]
        putv(("f1_ln_g", l), f1["ln_g"]); putv(("f1_ln_b", l), f1["ln_b"])
        putw(("f1_w1", l), f1["w1"]); putv(("f1_b1", l), f1["b1"])
        putw(("f1_w2", l), 0.5 * np.asarray(f1["w2"]))
        putv(("f1_b2", l), 0.5 * np.asarray(f1["b2"]))

        putv(("at_ln_g", l), at["ln_g"]); putv(("at_ln_b", l), at["ln_b"])
        putw(("at_wq_t", l), (scale * np.asarray(at["wq"])).T)
        putw(("at_wk_t", l), np.asarray(at["wk"]).T)
        putw(("at_wv_t", l), np.asarray(at["wv"]).T)
        putw(("at_wo", l), at["wo"])
        putv(("at_bq", l), scale * np.asarray(at["bq"]))
        putv(("at_bk", l), at["bk"]); putv(("at_bv", l), at["bv"]); putv(("at_bo", l), at["bo"])

        putv(("cv_ln1_g", l), cv["ln1_g"]); putv(("cv_ln1_b", l), cv["ln1_b"])
        wpw1 = np.asarray(cv["wpw1"]); bpw1 = np.asarray(cv["bpw1"])
        putw(("cv_pw1a", l), wpw1[:, :HIDDEN]); putw(("cv_pw1g", l), wpw1[:, HIDDEN:])
        putv(("cv_pb1a", l), bpw1[:, :HIDDEN]); putv(("cv_pb1g", l), bpw1[:, HIDDEN:])
        putv(("cv_dw", l), cv["dw"])
        putv(("cv_ln2_g", l), cv["ln2_g"]); putv(("cv_ln2_b", l), cv["ln2_b"])
        putw(("cv_pw2", l), cv["wpw2"]); putv(("cv_pb2", l), cv["bpw2"])

        putv(("f2_ln_g", l), f2["ln_g"]); putv(("f2_ln_b", l), f2["ln_b"])
        putw(("f2_w1", l), f2["w1"]); putv(("f2_b1", l), f2["b1"])
        putw(("f2_w2", l), 0.5 * np.asarray(f2["w2"]))
        putv(("f2_b2", l), 0.5 * np.asarray(f2["b2"]))

        putv(("fl_g", l), lp["ln_g"]); putv(("fl_b", l), lp["ln_b"])

    return jnp.asarray(wslab, jnp.bfloat16), jnp.asarray(vslab, jnp.float32)


# ---- device-side forward (fully jitted, single fused pallas_call) ------------
def _forward_impl(wslab, vslab, x):
    B, T = x.shape
    F = (T - FRAME_LEN) // HOP + 1
    S = F // STACK
    F2 = S * STACK
    S_pad = max(8, ((S + 7) // 8) * 8)     # sublane-aligned sequence length

    # trailing-zero trim on device -> valid-frame counts (the only mask input,
    # shipped as an SMEM scalar-prefetch array; the kernel rebuilds all masks).
    idx = jnp.arange(T, dtype=jnp.int32)
    valid_len = jnp.max(jnp.where(x != 0.0, idx + 1, 0), axis=1)             # (B,)
    nvf = jnp.where(valid_len >= FRAME_LEN,
                    (valid_len - FRAME_LEN) // HOP + 1, 0)
    nvf = jnp.minimum(nvf, F2).astype(jnp.int32)                             # (B,)

    # framing: frame f = audio[f*HOP : f*HOP + FRAME_LEN]  (FRAME_LEN == 2*HOP),
    # even|odd frame pairs fused along the 128-lane axis.
    a2 = x[:, :(F + 1) * HOP].reshape(B, F + 1, HOP)
    frames = jnp.concatenate([a2[:, :F2, :], a2[:, 1:F2 + 1, :]], axis=2)    # (B, F2, 64)
    frames2 = frames.reshape(B, S, STACK * FRAME_LEN)                        # (B, S, 128)
    if S_pad > S:
        frames2 = jnp.pad(frames2, ((0, 0), (0, S_pad - S), (0, 0)))

    grid_spec = pltpu.PrefetchScalarGridSpec(
        num_scalar_prefetch=1,
        grid=(B,),
        in_specs=[
            pl.BlockSpec((1, S_pad, STACK * FRAME_LEN), lambda b, sref: (b, 0, 0)),
            pl.BlockSpec((W_ROWS, _LANES), lambda b, sref: (0, 0)),   # constant block
            pl.BlockSpec((V_ROWS, _LANES), lambda b, sref: (0, 0)),   # -> fetched once
        ],
        out_specs=pl.BlockSpec((1, S_pad, HIDDEN), lambda b, sref: (b, 0, 0)),
    )
    hidden = pl.pallas_call(
        _w2v2bert_fused_kernel,
        out_shape=jax.ShapeDtypeStruct((B, S_pad, HIDDEN), jnp.float32),
        grid_spec=grid_spec,
        compiler_params=pltpu.CompilerParams(
            dimension_semantics=("parallel",),
            vmem_limit_bytes=32 * 1024 * 1024),
    )(nvf, frames2, wslab, vslab)

    hidden = hidden[:, :S, :]
    sidx = jnp.arange(S, dtype=jnp.int32)
    attn_mask = (2 * sidx[None, :] + 1 < nvf[:, None]).astype(jnp.int32)
    return hidden, attn_mask


_forward_jit = jax.jit(_forward_impl)


def w2v2bert_forward(wslab, vslab, input_ids):
    x = jnp.asarray(input_ids, dtype=jnp.float32)
    if x.ndim == 3:                                         # 'b 1 t -> b t'
        x = x.reshape(x.shape[0], x.shape[-1])
    assert x.ndim == 2, "Expected input shape (B, T)."
    assert x.shape[1] >= FRAME_LEN + HOP, "Audio too short for one stacked frame."
    return _forward_jit(wslab, vslab, x)


if __name__ == "__main__":
    key = jax.random.PRNGKey(0)
    pkey, dkey = jax.random.split(key)
    params = init_params(pkey)
    consts = build_frontend_consts()
    wslab, vslab = pack_params(params, consts)

    B, T = 2, 1056
    audio = jax.random.normal(dkey, (B, T), dtype=jnp.float32)
    # second sequence has trailing zero padding -> shorter valid length
    valid_len = jnp.array([T, 736])
    col = jnp.arange(T)[None, :]
    audio = jnp.where(col < valid_len[:, None], audio, 0.0)
    input_ids = audio[:, None, :]            # (B, 1, T) like the torch module accepts

    last_hidden_state, attention_mask = w2v2bert_forward(wslab, vslab, input_ids)
    jax.block_until_ready((last_hidden_state, attention_mask))

    S = last_hidden_state.shape[1]
    assert last_hidden_state.shape == (B, S, HIDDEN)
    assert last_hidden_state.dtype == jnp.float32
    assert attention_mask.shape == (B, S)
    assert bool(jnp.all(jnp.isfinite(last_hidden_state)))
    print("KERNEL_OK")
</pallas_src>

<mosaic_0001>
module attributes {stable_mosaic.version = 11 : i64} {
  func.func @_w2v2bert_fused_kernel(%arg0: i32, %arg1: memref<2xi32, #tpu.memory_space<smem>>, %arg2: memref<1x16x128xf32, #tpu.memory_space<vmem>>, %arg3: memref<864x128xbf16, #tpu.memory_space<vmem>>, %arg4: memref<320x128xf32, #tpu.memory_space<vmem>>, %arg5: memref<1x16x32xf32, #tpu.memory_space<vmem>>) attributes {dimension_semantics = [#tpu.dimension_semantics<parallel>], iteration_bounds = array<i64: 2>, scalar_prefetch = 1 : i64, scratch_operands = 0 : i64, tpu.core_type = #tpu.core_type<tc>, window_params = [{transform_indices = @transform_0, window_bounds = array<i64: 1, 16, 128>}, {pipeline_mode = #tpu.pipeline_mode<synchronous>, transform_indices = @transform_1, window_bounds = array<i64: 864, 128>}, {pipeline_mode = #tpu.pipeline_mode<synchronous>, transform_indices = @transform_2, window_bounds = array<i64: 320, 128>}, {transform_indices = @transform_3, window_bounds = array<i64: 1, 16, 32>}]} {
    %0 = arith.index_cast %arg0 : i32 to index
    %1 = memref.load %arg1[%0] : memref<2xi32, #tpu.memory_space<smem>>
    %c0 = arith.constant 0 : index
    %c0_0 = arith.constant 0 : index
    %c0_1 = arith.constant 0 : index
    %2 = vector.load %arg2[%c0, %c0_0, %c0_1] : memref<1x16x128xf32, #tpu.memory_space<vmem>>, vector<1x16x128xf32>
    %3 = vector.shape_cast %2 : vector<1x16x128xf32> to vector<16x128xf32>
    %4 = tpu.iota {dimensions = array<i32: 0>} : vector<16x1xi32>
    %5 = tpu.iota {dimensions = array<i32: 1>} : vector<1x16xi32>
    %c2_i32 = arith.constant 2 : i32
    %6 = vector.broadcast %c2_i32 : i32 to vector<16x1xi32>
    %7 = arith.muli %6, %4 : vector<16x1xi32>
    %c1_i32 = arith.constant 1 : i32
    %8 = vector.broadcast %c1_i32 : i32 to vector<16x1xi32>
    %9 = arith.addi %7, %8 : vector<16x1xi32>
    %10 = vector.broadcast %1 : i32 to vector<16x1xi32>
    %11 = arith.cmpi slt, %9, %10 : vector<16x1xi32>
    %12 = arith.extui %11 : vector<16x1xi1> to vector<16x1xi32>
    %13 = arith.sitofp %12 : vector<16x1xi32> to vector<16x1xf32>
    %c2_i32_2 = arith.constant 2 : i32
    %14 = vector.broadcast %c2_i32_2 : i32 to vector<1x16xi32>
    %15 = arith.muli %14, %5 : vector<1x16xi32>
    %c1_i32_3 = arith.constant 1 : i32
    %16 = vector.broadcast %c1_i32_3 : i32 to vector<1x16xi32>
    %17 = arith.addi %15, %16 : vector<1x16xi32>
    %18 = vector.broadcast %1 : i32 to vector<1x16xi32>
    %19 = arith.cmpi slt, %17, %18 : vector<1x16xi32>
    %cst = arith.constant 0.000000e+00 : f32
    %cst_4 = arith.constant -1.000000e+09 : f32
    %20 = vector.broadcast %cst : f32 to vector<1x16xf32>
    %21 = vector.broadcast %cst_4 : f32 to vector<1x16xf32>
    %22 = arith.select %19, %20, %21 : vector<1x16xi1>, vector<1x16xf32>
    %23 = tpu.iota {dimensions = array<i32: 0>} : vector<16x32xi32>
    %24 = tpu.iota {dimensions = array<i32: 1>} : vector<16x32xi32>
    %c2_i32_5 = arith.constant 2 : i32
    %25 = vector.broadcast %c2_i32_5 : i32 to vector<16x32xi32>
    %26 = arith.muli %25, %23 : vector<16x32xi32>
    %c16_i32 = arith.constant 16 : i32
    %27 = vector.broadcast %c16_i32 : i32 to vector<16x32xi32>
    %28 = arith.cmpi sge, %24, %27 : vector<16x32xi32>
    %29 = arith.extui %28 : vector<16x32xi1> to vector<16x32xi32>
    %30 = arith.addi %26, %29 : vector<16x32xi32>
    %31 = vector.broadcast %1 : i32 to vector<16x32xi32>
    %32 = arith.cmpi slt, %30, %31 : vector<16x32xi32>
    %33 = arith.extui %32 : vector<16x32xi1> to vector<16x32xi32>
    %34 = arith.sitofp %33 : vector<16x32xi32> to vector<16x32xf32>
    %c256 = arith.constant 256 : index
    %c0_6 = arith.constant 0 : index
    %35 = vector.load %arg4[%c256, %c0_6] : memref<320x128xf32, #tpu.memory_space<vmem>>, vector<1x128xf32>
    %36 = vector.broadcast %35 : vector<1x128xf32> to vector<16x128xf32>
    %37 = arith.mulf %3, %36 : vector<16x128xf32>
    %c0_7 = arith.constant 0 : index
    %c0_8 = arith.constant 0 : index
    %38 = vector.load %arg4[%c0_7, %c0_8] : memref<320x128xf32, #tpu.memory_space<vmem>>, vector<128x128xf32>
    %cst_9 = arith.constant dense<0.000000e+00> : vector<16x128xf32>
    %39 = tpu.matmul %37, %38, %cst_9 {dimension_numbers = #tpu.dot_dimension_numbers<[1], [0], [0], [1], [0, 0, 1, 1], [], []>} : vector<16x128xf32>, vector<128x128xf32>, vector<16x128xf32> -> vector<16x128xf32>
    %40 = arith.mulf %39, %39 : vector<16x128xf32>
    %c128 = arith.constant 128 : index
    %c0_10 = arith.constant 0 : index
    %41 = vector.load %arg4[%c128, %c0_10] : memref<320x128xf32, #tpu.memory_space<vmem>>, vector<128x32xf32>
    %cst_11 = arith.constant dense<0.000000e+00> : vector<16x32xf32>
    %42 = tpu.matmul %40, %41, %cst_11 {dimension_numbers = #tpu.dot_dimension_numbers<[1], [0], [0], [1], [0, 0, 1, 1], [], []>} : vector<16x128xf32>, vector<128x32xf32>, vector<16x32xf32> -> vector<16x32xf32>
    %cst_12 = arith.constant 9.99999997E-7 : f32
    %43 = vector.broadcast %cst_12 : f32 to vector<16x32xf32>
    %44 = arith.addf %42, %43 : vector<16x32xf32>
    %45 = math.log %44 : vector<16x32xf32>
    %c32_i32 = arith.constant 32 : i32
    %46 = arith.minsi %1, %c32_i32 : i32
    %c1_i32_13 = arith.constant 1 : i32
    %47 = arith.maxsi %46, %c1_i32_13 : i32
    %48 = arith.sitofp %47 : i32 to f32
    %cst_14 = arith.constant 1.000000e+00 : f32
    %49 = arith.divf %cst_14, %48 : f32
    %50 = arith.mulf %45, %34 : vector<16x32xf32>
    %cst_15 = arith.constant dense<0.000000e+00> : vector<32xf32>
    %51 = vector.multi_reduction <add>, %50, %cst_15 [0] : vector<16x32xf32> to vector<32xf32>
    %52 = vector.shape_cast %51 : vector<32xf32> to vector<1x32xf32>
    %53 = vector.extract_strided_slice %52 {offsets = [0, 0], sizes = [1, 16], strides = [1, 1]} : vector<1x32xf32> to vector<1x16xf32>
    %54 = vector.extract_strided_slice %52 {offsets = [0, 16], sizes = [1, 16], strides = [1, 1]} : vector<1x32xf32> to vector<1x16xf32>
    %55 = arith.addf %53, %54 : vector<1x16xf32>
    %56 = vector.broadcast %49 : f32 to vector<1x16xf32>
    %57 = arith.mulf %55, %56 : vector<1x16xf32>
    %58 = tpu.concatenate %57, %57 in 1 : vector<1x16xf32>, vector<1x16xf32> -> vector<1x32xf32>
    %59 = vector.broadcast %58 : vector<1x32xf32> to vector<16x32xf32>
    %60 = arith.subf %45, %59 : vector<16x32xf32>
    %61 = arith.mulf %60, %60 : vector<16x32xf32>
    %62 = arith.mulf %61, %34 : vector<16x32xf32>
    %cst_16 = arith.constant dense<0.000000e+00> : vector<32xf32>
    %63 = vector.multi_reduction <add>, %62, %cst_16 [0] : vector<16x32xf32> to vector<32xf32>
    %64 = vector.shape_cast %63 : vector<32xf32> to vector<1x32xf32>
    %65 = vector.extract_strided_slice %64 {offsets = [0, 0], sizes = [1, 16], strides = [1, 1]} : vector<1x32xf32> to vector<1x16xf32>
    %66 = vector.extract_strided_slice %64 {offsets = [0, 16], sizes = [1, 16], strides = [1, 1]} : vector<1x32xf32> to vector<1x16xf32>
    %67 = arith.addf %65, %66 : vector<1x16xf32>
    %68 = vector.broadcast %49 : f32 to vector<1x16xf32>
    %69 = arith.mulf %67, %68 : vector<1x16xf32>
    %70 = tpu.concatenate %69, %69 in 1 : vector<1x16xf32>, vector<1x16xf32> -> vector<1x32xf32>
    %cst_17 = arith.constant 1.000000e-07 : f32
    %71 = vector.broadcast %cst_17 : f32 to vector<1x32xf32>
    %72 = arith.addf %70, %71 : vector<1x32xf32>
    %73 = math.rsqrt %72 : vector<1x32xf32>
    %74 = vector.broadcast %73 : vector<1x32xf32> to vector<16x32xf32>
    %75 = arith.mulf %60, %74 : vector<16x32xf32>
    %76 = arith.mulf %75, %34 : vector<16x32xf32>
    %c257 = arith.constant 257 : index
    %c0_18 = arith.constant 0 : index
    %77 = vector.load %arg4[%c257, %c0_18] : memref<320x128xf32, #tpu.memory_space<vmem>>, vector<1x32xf32>
    %c258 = arith.constant 258 : index
    %c0_19 = arith.constant 0 : index
    %78 = vector.load %arg4[%c258, %c0_19] : memref<320x128xf32, #tpu.memory_space<vmem>>, vector<1x32xf32>
    %cst_20 = arith.constant dense<0.000000e+00> : vector<16xf32>
    %79 = vector.multi_reduction <add>, %76, %cst_20 [1] : vector<16x32xf32> to vector<16xf32>
    %80 = vector.shape_cast %79 : vector<16xf32> to vector<16x1xf32>
    %cst_21 = arith.constant 3.200000e+01 : f32
    %81 = vector.broadcast %cst_21 : f32 to vector<16x1xf32>
    %82 = arith.divf %80, %81 : vector<16x1xf32>
    %83 = vector.broadcast %82 : vector<16x1xf32> to vector<16x32xf32>
    %84 = arith.subf %76, %83 : vector<16x32xf32>
    %85 = arith.mulf %84, %84 : vector<16x32xf32>
    %cst_22 = arith.constant dense<0.000000e+00> : vector<16xf32>
    %86 = vector.multi_reduction <add>, %85, %cst_22 [1] : vector<16x32xf32> to vector<16xf32>
    %87 = vector.shape_cast %86 : vector<16xf32> to vector<16x1xf32>
    %cst_23 = arith.constant 3.200000e+01 : f32
    %88 = vector.broadcast %cst_23 : f32 to vector<16x1xf32>
    %89 = arith.divf %87, %88 : vector<16x1xf32>
    %90 = vector.broadcast %82 : vector<16x1xf32> to vector<16x32xf32>
    %91 = arith.subf %76, %90 : vector<16x32xf32>
    %cst_24 = arith.constant 9.99999974E-6 : f32
    %92 = vector.broadcast %cst_24 : f32 to vector<16x1xf32>
    %93 = arith.addf %89, %92 : vector<16x1xf32>
    %94 = math.rsqrt %93 : vector<16x1xf32>
    %95 = vector.broadcast %94 : vector<16x1xf32> to vector<16x32xf32>
    %96 = arith.mulf %91, %95 : vector<16x32xf32>
    %97 = vector.broadcast %77 : vector<1x32xf32> to vector<16x32xf32>
    %98 = arith.mulf %96, %97 : vector<16x32xf32>
    %99 = vector.broadcast %78 : vector<1x32xf32> to vector<16x32xf32>
    %100 = arith.addf %98, %99 : vector<16x32xf32>
    %101 = arith.truncf %100 : vector<16x32xf32> to vector<16x32xbf16>
    %c0_25 = arith.constant 0 : index
    %c0_26 = arith.constant 0 : index
    %102 = vector.load %arg3[%c0_25, %c0_26] : memref<864x128xbf16, #tpu.memory_space<vmem>>, vector<32x32xbf16>
    %cst_27 = arith.constant dense<0.000000e+00> : vector<16x32xf32>
    %103 = tpu.matmul %101, %102, %cst_27 {dimension_numbers = #tpu.dot_dimension_numbers<[1], [0], [0], [1], [0, 0, 1, 1], [], []>} : vector<16x32xbf16>, vector<32x32xbf16>, vector<16x32xf32> -> vector<16x32xf32>
    %c259 = arith.constant 259 : index
    %c0_28 = arith.constant 0 : index
    %104 = vector.load %arg4[%c259, %c0_28] : memref<320x128xf32, #tpu.memory_space<vmem>>, vector<1x32xf32>
    %105 = vector.broadcast %104 : vector<1x32xf32> to vector<16x32xf32>
    %106 = arith.addf %103, %105 : vector<16x32xf32>
    %107 = vector.broadcast %13 : vector<16x1xf32> to vector<16x32xf32>
    %108 = arith.mulf %106, %107 : vector<16x32xf32>
    %c2_i32_29 = arith.constant 2 : i32
    %109 = vector.broadcast %c2_i32_29 : i32 to vector<16x1xi32>
    %110 = arith.cmpi sge, %4, %109 : vector<16x1xi32>
    %111 = arith.extui %110 : vector<16x1xi1> to vector<16x1xi32>
    %112 = arith.sitofp %111 : vector<16x1xi32> to vector<16x1xf32>
    %c1_i32_30 = arith.constant 1 : i32
    %113 = vector.broadcast %c1_i32_30 : i32 to vector<16x1xi32>
    %114 = arith.cmpi sge, %4, %113 : vector<16x1xi32>
    %115 = arith.extui %114 : vector<16x1xi1> to vector<16x1xi32>
    %116 = arith.sitofp %115 : vector<16x1xi32> to vector<16x1xf32>
    %c15_i32 = arith.constant 15 : i32
    %117 = vector.broadcast %c15_i32 : i32 to vector<16x1xi32>
    %118 = arith.cmpi slt, %4, %117 : vector<16x1xi32>
    %119 = arith.extui %118 : vector<16x1xi1> to vector<16x1xi32>
    %120 = arith.sitofp %119 : vector<16x1xi32> to vector<16x1xf32>
    %c14_i32 = arith.constant 14 : i32
    %121 = vector.broadcast %c14_i32 : i32 to vector<16x1xi32>
    %122 = arith.cmpi slt, %4, %121 : vector<16x1xi32>
    %123 = arith.extui %122 : vector<16x1xi1> to vector<16x1xi32>
    %124 = arith.sitofp %123 : vector<16x1xi32> to vector<16x1xf32>
    %c260 = arith.constant 260 : index
    %c0_31 = arith.constant 0 : index
    %125 = vector.load %arg4[%c260, %c0_31] : memref<320x128xf32, #tpu.memory_space<vmem>>, vector<1x32xf32>
    %c261 = arith.constant 261 : index
    %c0_32 = arith.constant 0 : index
    %126 = vector.load %arg4[%c261, %c0_32] : memref<320x128xf32, #tpu.memory_space<vmem>>, vector<1x32xf32>
    %cst_33 = arith.constant dense<0.000000e+00> : vector<16xf32>
    %127 = vector.multi_reduction <add>, %108, %cst_33 [1] : vector<16x32xf32> to vector<16xf32>
    %128 = vector.shape_cast %127 : vector<16xf32> to vector<16x1xf32>
    %cst_34 = arith.constant 3.200000e+01 : f32
    %129 = vector.broadcast %cst_34 : f32 to vector<16x1xf32>
    %130 = arith.divf %128, %129 : vector<16x1xf32>
    %131 = vector.broadcast %130 : vector<16x1xf32> to vector<16x32xf32>
    %132 = arith.subf %108, %131 : vector<16x32xf32>
    %133 = arith.mulf %132, %132 : vector<16x32xf32>
    %cst_35 = arith.constant dense<0.000000e+00> : vector<16xf32>
    %134 = vector.multi_reduction <add>, %133, %cst_35 [1] : vector<16x32xf32> to vector<16xf32>
    %135 = vector.shape_cast %134 : vector<16xf32> to vector<16x1xf32>
    %cst_36 = arith.constant 3.200000e+01 : f32
    %136 = vector.broadcast %cst_36 : f32 to vector<16x1xf32>
    %137 = arith.divf %135, %136 : vector<16x1xf32>
    %138 = vector.broadcast %130 : vector<16x1xf32> to vector<16x32xf32>
    %139 = arith.subf %108, %138 : vector<16x32xf32>
    %cst_37 = arith.constant 9.99999974E-6 : f32
    %140 = vector.broadcast %cst_37 : f32 to vector<16x1xf32>
    %141 = arith.addf %137, %140 : vector<16x1xf32>
    %142 = math.rsqrt %141 : vector<16x1xf32>
    %143 = vector.broadcast %142 : vector<16x1xf32> to vector<16x32xf32>
    %144 = arith.mulf %139, %143 : vector<16x32xf32>
    %145 = vector.broadcast %125 : vector<1x32xf32> to vector<16x32xf32>
    %146 = arith.mulf %144, %145 : vector<16x32xf32>
    %147 = vector.broadcast %126 : vector<1x32xf32> to vector<16x32xf32>
    %148 = arith.addf %146, %147 : vector<16x32xf32>
    %149 = arith.truncf %148 : vector<16x32xf32> to vector<16x32xbf16>
    %c32 = arith.constant 32 : index
    %c0_38 = arith.constant 0 : index
    %150 = vector.load %arg3[%c32, %c0_38] : memref<864x128xbf16, #tpu.memory_space<vmem>>, vector<32x64xbf16>
    %cst_39 = arith.constant dense<0.000000e+00> : vector<16x64xf32>
    %151 = tpu.matmul %149, %150, %cst_39 {dimension_numbers = #tpu.dot_dimension_numbers<[1], [0], [0], [1], [0, 0, 1, 1], [], []>} : vector<16x32xbf16>, vector<32x64xbf16>, vector<16x64xf32> -> vector<16x64xf32>
    %c262 = arith.constant 262 : index
    %c0_40 = arith.constant 0 : index
    %152 = vector.load %arg4[%c262, %c0_40] : memref<320x128xf32, #tpu.memory_space<vmem>>, vector<1x64xf32>
    %153 = vector.broadcast %152 : vector<1x64xf32> to vector<16x64xf32>
    %154 = arith.addf %151, %153 : vector<16x64xf32>
    %155 = arith.negf %154 : vector<16x64xf32>
    %156 = math.exp %155 : vector<16x64xf32>
    %cst_41 = arith.constant 1.000000e+00 : f32
    %157 = vector.broadcast %cst_41 : f32 to vector<16x64xf32>
    %158 = arith.addf %157, %156 : vector<16x64xf32>
    %159 = arith.divf %157, %158 : vector<16x64xf32>
    %160 = arith.mulf %154, %159 : vector<16x64xf32>
    %161 = arith.truncf %160 : vector<16x64xf32> to vector<16x64xbf16>
    %c64 = arith.constant 64 : index
    %c0_42 = arith.constant 0 : index
    %162 = vector.load %arg3[%c64, %c0_42] : memref<864x128xbf16, #tpu.memory_space<vmem>>, vector<64x32xbf16>
    %cst_43 = arith.constant dense<0.000000e+00> : vector<16x32xf32>
    %163 = tpu.matmul %161, %162, %cst_43 {dimension_numbers = #tpu.dot_dimension_numbers<[1], [0], [0], [1], [0, 0, 1, 1], [], []>} : vector<16x64xbf16>, vector<64x32xbf16>, vector<16x32xf32> -> vector<16x32xf32>
    %c263 = arith.constant 263 : index
    %c0_44 = arith.constant 0 : index
    %164 = vector.load %arg4[%c263, %c0_44] : memref<320x128xf32, #tpu.memory_space<vmem>>, vector<1x32xf32>
    %165 = vector.broadcast %164 : vector<1x32xf32> to vector<16x32xf32>
    %166 = arith.addf %163, %165 : vector<16x32xf32>
    %167 = arith.addf %108, %166 : vector<16x32xf32>
    %c264 = arith.constant 264 : index
    %c0_45 = arith.constant 0 : index
    %168 = vector.load %arg4[%c264, %c0_45] : memref<320x128xf32, #tpu.memory_space<vmem>>, vector<1x32xf32>
    %c265 = arith.constant 265 : index
    %c0_46 = arith.constant 0 : index
    %169 = vector.load %arg4[%c265, %c0_46] : memref<320x128xf32, #tpu.memory_space<vmem>>, vector<1x32xf32>
    %cst_47 = arith.constant dense<0.000000e+00> : vector<16xf32>
    %170 = vector.multi_reduction <add>, %167, %cst_47 [1] : vector<16x32xf32> to vector<16xf32>
    %171 = vector.shape_cast %170 : vector<16xf32> to vector<16x1xf32>
    %cst_48 = arith.constant 3.200000e+01 : f32
    %172 = vector.broadcast %cst_48 : f32 to vector<16x1xf32>
    %173 = arith.divf %171, %172 : vector<16x1xf32>
    %174 = vector.broadcast %173 : vector<16x1xf32> to vector<16x32xf32>
    %175 = arith.subf %167, %174 : vector<16x32xf32>
    %176 = arith.mulf %175, %175 : vector<16x32xf32>
    %cst_49 = arith.constant dense<0.000000e+00> : vector<16xf32>
    %177 = vector.multi_reduction <add>, %176, %cst_49 [1] : vector<16x32xf32> to vector<16xf32>
    %178 = vector.shape_cast %177 : vector<16xf32> to vector<16x1xf32>
    %cst_50 = arith.constant 3.200000e+01 : f32
    %179 = vector.broadcast %cst_50 : f32 to vector<16x1xf32>
    %180 = arith.divf %178, %179 : vector<16x1xf32>
    %181 = vector.broadcast %173 : vector<16x1xf32> to vector<16x32xf32>
    %182 = arith.subf %167, %181 : vector<16x32xf32>
    %cst_51 = arith.constant 9.99999974E-6 : f32
    %183 = vector.broadcast %cst_51 : f32 to vector<16x1xf32>
    %184 = arith.addf %180, %183 : vector<16x1xf32>
    %185 = math.rsqrt %184 : vector<16x1xf32>
    %186 = vector.broadcast %185 : vector<16x1xf32> to vector<16x32xf32>
    %187 = arith.mulf %182, %186 : vector<16x32xf32>
    %188 = vector.broadcast %168 : vector<1x32xf32> to vector<16x32xf32>
    %189 = arith.mulf %187, %188 : vector<16x32xf32>
    %190 = vector.broadcast %169 : vector<1x32xf32> to vector<16x32xf32>
    %191 = arith.addf %189, %190 : vector<16x32xf32>
    %192 = arith.truncf %191 : vector<16x32xf32> to vector<16x32xbf16>
    %c266 = arith.constant 266 : index
    %c0_52 = arith.constant 0 : index
    %193 = vector.load %arg4[%c266, %c0_52] : memref<320x128xf32, #tpu.memory_space<vmem>>, vector<1x32xf32>
    %c267 = arith.constant 267 : index
    %c0_53 = arith.constant 0 : index
    %194 = vector.load %arg4[%c267, %c0_53] : memref<320x128xf32, #tpu.memory_space<vmem>>, vector<1x32xf32>
    %c268 = arith.constant 268 : index
    %c0_54 = arith.constant 0 : index
    %195 = vector.load %arg4[%c268, %c0_54] : memref<320x128xf32, #tpu.memory_space<vmem>>, vector<1x32xf32>
    %c128_55 = arith.constant 128 : index
    %c0_56 = arith.constant 0 : index
    %196 = vector.load %arg3[%c128_55, %c0_56] : memref<864x128xbf16, #tpu.memory_space<vmem>>, vector<8x32xbf16>
    %cst_57 = arith.constant dense<0.000000e+00> : vector<16x8xf32>
    %197 = tpu.matmul %192, %196, %cst_57 {dimension_numbers = #tpu.dot_dimension_numbers<[1], [1], [0], [0], [0, 0, 1, 0], [], []>} : vector<16x32xbf16>, vector<8x32xbf16>, vector<16x8xf32> -> vector<16x8xf32>
    %198 = vector.extract_strided_slice %193 {offsets = [0, 0], sizes = [1, 8], strides = [1, 1]} : vector<1x32xf32> to vector<1x8xf32>
    %199 = vector.broadcast %198 : vector<1x8xf32> to vector<16x8xf32>
    %200 = arith.addf %197, %199 : vector<16x8xf32>
    %c160 = arith.constant 160 : index
    %c0_58 = arith.constant 0 : index
    %201 = vector.load %arg3[%c160, %c0_58] : memref<864x128xbf16, #tpu.memory_space<vmem>>, vector<8x32xbf16>
    %cst_59 = arith.constant dense<0.000000e+00> : vector<16x8xf32>
    %202 = tpu.matmul %192, %201, %cst_59 {dimension_numbers = #tpu.dot_dimension_numbers<[1], [1], [0], [0], [0, 0, 1, 0], [], []>} : vector<16x32xbf16>, vector<8x32xbf16>, vector<16x8xf32> -> vector<16x8xf32>
    %203 = vector.extract_strided_slice %194 {offsets = [0, 0], sizes = [1, 8], strides = [1, 1]} : vector<1x32xf32> to vector<1x8xf32>
    %204 = vector.broadcast %203 : vector<1x8xf32> to vector<16x8xf32>
    %205 = arith.addf %202, %204 : vector<16x8xf32>
    %c192 = arith.constant 192 : index
    %c0_60 = arith.constant 0 : index
    %206 = vector.load %arg3[%c192, %c0_60] : memref<864x128xbf16, #tpu.memory_space<vmem>>, vector<8x32xbf16>
    %cst_61 = arith.constant dense<0.000000e+00> : vector<16x8xf32>
    %207 = tpu.matmul %192, %206, %cst_61 {dimension_numbers = #tpu.dot_dimension_numbers<[1], [1], [0], [0], [0, 0, 1, 0], [], []>} : vector<16x32xbf16>, vector<8x32xbf16>, vector<16x8xf32> -> vector<16x8xf32>
    %208 = vector.extract_strided_slice %195 {offsets = [0, 0], sizes = [1, 8], strides = [1, 1]} : vector<1x32xf32> to vector<1x8xf32>
    %209 = vector.broadcast %208 : vector<1x8xf32> to vector<16x8xf32>
    %210 = arith.addf %207, %209 : vector<16x8xf32>
    %c136 = arith.constant 136 : index
    %c0_62 = arith.constant 0 : index
    %211 = vector.load %arg3[%c136, %c0_62] : memref<864x128xbf16, #tpu.memory_space<vmem>>, vector<8x32xbf16>
    %cst_63 = arith.constant dense<0.000000e+00> : vector<16x8xf32>
    %212 = tpu.matmul %192, %211, %cst_63 {dimension_numbers = #tpu.dot_dimension_numbers<[1], [1], [0], [0], [0, 0, 1, 0], [], []>} : vector<16x32xbf16>, vector<8x32xbf16>, vector<16x8xf32> -> vector<16x8xf32>
    %213 = vector.extract_strided_slice %193 {offsets = [0, 8], sizes = [1, 8], strides = [1, 1]} : vector<1x32xf32> to vector<1x8xf32>
    %214 = vector.broadcast %213 : vector<1x8xf32> to vector<16x8xf32>
    %215 = arith.addf %212, %214 : vector<16x8xf32>
    %c168 = arith.constant 168 : index
    %c0_64 = arith.constant 0 : index
    %216 = vector.load %arg3[%c168, %c0_64] : memref<864x128xbf16, #tpu.memory_space<vmem>>, vector<8x32xbf16>
    %cst_65 = arith.constant dense<0.000000e+00> : vector<16x8xf32>
    %217 = tpu.matmul %192, %216, %cst_65 {dimension_numbers = #tpu.dot_dimension_numbers<[1], [1], [0], [0], [0, 0, 1, 0], [], []>} : vector<16x32xbf16>, vector<8x32xbf16>, vector<16x8xf32> -> vector<16x8xf32>
    %218 = vector.extract_strided_slice %194 {offsets = [0, 8], sizes = [1, 8], strides = [1, 1]} : vector<1x32xf32> to vector<1x8xf32>
    %219 = vector.broadcast %218 : vector<1x8xf32> to vector<16x8xf32>
    %220 = arith.addf %217, %219 : vector<16x8xf32>
    %c200 = arith.constant 200 : index
    %c0_66 = arith.constant 0 : index
    %221 = vector.load %arg3[%c200, %c0_66] : memref<864x128xbf16, #tpu.memory_space<vmem>>, vector<8x32xbf16>
    %cst_67 = arith.constant dense<0.000000e+00> : vector<16x8xf32>
    %222 = tpu.matmul %192, %221, %cst_67 {dimension_numbers = #tpu.dot_dimension_numbers<[1], [1], [0], [0], [0, 0, 1, 0], [], []>} : vector<16x32xbf16>, vector<8x32xbf16>, vector<16x8xf32> -> vector<16x8xf32>
    %223 = vector.extract_strided_slice %195 {offsets = [0, 8], sizes = [1, 8], strides = [1, 1]} : vector<1x32xf32> to vector<1x8xf32>
    %224 = vector.broadcast %223 : vector<1x8xf32> to vector<16x8xf32>
    %225 = arith.addf %222, %224 : vector<16x8xf32>
    %c144 = arith.constant 144 : index
    %c0_68 = arith.constant 0 : index
    %226 = vector.load %arg3[%c144, %c0_68] : memref<864x128xbf16, #tpu.memory_space<vmem>>, vector<8x32xbf16>
    %cst_69 = arith.constant dense<0.000000e+00> : vector<16x8xf32>
    %227 = tpu.matmul %192, %226, %cst_69 {dimension_numbers = #tpu.dot_dimension_numbers<[1], [1], [0], [0], [0, 0, 1, 0], [], []>} : vector<16x32xbf16>, vector<8x32xbf16>, vector<16x8xf32> -> vector<16x8xf32>
    %228 = vector.extract_strided_slice %193 {offsets = [0, 16], sizes = [1, 8], strides = [1, 1]} : vector<1x32xf32> to vector<1x8xf32>
    %229 = vector.broadcast %228 : vector<1x8xf32> to vector<16x8xf32>
    %230 = arith.addf %227, %229 : vector<16x8xf32>
    %c176 = arith.constant 176 : index
    %c0_70 = arith.constant 0 : index
    %231 = vector.load %arg3[%c176, %c0_70] : memref<864x128xbf16, #tpu.memory_space<vmem>>, vector<8x32xbf16>
    %cst_71 = arith.constant dense<0.000000e+00> : vector<16x8xf32>
    %232 = tpu.matmul %192, %231, %cst_71 {dimension_numbers = #tpu.dot_dimension_numbers<[1], [1], [0], [0], [0, 0, 1, 0], [], []>} : vector<16x32xbf16>, vector<8x32xbf16>, vector<16x8xf32> -> vector<16x8xf32>
    %233 = vector.extract_strided_slice %194 {offsets = [0, 16], sizes = [1, 8], strides = [1, 1]} : vector<1x32xf32> to vector<1x8xf32>
    %234 = vector.broadcast %233 : vector<1x8xf32> to vector<16x8xf32>
    %235 = arith.addf %232, %234 : vector<16x8xf32>
    %c208 = arith.constant 208 : index
    %c0_72 = arith.constant 0 : index
    %236 = vector.load %arg3[%c208, %c0_72] : memref<864x128xbf16, #tpu.memory_space<vmem>>, vector<8x32xbf16>
    %cst_73 = arith.constant dense<0.000000e+00> : vector<16x8xf32>
    %237 = tpu.matmul %192, %236, %cst_73 {dimension_numbers = #tpu.dot_dimension_numbers<[1], [1], [0], [0], [0, 0, 1, 0], [], []>} : vector<16x32xbf16>, vector<8x32xbf16>, vector<16x8xf32> -> vector<16x8xf32>
    %238 = vector.extract_strided_slice %195 {offsets = [0, 16], sizes = [1, 8], strides = [1, 1]} : vector<1x32xf32> to vector<1x8xf32>
    %239 = vector.broadcast %238 : vector<1x8xf32> to vector<16x8xf32>
    %240 = arith.addf %237, %239 : vector<16x8xf32>
    %c152 = arith.constant 152 : index
    %c0_74 = arith.constant 0 : index
    %241 = vector.load %arg3[%c152, %c0_74] : memref<864x128xbf16, #tpu.memory_space<vmem>>, vector<8x32xbf16>
    %cst_75 = arith.constant dense<0.000000e+00> : vector<16x8xf32>
    %242 = tpu.matmul %192, %241, %cst_75 {dimension_numbers = #tpu.dot_dimension_numbers<[1], [1], [0], [0], [0, 0, 1, 0], [], []>} : vector<16x32xbf16>, vector<8x32xbf16>, vector<16x8xf32> -> vector<16x8xf32>
    %243 = vector.extract_strided_slice %193 {offsets = [0, 24], sizes = [1, 8], strides = [1, 1]} : vector<1x32xf32> to vector<1x8xf32>
    %244 = vector.broadcast %243 : vector<1x8xf32> to vector<16x8xf32>
    %245 = arith.addf %242, %244 : vector<16x8xf32>
    %c184 = arith.constant 184 : index
    %c0_76 = arith.constant 0 : index
    %246 = vector.load %arg3[%c184, %c0_76] : memref<864x128xbf16, #tpu.memory_space<vmem>>, vector<8x32xbf16>
    %cst_77 = arith.constant dense<0.000000e+00> : vector<16x8xf32>
    %247 = tpu.matmul %192, %246, %cst_77 {dimension_numbers = #tpu.dot_dimension_numbers<[1], [1], [0], [0], [0, 0, 1, 0], [], []>} : vector<16x32xbf16>, vector<8x32xbf16>, vector<16x8xf32> -> vector<16x8xf32>
    %248 = vector.extract_strided_slice %194 {offsets = [0, 24], sizes = [1, 8], strides = [1, 1]} : vector<1x32xf32> to vector<1x8xf32>
    %249 = vector.broadcast %248 : vector<1x8xf32> to vector<16x8xf32>
    %250 = arith.addf %247, %249 : vector<16x8xf32>
    %c216 = arith.constant 216 : index
    %c0_78 = arith.constant 0 : index
    %251 = vector.load %arg3[%c216, %c0_78] : memref<864x128xbf16, #tpu.memory_space<vmem>>, vector<8x32xbf16>
    %cst_79 = arith.constant dense<0.000000e+00> : vector<16x8xf32>
    %252 = tpu.matmul %192, %251, %cst_79 {dimension_numbers = #tpu.dot_dimension_numbers<[1], [1], [0], [0], [0, 0, 1, 0], [], []>} : vector<16x32xbf16>, vector<8x32xbf16>, vector<16x8xf32> -> vector<16x8xf32>
    %253 = vector.extract_strided_slice %195 {offsets = [0, 24], sizes = [1, 8], strides = [1, 1]} : vector<1x32xf32> to vector<1x8xf32>
    %254 = vector.broadcast %253 : vector<1x8xf32> to vector<16x8xf32>
    %255 = arith.addf %252, %254 : vector<16x8xf32>
    %256 = arith.truncf %200 : vector<16x8xf32> to vector<16x8xbf16>
    %257 = arith.truncf %205 : vector<16x8xf32> to vector<16x8xbf16>
    %cst_80 = arith.constant dense<0.000000e+00> : vector<16x16xf32>
    %258 = tpu.matmul %256, %257, %cst_80 {dimension_numbers = #tpu.dot_dimension_numbers<[1], [1], [0], [0], [0, 0, 1, 0], [], []>} : vector<16x8xbf16>, vector<16x8xbf16>, vector<16x16xf32> -> vector<16x16xf32>
    %259 = vector.broadcast %22 : vector<1x16xf32> to vector<16x16xf32>
    %260 = arith.addf %258, %259 : vector<16x16xf32>
    %261 = arith.truncf %215 : vector<16x8xf32> to vector<16x8xbf16>
    %262 = arith.truncf %220 : vector<16x8xf32> to vector<16x8xbf16>
    %cst_81 = arith.constant dense<0.000000e+00> : vector<16x16xf32>
    %263 = tpu.matmul %261, %262, %cst_81 {dimension_numbers = #tpu.dot_dimension_numbers<[1], [1], [0], [0], [0, 0, 1, 0], [], []>} : vector<16x8xbf16>, vector<16x8xbf16>, vector<16x16xf32> -> vector<16x16xf32>
    %264 = vector.broadcast %22 : vector<1x16xf32> to vector<16x16xf32>
    %265 = arith.addf %263, %264 : vector<16x16xf32>
    %266 = arith.truncf %230 : vector<16x8xf32> to vector<16x8xbf16>
    %267 = arith.truncf %235 : vector<16x8xf32> to vector<16x8xbf16>
    %cst_82 = arith.constant dense<0.000000e+00> : vector<16x16xf32>
    %268 = tpu.matmul %266, %267, %cst_82 {dimension_numbers = #tpu.dot_dimension_numbers<[1], [1], [0], [0], [0, 0, 1, 0], [], []>} : vector<16x8xbf16>, vector<16x8xbf16>, vector<16x16xf32> -> vector<16x16xf32>
    %269 = vector.broadcast %22 : vector<1x16xf32> to vector<16x16xf32>
    %270 = arith.addf %268, %269 : vector<16x16xf32>
    %271 = arith.truncf %245 : vector<16x8xf32> to vector<16x8xbf16>
    %272 = arith.truncf %250 : vector<16x8xf32> to vector<16x8xbf16>
    %cst_83 = arith.constant dense<0.000000e+00> : vector<16x16xf32>
    %273 = tpu.matmul %271, %272, %cst_83 {dimension_numbers = #tpu.dot_dimension_numbers<[1], [1], [0], [0], [0, 0, 1, 0], [], []>} : vector<16x8xbf16>, vector<16x8xbf16>, vector<16x16xf32> -> vector<16x16xf32>
    %274 = vector.broadcast %22 : vector<1x16xf32> to vector<16x16xf32>
    %275 = arith.addf %273, %274 : vector<16x16xf32>
    %cst_84 = arith.constant dense<0xFF800000> : vector<16xf32>
    %276 = vector.multi_reduction <maximumf>, %260, %cst_84 [1] : vector<16x16xf32> to vector<16xf32>
    %277 = vector.shape_cast %276 : vector<16xf32> to vector<16x1xf32>
    %278 = vector.broadcast %277 : vector<16x1xf32> to vector<16x16xf32>
    %279 = arith.subf %260, %278 : vector<16x16xf32>
    %280 = math.exp %279 : vector<16x16xf32>
    %cst_85 = arith.constant dense<0.000000e+00> : vector<16xf32>
    %281 = vector.multi_reduction <add>, %280, %cst_85 [1] : vector<16x16xf32> to vector<16xf32>
    %282 = vector.shape_cast %281 : vector<16xf32> to vector<16x1xf32>
    %283 = tpu.reciprocal %282 {approx = true} : vector<16x1xf32> -> vector<16x1xf32>
    %284 = vector.broadcast %283 : vector<16x1xf32> to vector<16x16xf32>
    %285 = arith.mulf %280, %284 : vector<16x16xf32>
    %cst_86 = arith.constant dense<0xFF800000> : vector<16xf32>
    %286 = vector.multi_reduction <maximumf>, %265, %cst_86 [1] : vector<16x16xf32> to vector<16xf32>
    %287 = vector.shape_cast %286 : vector<16xf32> to vector<16x1xf32>
    %288 = vector.broadcast %287 : vector<16x1xf32> to vector<16x16xf32>
    %289 = arith.subf %265, %288 : vector<16x16xf32>
    %290 = math.exp %289 : vector<16x16xf32>
    %cst_87 = arith.constant dense<0.000000e+00> : vector<16xf32>
    %291 = vector.multi_reduction <add>, %290, %cst_87 [1] : vector<16x16xf32> to vector<16xf32>
    %292 = vector.shape_cast %291 : vector<16xf32> to vector<16x1xf32>
    %293 = tpu.reciprocal %292 {approx = true} : vector<16x1xf32> -> vector<16x1xf32>
    %294 = vector.broadcast %293 : vector<16x1xf32> to vector<16x16xf32>
    %295 = arith.mulf %290, %294 : vector<16x16xf32>
    %cst_88 = arith.constant dense<0xFF800000> : vector<16xf32>
    %296 = vector.multi_reduction <maximumf>, %270, %cst_88 [1] : vector<16x16xf32> to vector<16xf32>
    %297 = vector.shape_cast %296 : vector<16xf32> to vector<16x1xf32>
    %298 = vector.broadcast %297 : vector<16x1xf32> to vector<16x16xf32>
    %299 = arith.subf %270, %298 : vector<16x16xf32>
    %300 = math.exp %299 : vector<16x16xf32>
    %cst_89 = arith.constant dense<0.000000e+00> : vector<16xf32>
    %301 = vector.multi_reduction <add>, %300, %cst_89 [1] : vector<16x16xf32> to vector<16xf32>
    %302 = vector.shape_cast %301 : vector<16xf32> to vector<16x1xf32>
    %303 = tpu.reciprocal %302 {approx = true} : vector<16x1xf32> -> vector<16x1xf32>
    %304 = vector.broadcast %303 : vector<16x1xf32> to vector<16x16xf32>
    %305 = arith.mulf %300, %304 : vector<16x16xf32>
    %cst_90 = arith.constant dense<0xFF800000> : vector<16xf32>
    %306 = vector.multi_reduction <maximumf>, %275, %cst_90 [1] : vector<16x16xf32> to vector<16xf32>
    %307 = vector.shape_cast %306 : vector<16xf32> to vector<16x1xf32>
    %308 = vector.broadcast %307 : vector<16x1xf32> to vector<16x16xf32>
    %309 = arith.subf %275, %308 : vector<16x16xf32>
    %310 = math.exp %309 : vector<16x16xf32>
    %cst_91 = arith.constant dense<0.000000e+00> : vector<16xf32>
    %311 = vector.multi_reduction <add>, %310, %cst_91 [1] : vector<16x16xf32> to vector<16xf32>
    %312 = vector.shape_cast %311 : vector<16xf32> to vector<16x1xf32>
    %313 = tpu.reciprocal %312 {approx = true} : vector<16x1xf32> -> vector<16x1xf32>
    %314 = vector.broadcast %313 : vector<16x1xf32> to vector<16x16xf32>
    %315 = arith.mulf %310, %314 : vector<16x16xf32>
    %316 = arith.truncf %285 : vector<16x16xf32> to vector<16x16xbf16>
    %317 = arith.truncf %210 : vector<16x8xf32> to vector<16x8xbf16>
    %cst_92 = arith.constant dense<0.000000e+00> : vector<16x8xf32>
    %318 = tpu.matmul %316, %317, %cst_92 {dimension_numbers = #tpu.dot_dimension_numbers<[1], [0], [0], [1], [0, 0, 1, 1], [], []>} : vector<16x16xbf16>, vector<16x8xbf16>, vector<16x8xf32> -> vector<16x8xf32>
    %319 = arith.truncf %318 : vector<16x8xf32> to vector<16x8xbf16>
    %c224 = arith.constant 224 : index
    %c0_93 = arith.constant 0 : index
    %320 = vector.load %arg3[%c224, %c0_93] : memref<864x128xbf16, #tpu.memory_space<vmem>>, vector<8x32xbf16>
    %cst_94 = arith.constant dense<0.000000e+00> : vector<16x32xf32>
    %321 = tpu.matmul %319, %320, %cst_94 {dimension_numbers = #tpu.dot_dimension_numbers<[1], [0], [0], [1], [0, 0, 1, 1], [], []>} : vector<16x8xbf16>, vector<8x32xbf16>, vector<16x32xf32> -> vector<16x32xf32>
    %322 = arith.truncf %295 : vector<16x16xf32> to vector<16x16xbf16>
    %323 = arith.truncf %225 : vector<16x8xf32> to vector<16x8xbf16>
    %cst_95 = arith.constant dense<0.000000e+00> : vector<16x8xf32>
    %324 = tpu.matmul %322, %323, %cst_95 {dimension_numbers = #tpu.dot_dimension_numbers<[1], [0], [0], [1], [0, 0, 1, 1], [], []>} : vector<16x16xbf16>, vector<16x8xbf16>, vector<16x8xf32> -> vector<16x8xf32>
    %325 = arith.truncf %324 : vector<16x8xf32> to vector<16x8xbf16>
    %c232 = arith.constant 232 : index
    %c0_96 = arith.constant 0 : index
    %326 = vector.load %arg3[%c232, %c0_96] : memref<864x128xbf16, #tpu.memory_space<vmem>>, vector<8x32xbf16>
    %cst_97 = arith.constant dense<0.000000e+00> : vector<16x32xf32>
    %327 = tpu.matmul %325, %326, %cst_97 {dimension_numbers = #tpu.dot_dimension_numbers<[1], [0], [0], [1], [0, 0, 1, 1], [], []>} : vector<16x8xbf16>, vector<8x32xbf16>, vector<16x32xf32> -> vector<16x32xf32>
    %328 = arith.addf %321, %327 : vector<16x32xf32>
    %329 = arith.truncf %305 : vector<16x16xf32> to vector<16x16xbf16>
    %330 = arith.truncf %240 : vector<16x8xf32> to vector<16x8xbf16>
    %cst_98 = arith.constant dense<0.000000e+00> : vector<16x8xf32>
    %331 = tpu.matmul %329, %330, %cst_98 {dimension_numbers = #tpu.dot_dimension_numbers<[1], [0], [0], [1], [0, 0, 1, 1], [], []>} : vector<16x16xbf16>, vector<16x8xbf16>, vector<16x8xf32> -> vector<16x8xf32>
    %332 = arith.truncf %331 : vector<16x8xf32> to vector<16x8xbf16>
    %c240 = arith.constant 240 : index
    %c0_99 = arith.constant 0 : index
    %333 = vector.load %arg3[%c240, %c0_99] : memref<864x128xbf16, #tpu.memory_space<vmem>>, vector<8x32xbf16>
    %cst_100 = arith.constant dense<0.000000e+00> : vector<16x32xf32>
    %334 = tpu.matmul %332, %333, %cst_100 {dimension_numbers = #tpu.dot_dimension_numbers<[1], [0], [0], [1], [0, 0, 1, 1], [], []>} : vector<16x8xbf16>, vector<8x32xbf16>, vector<16x32xf32> -> vector<16x32xf32>
    %335 = arith.addf %328, %334 : vector<16x32xf32>
    %336 = arith.truncf %315 : vector<16x16xf32> to vector<16x16xbf16>
    %337 = arith.truncf %255 : vector<16x8xf32> to vector<16x8xbf16>
    %cst_101 = arith.constant dense<0.000000e+00> : vector<16x8xf32>
    %338 = tpu.matmul %336, %337, %cst_101 {dimension_numbers = #tpu.dot_dimension_numbers<[1], [0], [0], [1], [0, 0, 1, 1], [], []>} : vector<16x16xbf16>, vector<16x8xbf16>, vector<16x8xf32> -> vector<16x8xf32>
    %339 = arith.truncf %338 : vector<16x8xf32> to vector<16x8xbf16>
    %c248 = arith.constant 248 : index
    %c0_102 = arith.constant 0 : index
    %340 = vector.load %arg3[%c248, %c0_102] : memref<864x128xbf16, #tpu.memory_space<vmem>>, vector<8x32xbf16>
    %cst_103 = arith.constant dense<0.000000e+00> : vector<16x32xf32>
    %341 = tpu.matmul %339, %340, %cst_103 {dimension_numbers = #tpu.dot_dimension_numbers<[1], [0], [0], [1], [0, 0, 1, 1], [], []>} : vector<16x8xbf16>, vector<8x32xbf16>, vector<16x32xf32> -> vector<16x32xf32>
    %342 = arith.addf %335, %341 : vector<16x32xf32>
    %343 = arith.addf %167, %342 : vector<16x32xf32>
    %c269 = arith.constant 269 : index
    %c0_104 = arith.constant 0 : index
    %344 = vector.load %arg4[%c269, %c0_104] : memref<320x128xf32, #tpu.memory_space<vmem>>, vector<1x32xf32>
    %345 = vector.broadcast %344 : vector<1x32xf32> to vector<16x32xf32>
    %346 = arith.addf %343, %345 : vector<16x32xf32>
    %c270 = arith.constant 270 : index
    %c0_105 = arith.constant 0 : index
    %347 = vector.load %arg4[%c270, %c0_105] : memref<320x128xf32, #tpu.memory_space<vmem>>, vector<1x32xf32>
    %c271 = arith.constant 271 : index
    %c0_106 = arith.constant 0 : index
    %348 = vector.load %arg4[%c271, %c0_106] : memref<320x128xf32, #tpu.memory_space<vmem>>, vector<1x32xf32>
    %cst_107 = arith.constant dense<0.000000e+00> : vector<16xf32>
    %349 = vector.multi_reduction <add>, %346, %cst_107 [1] : vector<16x32xf32> to vector<16xf32>
    %350 = vector.shape_cast %349 : vector<16xf32> to vector<16x1xf32>
    %cst_108 = arith.constant 3.200000e+01 : f32
    %351 = vector.broadcast %cst_108 : f32 to vector<16x1xf32>
    %352 = arith.divf %350, %351 : vector<16x1xf32>
    %353 = vector.broadcast %352 : vector<16x1xf32> to vector<16x32xf32>
    %354 = arith.subf %346, %353 : vector<16x32xf32>
    %355 = arith.mulf %354, %354 : vector<16x32xf32>
    %cst_109 = arith.constant dense<0.000000e+00> : vector<16xf32>
    %356 = vector.multi_reduction <add>, %355, %cst_109 [1] : vector<16x32xf32> to vector<16xf32>
    %357 = vector.shape_cast %356 : vector<16xf32> to vector<16x1xf32>
    %cst_110 = arith.constant 3.200000e+01 : f32
    %358 = vector.broadcast %cst_110 : f32 to vector<16x1xf32>
    %359 = arith.divf %357, %358 : vector<16x1xf32>
    %360 = vector.broadcast %352 : vector<16x1xf32> to vector<16x32xf32>
    %361 = arith.subf %346, %360 : vector<16x32xf32>
    %cst_111 = arith.constant 9.99999974E-6 : f32
    %362 = vector.broadcast %cst_111 : f32 to vector<16x1xf32>
    %363 = arith.addf %359, %362 : vector<16x1xf32>
    %364 = math.rsqrt %363 : vector<16x1xf32>
    %365 = vector.broadcast %364 : vector<16x1xf32> to vector<16x32xf32>
    %366 = arith.mulf %361, %365 : vector<16x32xf32>
    %367 = vector.broadcast %347 : vector<1x32xf32> to vector<16x32xf32>
    %368 = arith.mulf %366, %367 : vector<16x32xf32>
    %369 = vector.broadcast %348 : vector<1x32xf32> to vector<16x32xf32>
    %370 = arith.addf %368, %369 : vector<16x32xf32>
    %371 = arith.truncf %370 : vector<16x32xf32> to vector<16x32xbf16>
    %c256_112 = arith.constant 256 : index
    %c0_113 = arith.constant 0 : index
    %372 = vector.load %arg3[%c256_112, %c0_113] : memref<864x128xbf16, #tpu.memory_space<vmem>>, vector<32x32xbf16>
    %cst_114 = arith.constant dense<0.000000e+00> : vector<16x32xf32>
    %373 = tpu.matmul %371, %372, %cst_114 {dimension_numbers = #tpu.dot_dimension_numbers<[1], [0], [0], [1], [0, 0, 1, 1], [], []>} : vector<16x32xbf16>, vector<32x32xbf16>, vector<16x32xf32> -> vector<16x32xf32>
    %c272 = arith.constant 272 : index
    %c0_115 = arith.constant 0 : index
    %374 = vector.load %arg4[%c272, %c0_115] : memref<320x128xf32, #tpu.memory_space<vmem>>, vector<1x32xf32>
    %375 = vector.broadcast %374 : vector<1x32xf32> to vector<16x32xf32>
    %376 = arith.addf %373, %375 : vector<16x32xf32>
    %c288 = arith.constant 288 : index
    %c0_116 = arith.constant 0 : index
    %377 = vector.load %arg3[%c288, %c0_116] : memref<864x128xbf16, #tpu.memory_space<vmem>>, vector<32x32xbf16>
    %cst_117 = arith.constant dense<0.000000e+00> : vector<16x32xf32>
    %378 = tpu.matmul %371, %377, %cst_117 {dimension_numbers = #tpu.dot_dimension_numbers<[1], [0], [0], [1], [0, 0, 1, 1], [], []>} : vector<16x32xbf16>, vector<32x32xbf16>, vector<16x32xf32> -> vector<16x32xf32>
    %c273 = arith.constant 273 : index
    %c0_118 = arith.constant 0 : index
    %379 = vector.load %arg4[%c273, %c0_118] : memref<320x128xf32, #tpu.memory_space<vmem>>, vector<1x32xf32>
    %380 = vector.broadcast %379 : vector<1x32xf32> to vector<16x32xf32>
    %381 = arith.addf %378, %380 : vector<16x32xf32>
    %382 = arith.negf %381 : vector<16x32xf32>
    %383 = math.exp %382 : vector<16x32xf32>
    %cst_119 = arith.constant 1.000000e+00 : f32
    %384 = vector.broadcast %cst_119 : f32 to vector<16x32xf32>
    %385 = arith.addf %384, %383 : vector<16x32xf32>
    %386 = arith.divf %384, %385 : vector<16x32xf32>
    %387 = arith.mulf %376, %386 : vector<16x32xf32>
    %388 = vector.broadcast %13 : vector<16x1xf32> to vector<16x32xf32>
    %389 = arith.mulf %387, %388 : vector<16x32xf32>
    %c274 = arith.constant 274 : index
    %c0_120 = arith.constant 0 : index
    %390 = vector.load %arg4[%c274, %c0_120] : memref<320x128xf32, #tpu.memory_space<vmem>>, vector<5x32xf32>
    %391 = vector.extract_strided_slice %390 {offsets = [2, 0], sizes = [1, 32], strides = [1, 1]} : vector<5x32xf32> to vector<1x32xf32>
    %392 = vector.broadcast %391 : vector<1x32xf32> to vector<16x32xf32>
    %393 = arith.mulf %389, %392 : vector<16x32xf32>
    %c2_i32_121 = arith.constant 2 : i32
    %394 = tpu.dynamic_rotate %389 by %c2_i32_121 dim 0 : vector<16x32xf32>, i32 -> vector<16x32xf32>
    %395 = vector.broadcast %112 : vector<16x1xf32> to vector<16x32xf32>
    %396 = arith.mulf %394, %395 : vector<16x32xf32>
    %397 = vector.extract_strided_slice %390 {offsets = [0, 0], sizes = [1, 32], strides = [1, 1]} : vector<5x32xf32> to vector<1x32xf32>
    %398 = vector.broadcast %397 : vector<1x32xf32> to vector<16x32xf32>
    %399 = arith.mulf %396, %398 : vector<16x32xf32>
    %400 = arith.addf %393, %399 : vector<16x32xf32>
    %c1_i32_122 = arith.constant 1 : i32
    %401 = tpu.dynamic_rotate %389 by %c1_i32_122 dim 0 : vector<16x32xf32>, i32 -> vector<16x32xf32>
    %402 = vector.broadcast %116 : vector<16x1xf32> to vector<16x32xf32>
    %403 = arith.mulf %401, %402 : vector<16x32xf32>
    %404 = vector.extract_strided_slice %390 {offsets = [1, 0], sizes = [1, 32], strides = [1, 1]} : vector<5x32xf32> to vector<1x32xf32>
    %405 = vector.broadcast %404 : vector<1x32xf32> to vector<16x32xf32>
    %406 = arith.mulf %403, %405 : vector<16x32xf32>
    %407 = arith.addf %400, %406 : vector<16x32xf32>
    %c15_i32_123 = arith.constant 15 : i32
    %408 = tpu.dynamic_rotate %389 by %c15_i32_123 dim 0 : vector<16x32xf32>, i32 -> vector<16x32xf32>
    %409 = vector.broadcast %120 : vector<16x1xf32> to vector<16x32xf32>
    %410 = arith.mulf %408, %409 : vector<16x32xf32>
    %411 = vector.extract_strided_slice %390 {offsets = [3, 0], sizes = [1, 32], strides = [1, 1]} : vector<5x32xf32> to vector<1x32xf32>
    %412 = vector.broadcast %411 : vector<1x32xf32> to vector<16x32xf32>
    %413 = arith.mulf %410, %412 : vector<16x32xf32>
    %414 = arith.addf %407, %413 : vector<16x32xf32>
    %c14_i32_124 = arith.constant 14 : i32
    %415 = tpu.dynamic_rotate %389 by %c14_i32_124 dim 0 : vector<16x32xf32>, i32 -> vector<16x32xf32>
    %416 = vector.broadcast %124 : vector<16x1xf32> to vector<16x32xf32>
    %417 = arith.mulf %415, %416 : vector<16x32xf32>
    %418 = vector.extract_strided_slice %390 {offsets = [4, 0], sizes = [1, 32], strides = [1, 1]} : vector<5x32xf32> to vector<1x32xf32>
    %419 = vector.broadcast %418 : vector<1x32xf32> to vector<16x32xf32>
    %420 = arith.mulf %417, %419 : vector<16x32xf32>
    %421 = arith.addf %414, %420 : vector<16x32xf32>
    %c279 = arith.constant 279 : index
    %c0_125 = arith.constant 0 : index
    %422 = vector.load %arg4[%c279, %c0_125] : memref<320x128xf32, #tpu.memory_space<vmem>>, vector<1x32xf32>
    %c280 = arith.constant 280 : index
    %c0_126 = arith.constant 0 : index
    %423 = vector.load %arg4[%c280, %c0_126] : memref<320x128xf32, #tpu.memory_space<vmem>>, vector<1x32xf32>
    %cst_127 = arith.constant dense<0.000000e+00> : vector<16xf32>
    %424 = vector.multi_reduction <add>, %421, %cst_127 [1] : vector<16x32xf32> to vector<16xf32>
    %425 = vector.shape_cast %424 : vector<16xf32> to vector<16x1xf32>
    %cst_128 = arith.constant 3.200000e+01 : f32
    %426 = vector.broadcast %cst_128 : f32 to vector<16x1xf32>
    %427 = arith.divf %425, %426 : vector<16x1xf32>
    %428 = vector.broadcast %427 : vector<16x1xf32> to vector<16x32xf32>
    %429 = arith.subf %421, %428 : vector<16x32xf32>
    %430 = arith.mulf %429, %429 : vector<16x32xf32>
    %cst_129 = arith.constant dense<0.000000e+00> : vector<16xf32>
    %431 = vector.multi_reduction <add>, %430, %cst_129 [1] : vector<16x32xf32> to vector<16xf32>
    %432 = vector.shape_cast %431 : vector<16xf32> to vector<16x1xf32>
    %cst_130 = arith.constant 3.200000e+01 : f32
    %433 = vector.broadcast %cst_130 : f32 to vector<16x1xf32>
    %434 = arith.divf %432, %433 : vector<16x1xf32>
    %435 = vector.broadcast %427 : vector<16x1xf32> to vector<16x32xf32>
    %436 = arith.subf %421, %435 : vector<16x32xf32>
    %cst_131 = arith.constant 9.99999974E-6 : f32
    %437 = vector.broadcast %cst_131 : f32 to vector<16x1xf32>
    %438 = arith.addf %434, %437 : vector<16x1xf32>
    %439 = math.rsqrt %438 : vector<16x1xf32>
    %440 = vector.broadcast %439 : vector<16x1xf32> to vector<16x32xf32>
    %441 = arith.mulf %436, %440 : vector<16x32xf32>
    %442 = vector.broadcast %422 : vector<1x32xf32> to vector<16x32xf32>
    %443 = arith.mulf %441, %442 : vector<16x32xf32>
    %444 = vector.broadcast %423 : vector<1x32xf32> to vector<16x32xf32>
    %445 = arith.addf %443, %444 : vector<16x32xf32>
    %446 = arith.negf %445 : vector<16x32xf32>
    %447 = math.exp %446 : vector<16x32xf32>
    %cst_132 = arith.constant 1.000000e+00 : f32
    %448 = vector.broadcast %cst_132 : f32 to vector<16x32xf32>
    %449 = arith.addf %448, %447 : vector<16x32xf32>
    %450 = arith.divf %448, %449 : vector<16x32xf32>
    %451 = arith.mulf %445, %450 : vector<16x32xf32>
    %452 = arith.truncf %451 : vector<16x32xf32> to vector<16x32xbf16>
    %c320 = arith.constant 320 : index
    %c0_133 = arith.constant 0 : index
    %453 = vector.load %arg3[%c320, %c0_133] : memref<864x128xbf16, #tpu.memory_space<vmem>>, vector<32x32xbf16>
    %cst_134 = arith.constant dense<0.000000e+00> : vector<16x32xf32>
    %454 = tpu.matmul %452, %453, %cst_134 {dimension_numbers = #tpu.dot_dimension_numbers<[1], [0], [0], [1], [0, 0, 1, 1], [], []>} : vector<16x32xbf16>, vector<32x32xbf16>, vector<16x32xf32> -> vector<16x32xf32>
    %455 = arith.addf %346, %454 : vector<16x32xf32>
    %c281 = arith.constant 281 : index
    %c0_135 = arith.constant 0 : index
    %456 = vector.load %arg4[%c281, %c0_135] : memref<320x128xf32, #tpu.memory_space<vmem>>, vector<1x32xf32>
    %457 = vector.broadcast %456 : vector<1x32xf32> to vector<16x32xf32>
    %458 = arith.addf %455, %457 : vector<16x32xf32>
    %c282 = arith.constant 282 : index
    %c0_136 = arith.constant 0 : index
    %459 = vector.load %arg4[%c282, %c0_136] : memref<320x128xf32, #tpu.memory_space<vmem>>, vector<1x32xf32>
    %c283 = arith.constant 283 : index
    %c0_137 = arith.constant 0 : index
    %460 = vector.load %arg4[%c283, %c0_137] : memref<320x128xf32, #tpu.memory_space<vmem>>, vector<1x32xf32>
    %cst_138 = arith.constant dense<0.000000e+00> : vector<16xf32>
    %461 = vector.multi_reduction <add>, %458, %cst_138 [1] : vector<16x32xf32> to vector<16xf32>
    %462 = vector.shape_cast %461 : vector<16xf32> to vector<16x1xf32>
    %cst_139 = arith.constant 3.200000e+01 : f32
    %463 = vector.broadcast %cst_139 : f32 to vector<16x1xf32>
    %464 = arith.divf %462, %463 : vector<16x1xf32>
    %465 = vector.broadcast %464 : vector<16x1xf32> to vector<16x32xf32>
    %466 = arith.subf %458, %465 : vector<16x32xf32>
    %467 = arith.mulf %466, %466 : vector<16x32xf32>
    %cst_140 = arith.constant dense<0.000000e+00> : vector<16xf32>
    %468 = vector.multi_reduction <add>, %467, %cst_140 [1] : vector<16x32xf32> to vector<16xf32>
    %469 = vector.shape_cast %468 : vector<16xf32> to vector<16x1xf32>
    %cst_141 = arith.constant 3.200000e+01 : f32
    %470 = vector.broadcast %cst_141 : f32 to vector<16x1xf32>
    %471 = arith.divf %469, %470 : vector<16x1xf32>
    %472 = vector.broadcast %464 : vector<16x1xf32> to vector<16x32xf32>
    %473 = arith.subf %458, %472 : vector<16x32xf32>
    %cst_142 = arith.constant 9.99999974E-6 : f32
    %474 = vector.broadcast %cst_142 : f32 to vector<16x1xf32>
    %475 = arith.addf %471, %474 : vector<16x1xf32>
    %476 = math.rsqrt %475 : vector<16x1xf32>
    %477 = vector.broadcast %476 : vector<16x1xf32> to vector<16x32xf32>
    %478 = arith.mulf %473, %477 : vector<16x32xf32>
    %479 = vector.broadcast %459 : vector<1x32xf32> to vector<16x32xf32>
    %480 = arith.mulf %478, %479 : vector<16x32xf32>
    %481 = vector.broadcast %460 : vector<1x32xf32> to vector<16x32xf32>
    %482 = arith.addf %480, %481 : vector<16x32xf32>
    %483 = arith.truncf %482 : vector<16x32xf32> to vector<16x32xbf16>
    %c352 = arith.constant 352 : index
    %c0_143 = arith.constant 0 : index
    %484 = vector.load %arg3[%c352, %c0_143] : memref<864x128xbf16, #tpu.memory_space<vmem>>, vector<32x64xbf16>
    %cst_144 = arith.constant dense<0.000000e+00> : vector<16x64xf32>
    %485 = tpu.matmul %483, %484, %cst_144 {dimension_numbers = #tpu.dot_dimension_numbers<[1], [0], [0], [1], [0, 0, 1, 1], [], []>} : vector<16x32xbf16>, vector<32x64xbf16>, vector<16x64xf32> -> vector<16x64xf32>
    %c284 = arith.constant 284 : index
    %c0_145 = arith.constant 0 : index
    %486 = vector.load %arg4[%c284, %c0_145] : memref<320x128xf32, #tpu.memory_space<vmem>>, vector<1x64xf32>
    %487 = vector.broadcast %486 : vector<1x64xf32> to vector<16x64xf32>
    %488 = arith.addf %485, %487 : vector<16x64xf32>
    %489 = arith.negf %488 : vector<16x64xf32>
    %490 = math.exp %489 : vector<16x64xf32>
    %cst_146 = arith.constant 1.000000e+00 : f32
    %491 = vector.broadcast %cst_146 : f32 to vector<16x64xf32>
    %492 = arith.addf %491, %490 : vector<16x64xf32>
    %493 = arith.divf %491, %492 : vector<16x64xf32>
    %494 = arith.mulf %488, %493 : vector<16x64xf32>
    %495 = arith.truncf %494 : vector<16x64xf32> to vector<16x64xbf16>
    %c384 = arith.constant 384 : index
    %c0_147 = arith.constant 0 : index
    %496 = vector.load %arg3[%c384, %c0_147] : memref<864x128xbf16, #tpu.memory_space<vmem>>, vector<64x32xbf16>
    %cst_148 = arith.constant dense<0.000000e+00> : vector<16x32xf32>
    %497 = tpu.matmul %495, %496, %cst_148 {dimension_numbers = #tpu.dot_dimension_numbers<[1], [0], [0], [1], [0, 0, 1, 1], [], []>} : vector<16x64xbf16>, vector<64x32xbf16>, vector<16x32xf32> -> vector<16x32xf32>
    %c285 = arith.constant 285 : index
    %c0_149 = arith.constant 0 : index
    %498 = vector.load %arg4[%c285, %c0_149] : memref<320x128xf32, #tpu.memory_space<vmem>>, vector<1x32xf32>
    %499 = vector.broadcast %498 : vector<1x32xf32> to vector<16x32xf32>
    %500 = arith.addf %497, %499 : vector<16x32xf32>
    %501 = arith.addf %458, %500 : vector<16x32xf32>
    %c286 = arith.constant 286 : index
    %c0_150 = arith.constant 0 : index
    %502 = vector.load %arg4[%c286, %c0_150] : memref<320x128xf32, #tpu.memory_space<vmem>>, vector<1x32xf32>
    %c287 = arith.constant 287 : index
    %c0_151 = arith.constant 0 : index
    %503 = vector.load %arg4[%c287, %c0_151] : memref<320x128xf32, #tpu.memory_space<vmem>>, vector<1x32xf32>
    %cst_152 = arith.constant dense<0.000000e+00> : vector<16xf32>
    %504 = vector.multi_reduction <add>, %501, %cst_152 [1] : vector<16x32xf32> to vector<16xf32>
    %505 = vector.shape_cast %504 : vector<16xf32> to vector<16x1xf32>
    %cst_153 = arith.constant 3.200000e+01 : f32
    %506 = vector.broadcast %cst_153 : f32 to vector<16x1xf32>
    %507 = arith.divf %505, %506 : vector<16x1xf32>
    %508 = vector.broadcast %507 : vector<16x1xf32> to vector<16x32xf32>
    %509 = arith.subf %501, %508 : vector<16x32xf32>
    %510 = arith.mulf %509, %509 : vector<16x32xf32>
    %cst_154 = arith.constant dense<0.000000e+00> : vector<16xf32>
    %511 = vector.multi_reduction <add>, %510, %cst_154 [1] : vector<16x32xf32> to vector<16xf32>
    %512 = vector.shape_cast %511 : vector<16xf32> to vector<16x1xf32>
    %cst_155 = arith.constant 3.200000e+01 : f32
    %513 = vector.broadcast %cst_155 : f32 to vector<16x1xf32>
    %514 = arith.divf %512, %513 : vector<16x1xf32>
    %515 = vector.broadcast %507 : vector<16x1xf32> to vector<16x32xf32>
    %516 = arith.subf %501, %515 : vector<16x32xf32>
    %cst_156 = arith.constant 9.99999974E-6 : f32
    %517 = vector.broadcast %cst_156 : f32 to vector<16x1xf32>
    %518 = arith.addf %514, %517 : vector<16x1xf32>
    %519 = math.rsqrt %518 : vector<16x1xf32>
    %520 = vector.broadcast %519 : vector<16x1xf32> to vector<16x32xf32>
    %521 = arith.mulf %516, %520 : vector<16x32xf32>
    %522 = vector.broadcast %502 : vector<1x32xf32> to vector<16x32xf32>
    %523 = arith.mulf %521, %522 : vector<16x32xf32>
    %524 = vector.broadcast %503 : vector<1x32xf32> to vector<16x32xf32>
    %525 = arith.addf %523, %524 : vector<16x32xf32>
    %c288_157 = arith.constant 288 : index
    %c0_158 = arith.constant 0 : index
    %526 = vector.load %arg4[%c288_157, %c0_158] : memref<320x128xf32, #tpu.memory_space<vmem>>, vector<1x32xf32>
    %c289 = arith.constant 289 : index
    %c0_159 = arith.constant 0 : index
    %527 = vector.load %arg4[%c289, %c0_159] : memref<320x128xf32, #tpu.memory_space<vmem>>, vector<1x32xf32>
    %cst_160 = arith.constant dense<0.000000e+00> : vector<16xf32>
    %528 = vector.multi_reduction <add>, %525, %cst_160 [1] : vector<16x32xf32> to vector<16xf32>
    %529 = vector.shape_cast %528 : vector<16xf32> to vector<16x1xf32>
    %cst_161 = arith.constant 3.200000e+01 : f32
    %530 = vector.broadcast %cst_161 : f32 to vector<16x1xf32>
    %531 = arith.divf %529, %530 : vector<16x1xf32>
    %532 = vector.broadcast %531 : vector<16x1xf32> to vector<16x32xf32>
    %533 = arith.subf %525, %532 : vector<16x32xf32>
    %534 = arith.mulf %533, %533 : vector<16x32xf32>
    %cst_162 = arith.constant dense<0.000000e+00> : vector<16xf32>
    %535 = vector.multi_reduction <add>, %534, %cst_162 [1] : vector<16x32xf32> to vector<16xf32>
    %536 = vector.shape_cast %535 : vector<16xf32> to vector<16x1xf32>
    %cst_163 = arith.constant 3.200000e+01 : f32
    %537 = vector.broadcast %cst_163 : f32 to vector<16x1xf32>
    %538 = arith.divf %536, %537 : vector<16x1xf32>
    %539 = vector.broadcast %531 : vector<16x1xf32> to vector<16x32xf32>
    %540 = arith.subf %525, %539 : vector<16x32xf32>
    %cst_164 = arith.constant 9.99999974E-6 : f32
    %541 = vector.broadcast %cst_164 : f32 to vector<16x1xf32>
    %542 = arith.addf %538, %541 : vector<16x1xf32>
    %543 = math.rsqrt %542 : vector<16x1xf32>
    %544 = vector.broadcast %543 : vector<16x1xf32> to vector<16x32xf32>
    %545 = arith.mulf %540, %544 : vector<16x32xf32>
    %546 = vector.broadcast %526 : vector<1x32xf32> to vector<16x32xf32>
    %547 = arith.mulf %545, %546 : vector<16x32xf32>
    %548 = vector.broadcast %527 : vector<1x32xf32> to vector<16x32xf32>
    %549 = arith.addf %547, %548 : vector<16x32xf32>
    %550 = arith.truncf %549 : vector<16x32xf32> to vector<16x32xbf16>
    %c448 = arith.constant 448 : index
    %c0_165 = arith.constant 0 : index
    %551 = vector.load %arg3[%c448, %c0_165] : memref<864x128xbf16, #tpu.memory_space<vmem>>, vector<32x64xbf16>
    %cst_166 = arith.constant dense<0.000000e+00> : vector<16x64xf32>
    %552 = tpu.matmul %550, %551, %cst_166 {dimension_numbers = #tpu.dot_dimension_numbers<[1], [0], [0], [1], [0, 0, 1, 1], [], []>} : vector<16x32xbf16>, vector<32x64xbf16>, vector<16x64xf32> -> vector<16x64xf32>
    %c290 = arith.constant 290 : index
    %c0_167 = arith.constant 0 : index
    %553 = vector.load %arg4[%c290, %c0_167] : memref<320x128xf32, #tpu.memory_space<vmem>>, vector<1x64xf32>
    %554 = vector.broadcast %553 : vector<1x64xf32> to vector<16x64xf32>
    %555 = arith.addf %552, %554 : vector<16x64xf32>
    %556 = arith.negf %555 : vector<16x64xf32>
    %557 = math.exp %556 : vector<16x64xf32>
    %cst_168 = arith.constant 1.000000e+00 : f32
    %558 = vector.broadcast %cst_168 : f32 to vector<16x64xf32>
    %559 = arith.addf %558, %557 : vector<16x64xf32>
    %560 = arith.divf %558, %559 : vector<16x64xf32>
    %561 = arith.mulf %555, %560 : vector<16x64xf32>
    %562 = arith.truncf %561 : vector<16x64xf32> to vector<16x64xbf16>
    %c480 = arith.constant 480 : index
    %c0_169 = arith.constant 0 : index
    %563 = vector.load %arg3[%c480, %c0_169] : memref<864x128xbf16, #tpu.memory_space<vmem>>, vector<64x32xbf16>
    %cst_170 = arith.constant dense<0.000000e+00> : vector<16x32xf32>
    %564 = tpu.matmul %562, %563, %cst_170 {dimension_numbers = #tpu.dot_dimension_numbers<[1], [0], [0], [1], [0, 0, 1, 1], [], []>} : vector<16x64xbf16>, vector<64x32xbf16>, vector<16x32xf32> -> vector<16x32xf32>
    %c291 = arith.constant 291 : index
    %c0_171 = arith.constant 0 : index
    %565 = vector.load %arg4[%c291, %c0_171] : memref<320x128xf32, #tpu.memory_space<vmem>>, vector<1x32xf32>
    %566 = vector.broadcast %565 : vector<1x32xf32> to vector<16x32xf32>
    %567 = arith.addf %564, %566 : vector<16x32xf32>
    %568 = arith.addf %525, %567 : vector<16x32xf32>
    %c292 = arith.constant 292 : index
    %c0_172 = arith.constant 0 : index
    %569 = vector.load %arg4[%c292, %c0_172] : memref<320x128xf32, #tpu.memory_space<vmem>>, vector<1x32xf32>
    %c293 = arith.constant 293 : index
    %c0_173 = arith.constant 0 : index
    %570 = vector.load %arg4[%c293, %c0_173] : memref<320x128xf32, #tpu.memory_space<vmem>>, vector<1x32xf32>
    %cst_174 = arith.constant dense<0.000000e+00> : vector<16xf32>
    %571 = vector.multi_reduction <add>, %568, %cst_174 [1] : vector<16x32xf32> to vector<16xf32>
    %572 = vector.shape_cast %571 : vector<16xf32> to vector<16x1xf32>
    %cst_175 = arith.constant 3.200000e+01 : f32
    %573 = vector.broadcast %cst_175 : f32 to vector<16x1xf32>
    %574 = arith.divf %572, %573 : vector<16x1xf32>
    %575 = vector.broadcast %574 : vector<16x1xf32> to vector<16x32xf32>
    %576 = arith.subf %568, %575 : vector<16x32xf32>
    %577 = arith.mulf %576, %576 : vector<16x32xf32>
    %cst_176 = arith.constant dense<0.000000e+00> : vector<16xf32>
    %578 = vector.multi_reduction <add>, %577, %cst_176 [1] : vector<16x32xf32> to vector<16xf32>
    %579 = vector.shape_cast %578 : vector<16xf32> to vector<16x1xf32>
    %cst_177 = arith.constant 3.200000e+01 : f32
    %580 = vector.broadcast %cst_177 : f32 to vector<16x1xf32>
    %581 = arith.divf %579, %580 : vector<16x1xf32>
    %582 = vector.broadcast %574 : vector<16x1xf32> to vector<16x32xf32>
    %583 = arith.subf %568, %582 : vector<16x32xf32>
    %cst_178 = arith.constant 9.99999974E-6 : f32
    %584 = vector.broadcast %cst_178 : f32 to vector<16x1xf32>
    %585 = arith.addf %581, %584 : vector<16x1xf32>
    %586 = math.rsqrt %585 : vector<16x1xf32>
    %587 = vector.broadcast %586 : vector<16x1xf32> to vector<16x32xf32>
    %588 = arith.mulf %583, %587 : vector<16x32xf32>
    %589 = vector.broadcast %569 : vector<1x32xf32> to vector<16x32xf32>
    %590 = arith.mulf %588, %589 : vector<16x32xf32>
    %591 = vector.broadcast %570 : vector<1x32xf32> to vector<16x32xf32>
    %592 = arith.addf %590, %591 : vector<16x32xf32>
    %593 = arith.truncf %592 : vector<16x32xf32> to vector<16x32xbf16>
    %c294 = arith.constant 294 : index
    %c0_179 = arith.constant 0 : index
    %594 = vector.load %arg4[%c294, %c0_179] : memref<320x128xf32, #tpu.memory_space<vmem>>, vector<1x32xf32>
    %c295 = arith.constant 295 : index
    %c0_180 = arith.constant 0 : index
    %595 = vector.load %arg4[%c295, %c0_180] : memref<320x128xf32, #tpu.memory_space<vmem>>, vector<1x32xf32>
    %c296 = arith.constant 296 : index
    %c0_181 = arith.constant 0 : index
    %596 = vector.load %arg4[%c296, %c0_181] : memref<320x128xf32, #tpu.memory_space<vmem>>, vector<1x32xf32>
    %c544 = arith.constant 544 : index
    %c0_182 = arith.constant 0 : index
    %597 = vector.load %arg3[%c544, %c0_182] : memref<864x128xbf16, #tpu.memory_space<vmem>>, vector<8x32xbf16>
    %cst_183 = arith.constant dense<0.000000e+00> : vector<16x8xf32>
    %598 = tpu.matmul %593, %597, %cst_183 {dimension_numbers = #tpu.dot_dimension_numbers<[1], [1], [0], [0], [0, 0, 1, 0], [], []>} : vector<16x32xbf16>, vector<8x32xbf16>, vector<16x8xf32> -> vector<16x8xf32>
    %599 = vector.extract_strided_slice %594 {offsets = [0, 0], sizes = [1, 8], strides = [1, 1]} : vector<1x32xf32> to vector<1x8xf32>
    %600 = vector.broadcast %599 : vector<1x8xf32> to vector<16x8xf32>
    %601 = arith.addf %598, %600 : vector<16x8xf32>
    %c576 = arith.constant 576 : index
    %c0_184 = arith.constant 0 : index
    %602 = vector.load %arg3[%c576, %c0_184] : memref<864x128xbf16, #tpu.memory_space<vmem>>, vector<8x32xbf16>
    %cst_185 = arith.constant dense<0.000000e+00> : vector<16x8xf32>
    %603 = tpu.matmul %593, %602, %cst_185 {dimension_numbers = #tpu.dot_dimension_numbers<[1], [1], [0], [0], [0, 0, 1, 0], [], []>} : vector<16x32xbf16>, vector<8x32xbf16>, vector<16x8xf32> -> vector<16x8xf32>
    %604 = vector.extract_strided_slice %595 {offsets = [0, 0], sizes = [1, 8], strides = [1, 1]} : vector<1x32xf32> to vector<1x8xf32>
    %605 = vector.broadcast %604 : vector<1x8xf32> to vector<16x8xf32>
    %606 = arith.addf %603, %605 : vector<16x8xf32>
    %c608 = arith.constant 608 : index
    %c0_186 = arith.constant 0 : index
    %607 = vector.load %arg3[%c608, %c0_186] : memref<864x128xbf16, #tpu.memory_space<vmem>>, vector<8x32xbf16>
    %cst_187 = arith.constant dense<0.000000e+00> : vector<16x8xf32>
    %608 = tpu.matmul %593, %607, %cst_187 {dimension_numbers = #tpu.dot_dimension_numbers<[1], [1], [0], [0], [0, 0, 1, 0], [], []>} : vector<16x32xbf16>, vector<8x32xbf16>, vector<16x8xf32> -> vector<16x8xf32>
    %609 = vector.extract_strided_slice %596 {offsets = [0, 0], sizes = [1, 8], strides = [1, 1]} : vector<1x32xf32> to vector<1x8xf32>
    %610 = vector.broadcast %609 : vector<1x8xf32> to vector<16x8xf32>
    %611 = arith.addf %608, %610 : vector<16x8xf32>
    %c552 = arith.constant 552 : index
    %c0_188 = arith.constant 0 : index
    %612 = vector.load %arg3[%c552, %c0_188] : memref<864x128xbf16, #tpu.memory_space<vmem>>, vector<8x32xbf16>
    %cst_189 = arith.constant dense<0.000000e+00> : vector<16x8xf32>
    %613 = tpu.matmul %593, %612, %cst_189 {dimension_numbers = #tpu.dot_dimension_numbers<[1], [1], [0], [0], [0, 0, 1, 0], [], []>} : vector<16x32xbf16>, vector<8x32xbf16>, vector<16x8xf32> -> vector<16x8xf32>
    %614 = vector.extract_strided_slice %594 {offsets = [0, 8], sizes = [1, 8], strides = [1, 1]} : vector<1x32xf32> to vector<1x8xf32>
    %615 = vector.broadcast %614 : vector<1x8xf32> to vector<16x8xf32>
    %616 = arith.addf %613, %615 : vector<16x8xf32>
    %c584 = arith.constant 584 : index
    %c0_190 = arith.constant 0 : index
    %617 = vector.load %arg3[%c584, %c0_190] : memref<864x128xbf16, #tpu.memory_space<vmem>>, vector<8x32xbf16>
    %cst_191 = arith.constant dense<0.000000e+00> : vector<16x8xf32>
    %618 = tpu.matmul %593, %617, %cst_191 {dimension_numbers = #tpu.dot_dimension_numbers<[1], [1], [0], [0], [0, 0, 1, 0], [], []>} : vector<16x32xbf16>, vector<8x32xbf16>, vector<16x8xf32> -> vector<16x8xf32>
    %619 = vector.extract_strided_slice %595 {offsets = [0, 8], sizes = [1, 8], strides = [1, 1]} : vector<1x32xf32> to vector<1x8xf32>
    %620 = vector.broadcast %619 : vector<1x8xf32> to vector<16x8xf32>
    %621 = arith.addf %618, %620 : vector<16x8xf32>
    %c616 = arith.constant 616 : index
    %c0_192 = arith.constant 0 : index
    %622 = vector.load %arg3[%c616, %c0_192] : memref<864x128xbf16, #tpu.memory_space<vmem>>, vector<8x32xbf16>
    %cst_193 = arith.constant dense<0.000000e+00> : vector<16x8xf32>
    %623 = tpu.matmul %593, %622, %cst_193 {dimension_numbers = #tpu.dot_dimension_numbers<[1], [1], [0], [0], [0, 0, 1, 0], [], []>} : vector<16x32xbf16>, vector<8x32xbf16>, vector<16x8xf32> -> vector<16x8xf32>
    %624 = vector.extract_strided_slice %596 {offsets = [0, 8], sizes = [1, 8], strides = [1, 1]} : vector<1x32xf32> to vector<1x8xf32>
    %625 = vector.broadcast %624 : vector<1x8xf32> to vector<16x8xf32>
    %626 = arith.addf %623, %625 : vector<16x8xf32>
    %c560 = arith.constant 560 : index
    %c0_194 = arith.constant 0 : index
    %627 = vector.load %arg3[%c560, %c0_194] : memref<864x128xbf16, #tpu.memory_space<vmem>>, vector<8x32xbf16>
    %cst_195 = arith.constant dense<0.000000e+00> : vector<16x8xf32>
    %628 = tpu.matmul %593, %627, %cst_195 {dimension_numbers = #tpu.dot_dimension_numbers<[1], [1], [0], [0], [0, 0, 1, 0], [], []>} : vector<16x32xbf16>, vector<8x32xbf16>, vector<16x8xf32> -> vector<16x8xf32>
    %629 = vector.extract_strided_slice %594 {offsets = [0, 16], sizes = [1, 8], strides = [1, 1]} : vector<1x32xf32> to vector<1x8xf32>
    %630 = vector.broadcast %629 : vector<1x8xf32> to vector<16x8xf32>
    %631 = arith.addf %628, %630 : vector<16x8xf32>
    %c592 = arith.constant 592 : index
    %c0_196 = arith.constant 0 : index
    %632 = vector.load %arg3[%c592, %c0_196] : memref<864x128xbf16, #tpu.memory_space<vmem>>, vector<8x32xbf16>
    %cst_197 = arith.constant dense<0.000000e+00> : vector<16x8xf32>
    %633 = tpu.matmul %593, %632, %cst_197 {dimension_numbers = #tpu.dot_dimension_numbers<[1], [1], [0], [0], [0, 0, 1, 0], [], []>} : vector<16x32xbf16>, vector<8x32xbf16>, vector<16x8xf32> -> vector<16x8xf32>
    %634 = vector.extract_strided_slice %595 {offsets = [0, 16], sizes = [1, 8], strides = [1, 1]} : vector<1x32xf32> to vector<1x8xf32>
    %635 = vector.broadcast %634 : vector<1x8xf32> to vector<16x8xf32>
    %636 = arith.addf %633, %635 : vector<16x8xf32>
    %c624 = arith.constant 624 : index
    %c0_198 = arith.constant 0 : index
    %637 = vector.load %arg3[%c624, %c0_198] : memref<864x128xbf16, #tpu.memory_space<vmem>>, vector<8x32xbf16>
    %cst_199 = arith.constant dense<0.000000e+00> : vector<16x8xf32>
    %638 = tpu.matmul %593, %637, %cst_199 {dimension_numbers = #tpu.dot_dimension_numbers<[1], [1], [0], [0], [0, 0, 1, 0], [], []>} : vector<16x32xbf16>, vector<8x32xbf16>, vector<16x8xf32> -> vector<16x8xf32>
    %639 = vector.extract_strided_slice %596 {offsets = [0, 16], sizes = [1, 8], strides = [1, 1]} : vector<1x32xf32> to vector<1x8xf32>
    %640 = vector.broadcast %639 : vector<1x8xf32> to vector<16x8xf32>
    %641 = arith.addf %638, %640 : vector<16x8xf32>
    %c568 = arith.constant 568 : index
    %c0_200 = arith.constant 0 : index
    %642 = vector.load %arg3[%c568, %c0_200] : memref<864x128xbf16, #tpu.memory_space<vmem>>, vector<8x32xbf16>
    %cst_201 = arith.constant dense<0.000000e+00> : vector<16x8xf32>
    %643 = tpu.matmul %593, %642, %cst_201 {dimension_numbers = #tpu.dot_dimension_numbers<[1], [1], [0], [0], [0, 0, 1, 0], [], []>} : vector<16x32xbf16>, vector<8x32xbf16>, vector<16x8xf32> -> vector<16x8xf32>
    %644 = vector.extract_strided_slice %594 {offsets = [0, 24], sizes = [1, 8], strides = [1, 1]} : vector<1x32xf32> to vector<1x8xf32>
    %645 = vector.broadcast %644 : vector<1x8xf32> to vector<16x8xf32>
    %646 = arith.addf %643, %645 : vector<16x8xf32>
    %c600 = arith.constant 600 : index
    %c0_202 = arith.constant 0 : index
    %647 = vector.load %arg3[%c600, %c0_202] : memref<864x128xbf16, #tpu.memory_space<vmem>>, vector<8x32xbf16>
    %cst_203 = arith.constant dense<0.000000e+00> : vector<16x8xf32>
    %648 = tpu.matmul %593, %647, %cst_203 {dimension_numbers = #tpu.dot_dimension_numbers<[1], [1], [0], [0], [0, 0, 1, 0], [], []>} : vector<16x32xbf16>, vector<8x32xbf16>, vector<16x8xf32> -> vector<16x8xf32>
    %649 = vector.extract_strided_slice %595 {offsets = [0, 24], sizes = [1, 8], strides = [1, 1]} : vector<1x32xf32> to vector<1x8xf32>
    %650 = vector.broadcast %649 : vector<1x8xf32> to vector<16x8xf32>
    %651 = arith.addf %648, %650 : vector<16x8xf32>
    %c632 = arith.constant 632 : index
    %c0_204 = arith.constant 0 : index
    %652 = vector.load %arg3[%c632, %c0_204] : memref<864x128xbf16, #tpu.memory_space<vmem>>, vector<8x32xbf16>
    %cst_205 = arith.constant dense<0.000000e+00> : vector<16x8xf32>
    %653 = tpu.matmul %593, %652, %cst_205 {dimension_numbers = #tpu.dot_dimension_numbers<[1], [1], [0], [0], [0, 0, 1, 0], [], []>} : vector<16x32xbf16>, vector<8x32xbf16>, vector<16x8xf32> -> vector<16x8xf32>
    %654 = vector.extract_strided_slice %596 {offsets = [0, 24], sizes = [1, 8], strides = [1, 1]} : vector<1x32xf32> to vector<1x8xf32>
    %655 = vector.broadcast %654 : vector<1x8xf32> to vector<16x8xf32>
    %656 = arith.addf %653, %655 : vector<16x8xf32>
    %657 = arith.truncf %601 : vector<16x8xf32> to vector<16x8xbf16>
    %658 = arith.truncf %606 : vector<16x8xf32> to vector<16x8xbf16>
    %cst_206 = arith.constant dense<0.000000e+00> : vector<16x16xf32>
    %659 = tpu.matmul %657, %658, %cst_206 {dimension_numbers = #tpu.dot_dimension_numbers<[1], [1], [0], [0], [0, 0, 1, 0], [], []>} : vector<16x8xbf16>, vector<16x8xbf16>, vector<16x16xf32> -> vector<16x16xf32>
    %660 = vector.broadcast %22 : vector<1x16xf32> to vector<16x16xf32>
    %661 = arith.addf %659, %660 : vector<16x16xf32>
    %662 = arith.truncf %616 : vector<16x8xf32> to vector<16x8xbf16>
    %663 = arith.truncf %621 : vector<16x8xf32> to vector<16x8xbf16>
    %cst_207 = arith.constant dense<0.000000e+00> : vector<16x16xf32>
    %664 = tpu.matmul %662, %663, %cst_207 {dimension_numbers = #tpu.dot_dimension_numbers<[1], [1], [0], [0], [0, 0, 1, 0], [], []>} : vector<16x8xbf16>, vector<16x8xbf16>, vector<16x16xf32> -> vector<16x16xf32>
    %665 = vector.broadcast %22 : vector<1x16xf32> to vector<16x16xf32>
    %666 = arith.addf %664, %665 : vector<16x16xf32>
    %667 = arith.truncf %631 : vector<16x8xf32> to vector<16x8xbf16>
    %668 = arith.truncf %636 : vector<16x8xf32> to vector<16x8xbf16>
    %cst_208 = arith.constant dense<0.000000e+00> : vector<16x16xf32>
    %669 = tpu.matmul %667, %668, %cst_208 {dimension_numbers = #tpu.dot_dimension_numbers<[1], [1], [0], [0], [0, 0, 1, 0], [], []>} : vector<16x8xbf16>, vector<16x8xbf16>, vector<16x16xf32> -> vector<16x16xf32>
    %670 = vector.broadcast %22 : vector<1x16xf32> to vector<16x16xf32>
    %671 = arith.addf %669, %670 : vector<16x16xf32>
    %672 = arith.truncf %646 : vector<16x8xf32> to vector<16x8xbf16>
    %673 = arith.truncf %651 : vector<16x8xf32> to vector<16x8xbf16>
    %cst_209 = arith.constant dense<0.000000e+00> : vector<16x16xf32>
    %674 = tpu.matmul %672, %673, %cst_209 {dimension_numbers = #tpu.dot_dimension_numbers<[1], [1], [0], [0], [0, 0, 1, 0], [], []>} : vector<16x8xbf16>, vector<16x8xbf16>, vector<16x16xf32> -> vector<16x16xf32>
    %675 = vector.broadcast %22 : vector<1x16xf32> to vector<16x16xf32>
    %676 = arith.addf %674, %675 : vector<16x16xf32>
    %cst_210 = arith.constant dense<0xFF800000> : vector<16xf32>
    %677 = vector.multi_reduction <maximumf>, %661, %cst_210 [1] : vector<16x16xf32> to vector<16xf32>
    %678 = vector.shape_cast %677 : vector<16xf32> to vector<16x1xf32>
    %679 = vector.broadcast %678 : vector<16x1xf32> to vector<16x16xf32>
    %680 = arith.subf %661, %679 : vector<16x16xf32>
    %681 = math.exp %680 : vector<16x16xf32>
    %cst_211 = arith.constant dense<0.000000e+00> : vector<16xf32>
    %682 = vector.multi_reduction <add>, %681, %cst_211 [1] : vector<16x16xf32> to vector<16xf32>
    %683 = vector.shape_cast %682 : vector<16xf32> to vector<16x1xf32>
    %684 = tpu.reciprocal %683 {approx = true} : vector<16x1xf32> -> vector<16x1xf32>
    %685 = vector.broadcast %684 : vector<16x1xf32> to vector<16x16xf32>
    %686 = arith.mulf %681, %685 : vector<16x16xf32>
    %cst_212 = arith.constant dense<0xFF800000> : vector<16xf32>
    %687 = vector.multi_reduction <maximumf>, %666, %cst_212 [1] : vector<16x16xf32> to vector<16xf32>
    %688 = vector.shape_cast %687 : vector<16xf32> to vector<16x1xf32>
    %689 = vector.broadcast %688 : vector<16x1xf32> to vector<16x16xf32>
    %690 = arith.subf %666, %689 : vector<16x16xf32>
    %691 = math.exp %690 : vector<16x16xf32>
    %cst_213 = arith.constant dense<0.000000e+00> : vector<16xf32>
    %692 = vector.multi_reduction <add>, %691, %cst_213 [1] : vector<16x16xf32> to vector<16xf32>
    %693 = vector.shape_cast %692 : vector<16xf32> to vector<16x1xf32>
    %694 = tpu.reciprocal %693 {approx = true} : vector<16x1xf32> -> vector<16x1xf32>
    %695 = vector.broadcast %694 : vector<16x1xf32> to vector<16x16xf32>
    %696 = arith.mulf %691, %695 : vector<16x16xf32>
    %cst_214 = arith.constant dense<0xFF800000> : vector<16xf32>
    %697 = vector.multi_reduction <maximumf>, %671, %cst_214 [1] : vector<16x16xf32> to vector<16xf32>
    %698 = vector.shape_cast %697 : vector<16xf32> to vector<16x1xf32>
    %699 = vector.broadcast %698 : vector<16x1xf32> to vector<16x16xf32>
    %700 = arith.subf %671, %699 : vector<16x16xf32>
    %701 = math.exp %700 : vector<16x16xf32>
    %cst_215 = arith.constant dense<0.000000e+00> : vector<16xf32>
    %702 = vector.multi_reduction <add>, %701, %cst_215 [1] : vector<16x16xf32> to vector<16xf32>
    %703 = vector.shape_cast %702 : vector<16xf32> to vector<16x1xf32>
    %704 = tpu.reciprocal %703 {approx = true} : vector<16x1xf32> -> vector<16x1xf32>
    %705 = vector.broadcast %704 : vector<16x1xf32> to vector<16x16xf32>
    %706 = arith.mulf %701, %705 : vector<16x16xf32>
    %cst_216 = arith.constant dense<0xFF800000> : vector<16xf32>
    %707 = vector.multi_reduction <maximumf>, %676, %cst_216 [1] : vector<16x16xf32> to vector<16xf32>
    %708 = vector.shape_cast %707 : vector<16xf32> to vector<16x1xf32>
    %709 = vector.broadcast %708 : vector<16x1xf32> to vector<16x16xf32>
    %710 = arith.subf %676, %709 : vector<16x16xf32>
    %711 = math.exp %710 : vector<16x16xf32>
    %cst_217 = arith.constant dense<0.000000e+00> : vector<16xf32>
    %712 = vector.multi_reduction <add>, %711, %cst_217 [1] : vector<16x16xf32> to vector<16xf32>
    %713 = vector.shape_cast %712 : vector<16xf32> to vector<16x1xf32>
    %714 = tpu.reciprocal %713 {approx = true} : vector<16x1xf32> -> vector<16x1xf32>
    %715 = vector.broadcast %714 : vector<16x1xf32> to vector<16x16xf32>
    %716 = arith.mulf %711, %715 : vector<16x16xf32>
    %717 = arith.truncf %686 : vector<16x16xf32> to vector<16x16xbf16>
    %718 = arith.truncf %611 : vector<16x8xf32> to vector<16x8xbf16>
    %cst_218 = arith.constant dense<0.000000e+00> : vector<16x8xf32>
    %719 = tpu.matmul %717, %718, %cst_218 {dimension_numbers = #tpu.dot_dimension_numbers<[1], [0], [0], [1], [0, 0, 1, 1], [], []>} : vector<16x16xbf16>, vector<16x8xbf16>, vector<16x8xf32> -> vector<16x8xf32>
    %720 = arith.truncf %719 : vector<16x8xf32> to vector<16x8xbf16>
    %c640 = arith.constant 640 : index
    %c0_219 = arith.constant 0 : index
    %721 = vector.load %arg3[%c640, %c0_219] : memref<864x128xbf16, #tpu.memory_space<vmem>>, vector<8x32xbf16>
    %cst_220 = arith.constant dense<0.000000e+00> : vector<16x32xf32>
    %722 = tpu.matmul %720, %721, %cst_220 {dimension_numbers = #tpu.dot_dimension_numbers<[1], [0], [0], [1], [0, 0, 1, 1], [], []>} : vector<16x8xbf16>, vector<8x32xbf16>, vector<16x32xf32> -> vector<16x32xf32>
    %723 = arith.truncf %696 : vector<16x16xf32> to vector<16x16xbf16>
    %724 = arith.truncf %626 : vector<16x8xf32> to vector<16x8xbf16>
    %cst_221 = arith.constant dense<0.000000e+00> : vector<16x8xf32>
    %725 = tpu.matmul %723, %724, %cst_221 {dimension_numbers = #tpu.dot_dimension_numbers<[1], [0], [0], [1], [0, 0, 1, 1], [], []>} : vector<16x16xbf16>, vector<16x8xbf16>, vector<16x8xf32> -> vector<16x8xf32>
    %726 = arith.truncf %725 : vector<16x8xf32> to vector<16x8xbf16>
    %c648 = arith.constant 648 : index
    %c0_222 = arith.constant 0 : index
    %727 = vector.load %arg3[%c648, %c0_222] : memref<864x128xbf16, #tpu.memory_space<vmem>>, vector<8x32xbf16>
    %cst_223 = arith.constant dense<0.000000e+00> : vector<16x32xf32>
    %728 = tpu.matmul %726, %727, %cst_223 {dimension_numbers = #tpu.dot_dimension_numbers<[1], [0], [0], [1], [0, 0, 1, 1], [], []>} : vector<16x8xbf16>, vector<8x32xbf16>, vector<16x32xf32> -> vector<16x32xf32>
    %729 = arith.addf %722, %728 : vector<16x32xf32>
    %730 = arith.truncf %706 : vector<16x16xf32> to vector<16x16xbf16>
    %731 = arith.truncf %641 : vector<16x8xf32> to vector<16x8xbf16>
    %cst_224 = arith.constant dense<0.000000e+00> : vector<16x8xf32>
    %732 = tpu.matmul %730, %731, %cst_224 {dimension_numbers = #tpu.dot_dimension_numbers<[1], [0], [0], [1], [0, 0, 1, 1], [], []>} : vector<16x16xbf16>, vector<16x8xbf16>, vector<16x8xf32> -> vector<16x8xf32>
    %733 = arith.truncf %732 : vector<16x8xf32> to vector<16x8xbf16>
    %c656 = arith.constant 656 : index
    %c0_225 = arith.constant 0 : index
    %734 = vector.load %arg3[%c656, %c0_225] : memref<864x128xbf16, #tpu.memory_space<vmem>>, vector<8x32xbf16>
    %cst_226 = arith.constant dense<0.000000e+00> : vector<16x32xf32>
    %735 = tpu.matmul %733, %734, %cst_226 {dimension_numbers = #tpu.dot_dimension_numbers<[1], [0], [0], [1], [0, 0, 1, 1], [], []>} : vector<16x8xbf16>, vector<8x32xbf16>, vector<16x32xf32> -> vector<16x32xf32>
    %736 = arith.addf %729, %735 : vector<16x32xf32>
    %737 = arith.truncf %716 : vector<16x16xf32> to vector<16x16xbf16>
    %738 = arith.truncf %656 : vector<16x8xf32> to vector<16x8xbf16>
    %cst_227 = arith.constant dense<0.000000e+00> : vector<16x8xf32>
    %739 = tpu.matmul %737, %738, %cst_227 {dimension_numbers = #tpu.dot_dimension_numbers<[1], [0], [0], [1], [0, 0, 1, 1], [], []>} : vector<16x16xbf16>, vector<16x8xbf16>, vector<16x8xf32> -> vector<16x8xf32>
    %740 = arith.truncf %739 : vector<16x8xf32> to vector<16x8xbf16>
    %c664 = arith.constant 664 : index
    %c0_228 = arith.constant 0 : index
    %741 = vector.load %arg3[%c664, %c0_228] : memref<864x128xbf16, #tpu.memory_space<vmem>>, vector<8x32xbf16>
    %cst_229 = arith.constant dense<0.000000e+00> : vector<16x32xf32>
    %742 = tpu.matmul %740, %741, %cst_229 {dimension_numbers = #tpu.dot_dimension_numbers<[1], [0], [0], [1], [0, 0, 1, 1], [], []>} : vector<16x8xbf16>, vector<8x32xbf16>, vector<16x32xf32> -> vector<16x32xf32>
    %743 = arith.addf %736, %742 : vector<16x32xf32>
    %744 = arith.addf %568, %743 : vector<16x32xf32>
    %c297 = arith.constant 297 : index
    %c0_230 = arith.constant 0 : index
    %745 = vector.load %arg4[%c297, %c0_230] : memref<320x128xf32, #tpu.memory_space<vmem>>, vector<1x32xf32>
    %746 = vector.broadcast %745 : vector<1x32xf32> to vector<16x32xf32>
    %747 = arith.addf %744, %746 : vector<16x32xf32>
    %c298 = arith.constant 298 : index
    %c0_231 = arith.constant 0 : index
    %748 = vector.load %arg4[%c298, %c0_231] : memref<320x128xf32, #tpu.memory_space<vmem>>, vector<1x32xf32>
    %c299 = arith.constant 299 : index
    %c0_232 = arith.constant 0 : index
    %749 = vector.load %arg4[%c299, %c0_232] : memref<320x128xf32, #tpu.memory_space<vmem>>, vector<1x32xf32>
    %cst_233 = arith.constant dense<0.000000e+00> : vector<16xf32>
    %750 = vector.multi_reduction <add>, %747, %cst_233 [1] : vector<16x32xf32> to vector<16xf32>
    %751 = vector.shape_cast %750 : vector<16xf32> to vector<16x1xf32>
    %cst_234 = arith.constant 3.200000e+01 : f32
    %752 = vector.broadcast %cst_234 : f32 to vector<16x1xf32>
    %753 = arith.divf %751, %752 : vector<16x1xf32>
    %754 = vector.broadcast %753 : vector<16x1xf32> to vector<16x32xf32>
    %755 = arith.subf %747, %754 : vector<16x32xf32>
    %756 = arith.mulf %755, %755 : vector<16x32xf32>
    %cst_235 = arith.constant dense<0.000000e+00> : vector<16xf32>
    %757 = vector.multi_reduction <add>, %756, %cst_235 [1] : vector<16x32xf32> to vector<16xf32>
    %758 = vector.shape_cast %757 : vector<16xf32> to vector<16x1xf32>
    %cst_236 = arith.constant 3.200000e+01 : f32
    %759 = vector.broadcast %cst_236 : f32 to vector<16x1xf32>
    %760 = arith.divf %758, %759 : vector<16x1xf32>
    %761 = vector.broadcast %753 : vector<16x1xf32> to vector<16x32xf32>
    %762 = arith.subf %747, %761 : vector<16x32xf32>
    %cst_237 = arith.constant 9.99999974E-6 : f32
    %763 = vector.broadcast %cst_237 : f32 to vector<16x1xf32>
    %764 = arith.addf %760, %763 : vector<16x1xf32>
    %765 = math.rsqrt %764 : vector<16x1xf32>
    %766 = vector.broadcast %765 : vector<16x1xf32> to vector<16x32xf32>
    %767 = arith.mulf %762, %766 : vector<16x32xf32>
    %768 = vector.broadcast %748 : vector<1x32xf32> to vector<16x32xf32>
    %769 = arith.mulf %767, %768 : vector<16x32xf32>
    %770 = vector.broadcast %749 : vector<1x32xf32> to vector<16x32xf32>
    %771 = arith.addf %769, %770 : vector<16x32xf32>
    %772 = arith.truncf %771 : vector<16x32xf32> to vector<16x32xbf16>
    %c672 = arith.constant 672 : index
    %c0_238 = arith.constant 0 : index
    %773 = vector.load %arg3[%c672, %c0_238] : memref<864x128xbf16, #tpu.memory_space<vmem>>, vector<32x32xbf16>
    %cst_239 = arith.constant dense<0.000000e+00> : vector<16x32xf32>
    %774 = tpu.matmul %772, %773, %cst_239 {dimension_numbers = #tpu.dot_dimension_numbers<[1], [0], [0], [1], [0, 0, 1, 1], [], []>} : vector<16x32xbf16>, vector<32x32xbf16>, vector<16x32xf32> -> vector<16x32xf32>
    %c300 = arith.constant 300 : index
    %c0_240 = arith.constant 0 : index
    %775 = vector.load %arg4[%c300, %c0_240] : memref<320x128xf32, #tpu.memory_space<vmem>>, vector<1x32xf32>
    %776 = vector.broadcast %775 : vector<1x32xf32> to vector<16x32xf32>
    %777 = arith.addf %774, %776 : vector<16x32xf32>
    %c704 = arith.constant 704 : index
    %c0_241 = arith.constant 0 : index
    %778 = vector.load %arg3[%c704, %c0_241] : memref<864x128xbf16, #tpu.memory_space<vmem>>, vector<32x32xbf16>
    %cst_242 = arith.constant dense<0.000000e+00> : vector<16x32xf32>
    %779 = tpu.matmul %772, %778, %cst_242 {dimension_numbers = #tpu.dot_dimension_numbers<[1], [0], [0], [1], [0, 0, 1, 1], [], []>} : vector<16x32xbf16>, vector<32x32xbf16>, vector<16x32xf32> -> vector<16x32xf32>
    %c301 = arith.constant 301 : index
    %c0_243 = arith.constant 0 : index
    %780 = vector.load %arg4[%c301, %c0_243] : memref<320x128xf32, #tpu.memory_space<vmem>>, vector<1x32xf32>
    %781 = vector.broadcast %780 : vector<1x32xf32> to vector<16x32xf32>
    %782 = arith.addf %779, %781 : vector<16x32xf32>
    %783 = arith.negf %782 : vector<16x32xf32>
    %784 = math.exp %783 : vector<16x32xf32>
    %cst_244 = arith.constant 1.000000e+00 : f32
    %785 = vector.broadcast %cst_244 : f32 to vector<16x32xf32>
    %786 = arith.addf %785, %784 : vector<16x32xf32>
    %787 = arith.divf %785, %786 : vector<16x32xf32>
    %788 = arith.mulf %777, %787 : vector<16x32xf32>
    %789 = vector.broadcast %13 : vector<16x1xf32> to vector<16x32xf32>
    %790 = arith.mulf %788, %789 : vector<16x32xf32>
    %c302 = arith.constant 302 : index
    %c0_245 = arith.constant 0 : index
    %791 = vector.load %arg4[%c302, %c0_245] : memref<320x128xf32, #tpu.memory_space<vmem>>, vector<5x32xf32>
    %792 = vector.extract_strided_slice %791 {offsets = [2, 0], sizes = [1, 32], strides = [1, 1]} : vector<5x32xf32> to vector<1x32xf32>
    %793 = vector.broadcast %792 : vector<1x32xf32> to vector<16x32xf32>
    %794 = arith.mulf %790, %793 : vector<16x32xf32>
    %c2_i32_246 = arith.constant 2 : i32
    %795 = tpu.dynamic_rotate %790 by %c2_i32_246 dim 0 : vector<16x32xf32>, i32 -> vector<16x32xf32>
    %796 = vector.broadcast %112 : vector<16x1xf32> to vector<16x32xf32>
    %797 = arith.mulf %795, %796 : vector<16x32xf32>
    %798 = vector.extract_strided_slice %791 {offsets = [0, 0], sizes = [1, 32], strides = [1, 1]} : vector<5x32xf32> to vector<1x32xf32>
    %799 = vector.broadcast %798 : vector<1x32xf32> to vector<16x32xf32>
    %800 = arith.mulf %797, %799 : vector<16x32xf32>
    %801 = arith.addf %794, %800 : vector<16x32xf32>
    %c1_i32_247 = arith.constant 1 : i32
    %802 = tpu.dynamic_rotate %790 by %c1_i32_247 dim 0 : vector<16x32xf32>, i32 -> vector<16x32xf32>
    %803 = vector.broadcast %116 : vector<16x1xf32> to vector<16x32xf32>
    %804 = arith.mulf %802, %803 : vector<16x32xf32>
    %805 = vector.extract_strided_slice %791 {offsets = [1, 0], sizes = [1, 32], strides = [1, 1]} : vector<5x32xf32> to vector<1x32xf32>
    %806 = vector.broadcast %805 : vector<1x32xf32> to vector<16x32xf32>
    %807 = arith.mulf %804, %806 : vector<16x32xf32>
    %808 = arith.addf %801, %807 : vector<16x32xf32>
    %c15_i32_248 = arith.constant 15 : i32
    %809 = tpu.dynamic_rotate %790 by %c15_i32_248 dim 0 : vector<16x32xf32>, i32 -> vector<16x32xf32>
    %810 = vector.broadcast %120 : vector<16x1xf32> to vector<16x32xf32>
    %811 = arith.mulf %809, %810 : vector<16x32xf32>
    %812 = vector.extract_strided_slice %791 {offsets = [3, 0], sizes = [1, 32], strides = [1, 1]} : vector<5x32xf32> to vector<1x32xf32>
    %813 = vector.broadcast %812 : vector<1x32xf32> to vector<16x32xf32>
    %814 = arith.mulf %811, %813 : vector<16x32xf32>
    %815 = arith.addf %808, %814 : vector<16x32xf32>
    %c14_i32_249 = arith.constant 14 : i32
    %816 = tpu.dynamic_rotate %790 by %c14_i32_249 dim 0 : vector<16x32xf32>, i32 -> vector<16x32xf32>
    %817 = vector.broadcast %124 : vector<16x1xf32> to vector<16x32xf32>
    %818 = arith.mulf %816, %817 : vector<16x32xf32>
    %819 = vector.extract_strided_slice %791 {offsets = [4, 0], sizes = [1, 32], strides = [1, 1]} : vector<5x32xf32> to vector<1x32xf32>
    %820 = vector.broadcast %819 : vector<1x32xf32> to vector<16x32xf32>
    %821 = arith.mulf %818, %820 : vector<16x32xf32>
    %822 = arith.addf %815, %821 : vector<16x32xf32>
    %c307 = arith.constant 307 : index
    %c0_250 = arith.constant 0 : index
    %823 = vector.load %arg4[%c307, %c0_250] : memref<320x128xf32, #tpu.memory_space<vmem>>, vector<1x32xf32>
    %c308 = arith.constant 308 : index
    %c0_251 = arith.constant 0 : index
    %824 = vector.load %arg4[%c308, %c0_251] : memref<320x128xf32, #tpu.memory_space<vmem>>, vector<1x32xf32>
    %cst_252 = arith.constant dense<0.000000e+00> : vector<16xf32>
    %825 = vector.multi_reduction <add>, %822, %cst_252 [1] : vector<16x32xf32> to vector<16xf32>
    %826 = vector.shape_cast %825 : vector<16xf32> to vector<16x1xf32>
    %cst_253 = arith.constant 3.200000e+01 : f32
    %827 = vector.broadcast %cst_253 : f32 to vector<16x1xf32>
    %828 = arith.divf %826, %827 : vector<16x1xf32>
    %829 = vector.broadcast %828 : vector<16x1xf32> to vector<16x32xf32>
    %830 = arith.subf %822, %829 : vector<16x32xf32>
    %831 = arith.mulf %830, %830 : vector<16x32xf32>
    %cst_254 = arith.constant dense<0.000000e+00> : vector<16xf32>
    %832 = vector.multi_reduction <add>, %831, %cst_254 [1] : vector<16x32xf32> to vector<16xf32>
    %833 = vector.shape_cast %832 : vector<16xf32> to vector<16x1xf32>
    %cst_255 = arith.constant 3.200000e+01 : f32
    %834 = vector.broadcast %cst_255 : f32 to vector<16x1xf32>
    %835 = arith.divf %833, %834 : vector<16x1xf32>
    %836 = vector.broadcast %828 : vector<16x1xf32> to vector<16x32xf32>
    %837 = arith.subf %822, %836 : vector<16x32xf32>
    %cst_256 = arith.constant 9.99999974E-6 : f32
    %838 = vector.broadcast %cst_256 : f32 to vector<16x1xf32>
    %839 = arith.addf %835, %838 : vector<16x1xf32>
    %840 = math.rsqrt %839 : vector<16x1xf32>
    %841 = vector.broadcast %840 : vector<16x1xf32> to vector<16x32xf32>
    %842 = arith.mulf %837, %841 : vector<16x32xf32>
    %843 = vector.broadcast %823 : vector<1x32xf32> to vector<16x32xf32>
    %844 = arith.mulf %842, %843 : vector<16x32xf32>
    %845 = vector.broadcast %824 : vector<1x32xf32> to vector<16x32xf32>
    %846 = arith.addf %844, %845 : vector<16x32xf32>
    %847 = arith.negf %846 : vector<16x32xf32>
    %848 = math.exp %847 : vector<16x32xf32>
    %cst_257 = arith.constant 1.000000e+00 : f32
    %849 = vector.broadcast %cst_257 : f32 to vector<16x32xf32>
    %850 = arith.addf %849, %848 : vector<16x32xf32>
    %851 = arith.divf %849, %850 : vector<16x32xf32>
    %852 = arith.mulf %846, %851 : vector<16x32xf32>
    %853 = arith.truncf %852 : vector<16x32xf32> to vector<16x32xbf16>
    %c736 = arith.constant 736 : index
    %c0_258 = arith.constant 0 : index
    %854 = vector.load %arg3[%c736, %c0_258] : memref<864x128xbf16, #tpu.memory_space<vmem>>, vector<32x32xbf16>
    %cst_259 = arith.constant dense<0.000000e+00> : vector<16x32xf32>
    %855 = tpu.matmul %853, %854, %cst_259 {dimension_numbers = #tpu.dot_dimension_numbers<[1], [0], [0], [1], [0, 0, 1, 1], [], []>} : vector<16x32xbf16>, vector<32x32xbf16>, vector<16x32xf32> -> vector<16x32xf32>
    %856 = arith.addf %747, %855 : vector<16x32xf32>
    %c309 = arith.constant 309 : index
    %c0_260 = arith.constant 0 : index
    %857 = vector.load %arg4[%c309, %c0_260] : memref<320x128xf32, #tpu.memory_space<vmem>>, vector<1x32xf32>
    %858 = vector.broadcast %857 : vector<1x32xf32> to vector<16x32xf32>
    %859 = arith.addf %856, %858 : vector<16x32xf32>
    %c310 = arith.constant 310 : index
    %c0_261 = arith.constant 0 : index
    %860 = vector.load %arg4[%c310, %c0_261] : memref<320x128xf32, #tpu.memory_space<vmem>>, vector<1x32xf32>
    %c311 = arith.constant 311 : index
    %c0_262 = arith.constant 0 : index
    %861 = vector.load %arg4[%c311, %c0_262] : memref<320x128xf32, #tpu.memory_space<vmem>>, vector<1x32xf32>
    %cst_263 = arith.constant dense<0.000000e+00> : vector<16xf32>
    %862 = vector.multi_reduction <add>, %859, %cst_263 [1] : vector<16x32xf32> to vector<16xf32>
    %863 = vector.shape_cast %862 : vector<16xf32> to vector<16x1xf32>
    %cst_264 = arith.constant 3.200000e+01 : f32
    %864 = vector.broadcast %cst_264 : f32 to vector<16x1xf32>
    %865 = arith.divf %863, %864 : vector<16x1xf32>
    %866 = vector.broadcast %865 : vector<16x1xf32> to vector<16x32xf32>
    %867 = arith.subf %859, %866 : vector<16x32xf32>
    %868 = arith.mulf %867, %867 : vector<16x32xf32>
    %cst_265 = arith.constant dense<0.000000e+00> : vector<16xf32>
    %869 = vector.multi_reduction <add>, %868, %cst_265 [1] : vector<16x32xf32> to vector<16xf32>
    %870 = vector.shape_cast %869 : vector<16xf32> to vector<16x1xf32>
    %cst_266 = arith.constant 3.200000e+01 : f32
    %871 = vector.broadcast %cst_266 : f32 to vector<16x1xf32>
    %872 = arith.divf %870, %871 : vector<16x1xf32>
    %873 = vector.broadcast %865 : vector<16x1xf32> to vector<16x32xf32>
    %874 = arith.subf %859, %873 : vector<16x32xf32>
    %cst_267 = arith.constant 9.99999974E-6 : f32
    %875 = vector.broadcast %cst_267 : f32 to vector<16x1xf32>
    %876 = arith.addf %872, %875 : vector<16x1xf32>
    %877 = math.rsqrt %876 : vector<16x1xf32>
    %878 = vector.broadcast %877 : vector<16x1xf32> to vector<16x32xf32>
    %879 = arith.mulf %874, %878 : vector<16x32xf32>
    %880 = vector.broadcast %860 : vector<1x32xf32> to vector<16x32xf32>
    %881 = arith.mulf %879, %880 : vector<16x32xf32>
    %882 = vector.broadcast %861 : vector<1x32xf32> to vector<16x32xf32>
    %883 = arith.addf %881, %882 : vector<16x32xf32>
    %884 = arith.truncf %883 : vector<16x32xf32> to vector<16x32xbf16>
    %c768 = arith.constant 768 : index
    %c0_268 = arith.constant 0 : index
    %885 = vector.load %arg3[%c768, %c0_268] : memref<864x128xbf16, #tpu.memory_space<vmem>>, vector<32x64xbf16>
    %cst_269 = arith.constant dense<0.000000e+00> : vector<16x64xf32>
    %886 = tpu.matmul %884, %885, %cst_269 {dimension_numbers = #tpu.dot_dimension_numbers<[1], [0], [0], [1], [0, 0, 1, 1], [], []>} : vector<16x32xbf16>, vector<32x64xbf16>, vector<16x64xf32> -> vector<16x64xf32>
    %c312 = arith.constant 312 : index
    %c0_270 = arith.constant 0 : index
    %887 = vector.load %arg4[%c312, %c0_270] : memref<320x128xf32, #tpu.memory_space<vmem>>, vector<1x64xf32>
    %888 = vector.broadcast %887 : vector<1x64xf32> to vector<16x64xf32>
    %889 = arith.addf %886, %888 : vector<16x64xf32>
    %890 = arith.negf %889 : vector<16x64xf32>
    %891 = math.exp %890 : vector<16x64xf32>
    %cst_271 = arith.constant 1.000000e+00 : f32
    %892 = vector.broadcast %cst_271 : f32 to vector<16x64xf32>
    %893 = arith.addf %892, %891 : vector<16x64xf32>
    %894 = arith.divf %892, %893 : vector<16x64xf32>
    %895 = arith.mulf %889, %894 : vector<16x64xf32>
    %896 = arith.truncf %895 : vector<16x64xf32> to vector<16x64xbf16>
    %c800 = arith.constant 800 : index
    %c0_272 = arith.constant 0 : index
    %897 = vector.load %arg3[%c800, %c0_272] : memref<864x128xbf16, #tpu.memory_space<vmem>>, vector<64x32xbf16>
    %cst_273 = arith.constant dense<0.000000e+00> : vector<16x32xf32>
    %898 = tpu.matmul %896, %897, %cst_273 {dimension_numbers = #tpu.dot_dimension_numbers<[1], [0], [0], [1], [0, 0, 1, 1], [], []>} : vector<16x64xbf16>, vector<64x32xbf16>, vector<16x32xf32> -> vector<16x32xf32>
    %c313 = arith.constant 313 : index
    %c0_274 = arith.constant 0 : index
    %899 = vector.load %arg4[%c313, %c0_274] : memref<320x128xf32, #tpu.memory_space<vmem>>, vector<1x32xf32>
    %900 = vector.broadcast %899 : vector<1x32xf32> to vector<16x32xf32>
    %901 = arith.addf %898, %900 : vector<16x32xf32>
    %902 = arith.addf %859, %901 : vector<16x32xf32>
    %c314 = arith.constant 314 : index
    %c0_275 = arith.constant 0 : index
    %903 = vector.load %arg4[%c314, %c0_275] : memref<320x128xf32, #tpu.memory_space<vmem>>, vector<1x32xf32>
    %c315 = arith.constant 315 : index
    %c0_276 = arith.constant 0 : index
    %904 = vector.load %arg4[%c315, %c0_276] : memref<320x128xf32, #tpu.memory_space<vmem>>, vector<1x32xf32>
    %cst_277 = arith.constant dense<0.000000e+00> : vector<16xf32>
    %905 = vector.multi_reduction <add>, %902, %cst_277 [1] : vector<16x32xf32> to vector<16xf32>
    %906 = vector.shape_cast %905 : vector<16xf32> to vector<16x1xf32>
    %cst_278 = arith.constant 3.200000e+01 : f32
    %907 = vector.broadcast %cst_278 : f32 to vector<16x1xf32>
    %908 = arith.divf %906, %907 : vector<16x1xf32>
    %909 = vector.broadcast %908 : vector<16x1xf32> to vector<16x32xf32>
    %910 = arith.subf %902, %909 : vector<16x32xf32>
    %911 = arith.mulf %910, %910 : vector<16x32xf32>
    %cst_279 = arith.constant dense<0.000000e+00> : vector<16xf32>
    %912 = vector.multi_reduction <add>, %911, %cst_279 [1] : vector<16x32xf32> to vector<16xf32>
    %913 = vector.shape_cast %912 : vector<16xf32> to vector<16x1xf32>
    %cst_280 = arith.constant 3.200000e+01 : f32
    %914 = vector.broadcast %cst_280 : f32 to vector<16x1xf32>
    %915 = arith.divf %913, %914 : vector<16x1xf32>
    %916 = vector.broadcast %908 : vector<16x1xf32> to vector<16x32xf32>
    %917 = arith.subf %902, %916 : vector<16x32xf32>
    %cst_281 = arith.constant 9.99999974E-6 : f32
    %918 = vector.broadcast %cst_281 : f32 to vector<16x1xf32>
    %919 = arith.addf %915, %918 : vector<16x1xf32>
    %920 = math.rsqrt %919 : vector<16x1xf32>
    %921 = vector.broadcast %920 : vector<16x1xf32> to vector<16x32xf32>
    %922 = arith.mulf %917, %921 : vector<16x32xf32>
    %923 = vector.broadcast %903 : vector<1x32xf32> to vector<16x32xf32>
    %924 = arith.mulf %922, %923 : vector<16x32xf32>
    %925 = vector.broadcast %904 : vector<1x32xf32> to vector<16x32xf32>
    %926 = arith.addf %924, %925 : vector<16x32xf32>
    %c0_282 = arith.constant 0 : index
    %c0_283 = arith.constant 0 : index
    %c0_284 = arith.constant 0 : index
    %927 = vector.load %arg5[%c0_282, %c0_283, %c0_284] : memref<1x16x32xf32, #tpu.memory_space<vmem>>, vector<1x16x32xf32>
    %928 = vector.shape_cast %927 : vector<1x16x32xf32> to vector<16x32xf32>
    %929 = vector.shape_cast %926 : vector<16x32xf32> to vector<1x16x32xf32>
    tpu.vector_store %arg5[%c0_282, %c0_283, %c0_284], %929 {strides = array<i32>} : memref<1x16x32xf32, #tpu.memory_space<vmem>>, vector<1x16x32xf32>,
    return
  }
  func.func @transform_0(%arg0: i32, %arg1: memref<2xi32, #tpu.memory_space<smem>>) -> (i32, i32, i32) {
    %c0_i32 = arith.constant 0 : i32
    %c0_i32_0 = arith.constant 0 : i32
    %c0_i32_1 = arith.constant 0 : i32
    return %arg0, %c0_i32, %c0_i32_0 : i32, i32, i32
  }
  func.func @transform_1(%arg0: i32, %arg1: memref<2xi32, #tpu.memory_space<smem>>) -> (i32, i32) {
    %c0_i32 = arith.constant 0 : i32
    %c0_i32_0 = arith.constant 0 : i32
    %c0_i32_1 = arith.constant 0 : i32
    return %c0_i32, %c0_i32_0 : i32, i32
  }
  func.func @transform_2(%arg0: i32, %arg1: memref<2xi32, #tpu.memory_space<smem>>) -> (i32, i32) {
    %c0_i32 = arith.constant 0 : i32
    %c0_i32_0 = arith.constant 0 : i32
    %c0_i32_1 = arith.constant 0 : i32
    return %c0_i32, %c0_i32_0 : i32, i32
  }
  func.func @transform_3(%arg0: i32, %arg1: memref<2xi32, #tpu.memory_space<smem>>) -> (i32, i32, i32) {
    %c0_i32 = arith.constant 0 : i32
    %c0_i32_0 = arith.constant 0 : i32
    %c0_i32_1 = arith.constant 0 : i32
    return %arg0, %c0_i32, %c0_i32_0 : i32, i32, i32
  }
}

</mosaic_0001>

<llo_original>
// kernel: _forward_impl.1
$region0: #{_forward_impl.1}
  #allocation0 [shape = 'u32[]', space=smem, size = 0x4, offset = 0x4, fixed_abs, tag = 'smem constant byte address 0x4 - core index']
  #allocation1 [shape = 'u32[144,128]{1,0:T(1,128)}', space=vmem, size = 0x12000, scoped, tag = 'internal scratch']
  #allocation2 [shape = 's32[1]{0}', space=sflag, size = 0x4, scoped, tag = 'scoped memory for _forward_impl.1']
  #allocation3 [shape = 'u8[512]{0}', space=smem, size = 0x200, scoped, tag = 'prefetched SMEM operand 0']
  %s0 = inlined_call_operand.vmem [shape: s32[2], index: 0, kind: input, shape index: {}]
  %s1 = inlined_call_operand.vmem [shape: f32[2,16,128], index: 1, kind: input, shape index: {}]
  %s2 = inlined_call_operand.vmem [shape: bf16[864,128], index: 2, kind: input, shape index: {}]
  %s3 = inlined_call_operand.hbm [shape: f32[320,128], index: 3, kind: input, shape index: {}]
  %s4 = inlined_call_operand.hbm [shape: f32[2,16,32], index: 4, kind: output, shape index: {}]
  %s5 = sld [smem:[#allocation0]]
  $region49: #{_forward_impl.1} parent=0
    _
  %s7 = ssub.s32 1, %s5
  %s8 = scalar_select 0, %s7, %s5
  %s9 = sshll.u32 %s0, 4
  %s10 = int_to_ptr.vmem [resolvable:$true] %s9
  %12 = dma.vmem_to_smem %s10, 16, [#allocation3], [#allocation2]
  %13 = dma.done [#allocation2], 16
  %14 = sfence
  $region1: #{_forward_impl.1} parent=0
    #allocation4 [shape = 'u8[163840]{0}', space=vmem, size = 0x28000, scoped, tag = 'input window, operand 3, single buffered']
    #allocation5 [shape = 's32[2]{0}', space=sflag, size = 0x8, scoped, tag = 'scoped memory for _forward_impl.1']
    #allocation6 [shape = 's32[2]{0}', space=sflag, size = 0x8, scoped, tag = 'scoped memory for _forward_impl.1']
    #allocation7 [shape = 'u8[16384]{0}', space=vmem, size = 0x4000, scoped, tag = 'output window, operand 0']
    %15 = vsyncpa [#allocation5], 0
    %16 = vsyncpa [#allocation6], 0
    %s17 = scalar_lea.sflag [#allocation6], 1
    %18 = vsyncpa %s17, 0
    loop: start=0, step=1, limit=4
    $region2: #{_forward_impl.1} parent=1 // loop_pre_header
      _
    $region3: #{_forward_impl.1} parent=1 // loop_header
      %s20 = sphi 0, %s24
      %p21 = scmp.ge.s32.totalorder %s20, 4
      %s30 = sphi 0, %s32
      %s33 = sphi 0, %s30
      %s34 = sphi 0, %s33
      %s50 = sphi 0, %s34
      %s54 = sphi 0, %s54
      %s56 = sphi 0, %s54
      %s57 = sphi 0, %s56
      %s71 = sphi 0, %s57
      %s75 = sphi 0, %s75
      %s77 = sphi 0, %s75
      %s78 = sphi 0, %s77
      %s92 = sphi 0, %s78
      %s98 = sphi 0, %s100
      %s101 = sphi 0, %s98
      %s102 = sphi 0, %s101
      %s118 = sphi 0, %s102
    $region4: #{_forward_impl.1} parent=1 // loop_header_branch
      %23 = sbr.rel (%p21) target = $region8
    $region5: #{_forward_impl.1} parent=1 // loop_body
      %s25 = ssub.s32 %s20, 1
      %s26 = ssub.s32 %s20, 2
      %s27 = sadd.s32 %s20, 1
      %s28 = ssub.s32 %s20, %s27
      %p29 = scmp.eq.s32.totalorder %s28, 0
      %s31 = sadd.s32 %s30, 1
      %s32 = scalar_select %p29, %s30, %s31
      %p35 = pneg %p29
      %p36 = scmp.eq.s32.totalorder %s20, 1
      %p37 = por %p35, %p36
      %p38 = scmp.ne.s32.totalorder %s30, %s33
      %p39 = scmp.eq.s32.totalorder %s20, 0
      %p40 = por %p38, %p39
      %p41 = scmp.ne.s32.totalorder %s30, %s33
      %p42 = scmp.eq.s32.totalorder %s25, 1
      %p43 = por %p41, %p42
      %p44 = scmp.ne.s32.totalorder %s33, %s34
      %p45 = scmp.eq.s32.totalorder %s25, 0
      %p46 = por %p44, %p45
      %p47 = scmp.ne.s32.totalorder %s33, %s34
      %p48 = scmp.eq.s32.totalorder %s26, 1
      %p49 = por %p47, %p48
      %p51 = scmp.ne.s32.totalorder %s34, %s50
      %p52 = scmp.eq.s32.totalorder %s26, 0
      %p53 = por %p51, %p52
      %s55 = sadd.s32 %s54, 1
      %p58 = scmp.eq.s32.totalorder %s20, 1
      %p59 = scmp.ne.s32.totalorder %s54, %s56
      %p60 = scmp.eq.s32.totalorder %s20, 0
      %p61 = por %p59, %p60
      %p62 = scmp.ne.s32.totalorder %s54, %s56
      %p63 = scmp.eq.s32.totalorder %s25, 1
      %p64 = por %p62, %p63
      %p65 = scmp.ne.s32.totalorder %s56, %s57
      %p66 = scmp.eq.s32.totalorder %s25, 0
      %p67 = por %p65, %p66
      %p68 = scmp.ne.s32.totalorder %s56, %s57
      %p69 = scmp.eq.s32.totalorder %s26, 1
      %p70 = por %p68, %p69
      %p72 = scmp.ne.s32.totalorder %s57, %s71
      %p73 = scmp.eq.s32.totalorder %s26, 0
      %p74 = por %p72, %p73
      %s76 = sadd.s32 %s75, 1
      %p79 = scmp.eq.s32.totalorder %s20, 1
      %p80 = scmp.ne.s32.totalorder %s75, %s77
      %p81 = scmp.eq.s32.totalorder %s20, 0
      %p82 = por %p80, %p81
      %p83 = scmp.ne.s32.totalorder %s75, %s77
      %p84 = scmp.eq.s32.totalorder %s25, 1
      %p85 = por %p83, %p84
      %p86 = scmp.ne.s32.totalorder %s77, %s78
      %p87 = scmp.eq.s32.totalorder %s25, 0
      %p88 = por %p86, %p87
      %p89 = scmp.ne.s32.totalorder %s77, %s78
      %p90 = scmp.eq.s32.totalorder %s26, 1
      %p91 = por %p89, %p90
      %p93 = scmp.ne.s32.totalorder %s78, %s92
      %p94 = scmp.eq.s32.totalorder %s26, 0
      %p95 = por %p93, %p94
      %s96 = ssub.s32 %s20, %s27
      %p97 = scmp.eq.s32.totalorder %s96, 0
      %s99 = sadd.s32 %s98, 1
      %s100 = scalar_select %p97, %s98, %s99
      %p103 = pneg %p97
      %p104 = scmp.eq.s32.totalorder %s20, 1
      %p105 = por %p103, %p104
      %p106 = scmp.ne.s32.totalorder %s98, %s101
      %p107 = scmp.eq.s32.totalorder %s20, 0
      %p108 = por %p106, %p107
      %p109 = scmp.ne.s32.totalorder %s98, %s101
      %p110 = scmp.eq.s32.totalorder %s25, 1
      %p111 = por %p109, %p110
      %p112 = scmp.ne.s32.totalorder %s101, %s102
      %p113 = scmp.eq.s32.totalorder %s25, 0
      %p114 = por %p112, %p113
      %p115 = scmp.ne.s32.totalorder %s101, %s102
      %p116 = scmp.eq.s32.totalorder %s26, 1
      %p117 = por %p115, %p116
      %p119 = scmp.ne.s32.totalorder %s102, %s118
      %p120 = scmp.eq.s32.totalorder %s26, 0
      %p121 = por %p119, %p120
      %p122 = scmp.le.s32.totalorder 1, %s20
      %p123 = scmp.lt.s32.totalorder %s20, 3
      %p124 = pnand %p122, %p123
      %p125 = pneg %p124
      // Predicated region
      $region9: #{_forward_impl.1} parent=5 // pred_check
        _
      $region10: #{_forward_impl.1} parent=5 // pred_check_branch
        %127 = sbr.rel (%p124) target = $region12
      $region11: #{_forward_impl.1} parent=5 // pred_region
        %s128 = ssub.s32 %s20, 1
        // Predicated region
        $region13: #{_forward_impl.1} parent=11 // pred_check
          %p129 = pneg %p67
        $region14: #{_forward_impl.1} parent=11 // pred_check_branch
          %131 = sbr.rel (%p129) target = $region16
        $region15: #{_forward_impl.1} parent=11 // pred_region
          _
        $region16: #{_forward_impl.1} parent=11 // pred_fallthru
          _
        // Predicated region
        $region17: #{_forward_impl.1} parent=11 // pred_check
          %p132 = pneg %p88
        $region18: #{_forward_impl.1} parent=11 // pred_check_branch
          %134 = sbr.rel (%p132) target = $region20
        $region19: #{_forward_impl.1} parent=11 // pred_region
          %s136 = ssub.s32 5120, 5120
          %137 = vsyncadd [#allocation5], %s136
          %s138 = sshll.u32 [#allocation4], 4
          %s139 = int_to_ptr.vmem [resolvable:$true] %s138
          %144 = dma.hbm_to_vmem [thread:$0]  %s3, 5120, %s139, [#allocation5], 128, 128, 8
        $region20: #{_forward_impl.1} parent=11 // pred_fallthru
          _
      $region12: #{_forward_impl.1} parent=5 // pred_fallthru
        _
      %p145 = scmp.lt.s32.totalorder %s20, 2
      // Predicated region
      $region21: #{_forward_impl.1} parent=5 // pred_check
        %p146 = pneg %p145
      $region22: #{_forward_impl.1} parent=5 // pred_check_branch
        %148 = sbr.rel (%p146) target = $region24
      $region23: #{_forward_impl.1} parent=5 // pred_region
        // Predicated region
        $region25: #{_forward_impl.1} parent=23 // pred_check
          %p149 = pneg %p40
        $region26: #{_forward_impl.1} parent=23 // pred_check_branch
          %151 = sbr.rel (%p149) target = $region28
        $region27: #{_forward_impl.1} parent=23 // pred_region
          %p152 = scmp.lt.s32.totalorder %s20, 1
          %s153 = scalar_select %p152, %s20, 1
          %s154 = smul.addr %s153, 2
          %s155 = smul.addr %s154, 8
          %s156 = scalar_lea.vmem %s1, %s155
        $region28: #{_forward_impl.1} parent=23 // pred_fallthru
          _
      $region24: #{_forward_impl.1} parent=5 // pred_fallthru
        _
      %p157 = scmp.le.s32.totalorder 1, %s20
      %p158 = scmp.lt.s32.totalorder %s20, 3
      %p159 = pnand %p157, %p158
      %p160 = pneg %p159
      // Predicated region
      $region29: #{_forward_impl.1} parent=5 // pred_check
        _
      $region30: #{_forward_impl.1} parent=5 // pred_check_branch
        %162 = sbr.rel (%p159) target = $region32
      $region31: #{_forward_impl.1} parent=5 // pred_region
        %s163 = ssub.s32 %s20, 1
        // Predicated region
        $region33: #{_forward_impl.1} parent=31 // pred_check
          %p164 = pneg %p88
        $region34: #{_forward_impl.1} parent=31 // pred_check_branch
          %166 = sbr.rel (%p164) target = $region36
        $region35: #{_forward_impl.1} parent=31 // pred_region
          %167 = dma.done [#allocation5], 5120
        $region36: #{_forward_impl.1} parent=31 // pred_fallthru
          _
        %p168 = scmp.lt.s32.totalorder %s25, 1
        %s169 = scalar_select %p168, %s25, 1
        %s170 = smul.addr %s169, 2
        %s171 = smul.addr %s170, 8
        %s172 = scalar_lea.vmem %s1, %s171
        %p173 = pneg %p46
        %p174 = pneg %p43
        %p175 = pneg %p67
        %p176 = pneg %p64
        %p177 = pneg %p88
        %p178 = pneg %p85
        %p179 = pneg %p114
        %p180 = pneg %p111
        %s181 = sand.u32 %s101, 1
        %s182 = scalar_lea.sflag [#allocation6], %s181
        %s183 = sand.u32 %s101, 1
        %s184 = smul.addr %s183, 16
        %s185 = scalar_lea.vmem [#allocation7], %s184
        %p186 = scmp.lt.s32.totalorder %s25, 1
        %s187 = scalar_select %p186, %s25, 1
        %s188 = smul.addr %s187, 2
        %s189 = smul.addr %s188, 8
        %s190 = scalar_lea.vmem %s1, %s189
        %s192 = sld [smem:[#allocation3 + %s25]]
        %v193 = vld [vmem:[%s190] sm:$0xff]
        %v194 = vld [vmem:[%s190 + $0x8] sm:$0xff]
        %v195 = vlaneseq
        %v196 = vshrl.u32 %v195, 7
        %v197 = vadd.s32 %v196, 8
        %v198 = vlaneseq
        %v199 = vand.u32 %v198, 127
        %v200 = vmul.u32 %v196, 2
        %v201 = vmul.u32 %v197, 2
        %v202 = vadd.s32 %v200, 1
        %v203 = vadd.s32 %v201, 1
        %v204 = vstv %s192
        %vm205 = vcmp.lt.s32.totalorder %v202, %v204
        %vm206 = vcmp.lt.s32.totalorder %v203, %v204
        %v207 = vsel %vm205, 1, 0
        %v208 = vsel %vm206, 1, 0
        %v209 = vcvt.s32.f32 %v207
        %v210 = vcvt.s32.f32 %v208
        %v211 = vmul.u32 %v199, 2
        %v212 = vadd.s32 %v211, 1
        %vm213 = vcmp.lt.s32.totalorder %v212, %v204
        %v214 = vsel %vm213, 0.0, -1e+09
        %vm215 = vcmp.ge.s32.totalorder %v199, 16
        %v216 = vsel %vm215, 1, 0
        %v217 = vadd.s32 %v200, %v216
        %v218 = vadd.s32 %v201, %v216
        %vm219 = vcmp.lt.s32.totalorder %v217, %v204
        %vm220 = vcmp.lt.s32.totalorder %v218, %v204
        %v221 = vsel %vm219, 1, 0
        %v222 = vsel %vm220, 1, 0
        %v223 = vcvt.s32.f32 %v221
        %v224 = vcvt.s32.f32 %v222
        %v225 = vld [vmem:[#allocation4 + $0x100] sm:$0x1]
        %v226 = vlaneseq
        %v227 = vshrl.u32 %v226, 7
        %v228 = vsub.s32 0, %v227
        %v229 = vrot.slane %v225, %v228
        %v230 = vmul.f32 %v193, %v229
        %v231 = vmul.f32 %v194, %v229
        %v232 = vld [vmem:[#allocation4] sm:$0xff]
        %v233 = vld [vmem:[#allocation4 + $0x8] sm:$0xff]
        %v234 = vld [vmem:[#allocation4 + $0x10] sm:$0xff]
        %v235 = vld [vmem:[#allocation4 + $0x18] sm:$0xff]
        %v236 = vld [vmem:[#allocation4 + $0x20] sm:$0xff]
        %v237 = vld [vmem:[#allocation4 + $0x28] sm:$0xff]
        %v238 = vld [vmem:[#allocation4 + $0x30] sm:$0xff]
        %v239 = vld [vmem:[#allocation4 + $0x38] sm:$0xff]
        %v240 = vld [vmem:[#allocation4 + $0x40] sm:$0xff]
        %v241 = vld [vmem:[#allocation4 + $0x48] sm:$0xff]
        %v242 = vld [vmem:[#allocation4 + $0x50] sm:$0xff]
        %v243 = vld [vmem:[#allocation4 + $0x58] sm:$0xff]
        %v244 = vld [vmem:[#allocation4 + $0x60] sm:$0xff]
        %v245 = vld [vmem:[#allocation4 + $0x68] sm:$0xff]
        %v246 = vld [vmem:[#allocation4 + $0x70] sm:$0xff]
        %v247 = vld [vmem:[#allocation4 + $0x78] sm:$0xff]
        %248 = vmatprep.subr.mxu0 0.0
        %249 = vmatpush1.msra.mxu0 %v232
        %250 = vmatprep.subr.mxu0 0.0
        %251 = vmatpush1.msra.mxu0 %v233
        %252 = vmatprep.subr.mxu0 0.0
        %253 = vmatpush1.msra.mxu0 %v234
        %254 = vmatprep.subr.mxu0 0.0
        %255 = vmatpush1.msra.mxu0 %v235
        %256 = vmatprep.subr.mxu0 0.0
        %257 = vmatpush1.msra.mxu0 %v236
        %258 = vmatprep.subr.mxu0 0.0
        %259 = vmatpush1.msra.mxu0 %v237
        %260 = vmatprep.subr.mxu0 0.0
        %261 = vmatpush1.msra.mxu0 %v238
        %262 = vmatprep.subr.mxu0 0.0
        %263 = vmatpush1.msra.mxu0 %v239
        %264 = vmatprep.subr.mxu0 0.0
        %265 = vmatpush1.msra.mxu0 %v240
        %266 = vmatprep.subr.mxu0 0.0
        %267 = vmatpush1.msra.mxu0 %v241
        %268 = vmatprep.subr.mxu0 0.0
        %269 = vmatpush1.msra.mxu0 %v242
        %270 = vmatprep.subr.mxu0 0.0
        %271 = vmatpush1.msra.mxu0 %v243
        %272 = vmatprep.subr.mxu0 0.0
        %273 = vmatpush1.msra.mxu0 %v244
        %274 = vmatprep.subr.mxu0 0.0
        %275 = vmatpush1.msra.mxu0 %v245
        %276 = vmatprep.subr.mxu0 0.0
        %277 = vmatpush1.msra.mxu0 %v246
        %278 = vmatprep.subr.mxu0 0.0
        %279 = vmatpush1.msra.mxu0 %v247
        %280 = vmatprep.subr.mxu0 0.0
        %281 = vmatpush1.msra.mxu0 0.0
        %282 = vmatprep.subr.mxu0 0.0
        %283 = vmatpush1.msra.mxu0 0.0
        %284 = vmatprep.subr.mxu0 0.0
        %285 = vmatpush1.msra.mxu0 0.0
        %286 = vmatprep.subr.mxu0 0.0
        %287 = vmatpush1.msra.mxu0 0.0
        %288 = vmatprep.subr.mxu0 0.0
        %289 = vmatpush1.msra.mxu0 0.0
        %290 = vmatprep.subr.mxu0 0.0
        %291 = vmatpush1.msra.mxu0 0.0
        %292 = vmatprep.subr.mxu0 0.0
        %293 = vmatpush1.msra.mxu0 0.0
        %294 = vmatprep.subr.mxu0 0.0
        %295 = vmatpush1.msra.mxu0 0.0
        %296 = vmatprep.subr.mxu0 0.0
        %297 = vmatpush1.msra.mxu0 0.0
        %298 = vmatprep.subr.mxu0 0.0
        %299 = vmatpush1.msra.mxu0 0.0
        %300 = vmatprep.subr.mxu0 0.0
        %301 = vmatpush1.msra.mxu0 0.0
        %302 = vmatprep.subr.mxu0 0.0
        %303 = vmatpush1.msra.mxu0 0.0
        %304 = vmatprep.subr.mxu0 0.0
        %305 = vmatpush1.msra.mxu0 0.0
        %306 = vmatprep.subr.mxu0 0.0
        %307 = vmatpush1.msra.mxu0 0.0
        %308 = vmatprep.subr.mxu0 0.0
        %309 = vmatpush1.msra.mxu0 0.0
        %310 = vmatprep.subr.mxu0 0.0
        %311 = vmatpush1.msra.mxu0 0.0
        %312 = vmatprep.mubr.f32.mxu0 0.0
        %313 = vmatmul.mubr.f32.gmra.mrb[0].mxu0 %v230
        %v314 = vpop.f32.mrb[0].mxu0
        %v315 = vadd.f32 0.0, %v314
        %v316 = vpop.f32.mrb[0].mxu0
        %317 = vmatprep.mubr.f32.mxu0 0.0
        %318 = vmatmul.mubr.f32.gmra.mrb[0].mxu0 %v231
        %v319 = vpop.f32.mrb[0].mxu0
        %v320 = vadd.f32 0.0, %v319
        %v321 = vpop.f32.mrb[0].mxu0
        %322 = vdwg.mxu0
        %v323 = vmul.f32 %v315, %v315
        %v324 = vmul.f32 %v320, %v320
        %v325 = vld [vmem:[#allocation4 + $0x80] sm:$0xff]
        %v326 = vld [vmem:[#allocation4 + $0x88] sm:$0xff]
        %v327 = vld [vmem:[#allocation4 + $0x90] sm:$0xff]
        %v328 = vld [vmem:[#allocation4 + $0x98] sm:$0xff]
        %v329 = vld [vmem:[#allocation4 + $0xa0] sm:$0xff]
        %v330 = vld [vmem:[#allocation4 + $0xa8] sm:$0xff]
        %v331 = vld [vmem:[#allocation4 + $0xb0] sm:$0xff]
        %v332 = vld [vmem:[#allocation4 + $0xb8] sm:$0xff]
        %v333 = vld [vmem:[#allocation4 + $0xc0] sm:$0xff]
        %v334 = vld [vmem:[#allocation4 + $0xc8] sm:$0xff]
        %v335 = vld [vmem:[#allocation4 + $0xd0] sm:$0xff]
        %v336 = vld [vmem:[#allocation4 + $0xd8] sm:$0xff]
        %v337 = vld [vmem:[#allocation4 + $0xe0] sm:$0xff]
        %v338 = vld [vmem:[#allocation4 + $0xe8] sm:$0xff]
        %v339 = vld [vmem:[#allocation4 + $0xf0] sm:$0xff]
        %v340 = vld [vmem:[#allocation4 + $0xf8] sm:$0xff]
        %341 = vmatprep.subr.mxu0 0.0
        %342 = vmatpush1.msra.mxu0 %v325
        %343 = vmatprep.subr.mxu0 0.0
        %344 = vmatpush1.msra.mxu0 %v326
        %345 = vmatprep.subr.mxu0 0.0
        %346 = vmatpush1.msra.mxu0 %v327
        %347 = vmatprep.subr.mxu0 0.0
        %348 = vmatpush1.msra.mxu0 %v328
        %349 = vmatprep.subr.mxu0 0.0
        %350 = vmatpush1.msra.mxu0 %v329
        %351 = vmatprep.subr.mxu0 0.0
        %352 = vmatpush1.msra.mxu0 %v330
        %353 = vmatprep.subr.mxu0 0.0
        %354 = vmatpush1.msra.mxu0 %v331
        %355 = vmatprep.subr.mxu0 0.0
        %356 = vmatpush1.msra.mxu0 %v332
        %357 = vmatprep.subr.mxu0 0.0
        %358 = vmatpush1.msra.mxu0 %v333
        %359 = vmatprep.subr.mxu0 0.0
        %360 = vmatpush1.msra.mxu0 %v334
        %361 = vmatprep.subr.mxu0 0.0
        %362 = vmatpush1.msra.mxu0 %v335
        %363 = vmatprep.subr.mxu0 0.0
        %364 = vmatpush1.msra.mxu0 %v336
        %365 = vmatprep.subr.mxu0 0.0
        %366 = vmatpush1.msra.mxu0 %v337
        %367 = vmatprep.subr.mxu0 0.0
        %368 = vmatpush1.msra.mxu0 %v338
        %369 = vmatprep.subr.mxu0 0.0
        %370 = vmatpush1.msra.mxu0 %v339
        %371 = vmatprep.subr.mxu0 0.0
        %372 = vmatpush1.msra.mxu0 %v340
        %373 = vmatprep.subr.mxu0 0.0
        %374 = vmatpush1.msra.mxu0 0.0
        %375 = vmatprep.subr.mxu0 0.0
        %376 = vmatpush1.msra.mxu0 0.0
        %377 = vmatprep.subr.mxu0 0.0
        %378 = vmatpush1.msra.mxu0 0.0
        %379 = vmatprep.subr.mxu0 0.0
        %380 = vmatpush1.msra.mxu0 0.0
        %381 = vmatprep.subr.mxu0 0.0
        %382 = vmatpush1.msra.mxu0 0.0
        %383 = vmatprep.subr.mxu0 0.0
        %384 = vmatpush1.msra.mxu0 0.0
        %385 = vmatprep.subr.mxu0 0.0
        %386 = vmatpush1.msra.mxu0 0.0
        %387 = vmatprep.subr.mxu0 0.0
        %388 = vmatpush1.msra.mxu0 0.0
        %389 = vmatprep.subr.mxu0 0.0
        %390 = vmatpush1.msra.mxu0 0.0
        %391 = vmatprep.subr.mxu0 0.0
        %392 = vmatpush1.msra.mxu0 0.0
        %393 = vmatprep.subr.mxu0 0.0
        %394 = vmatpush1.msra.mxu0 0.0
        %395 = vmatprep.subr.mxu0 0.0
        %396 = vmatpush1.msra.mxu0 0.0
        %397 = vmatprep.subr.mxu0 0.0
        %398 = vmatpush1.msra.mxu0 0.0
        %399 = vmatprep.subr.mxu0 0.0
        %400 = vmatpush1.msra.mxu0 0.0
        %401 = vmatprep.subr.mxu0 0.0
        %402 = vmatpush1.msra.mxu0 0.0
        %403 = vmatprep.subr.mxu0 0.0
        %404 = vmatpush1.msra.mxu0 0.0
        %405 = vmatprep.mubr.f32.mxu0 0.0
        %406 = vmatmul.mubr.f32.gmra.mrb[0].mxu0 %v323
        %v407 = vpop.f32.mrb[0].mxu0
        %v408 = vadd.f32 1e-06, %v407
        %v409 = vpop.f32.mrb[0].mxu0
        %410 = vmatprep.mubr.f32.mxu0 0.0
        %411 = vmatmul.mubr.f32.gmra.mrb[0].mxu0 %v324
        %v412 = vpop.f32.mrb[0].mxu0
        %v413 = vadd.f32 1e-06, %v412
        %v414 = vpop.f32.mrb[0].mxu0
        %415 = vdwg.mxu0
        %v416 = vlog2.pop %v408
        %v417 = vmul.f32 %v416, 0.6931472
        %v418 = vlog2.pop %v413
        %v419 = vmul.f32 %v418, 0.6931472
        %p420 = scmp.lt.s32.totalorder %s192, 32
        %s421 = scalar_select %p420, %s192, 32
        %p422 = scmp.gt.s32.totalorder %s421, 1
        %s423 = scalar_select %p422, %s421, 1
        %s424 = scvt.s32.f32 %s423
        %v425 = vstv %s424
        %v426 = vrcp.pop %v425
        %s427 = vtos %v426
        %v428 = vmul.f32 %v417, %v223
        %v429 = vmul.f32 %v419, %v224
        %vm430 = vcmask 261120
        %v431 = vsel %vm430, %v428, 0.0
        %v432 = vsel %vm430, %v429, 0.0
        %v433 = vadd.f32 %v431, %v432
        %v434 = vrot.slane %v433, 4
        %v435 = vadd.f32 %v433, %v434
        %v436 = vrot.slane %v435, 2
        %v437 = vadd.f32 %v435, %v436
        %v438 = vrot.slane %v437, 1
        %v439 = vadd.f32 %v437, %v438
        %441 = vrot.lane.b32.xlu0 %v439, 112
        %v442 = vpop.permute.xlu0 %441
        %v444 = vadd.f32 %v439, %v442
        %v445 = vstv %s427
        %v446 = vmul.f32 %v444, %v445
        %448 = vrot.lane.b32.xlu0 %v446, 16
        %v449 = vpop.permute.xlu0 %448
        %vm451 = vcmask 130048
        %v452 = vsel %vm451, %v446, %v449
        %v453 = vlaneseq
        %v454 = vshrl.u32 %v453, 7
        %v455 = vsub.s32 0, %v454
        %v456 = vrot.slane %v452, %v455
        %v457 = vsub.f32 %v417, %v456
        %v458 = vsub.f32 %v419, %v456
        %v459 = vmul.f32 %v457, %v457
        %v460 = vmul.f32 %v458, %v458
        %v461 = vmul.f32 %v459, %v223
        %v462 = vmul.f32 %v460, %v224
        %v463 = vsel %vm430, %v461, 0.0
        %v464 = vsel %vm430, %v462, 0.0
        %v465 = vadd.f32 %v463, %v464
        %v466 = vrot.slane %v465, 4
        %v467 = vadd.f32 %v465, %v466
        %v468 = vrot.slane %v467, 2
        %v469 = vadd.f32 %v467, %v468
        %v470 = vrot.slane %v469, 1
        %v471 = vadd.f32 %v469, %v470
        %473 = vrot.lane.b32.xlu0 %v471, 112
        %v474 = vpop.permute.xlu0 %473
        %v476 = vadd.f32 %v471, %v474
        %v477 = vmul.f32 %v476, %v445
        %479 = vrot.lane.b32.xlu0 %v477, 16
        %v480 = vpop.permute.xlu0 %479
        %v482 = vsel %vm451, %v477, %v480
        %v483 = vadd.f32 %v482, 1e-07
        %v484 = vrsqrt.pop %v483
        %v485 = vlaneseq
        %v486 = vshrl.u32 %v485, 7
        %v487 = vsub.s32 0, %v486
        %v488 = vrot.slane %v484, %v487
        %v489 = vmul.f32 %v457, %v488
        %v490 = vmul.f32 %v458, %v488
        %v491 = vmul.f32 %v489, %v223
        %v492 = vmul.f32 %v490, %v224
        %v493 = vld [vmem:[#allocation4 + $0x101] sm:$0x1]
        %v494 = vld [vmem:[#allocation4 + $0x102] sm:$0x1]
        %v495 = vsel %vm430, %v491, 0.0
        %496 = vadd.xlane.f32.xlu0 %v495
        %v497 = vpop.xlane.xlu0 %496
        %v498 = vsel %vm430, %v492, 0.0
        %499 = vadd.xlane.f32.xlu0 %v498
        %v500 = vpop.xlane.xlu0 %499
        %v501 = vrcp.pop 32.0
        %v502 = vmul.f32 %v497, %v501
        %v503 = vmul.f32 %v500, %v501
        %v504 = vsub.f32 %v491, %v502
        %v505 = vsub.f32 %v492, %v503
        %v506 = vmul.f32 %v504, %v504
        %v507 = vmul.f32 %v505, %v505
        %v508 = vsel %vm430, %v506, 0.0
        %509 = vadd.xlane.f32.xlu0 %v508
        %v510 = vpop.xlane.xlu0 %509
        %v511 = vsel %vm430, %v507, 0.0
        %512 = vadd.xlane.f32.xlu0 %v511
        %v513 = vpop.xlane.xlu0 %512
        %v514 = vmul.f32 %v510, %v501
        %v515 = vmul.f32 %v513, %v501
        %v516 = vadd.f32 %v514, 1e-05
        %v517 = vadd.f32 %v515, 1e-05
        %v518 = vrsqrt.pop %v516
        %v519 = vrsqrt.pop %v517
        %v520 = vmul.f32 %v504, %v518
        %v521 = vmul.f32 %v505, %v519
        %v522 = vlaneseq
        %v523 = vshrl.u32 %v522, 7
        %v524 = vsub.s32 0, %v523
        %v525 = vrot.slane %v493, %v524
        %v526 = vmul.f32 %v520, %v525
        %v527 = vmul.f32 %v521, %v525
        %v528 = vlaneseq
        %v529 = vshrl.u32 %v528, 7
        %v530 = vsub.s32 0, %v529
        %v531 = vrot.slane %v494, %v530
        %v532 = vadd.f32 %v526, %v531
        %v533 = vadd.f32 %v527, %v531
        %v534 = vpack.c.bf16 %v533, %v532
        %v535 = vld [vmem:[%s2] sm:$0xf]
        %v536 = vld [vmem:[%s2 + $0x4] sm:$0xf]
        %v537 = vld [vmem:[%s2 + $0x8] sm:$0xf]
        %v538 = vld [vmem:[%s2 + $0xc] sm:$0xf]
        %v539 = vld [vmem:[#allocation4 + $0x103] sm:$0x1]
        %v540 = vlaneseq
        %v541 = vshrl.u32 %v540, 7
        %v542 = vsub.s32 0, %v541
        %v543 = vrot.slane %v539, %v542
        %v548 = vunpack.c.l.b16 %v535
        %v549 = vunpack.c.l.b16 %v536
        %v550 = vunpack.c.l.b16 %v537
        %v551 = vunpack.c.l.b16 %v538
        %v552 = vpack.c.b16 %v549, %v548
        %v553 = vpack.c.b16 %v551, %v550
        %v557 = vsel %vm430, %v534, 0
        %559 = vmatprep.subr.bf16.mxu0 0
        %560 = vmatpush1.bf16.msra.mxu0 %v552
        %561 = vmatprep.subr.bf16.mxu0 0
        %562 = vmatpush1.bf16.msra.mxu0 %v553
        %563 = vmatprep.subr.bf16.mxu0 0
        %564 = vmatpush1.bf16.msra.mxu0 0
        %565 = vmatprep.subr.bf16.mxu0 0
        %566 = vmatpush1.bf16.msra.mxu0 0
        %567 = vmatprep.subr.bf16.mxu0 0
        %568 = vmatpush1.bf16.msra.mxu0 0
        %569 = vmatprep.subr.bf16.mxu0 0
        %570 = vmatpush1.bf16.msra.mxu0 0
        %571 = vmatprep.subr.bf16.mxu0 0
        %572 = vmatpush1.bf16.msra.mxu0 0
        %573 = vmatprep.subr.bf16.mxu0 0
        %574 = vmatpush1.bf16.msra.mxu0 0
        %575 = vmatprep.subr.bf16.mxu0 0
        %576 = vmatpush1.bf16.msra.mxu0 0
        %577 = vmatprep.subr.bf16.mxu0 0
        %578 = vmatpush1.bf16.msra.mxu0 0
        %579 = vmatprep.subr.bf16.mxu0 0
        %580 = vmatpush1.bf16.msra.mxu0 0
        %581 = vmatprep.subr.bf16.mxu0 0
        %582 = vmatpush1.bf16.msra.mxu0 0
        %583 = vmatprep.subr.bf16.mxu0 0
        %584 = vmatpush1.bf16.msra.mxu0 0
        %585 = vmatprep.subr.bf16.mxu0 0
        %586 = vmatpush1.bf16.msra.mxu0 0
        %587 = vmatprep.subr.bf16.mxu0 0
        %588 = vmatpush1.bf16.msra.mxu0 0
        %589 = vmatprep.subr.bf16.mxu0 0
        %590 = vmatpush1.bf16.msra.mxu0 0
        %591 = vmatprep.mubr.bf16.mxu0 0
        %592 = vmatmul.mubr.bf16.gmra.mrb[0].mxu0 %v557
        %v593 = vpop.f32.mrb[0].mxu0
        %v594 = vadd.f32 %v543, %v593
        %v595 = vpop.f32.mrb[0].mxu0
        %v596 = vpop.f32.mrb[0].mxu0
        %v597 = vadd.f32 %v543, %v596
        %v598 = vpop.f32.mrb[0].mxu0
        %599 = vdwg.mxu0
        %v600 = vmul.f32 %v594, %v209
        %v601 = vmul.f32 %v597, %v210
        %vm602 = vcmp.ge.s32.totalorder %v196, 2
        %vm603 = vcmp.ge.s32.totalorder %v197, 2
        %v604 = vsel %vm602, 1, 0
        %v605 = vsel %vm603, 1, 0
        %v606 = vcvt.s32.f32 %v604
        %v607 = vcvt.s32.f32 %v605
        %vm608 = vcmp.ge.s32.totalorder %v196, 1
        %vm609 = vcmp.ge.s32.totalorder %v197, 1
        %v610 = vsel %vm608, 1, 0
        %v611 = vsel %vm609, 1, 0
        %v612 = vcvt.s32.f32 %v610
        %v613 = vcvt.s32.f32 %v611
        %vm614 = vcmp.lt.s32.totalorder %v196, 15
        %vm615 = vcmp.lt.s32.totalorder %v197, 15
        %v616 = vsel %vm614, 1, 0
        %v617 = vsel %vm615, 1, 0
        %v618 = vcvt.s32.f32 %v616
        %v619 = vcvt.s32.f32 %v617
        %vm620 = vcmp.lt.s32.totalorder %v196, 14
        %vm621 = vcmp.lt.s32.totalorder %v197, 14
        %v622 = vsel %vm620, 1, 0
        %v623 = vsel %vm621, 1, 0
        %v624 = vcvt.s32.f32 %v622
        %v625 = vcvt.s32.f32 %v623
        %v626 = vld [vmem:[#allocation4 + $0x104] sm:$0x1]
        %v627 = vld [vmem:[#allocation4 + $0x105] sm:$0x1]
        %v628 = vsel %vm430, %v600, 0.0
        %629 = vadd.xlane.f32.xlu0 %v628
        %v630 = vpop.xlane.xlu0 %629
        %v631 = vsel %vm430, %v601, 0.0
        %632 = vadd.xlane.f32.xlu0 %v631
        %v633 = vpop.xlane.xlu0 %632
        %v634 = vmul.f32 %v630, %v501
        %v635 = vmul.f32 %v633, %v501
        %v636 = vsub.f32 %v600, %v634
        %v637 = vsub.f32 %v601, %v635
        %v638 = vmul.f32 %v636, %v636
        %v639 = vmul.f32 %v637, %v637
        %v640 = vsel %vm430, %v638, 0.0
        %641 = vadd.xlane.f32.xlu0 %v640
        %v642 = vpop.xlane.xlu0 %641
        %v643 = vsel %vm430, %v639, 0.0
        %644 = vadd.xlane.f32.xlu0 %v643
        %v645 = vpop.xlane.xlu0 %644
        %v646 = vmul.f32 %v642, %v501
        %v647 = vmul.f32 %v645, %v501
        %v648 = vadd.f32 %v646, 1e-05
        %v649 = vadd.f32 %v647, 1e-05
        %v650 = vrsqrt.pop %v648
        %v651 = vrsqrt.pop %v649
        %v652 = vmul.f32 %v636, %v650
        %v653 = vmul.f32 %v637, %v651
        %v654 = vlaneseq
        %v655 = vshrl.u32 %v654, 7
        %v656 = vsub.s32 0, %v655
        %v657 = vrot.slane %v626, %v656
        %v658 = vmul.f32 %v652, %v657
        %v659 = vmul.f32 %v653, %v657
        %v660 = vlaneseq
        %v661 = vshrl.u32 %v660, 7
        %v662 = vsub.s32 0, %v661
        %v663 = vrot.slane %v627, %v662
        %v664 = vadd.f32 %v658, %v663
        %v665 = vadd.f32 %v659, %v663
        %v666 = vpack.c.bf16 %v665, %v664
        %v667 = vld [vmem:[%s2 + $0x10] sm:$0xf]
        %v668 = vld [vmem:[%s2 + $0x14] sm:$0xf]
        %v669 = vld [vmem:[%s2 + $0x18] sm:$0xf]
        %v670 = vld [vmem:[%s2 + $0x1c] sm:$0xf]
        %v671 = vld [vmem:[#allocation4 + $0x106] sm:$0x1]
        %v672 = vlaneseq
        %v673 = vshrl.u32 %v672, 7
        %v674 = vsub.s32 0, %v673
        %v675 = vrot.slane %v671, %v674
        %v680 = vunpack.c.l.b16 %v667
        %v681 = vunpack.c.l.b16 %v668
        %v682 = vunpack.c.l.b16 %v669
        %v683 = vunpack.c.l.b16 %v670
        %v684 = vpack.c.b16 %v681, %v680
        %v685 = vpack.c.b16 %v683, %v682
        %v689 = vsel %vm430, %v666, 0
        %691 = vmatprep.subr.bf16.mxu0 0
        %692 = vmatpush1.bf16.msra.mxu0 %v684
        %693 = vmatprep.subr.bf16.mxu0 0
        %694 = vmatpush1.bf16.msra.mxu0 %v685
        %695 = vmatprep.subr.bf16.mxu0 0
        %696 = vmatpush1.bf16.msra.mxu0 0
        %697 = vmatprep.subr.bf16.mxu0 0
        %698 = vmatpush1.bf16.msra.mxu0 0
        %699 = vmatprep.subr.bf16.mxu0 0
        %700 = vmatpush1.bf16.msra.mxu0 0
        %701 = vmatprep.subr.bf16.mxu0 0
        %702 = vmatpush1.bf16.msra.mxu0 0
        %703 = vmatprep.subr.bf16.mxu0 0
        %704 = vmatpush1.bf16.msra.mxu0 0
        %705 = vmatprep.subr.bf16.mxu0 0
        %706 = vmatpush1.bf16.msra.mxu0 0
        %707 = vmatprep.subr.bf16.mxu0 0
        %708 = vmatpush1.bf16.msra.mxu0 0
        %709 = vmatprep.subr.bf16.mxu0 0
        %710 = vmatpush1.bf16.msra.mxu0 0
        %711 = vmatprep.subr.bf16.mxu0 0
        %712 = vmatpush1.bf16.msra.mxu0 0
        %713 = vmatprep.subr.bf16.mxu0 0
        %714 = vmatpush1.bf16.msra.mxu0 0
        %715 = vmatprep.subr.bf16.mxu0 0
        %716 = vmatpush1.bf16.msra.mxu0 0
        %717 = vmatprep.subr.bf16.mxu0 0
        %718 = vmatpush1.bf16.msra.mxu0 0
        %719 = vmatprep.subr.bf16.mxu0 0
        %720 = vmatpush1.bf16.msra.mxu0 0
        %721 = vmatprep.subr.bf16.mxu0 0
        %722 = vmatpush1.bf16.msra.mxu0 0
        %723 = vmatprep.mubr.bf16.mxu0 0
        %724 = vmatmul.mubr.bf16.gmra.mrb[0].mxu0 %v689
        %v725 = vpop.f32.mrb[0].mxu0
        %v726 = vadd.f32 %v675, %v725
        %v727 = vpop.f32.mrb[0].mxu0
        %v728 = vpop.f32.mrb[0].mxu0
        %v729 = vadd.f32 %v675, %v728
        %v730 = vpop.f32.mrb[0].mxu0
        %731 = vdwg.mxu0
        %v732 = vxor.u32 %v726, 2147483648
        %v733 = vxor.u32 %v729, 2147483648
        %v734 = vmul.f32 %v732, 1.442695
        %v735 = vpow.pop %v734
        %v736 = vmul.f32 %v733, 1.442695
        %v737 = vpow.pop %v736
        %v738 = vadd.f32 %v735, 1.0
        %v739 = vadd.f32 %v737, 1.0
        %v740 = vrcp.pop %v738
        %v741 = vmul.f32 1.0, %v740
        %v742 = vrcp.pop %v739
        %v743 = vmul.f32 1.0, %v742
        %v744 = vmul.f32 %v726, %v741
        %v745 = vmul.f32 %v729, %v743
        %v746 = vpack.c.bf16 %v745, %v744
        %v747 = vld [vmem:[%s2 + $0x20] sm:$0xf]
        %v748 = vld [vmem:[%s2 + $0x24] sm:$0xf]
        %v749 = vld [vmem:[%s2 + $0x28] sm:$0xf]
        %v750 = vld [vmem:[%s2 + $0x2c] sm:$0xf]
        %v751 = vld [vmem:[%s2 + $0x30] sm:$0xf]
        %v752 = vld [vmem:[%s2 + $0x34] sm:$0xf]
        %v753 = vld [vmem:[%s2 + $0x38] sm:$0xf]
        %v754 = vld [vmem:[%s2 + $0x3c] sm:$0xf]
        %v755 = vld [vmem:[#allocation4 + $0x107] sm:$0x1]
        %v756 = vlaneseq
        %v757 = vshrl.u32 %v756, 7
        %v758 = vsub.s32 0, %v757
        %v759 = vrot.slane %v755, %v758
        %v768 = vunpack.c.l.b16 %v747
        %v769 = vunpack.c.l.b16 %v748
        %v770 = vunpack.c.l.b16 %v749
        %v771 = vunpack.c.l.b16 %v750
        %v772 = vunpack.c.l.b16 %v751
        %v773 = vunpack.c.l.b16 %v752
        %v774 = vunpack.c.l.b16 %v753
        %v775 = vunpack.c.l.b16 %v754
        %v776 = vpack.c.b16 %v769, %v768
        %v777 = vpack.c.b16 %v771, %v770
        %v778 = vpack.c.b16 %v773, %v772
        %v779 = vpack.c.b16 %v775, %v774
        %vm784 = vcmask 523264
        %v786 = vsel %vm784, %v746, 0
        %788 = vmatprep.subr.bf16.mxu0 0
        %789 = vmatpush1.bf16.msra.mxu0 %v776
        %790 = vmatprep.subr.bf16.mxu0 0
        %791 = vmatpush1.bf16.msra.mxu0 %v777
        %792 = vmatprep.subr.bf16.mxu0 0
        %793 = vmatpush1.bf16.msra.mxu0 %v778
        %794 = vmatprep.subr.bf16.mxu0 0
        %795 = vmatpush1.bf16.msra.mxu0 %v779
        %796 = vmatprep.subr.bf16.mxu0 0
        %797 = vmatpush1.bf16.msra.mxu0 0
        %798 = vmatprep.subr.bf16.mxu0 0
        %799 = vmatpush1.bf16.msra.mxu0 0
        %800 = vmatprep.subr.bf16.mxu0 0
        %801 = vmatpush1.bf16.msra.mxu0 0
        %802 = vmatprep.subr.bf16.mxu0 0
        %803 = vmatpush1.bf16.msra.mxu0 0
        %804 = vmatprep.subr.bf16.mxu0 0
        %805 = vmatpush1.bf16.msra.mxu0 0
        %806 = vmatprep.subr.bf16.mxu0 0
        %807 = vmatpush1.bf16.msra.mxu0 0
        %808 = vmatprep.subr.bf16.mxu0 0
        %809 = vmatpush1.bf16.msra.mxu0 0
        %810 = vmatprep.subr.bf16.mxu0 0
        %811 = vmatpush1.bf16.msra.mxu0 0
        %812 = vmatprep.subr.bf16.mxu0 0
        %813 = vmatpush1.bf16.msra.mxu0 0
        %814 = vmatprep.subr.bf16.mxu0 0
        %815 = vmatpush1.bf16.msra.mxu0 0
        %816 = vmatprep.subr.bf16.mxu0 0
        %817 = vmatpush1.bf16.msra.mxu0 0
        %818 = vmatprep.subr.bf16.mxu0 0
        %819 = vmatpush1.bf16.msra.mxu0 0
        %820 = vmatprep.mubr.bf16.mxu0 0
        %821 = vmatmul.mubr.bf16.gmra.mrb[0].mxu0 %v786
        %v822 = vpop.f32.mrb[0].mxu0
        %v823 = vadd.f32 %v759, %v822
        %v824 = vpop.f32.mrb[0].mxu0
        %v825 = vpop.f32.mrb[0].mxu0
        %v826 = vadd.f32 %v759, %v825
        %v827 = vpop.f32.mrb[0].mxu0
        %828 = vdwg.mxu0
        %v829 = vadd.f32 %v600, %v823
        %v830 = vadd.f32 %v601, %v826
        %v831 = vld [vmem:[#allocation4 + $0x108] sm:$0x1]
        %v832 = vld [vmem:[#allocation4 + $0x109] sm:$0x1]
        %v833 = vsel %vm430, %v829, 0.0
        %834 = vadd.xlane.f32.xlu0 %v833
        %v835 = vpop.xlane.xlu0 %834
        %v836 = vsel %vm430, %v830, 0.0
        %837 = vadd.xlane.f32.xlu0 %v836
        %v838 = vpop.xlane.xlu0 %837
        %v839 = vmul.f32 %v835, %v501
        %v840 = vmul.f32 %v838, %v501
        %v841 = vsub.f32 %v829, %v839
        %v842 = vsub.f32 %v830, %v840
        %v843 = vmul.f32 %v841, %v841
        %v844 = vmul.f32 %v842, %v842
        %v845 = vsel %vm430, %v843, 0.0
        %846 = vadd.xlane.f32.xlu0 %v845
        %v847 = vpop.xlane.xlu0 %846
        %v848 = vsel %vm430, %v844, 0.0
        %849 = vadd.xlane.f32.xlu0 %v848
        %v850 = vpop.xlane.xlu0 %849
        %v851 = vmul.f32 %v847, %v501
        %v852 = vmul.f32 %v850, %v501
        %v853 = vadd.f32 %v851, 1e-05
        %v854 = vadd.f32 %v852, 1e-05
        %v855 = vrsqrt.pop %v853
        %v856 = vrsqrt.pop %v854
        %v857 = vmul.f32 %v841, %v855
        %v858 = vmul.f32 %v842, %v856
        %v859 = vlaneseq
        %v860 = vshrl.u32 %v859, 7
        %v861 = vsub.s32 0, %v860
        %v862 = vrot.slane %v831, %v861
        %v863 = vmul.f32 %v857, %v862
        %v864 = vmul.f32 %v858, %v862
        %v865 = vlaneseq
        %v866 = vshrl.u32 %v865, 7
        %v867 = vsub.s32 0, %v866
        %v868 = vrot.slane %v832, %v867
        %v869 = vadd.f32 %v863, %v868
        %v870 = vadd.f32 %v864, %v868
        %v871 = vpack.c.bf16 %v870, %v869
        %v872 = vld [vmem:[#allocation4 + $0x10a] sm:$0x1]
        %v873 = vld [vmem:[#allocation4 + $0x10b] sm:$0x1]
        %v874 = vld [vmem:[#allocation4 + $0x10c] sm:$0x1]
        %v875 = vld [vmem:[%s2 + $0x40] sm:$0xf]
        %v876 = vlaneseq
        %v877 = vshrl.u32 %v876, 7
        %v878 = vsub.s32 0, %v877
        %v879 = vrot.slane %v872, %v878
        %v881 = vsel %vm430, %v871, 0
        %v884 = vsel %vm430, %v875, 0
        %886 = vmatprep.subr.bf16.mxu0 0
        %887 = vmatpush1.bf16.xpose.msra.mxu0 %v884
        %888 = vmatprep.subr.bf16.mxu0 0
        %889 = vmatpush1.bf16.xpose.msra.mxu0 0
        %890 = vmatprep.subr.bf16.mxu0 0
        %891 = vmatpush1.bf16.xpose.msra.mxu0 0
        %892 = vmatprep.subr.bf16.mxu0 0
        %893 = vmatpush1.bf16.xpose.msra.mxu0 0
        %894 = vmatprep.subr.bf16.mxu0 0
        %895 = vmatpush1.bf16.xpose.msra.mxu0 0
        %896 = vmatprep.subr.bf16.mxu0 0
        %897 = vmatpush1.bf16.xpose.msra.mxu0 0
        %898 = vmatprep.subr.bf16.mxu0 0
        %899 = vmatpush1.bf16.xpose.msra.mxu0 0
        %900 = vmatprep.subr.bf16.mxu0 0
        %901 = vmatpush1.bf16.xpose.msra.mxu0 0
        %902 = vmatprep.subr.bf16.mxu0 0
        %903 = vmatpush1.bf16.xpose.msra.mxu0 0
        %904 = vmatprep.subr.bf16.mxu0 0
        %905 = vmatpush1.bf16.xpose.msra.mxu0 0
        %906 = vmatprep.subr.bf16.mxu0 0
        %907 = vmatpush1.bf16.xpose.msra.mxu0 0
        %908 = vmatprep.subr.bf16.mxu0 0
        %909 = vmatpush1.bf16.xpose.msra.mxu0 0
        %910 = vmatprep.subr.bf16.mxu0 0
        %911 = vmatpush1.bf16.xpose.msra.mxu0 0
        %912 = vmatprep.subr.bf16.mxu0 0
        %913 = vmatpush1.bf16.xpose.msra.mxu0 0
        %914 = vmatprep.subr.bf16.mxu0 0
        %915 = vmatpush1.bf16.xpose.msra.mxu0 0
        %916 = vmatprep.subr.bf16.mxu0 0
        %917 = vmatpush1.bf16.xpose.msra.mxu0 0
        %918 = vmatprep.mubr.bf16.mxu0 0
        %919 = vmatmul.mubr.bf16.gmra.mrb[0].mxu0 %v881
        %v920 = vpop.f32.mrb[0].mxu0
        %v921 = vadd.f32 %v879, %v920
        %v922 = vpop.f32.mrb[0].mxu0
        %v923 = vpop.f32.mrb[0].mxu0
        %v924 = vadd.f32 %v879, %v923
        %v925 = vpop.f32.mrb[0].mxu0
        %926 = vdwg.mxu0
        %v927 = vld [vmem:[%s2 + $0x50] sm:$0xf]
        %v928 = vlaneseq
        %v929 = vshrl.u32 %v928, 7
        %v930 = vsub.s32 0, %v929
        %v931 = vrot.slane %v873, %v930
        %v933 = vsel %vm430, %v927, 0
        %935 = vmatprep.subr.bf16.mxu0 0
        %936 = vmatpush1.bf16.xpose.msra.mxu0 %v933
        %937 = vmatprep.subr.bf16.mxu0 0
        %938 = vmatpush1.bf16.xpose.msra.mxu0 0
        %939 = vmatprep.subr.bf16.mxu0 0
        %940 = vmatpush1.bf16.xpose.msra.mxu0 0
        %941 = vmatprep.subr.bf16.mxu0 0
        %942 = vmatpush1.bf16.xpose.msra.mxu0 0
        %943 = vmatprep.subr.bf16.mxu0 0
        %944 = vmatpush1.bf16.xpose.msra.mxu0 0
        %945 = vmatprep.subr.bf16.mxu0 0
        %946 = vmatpush1.bf16.xpose.msra.mxu0 0
        %947 = vmatprep.subr.bf16.mxu0 0
        %948 = vmatpush1.bf16.xpose.msra.mxu0 0
        %949 = vmatprep.subr.bf16.mxu0 0
        %950 = vmatpush1.bf16.xpose.msra.mxu0 0
        %951 = vmatprep.subr.bf16.mxu0 0
        %952 = vmatpush1.bf16.xpose.msra.mxu0 0
        %953 = vmatprep.subr.bf16.mxu0 0
        %954 = vmatpush1.bf16.xpose.msra.mxu0 0
        %955 = vmatprep.subr.bf16.mxu0 0
        %956 = vmatpush1.bf16.xpose.msra.mxu0 0
        %957 = vmatprep.subr.bf16.mxu0 0
        %958 = vmatpush1.bf16.xpose.msra.mxu0 0
        %959 = vmatprep.subr.bf16.mxu0 0
        %960 = vmatpush1.bf16.xpose.msra.mxu0 0
        %961 = vmatprep.subr.bf16.mxu0 0
        %962 = vmatpush1.bf16.xpose.msra.mxu0 0
        %963 = vmatprep.subr.bf16.mxu0 0
        %964 = vmatpush1.bf16.xpose.msra.mxu0 0
        %965 = vmatprep.subr.bf16.mxu0 0
        %966 = vmatpush1.bf16.xpose.msra.mxu0 0
        %967 = vmatprep.mubr.bf16.mxu0 0
        %968 = vmatmul.mubr.bf16.gmra.mrb[0].mxu0 %v881
        %v969 = vpop.f32.mrb[0].mxu0
        %v970 = vadd.f32 %v931, %v969
        %v971 = vpop.f32.mrb[0].mxu0
        %v972 = vpop.f32.mrb[0].mxu0
        %v973 = vadd.f32 %v931, %v972
        %v974 = vpop.f32.mrb[0].mxu0
        %975 = vdwg.mxu0
        %v976 = vld [vmem:[%s2 + $0x60] sm:$0xf]
        %v977 = vlaneseq
        %v978 = vshrl.u32 %v977, 7
        %v979 = vsub.s32 0, %v978
        %v980 = vrot.slane %v874, %v979
        %v982 = vsel %vm430, %v976, 0
        %984 = vmatprep.subr.bf16.mxu0 0
        %985 = vmatpush1.bf16.xpose.msra.mxu0 %v982
        %986 = vmatprep.subr.bf16.mxu0 0
        %987 = vmatpush1.bf16.xpose.msra.mxu0 0
        %988 = vmatprep.subr.bf16.mxu0 0
        %989 = vmatpush1.bf16.xpose.msra.mxu0 0
        %990 = vmatprep.subr.bf16.mxu0 0
        %991 = vmatpush1.bf16.xpose.msra.mxu0 0
        %992 = vmatprep.subr.bf16.mxu0 0
        %993 = vmatpush1.bf16.xpose.msra.mxu0 0
        %994 = vmatprep.subr.bf16.mxu0 0
        %995 = vmatpush1.bf16.xpose.msra.mxu0 0
        %996 = vmatprep.subr.bf16.mxu0 0
        %997 = vmatpush1.bf16.xpose.msra.mxu0 0
        %998 = vmatprep.subr.bf16.mxu0 0
        %999 = vmatpush1.bf16.xpose.msra.mxu0 0
        %1000 = vmatprep.subr.bf16.mxu0 0
        %1001 = vmatpush1.bf16.xpose.msra.mxu0 0
        %1002 = vmatprep.subr.bf16.mxu0 0
        %1003 = vmatpush1.bf16.xpose.msra.mxu0 0
        %1004 = vmatprep.subr.bf16.mxu0 0
        %1005 = vmatpush1.bf16.xpose.msra.mxu0 0
        %1006 = vmatprep.subr.bf16.mxu0 0
        %1007 = vmatpush1.bf16.xpose.msra.mxu0 0
        %1008 = vmatprep.subr.bf16.mxu0 0
        %1009 = vmatpush1.bf16.xpose.msra.mxu0 0
        %1010 = vmatprep.subr.bf16.mxu0 0
        %1011 = vmatpush1.bf16.xpose.msra.mxu0 0
        %1012 = vmatprep.subr.bf16.mxu0 0
        %1013 = vmatpush1.bf16.xpose.msra.mxu0 0
        %1014 = vmatprep.subr.bf16.mxu0 0
        %1015 = vmatpush1.bf16.xpose.msra.mxu0 0
        %1016 = vmatprep.mubr.bf16.mxu0 0
        %1017 = vmatmul.mubr.bf16.gmra.mrb[0].mxu0 %v881
        %v1018 = vpop.f32.mrb[0].mxu0
        %v1019 = vadd.f32 %v980, %v1018
        %v1020 = vpop.f32.mrb[0].mxu0
        %v1021 = vpop.f32.mrb[0].mxu0
        %v1022 = vadd.f32 %v980, %v1021
        %v1023 = vpop.f32.mrb[0].mxu0
        %1024 = vdwg.mxu0
        %v1025 = vld [vmem:[%s2 + $0x44] sm:$0xf]
        %1027 = vrot.lane.b32.xlu0 %v879, 120
        %v1028 = vpop.permute.xlu0 %1027
        %v1031 = vsel %vm430, %v1025, 0
        %1033 = vmatprep.subr.bf16.mxu0 0
        %1034 = vmatpush1.bf16.xpose.msra.mxu0 %v1031
        %1035 = vmatprep.subr.bf16.mxu0 0
        %1036 = vmatpush1.bf16.xpose.msra.mxu0 0
        %1037 = vmatprep.subr.bf16.mxu0 0
        %1038 = vmatpush1.bf16.xpose.msra.mxu0 0
        %1039 = vmatprep.subr.bf16.mxu0 0
        %1040 = vmatpush1.bf16.xpose.msra.mxu0 0
        %1041 = vmatprep.subr.bf16.mxu0 0
        %1042 = vmatpush1.bf16.xpose.msra.mxu0 0
        %1043 = vmatprep.subr.bf16.mxu0 0
        %1044 = vmatpush1.bf16.xpose.msra.mxu0 0
        %1045 = vmatprep.subr.bf16.mxu0 0
        %1046 = vmatpush1.bf16.xpose.msra.mxu0 0
        %1047 = vmatprep.subr.bf16.mxu0 0
        %1048 = vmatpush1.bf16.xpose.msra.mxu0 0
        %1049 = vmatprep.subr.bf16.mxu0 0
        %1050 = vmatpush1.bf16.xpose.msra.mxu0 0
        %1051 = vmatprep.subr.bf16.mxu0 0
        %1052 = vmatpush1.bf16.xpose.msra.mxu0 0
        %1053 = vmatprep.subr.bf16.mxu0 0
        %1054 = vmatpush1.bf16.xpose.msra.mxu0 0
        %1055 = vmatprep.subr.bf16.mxu0 0
        %1056 = vmatpush1.bf16.xpose.msra.mxu0 0
        %1057 = vmatprep.subr.bf16.mxu0 0
        %1058 = vmatpush1.bf16.xpose.msra.mxu0 0
        %1059 = vmatprep.subr.bf16.mxu0 0
        %1060 = vmatpush1.bf16.xpose.msra.mxu0 0
        %1061 = vmatprep.subr.bf16.mxu0 0
        %1062 = vmatpush1.bf16.xpose.msra.mxu0 0
        %1063 = vmatprep.subr.bf16.mxu0 0
        %1064 = vmatpush1.bf16.xpose.msra.mxu0 0
        %1065 = vmatprep.mubr.bf16.mxu0 0
        %1066 = vmatmul.mubr.bf16.gmra.mrb[0].mxu0 %v881
        %v1067 = vpop.f32.mrb[0].mxu0
        %v1068 = vadd.f32 %v1028, %v1067
        %v1069 = vpop.f32.mrb[0].mxu0
        %v1070 = vpop.f32.mrb[0].mxu0
        %v1071 = vadd.f32 %v1028, %v1070
        %v1072 = vpop.f32.mrb[0].mxu0
        %1073 = vdwg.mxu0
        %v1074 = vld [vmem:[%s2 + $0x54] sm:$0xf]
        %1076 = vrot.lane.b32.xlu0 %v931, 120
        %v1077 = vpop.permute.xlu0 %1076
        %v1080 = vsel %vm430, %v1074, 0
        %1082 = vmatprep.subr.bf16.mxu0 0
        %1083 = vmatpush1.bf16.xpose.msra.mxu0 %v1080
        %1084 = vmatprep.subr.bf16.mxu0 0
        %1085 = vmatpush1.bf16.xpose.msra.mxu0 0
        %1086 = vmatprep.subr.bf16.mxu0 0
        %1087 = vmatpush1.bf16.xpose.msra.mxu0 0
        %1088 = vmatprep.subr.bf16.mxu0 0
        %1089 = vmatpush1.bf16.xpose.msra.mxu0 0
        %1090 = vmatprep.subr.bf16.mxu0 0
        %1091 = vmatpush1.bf16.xpose.msra.mxu0 0
        %1092 = vmatprep.subr.bf16.mxu0 0
        %1093 = vmatpush1.bf16.xpose.msra.mxu0 0
        %1094 = vmatprep.subr.bf16.mxu0 0
        %1095 = vmatpush1.bf16.xpose.msra.mxu0 0
        %1096 = vmatprep.subr.bf16.mxu0 0
        %1097 = vmatpush1.bf16.xpose.msra.mxu0 0
        %1098 = vmatprep.subr.bf16.mxu0 0
        %1099 = vmatpush1.bf16.xpose.msra.mxu0 0
        %1100 = vmatprep.subr.bf16.mxu0 0
        %1101 = vmatpush1.bf16.xpose.msra.mxu0 0
        %1102 = vmatprep.subr.bf16.mxu0 0
        %1103 = vmatpush1.bf16.xpose.msra.mxu0 0
        %1104 = vmatprep.subr.bf16.mxu0 0
        %1105 = vmatpush1.bf16.xpose.msra.mxu0 0
        %1106 = vmatprep.subr.bf16.mxu0 0
        %1107 = vmatpush1.bf16.xpose.msra.mxu0 0
        %1108 = vmatprep.subr.bf16.mxu0 0
        %1109 = vmatpush1.bf16.xpose.msra.mxu0 0
        %1110 = vmatprep.subr.bf16.mxu0 0
        %1111 = vmatpush1.bf16.xpose.msra.mxu0 0
        %1112 = vmatprep.subr.bf16.mxu0 0
        %1113 = vmatpush1.bf16.xpose.msra.mxu0 0
        %1114 = vmatprep.mubr.bf16.mxu0 0
        %1115 = vmatmul.mubr.bf16.gmra.mrb[0].mxu0 %v881
        %v1116 = vpop.f32.mrb[0].mxu0
        %v1117 = vadd.f32 %v1077, %v1116
        %v1118 = vpop.f32.mrb[0].mxu0
        %v1119 = vpop.f32.mrb[0].mxu0
        %v1120 = vadd.f32 %v1077, %v1119
        %v1121 = vpop.f32.mrb[0].mxu0
        %1122 = vdwg.mxu0
        %v1123 = vld [vmem:[%s2 + $0x64] sm:$0xf]
        %1125 = vrot.lane.b32.xlu0 %v980, 120
        %v1126 = vpop.permute.xlu0 %1125
        %v1129 = vsel %vm430, %v1123, 0
        %1131 = vmatprep.subr.bf16.mxu0 0
        %1132 = vmatpush1.bf16.xpose.msra.mxu0 %v1129
        %1133 = vmatprep.subr.bf16.mxu0 0
        %1134 = vmatpush1.bf16.xpose.msra.mxu0 0
        %1135 = vmatprep.subr.bf16.mxu0 0
        %1136 = vmatpush1.bf16.xpose.msra.mxu0 0
        %1137 = vmatprep.subr.bf16.mxu0 0
        %1138 = vmatpush1.bf16.xpose.msra.mxu0 0
        %1139 = vmatprep.subr.bf16.mxu0 0
        %1140 = vmatpush1.bf16.xpose.msra.mxu0 0
        %1141 = vmatprep.subr.bf16.mxu0 0
        %1142 = vmatpush1.bf16.xpose.msra.mxu0 0
        %1143 = vmatprep.subr.bf16.mxu0 0
        %1144 = vmatpush1.bf16.xpose.msra.mxu0 0
        %1145 = vmatprep.subr.bf16.mxu0 0
        %1146 = vmatpush1.bf16.xpose.msra.mxu0 0
        %1147 = vmatprep.subr.bf16.mxu0 0
        %1148 = vmatpush1.bf16.xpose.msra.mxu0 0
        %1149 = vmatprep.subr.bf16.mxu0 0
        %1150 = vmatpush1.bf16.xpose.msra.mxu0 0
        %1151 = vmatprep.subr.bf16.mxu0 0
        %1152 = vmatpush1.bf16.xpose.msra.mxu0 0
        %1153 = vmatprep.subr.bf16.mxu0 0
        %1154 = vmatpush1.bf16.xpose.msra.mxu0 0
        %1155 = vmatprep.subr.bf16.mxu0 0
        %1156 = vmatpush1.bf16.xpose.msra.mxu0 0
        %1157 = vmatprep.subr.bf16.mxu0 0
        %1158 = vmatpush1.bf16.xpose.msra.mxu0 0
        %1159 = vmatprep.subr.bf16.mxu0 0
        %1160 = vmatpush1.bf16.xpose.msra.mxu0 0
        %1161 = vmatprep.subr.bf16.mxu0 0
        %1162 = vmatpush1.bf16.xpose.msra.mxu0 0
        %1163 = vmatprep.mubr.bf16.mxu0 0
        %1164 = vmatmul.mubr.bf16.gmra.mrb[0].mxu0 %v881
        %v1165 = vpop.f32.mrb[0].mxu0
        %v1166 = vadd.f32 %v1126, %v1165
        %v1167 = vpop.f32.mrb[0].mxu0
        %v1168 = vpop.f32.mrb[0].mxu0
        %v1169 = vadd.f32 %v1126, %v1168
        %v1170 = vpop.f32.mrb[0].mxu0
        %1171 = vdwg.mxu0
        %v1172 = vld [vmem:[%s2 + $0x48] sm:$0xf]
        %1173 = vrot.lane.b32.xlu0 %v879, 112
        %v1174 = vpop.permute.xlu0 %1173
        %v1177 = vsel %vm430, %v1172, 0
        %1179 = vmatprep.subr.bf16.mxu0 0
        %1180 = vmatpush1.bf16.xpose.msra.mxu0 %v1177
        %1181 = vmatprep.subr.bf16.mxu0 0
        %1182 = vmatpush1.bf16.xpose.msra.mxu0 0
        %1183 = vmatprep.subr.bf16.mxu0 0
        %1184 = vmatpush1.bf16.xpose.msra.mxu0 0
        %1185 = vmatprep.subr.bf16.mxu0 0
        %1186 = vmatpush1.bf16.xpose.msra.mxu0 0
        %1187 = vmatprep.subr.bf16.mxu0 0
        %1188 = vmatpush1.bf16.xpose.msra.mxu0 0
        %1189 = vmatprep.subr.bf16.mxu0 0
        %1190 = vmatpush1.bf16.xpose.msra.mxu0 0
        %1191 = vmatprep.subr.bf16.mxu0 0
        %1192 = vmatpush1.bf16.xpose.msra.mxu0 0
        %1193 = vmatprep.subr.bf16.mxu0 0
        %1194 = vmatpush1.bf16.xpose.msra.mxu0 0
        %1195 = vmatprep.subr.bf16.mxu0 0
        %1196 = vmatpush1.bf16.xpose.msra.mxu0 0
        %1197 = vmatprep.subr.bf16.mxu0 0
        %1198 = vmatpush1.bf16.xpose.msra.mxu0 0
        %1199 = vmatprep.subr.bf16.mxu0 0
        %1200 = vmatpush1.bf16.xpose.msra.mxu0 0
        %1201 = vmatprep.subr.bf16.mxu0 0
        %1202 = vmatpush1.bf16.xpose.msra.mxu0 0
        %1203 = vmatprep.subr.bf16.mxu0 0
        %1204 = vmatpush1.bf16.xpose.msra.mxu0 0
        %1205 = vmatprep.subr.bf16.mxu0 0
        %1206 = vmatpush1.bf16.xpose.msra.mxu0 0
        %1207 = vmatprep.subr.bf16.mxu0 0
        %1208 = vmatpush1.bf16.xpose.msra.mxu0 0
        %1209 = vmatprep.subr.bf16.mxu0 0
        %1210 = vmatpush1.bf16.xpose.msra.mxu0 0
        %1211 = vmatprep.mubr.bf16.mxu0 0
        %1212 = vmatmul.mubr.bf16.gmra.mrb[0].mxu0 %v881
        %v1213 = vpop.f32.mrb[0].mxu0
        %v1214 = vadd.f32 %v1174, %v1213
        %v1215 = vpop.f32.mrb[0].mxu0
        %v1216 = vpop.f32.mrb[0].mxu0
        %v1217 = vadd.f32 %v1174, %v1216
        %v1218 = vpop.f32.mrb[0].mxu0
        %1219 = vdwg.mxu0
        %v1220 = vld [vmem:[%s2 + $0x58] sm:$0xf]
        %1221 = vrot.lane.b32.xlu0 %v931, 112
        %v1222 = vpop.permute.xlu0 %1221
        %v1225 = vsel %vm430, %v1220, 0
        %1227 = vmatprep.subr.bf16.mxu0 0
        %1228 = vmatpush1.bf16.xpose.msra.mxu0 %v1225
        %1229 = vmatprep.subr.bf16.mxu0 0
        %1230 = vmatpush1.bf16.xpose.msra.mxu0 0
        %1231 = vmatprep.subr.bf16.mxu0 0
        %1232 = vmatpush1.bf16.xpose.msra.mxu0 0
        %1233 = vmatprep.subr.bf16.mxu0 0
        %1234 = vmatpush1.bf16.xpose.msra.mxu0 0
        %1235 = vmatprep.subr.bf16.mxu0 0
        %1236 = vmatpush1.bf16.xpose.msra.mxu0 0
        %1237 = vmatprep.subr.bf16.mxu0 0
        %1238 = vmatpush1.bf16.xpose.msra.mxu0 0
        %1239 = vmatprep.subr.bf16.mxu0 0
        %1240 = vmatpush1.bf16.xpose.msra.mxu0 0
        %1241 = vmatprep.subr.bf16.mxu0 0
        %1242 = vmatpush1.bf16.xpose.msra.mxu0 0
        %1243 = vmatprep.subr.bf16.mxu0 0
        %1244 = vmatpush1.bf16.xpose.msra.mxu0 0
        %1245 = vmatprep.subr.bf16.mxu0 0
        %1246 = vmatpush1.bf16.xpose.msra.mxu0 0
        %1247 = vmatprep.subr.bf16.mxu0 0
        %1248 = vmatpush1.bf16.xpose.msra.mxu0 0
        %1249 = vmatprep.subr.bf16.mxu0 0
        %1250 = vmatpush1.bf16.xpose.msra.mxu0 0
        %1251 = vmatprep.subr.bf16.mxu0 0
        %1252 = vmatpush1.bf16.xpose.msra.mxu0 0
        %1253 = vmatprep.subr.bf16.mxu0 0
        %1254 = vmatpush1.bf16.xpose.msra.mxu0 0
        %1255 = vmatprep.subr.bf16.mxu0 0
        %1256 = vmatpush1.bf16.xpose.msra.mxu0 0
        %1257 = vmatprep.subr.bf16.mxu0 0
        %1258 = vmatpush1.bf16.xpose.msra.mxu0 0
        %1259 = vmatprep.mubr.bf16.mxu0 0
        %1260 = vmatmul.mubr.bf16.gmra.mrb[0].mxu0 %v881
        %v1261 = vpop.f32.mrb[0].mxu0
        %v1262 = vadd.f32 %v1222, %v1261
        %v1263 = vpop.f32.mrb[0].mxu0
        %v1264 = vpop.f32.mrb[0].mxu0
        %v1265 = vadd.f32 %v1222, %v1264
        %v1266 = vpop.f32.mrb[0].mxu0
        %1267 = vdwg.mxu0
        %v1268 = vld [vmem:[%s2 + $0x68] sm:$0xf]
        %1269 = vrot.lane.b32.xlu0 %v980, 112
        %v1270 = vpop.permute.xlu0 %1269
        %v1273 = vsel %vm430, %v1268, 0
        %1275 = vmatprep.subr.bf16.mxu0 0
        %1276 = vmatpush1.bf16.xpose.msra.mxu0 %v1273
        %1277 = vmatprep.subr.bf16.mxu0 0
        %1278 = vmatpush1.bf16.xpose.msra.mxu0 0
        %1279 = vmatprep.subr.bf16.mxu0 0
        %1280 = vmatpush1.bf16.xpose.msra.mxu0 0
        %1281 = vmatprep.subr.bf16.mxu0 0
        %1282 = vmatpush1.bf16.xpose.msra.mxu0 0
        %1283 = vmatprep.subr.bf16.mxu0 0
        %1284 = vmatpush1.bf16.xpose.msra.mxu0 0
        %1285 = vmatprep.subr.bf16.mxu0 0
        %1286 = vmatpush1.bf16.xpose.msra.mxu0 0
        %1287 = vmatprep.subr.bf16.mxu0 0
        %1288 = vmatpush1.bf16.xpose.msra.mxu0 0
        %1289 = vmatprep.subr.bf16.mxu0 0
        %1290 = vmatpush1.bf16.xpose.msra.mxu0 0
        %1291 = vmatprep.subr.bf16.mxu0 0
        %1292 = vmatpush1.bf16.xpose.msra.mxu0 0
        %1293 = vmatprep.subr.bf16.mxu0 0
        %1294 = vmatpush1.bf16.xpose.msra.mxu0 0
        %1295 = vmatprep.subr.bf16.mxu0 0
        %1296 = vmatpush1.bf16.xpose.msra.mxu0 0
        %1297 = vmatprep.subr.bf16.mxu0 0
        %1298 = vmatpush1.bf16.xpose.msra.mxu0 0
        %1299 = vmatprep.subr.bf16.mxu0 0
        %1300 = vmatpush1.bf16.xpose.msra.mxu0 0
        %1301 = vmatprep.subr.bf16.mxu0 0
        %1302 = vmatpush1.bf16.xpose.msra.mxu0 0
        %1303 = vmatprep.subr.bf16.mxu0 0
        %1304 = vmatpush1.bf16.xpose.msra.mxu0 0
        %1305 = vmatprep.subr.bf16.mxu0 0
        %1306 = vmatpush1.bf16.xpose.msra.mxu0 0
        %1307 = vmatprep.mubr.bf16.mxu0 0
        %1308 = vmatmul.mubr.bf16.gmra.mrb[0].mxu0 %v881
        %v1309 = vpop.f32.mrb[0].mxu0
        %v1310 = vadd.f32 %v1270, %v1309
        %v1311 = vpop.f32.mrb[0].mxu0
        %v1312 = vpop.f32.mrb[0].mxu0
        %v1313 = vadd.f32 %v1270, %v1312
        %v1314 = vpop.f32.mrb[0].mxu0
        %1315 = vdwg.mxu0
        %v1316 = vld [vmem:[%s2 + $0x4c] sm:$0xf]
        %1317 = vrot.lane.b32.xlu0 %v879, 104
        %v1318 = vpop.permute.xlu0 %1317
        %v1321 = vsel %vm430, %v1316, 0
        %1323 = vmatprep.subr.bf16.mxu0 0
        %1324 = vmatpush1.bf16.xpose.msra.mxu0 %v1321
        %1325 = vmatprep.subr.bf16.mxu0 0
        %1326 = vmatpush1.bf16.xpose.msra.mxu0 0
        %1327 = vmatprep.subr.bf16.mxu0 0
        %1328 = vmatpush1.bf16.xpose.msra.mxu0 0
        %1329 = vmatprep.subr.bf16.mxu0 0
        %1330 = vmatpush1.bf16.xpose.msra.mxu0 0
        %1331 = vmatprep.subr.bf16.mxu0 0
        %1332 = vmatpush1.bf16.xpose.msra.mxu0 0
        %1333 = vmatprep.subr.bf16.mxu0 0
        %1334 = vmatpush1.bf16.xpose.msra.mxu0 0
        %1335 = vmatprep.subr.bf16.mxu0 0
        %1336 = vmatpush1.bf16.xpose.msra.mxu0 0
        %1337 = vmatprep.subr.bf16.mxu0 0
        %1338 = vmatpush1.bf16.xpose.msra.mxu0 0
        %1339 = vmatprep.subr.bf16.mxu0 0
        %1340 = vmatpush1.bf16.xpose.msra.mxu0 0
        %1341 = vmatprep.subr.bf16.mxu0 0
        %1342 = vmatpush1.bf16.xpose.msra.mxu0 0
        %1343 = vmatprep.subr.bf16.mxu0 0
        %1344 = vmatpush1.bf16.xpose.msra.mxu0 0
        %1345 = vmatprep.subr.bf16.mxu0 0
        %1346 = vmatpush1.bf16.xpose.msra.mxu0 0
        %1347 = vmatprep.subr.bf16.mxu0 0
        %1348 = vmatpush1.bf16.xpose.msra.mxu0 0
        %1349 = vmatprep.subr.bf16.mxu0 0
        %1350 = vmatpush1.bf16.xpose.msra.mxu0 0
        %1351 = vmatprep.subr.bf16.mxu0 0
        %1352 = vmatpush1.bf16.xpose.msra.mxu0 0
        %1353 = vmatprep.subr.bf16.mxu0 0
        %1354 = vmatpush1.bf16.xpose.msra.mxu0 0
        %1355 = vmatprep.mubr.bf16.mxu0 0
        %1356 = vmatmul.mubr.bf16.gmra.mrb[0].mxu0 %v881
        %v1357 = vpop.f32.mrb[0].mxu0
        %v1358 = vadd.f32 %v1318, %v1357
        %v1359 = vpop.f32.mrb[0].mxu0
        %v1360 = vpop.f32.mrb[0].mxu0
        %v1361 = vadd.f32 %v1318, %v1360
        %v1362 = vpop.f32.mrb[0].mxu0
        %1363 = vdwg.mxu0
        %v1364 = vld [vmem:[%s2 + $0x5c] sm:$0xf]
        %1365 = vrot.lane.b32.xlu0 %v931, 104
        %v1366 = vpop.permute.xlu0 %1365
        %v1369 = vsel %vm430, %v1364, 0
        %1371 = vmatprep.subr.bf16.mxu0 0
        %1372 = vmatpush1.bf16.xpose.msra.mxu0 %v1369
        %1373 = vmatprep.subr.bf16.mxu0 0
        %1374 = vmatpush1.bf16.xpose.msra.mxu0 0
        %1375 = vmatprep.subr.bf16.mxu0 0
        %1376 = vmatpush1.bf16.xpose.msra.mxu0 0
        %1377 = vmatprep.subr.bf16.mxu0 0
        %1378 = vmatpush1.bf16.xpose.msra.mxu0 0
        %1379 = vmatprep.subr.bf16.mxu0 0
        %1380 = vmatpush1.bf16.xpose.msra.mxu0 0
        %1381 = vmatprep.subr.bf16.mxu0 0
        %1382 = vmatpush1.bf16.xpose.msra.mxu0 0
        %1383 = vmatprep.subr.bf16.mxu0 0
        %1384 = vmatpush1.bf16.xpose.msra.mxu0 0
        %1385 = vmatprep.subr.bf16.mxu0 0
        %1386 = vmatpush1.bf16.xpose.msra.mxu0 0
        %1387 = vmatprep.subr.bf16.mxu0 0
        %1388 = vmatpush1.bf16.xpose.msra.mxu0 0
        %1389 = vmatprep.subr.bf16.mxu0 0
        %1390 = vmatpush1.bf16.xpose.msra.mxu0 0
        %1391 = vmatprep.subr.bf16.mxu0 0
        %1392 = vmatpush1.bf16.xpose.msra.mxu0 0
        %1393 = vmatprep.subr.bf16.mxu0 0
        %1394 = vmatpush1.bf16.xpose.msra.mxu0 0
        %1395 = vmatprep.subr.bf16.mxu0 0
        %1396 = vmatpush1.bf16.xpose.msra.mxu0 0
        %1397 = vmatprep.subr.bf16.mxu0 0
        %1398 = vmatpush1.bf16.xpose.msra.mxu0 0
        %1399 = vmatprep.subr.bf16.mxu0 0
        %1400 = vmatpush1.bf16.xpose.msra.mxu0 0
        %1401 = vmatprep.subr.bf16.mxu0 0
        %1402 = vmatpush1.bf16.xpose.msra.mxu0 0
        %1403 = vmatprep.mubr.bf16.mxu0 0
        %1404 = vmatmul.mubr.bf16.gmra.mrb[0].mxu0 %v881
        %v1405 = vpop.f32.mrb[0].mxu0
        %v1406 = vadd.f32 %v1366, %v1405
        %v1407 = vpop.f32.mrb[0].mxu0
        %v1408 = vpop.f32.mrb[0].mxu0
        %v1409 = vadd.f32 %v1366, %v1408
        %v1410 = vpop.f32.mrb[0].mxu0
        %1411 = vdwg.mxu0
        %v1412 = vld [vmem:[%s2 + $0x6c] sm:$0xf]
        %1413 = vrot.lane.b32.xlu0 %v980, 104
        %v1414 = vpop.permute.xlu0 %1413
        %v1417 = vsel %vm430, %v1412, 0
        %1419 = vmatprep.subr.bf16.mxu0 0
        %1420 = vmatpush1.bf16.xpose.msra.mxu0 %v1417
        %1421 = vmatprep.subr.bf16.mxu0 0
        %1422 = vmatpush1.bf16.xpose.msra.mxu0 0
        %1423 = vmatprep.subr.bf16.mxu0 0
        %1424 = vmatpush1.bf16.xpose.msra.mxu0 0
        %1425 = vmatprep.subr.bf16.mxu0 0
        %1426 = vmatpush1.bf16.xpose.msra.mxu0 0
        %1427 = vmatprep.subr.bf16.mxu0 0
        %1428 = vmatpush1.bf16.xpose.msra.mxu0 0
        %1429 = vmatprep.subr.bf16.mxu0 0
        %1430 = vmatpush1.bf16.xpose.msra.mxu0 0
        %1431 = vmatprep.subr.bf16.mxu0 0
        %1432 = vmatpush1.bf16.xpose.msra.mxu0 0
        %1433 = vmatprep.subr.bf16.mxu0 0
        %1434 = vmatpush1.bf16.xpose.msra.mxu0 0
        %1435 = vmatprep.subr.bf16.mxu0 0
        %1436 = vmatpush1.bf16.xpose.msra.mxu0 0
        %1437 = vmatprep.subr.bf16.mxu0 0
        %1438 = vmatpush1.bf16.xpose.msra.mxu0 0
        %1439 = vmatprep.subr.bf16.mxu0 0
        %1440 = vmatpush1.bf16.xpose.msra.mxu0 0
        %1441 = vmatprep.subr.bf16.mxu0 0
        %1442 = vmatpush1.bf16.xpose.msra.mxu0 0
        %1443 = vmatprep.subr.bf16.mxu0 0
        %1444 = vmatpush1.bf16.xpose.msra.mxu0 0
        %1445 = vmatprep.subr.bf16.mxu0 0
        %1446 = vmatpush1.bf16.xpose.msra.mxu0 0
        %1447 = vmatprep.subr.bf16.mxu0 0
        %1448 = vmatpush1.bf16.xpose.msra.mxu0 0
        %1449 = vmatprep.subr.bf16.mxu0 0
        %1450 = vmatpush1.bf16.xpose.msra.mxu0 0
        %1451 = vmatprep.mubr.bf16.mxu0 0
        %1452 = vmatmul.mubr.bf16.gmra.mrb[0].mxu0 %v881
        %v1453 = vpop.f32.mrb[0].mxu0
        %v1454 = vadd.f32 %v1414, %v1453
        %v1455 = vpop.f32.mrb[0].mxu0
        %v1456 = vpop.f32.mrb[0].mxu0
        %v1457 = vadd.f32 %v1414, %v1456
        %v1458 = vpop.f32.mrb[0].mxu0
        %1459 = vdwg.mxu0
        %v1460 = vpack.c.bf16 %v924, %v921
        %v1461 = vpack.c.bf16 %v973, %v970
        %vm1462 = vcmask 64512
        %v1464 = vsel %vm1462, %v1460, 0
        %v1467 = vsel %vm1462, %v1461, 0
        %1469 = vmatprep.subr.bf16.mxu0 0
        %1470 = vmatpush1.bf16.xpose.msra.mxu0 %v1467
        %1471 = vmatprep.subr.bf16.mxu0 0
        %1472 = vmatpush1.bf16.xpose.msra.mxu0 0
        %1473 = vmatprep.subr.bf16.mxu0 0
        %1474 = vmatpush1.bf16.xpose.msra.mxu0 0
        %1475 = vmatprep.subr.bf16.mxu0 0
        %1476 = vmatpush1.bf16.xpose.msra.mxu0 0
        %1477 = vmatprep.subr.bf16.mxu0 0
        %1478 = vmatpush1.bf16.xpose.msra.mxu0 0
        %1479 = vmatprep.subr.bf16.mxu0 0
        %1480 = vmatpush1.bf16.xpose.msra.mxu0 0
        %1481 = vmatprep.subr.bf16.mxu0 0
        %1482 = vmatpush1.bf16.xpose.msra.mxu0 0
        %1483 = vmatprep.subr.bf16.mxu0 0
        %1484 = vmatpush1.bf16.xpose.msra.mxu0 0
        %1485 = vmatprep.subr.bf16.mxu0 0
        %1486 = vmatpush1.bf16.xpose.msra.mxu0 0
        %1487 = vmatprep.subr.bf16.mxu0 0
        %1488 = vmatpush1.bf16.xpose.msra.mxu0 0
        %1489 = vmatprep.subr.bf16.mxu0 0
        %1490 = vmatpush1.bf16.xpose.msra.mxu0 0
        %1491 = vmatprep.subr.bf16.mxu0 0
        %1492 = vmatpush1.bf16.xpose.msra.mxu0 0
        %1493 = vmatprep.subr.bf16.mxu0 0
        %1494 = vmatpush1.bf16.xpose.msra.mxu0 0
        %1495 = vmatprep.subr.bf16.mxu0 0
        %1496 = vmatpush1.bf16.xpose.msra.mxu0 0
        %1497 = vmatprep.subr.bf16.mxu0 0
        %1498 = vmatpush1.bf16.xpose.msra.mxu0 0
        %1499 = vmatprep.subr.bf16.mxu0 0
        %1500 = vmatpush1.bf16.xpose.msra.mxu0 0
        %1501 = vmatprep.mubr.bf16.mxu0 0
        %1502 = vmatmul.mubr.bf16.gmra.mrb[0].mxu0 %v1464
        %v1503 = vpop.f32.mrb[0].mxu0
        %v1504 = vadd.f32 %v214, %v1503
        %v1505 = vpop.f32.mrb[0].mxu0
        %v1506 = vpop.f32.mrb[0].mxu0
        %v1507 = vadd.f32 %v214, %v1506
        %v1508 = vpop.f32.mrb[0].mxu0
        %1509 = vdwg.mxu0
        %v1510 = vpack.c.bf16 %v1071, %v1068
        %v1511 = vpack.c.bf16 %v1120, %v1117
        %v1513 = vsel %vm1462, %v1510, 0
        %v1516 = vsel %vm1462, %v1511, 0
        %1518 = vmatprep.subr.bf16.mxu0 0
        %1519 = vmatpush1.bf16.xpose.msra.mxu0 %v1516
        %1520 = vmatprep.subr.bf16.mxu0 0
        %1521 = vmatpush1.bf16.xpose.msra.mxu0 0
        %1522 = vmatprep.subr.bf16.mxu0 0
        %1523 = vmatpush1.bf16.xpose.msra.mxu0 0
        %1524 = vmatprep.subr.bf16.mxu0 0
        %1525 = vmatpush1.bf16.xpose.msra.mxu0 0
        %1526 = vmatprep.subr.bf16.mxu0 0
        %1527 = vmatpush1.bf16.xpose.msra.mxu0 0
        %1528 = vmatprep.subr.bf16.mxu0 0
        %1529 = vmatpush1.bf16.xpose.msra.mxu0 0
        %1530 = vmatprep.subr.bf16.mxu0 0
        %1531 = vmatpush1.bf16.xpose.msra.mxu0 0
        %1532 = vmatprep.subr.bf16.mxu0 0
        %1533 = vmatpush1.bf16.xpose.msra.mxu0 0
        %1534 = vmatprep.subr.bf16.mxu0 0
        %1535 = vmatpush1.bf16.xpose.msra.mxu0 0
        %1536 = vmatprep.subr.bf16.mxu0 0
        %1537 = vmatpush1.bf16.xpose.msra.mxu0 0
        %1538 = vmatprep.subr.bf16.mxu0 0
        %1539 = vmatpush1.bf16.xpose.msra.mxu0 0
        %1540 = vmatprep.subr.bf16.mxu0 0
        %1541 = vmatpush1.bf16.xpose.msra.mxu0 0
        %1542 = vmatprep.subr.bf16.mxu0 0
        %1543 = vmatpush1.bf16.xpose.msra.mxu0 0
        %1544 = vmatprep.subr.bf16.mxu0 0
        %1545 = vmatpush1.bf16.xpose.msra.mxu0 0
        %1546 = vmatprep.subr.bf16.mxu0 0
        %1547 = vmatpush1.bf16.xpose.msra.mxu0 0
        %1548 = vmatprep.subr.bf16.mxu0 0
        %1549 = vmatpush1.bf16.xpose.msra.mxu0 0
        %1550 = vmatprep.mubr.bf16.mxu0 0
        %1551 = vmatmul.mubr.bf16.gmra.mrb[0].mxu0 %v1513
        %v1552 = vpop.f32.mrb[0].mxu0
        %v1553 = vadd.f32 %v214, %v1552
        %v1554 = vpop.f32.mrb[0].mxu0
        %v1555 = vpop.f32.mrb[0].mxu0
        %v1556 = vadd.f32 %v214, %v1555
        %v1557 = vpop.f32.mrb[0].mxu0
        %1558 = vdwg.mxu0
        %v1559 = vpack.c.bf16 %v1217, %v1214
        %v1560 = vpack.c.bf16 %v1265, %v1262
        %v1562 = vsel %vm1462, %v1559, 0
        %v1565 = vsel %vm1462, %v1560, 0
        %1567 = vmatprep.subr.bf16.mxu0 0
        %1568 = vmatpush1.bf16.xpose.msra.mxu0 %v1565
        %1569 = vmatprep.subr.bf16.mxu0 0
        %1570 = vmatpush1.bf16.xpose.msra.mxu0 0
        %1571 = vmatprep.subr.bf16.mxu0 0
        %1572 = vmatpush1.bf16.xpose.msra.mxu0 0
        %1573 = vmatprep.subr.bf16.mxu0 0
        %1574 = vmatpush1.bf16.xpose.msra.mxu0 0
        %1575 = vmatprep.subr.bf16.mxu0 0
        %1576 = vmatpush1.bf16.xpose.msra.mxu0 0
        %1577 = vmatprep.subr.bf16.mxu0 0
        %1578 = vmatpush1.bf16.xpose.msra.mxu0 0
        %1579 = vmatprep.subr.bf16.mxu0 0
        %1580 = vmatpush1.bf16.xpose.msra.mxu0 0
        %1581 = vmatprep.subr.bf16.mxu0 0
        %1582 = vmatpush1.bf16.xpose.msra.mxu0 0
        %1583 = vmatprep.subr.bf16.mxu0 0
        %1584 = vmatpush1.bf16.xpose.msra.mxu0 0
        %1585 = vmatprep.subr.bf16.mxu0 0
        %1586 = vmatpush1.bf16.xpose.msra.mxu0 0
        %1587 = vmatprep.subr.bf16.mxu0 0
        %1588 = vmatpush1.bf16.xpose.msra.mxu0 0
        %1589 = vmatprep.subr.bf16.mxu0 0
        %1590 = vmatpush1.bf16.xpose.msra.mxu0 0
        %1591 = vmatprep.subr.bf16.mxu0 0
        %1592 = vmatpush1.bf16.xpose.msra.mxu0 0
        %1593 = vmatprep.subr.bf16.mxu0 0
        %1594 = vmatpush1.bf16.xpose.msra.mxu0 0
        %1595 = vmatprep.subr.bf16.mxu0 0
        %1596 = vmatpush1.bf16.xpose.msra.mxu0 0
        %1597 = vmatprep.subr.bf16.mxu0 0
        %1598 = vmatpush1.bf16.xpose.msra.mxu0 0
        %1599 = vmatprep.mubr.bf16.mxu0 0
        %1600 = vmatmul.mubr.bf16.gmra.mrb[0].mxu0 %v1562
        %v1601 = vpop.f32.mrb[0].mxu0
        %v1602 = vadd.f32 %v214, %v1601
        %v1603 = vpop.f32.mrb[0].mxu0
        %v1604 = vpop.f32.mrb[0].mxu0
        %v1605 = vadd.f32 %v214, %v1604
        %v1606 = vpop.f32.mrb[0].mxu0
        %1607 = vdwg.mxu0
        %v1608 = vpack.c.bf16 %v1361, %v1358
        %v1609 = vpack.c.bf16 %v1409, %v1406
        %v1611 = vsel %vm1462, %v1608, 0
        %v1614 = vsel %vm1462, %v1609, 0
        %1616 = vmatprep.subr.bf16.mxu0 0
        %1617 = vmatpush1.bf16.xpose.msra.mxu0 %v1614
        %1618 = vmatprep.subr.bf16.mxu0 0
        %1619 = vmatpush1.bf16.xpose.msra.mxu0 0
        %1620 = vmatprep.subr.bf16.mxu0 0
        %1621 = vmatpush1.bf16.xpose.msra.mxu0 0
        %1622 = vmatprep.subr.bf16.mxu0 0
        %1623 = vmatpush1.bf16.xpose.msra.mxu0 0
        %1624 = vmatprep.subr.bf16.mxu0 0
        %1625 = vmatpush1.bf16.xpose.msra.mxu0 0
        %1626 = vmatprep.subr.bf16.mxu0 0
        %1627 = vmatpush1.bf16.xpose.msra.mxu0 0
        %1628 = vmatprep.subr.bf16.mxu0 0
        %1629 = vmatpush1.bf16.xpose.msra.mxu0 0
        %1630 = vmatprep.subr.bf16.mxu0 0
        %1631 = vmatpush1.bf16.xpose.msra.mxu0 0
        %1632 = vmatprep.subr.bf16.mxu0 0
        %1633 = vmatpush1.bf16.xpose.msra.mxu0 0
        %1634 = vmatprep.subr.bf16.mxu0 0
        %1635 = vmatpush1.bf16.xpose.msra.mxu0 0
        %1636 = vmatprep.subr.bf16.mxu0 0
        %1637 = vmatpush1.bf16.xpose.msra.mxu0 0
        %1638 = vmatprep.subr.bf16.mxu0 0
        %1639 = vmatpush1.bf16.xpose.msra.mxu0 0
        %1640 = vmatprep.subr.bf16.mxu0 0
        %1641 = vmatpush1.bf16.xpose.msra.mxu0 0
        %1642 = vmatprep.subr.bf16.mxu0 0
        %1643 = vmatpush1.bf16.xpose.msra.mxu0 0
        %1644 = vmatprep.subr.bf16.mxu0 0
        %1645 = vmatpush1.bf16.xpose.msra.mxu0 0
        %1646 = vmatprep.subr.bf16.mxu0 0
        %1647 = vmatpush1.bf16.xpose.msra.mxu0 0
        %1648 = vmatprep.mubr.bf16.mxu0 0
        %1649 = vmatmul.mubr.bf16.gmra.mrb[0].mxu0 %v1611
        %v1650 = vpop.f32.mrb[0].mxu0
        %v1651 = vadd.f32 %v214, %v1650
        %v1652 = vpop.f32.mrb[0].mxu0
        %v1653 = vpop.f32.mrb[0].mxu0
        %v1654 = vadd.f32 %v214, %v1653
        %v1655 = vpop.f32.mrb[0].mxu0
        %1656 = vdwg.mxu0
        %v1657 = vsel %vm451, %v1504, -inf
        %1658 = vmax.xlane.f32.xlu0 %v1657
        %v1659 = vpop.xlane.xlu0 %1658
        %v1660 = vsel %vm451, %v1507, -inf
        %1661 = vmax.xlane.f32.xlu0 %v1660
        %v1662 = vpop.xlane.xlu0 %1661
        %v1663 = vsub.f32 %v1504, %v1659
        %v1664 = vsub.f32 %v1507, %v1662
        %v1665 = vmul.f32 %v1663, 1.442695
        %v1666 = vpow.pop %v1665
        %v1667 = vmul.f32 %v1664, 1.442695
        %v1668 = vpow.pop %v1667
        %v1669 = vsel %vm451, %v1666, 0.0
        %1670 = vadd.xlane.f32.xlu0 %v1669
        %v1671 = vpop.xlane.xlu0 %1670
        %v1672 = vsel %vm451, %v1668, 0.0
        %1673 = vadd.xlane.f32.xlu0 %v1672
        %v1674 = vpop.xlane.xlu0 %1673
        %v1675 = vrcp.pop %v1671
        %v1676 = vrcp.pop %v1674
        %v1677 = vmul.f32 %v1666, %v1675
        %v1678 = vmul.f32 %v1668, %v1676
        %v1679 = vsel %vm451, %v1553, -inf
        %1680 = vmax.xlane.f32.xlu0 %v1679
        %v1681 = vpop.xlane.xlu0 %1680
        %v1682 = vsel %vm451, %v1556, -inf
        %1683 = vmax.xlane.f32.xlu0 %v1682
        %v1684 = vpop.xlane.xlu0 %1683
        %v1685 = vsub.f32 %v1553, %v1681
        %v1686 = vsub.f32 %v1556, %v1684
        %v1687 = vmul.f32 %v1685, 1.442695
        %v1688 = vpow.pop %v1687
        %v1689 = vmul.f32 %v1686, 1.442695
        %v1690 = vpow.pop %v1689
        %v1691 = vsel %vm451, %v1688, 0.0
        %1692 = vadd.xlane.f32.xlu0 %v1691
        %v1693 = vpop.xlane.xlu0 %1692
        %v1694 = vsel %vm451, %v1690, 0.0
        %1695 = vadd.xlane.f32.xlu0 %v1694
        %v1696 = vpop.xlane.xlu0 %1695
        %v1697 = vrcp.pop %v1693
        %v1698 = vrcp.pop %v1696
        %v1699 = vmul.f32 %v1688, %v1697
        %v1700 = vmul.f32 %v1690, %v1698
        %v1701 = vsel %vm451, %v1602, -inf
        %1702 = vmax.xlane.f32.xlu0 %v1701
        %v1703 = vpop.xlane.xlu0 %1702
        %v1704 = vsel %vm451, %v1605, -inf
        %1705 = vmax.xlane.f32.xlu0 %v1704
        %v1706 = vpop.xlane.xlu0 %1705
        %v1707 = vsub.f32 %v1602, %v1703
        %v1708 = vsub.f32 %v1605, %v1706
        %v1709 = vmul.f32 %v1707, 1.442695
        %v1710 = vpow.pop %v1709
        %v1711 = vmul.f32 %v1708, 1.442695
        %v1712 = vpow.pop %v1711
        %v1713 = vsel %vm451, %v1710, 0.0
        %1714 = vadd.xlane.f32.xlu0 %v1713
        %v1715 = vpop.xlane.xlu0 %1714
        %v1716 = vsel %vm451, %v1712, 0.0
        %1717 = vadd.xlane.f32.xlu0 %v1716
        %v1718 = vpop.xlane.xlu0 %1717
        %v1719 = vrcp.pop %v1715
        %v1720 = vrcp.pop %v1718
        %v1721 = vmul.f32 %v1710, %v1719
        %v1722 = vmul.f32 %v1712, %v1720
        %v1723 = vsel %vm451, %v1651, -inf
        %1724 = vmax.xlane.f32.xlu0 %v1723
        %v1725 = vpop.xlane.xlu0 %1724
        %v1726 = vsel %vm451, %v1654, -inf
        %1727 = vmax.xlane.f32.xlu0 %v1726
        %v1728 = vpop.xlane.xlu0 %1727
        %v1729 = vsub.f32 %v1651, %v1725
        %v1730 = vsub.f32 %v1654, %v1728
        %v1731 = vmul.f32 %v1729, 1.442695
        %v1732 = vpow.pop %v1731
        %v1733 = vmul.f32 %v1730, 1.442695
        %v1734 = vpow.pop %v1733
        %v1735 = vsel %vm451, %v1732, 0.0
        %1736 = vadd.xlane.f32.xlu0 %v1735
        %v1737 = vpop.xlane.xlu0 %1736
        %v1738 = vsel %vm451, %v1734, 0.0
        %1739 = vadd.xlane.f32.xlu0 %v1738
        %v1740 = vpop.xlane.xlu0 %1739
        %v1741 = vrcp.pop %v1737
        %v1742 = vrcp.pop %v1740
        %v1743 = vmul.f32 %v1732, %v1741
        %v1744 = vmul.f32 %v1734, %v1742
        %v1745 = vpack.c.bf16 %v1678, %v1677
        %v1746 = vpack.c.bf16 %v1022, %v1019
        %v1748 = vsel %vm451, %v1745, 0
        %1750 = vmatprep.subr.bf16.mxu0 0
        %1751 = vmatpush1.bf16.msra.mxu0 %v1746
        %1752 = vmatprep.subr.bf16.mxu0 0
        %1753 = vmatpush1.bf16.msra.mxu0 0
        %1754 = vmatprep.subr.bf16.mxu0 0
        %1755 = vmatpush1.bf16.msra.mxu0 0
        %1756 = vmatprep.subr.bf16.mxu0 0
        %1757 = vmatpush1.bf16.msra.mxu0 0
        %1758 = vmatprep.subr.bf16.mxu0 0
        %1759 = vmatpush1.bf16.msra.mxu0 0
        %1760 = vmatprep.subr.bf16.mxu0 0
        %1761 = vmatpush1.bf16.msra.mxu0 0
        %1762 = vmatprep.subr.bf16.mxu0 0
        %1763 = vmatpush1.bf16.msra.mxu0 0
        %1764 = vmatprep.subr.bf16.mxu0 0
        %1765 = vmatpush1.bf16.msra.mxu0 0
        %1766 = vmatprep.subr.bf16.mxu0 0
        %1767 = vmatpush1.bf16.msra.mxu0 0
        %1768 = vmatprep.subr.bf16.mxu0 0
        %1769 = vmatpush1.bf16.msra.mxu0 0
        %1770 = vmatprep.subr.bf16.mxu0 0
        %1771 = vmatpush1.bf16.msra.mxu0 0
        %1772 = vmatprep.subr.bf16.mxu0 0
        %1773 = vmatpush1.bf16.msra.mxu0 0
        %1774 = vmatprep.subr.bf16.mxu0 0
        %1775 = vmatpush1.bf16.msra.mxu0 0
        %1776 = vmatprep.subr.bf16.mxu0 0
        %1777 = vmatpush1.bf16.msra.mxu0 0
        %1778 = vmatprep.subr.bf16.mxu0 0
        %1779 = vmatpush1.bf16.msra.mxu0 0
        %1780 = vmatprep.subr.bf16.mxu0 0
        %1781 = vmatpush1.bf16.msra.mxu0 0
        %1782 = vmatprep.mubr.bf16.mxu0 0
        %1783 = vmatmul.mubr.bf16.gmra.mrb[0].mxu0 %v1748
        %v1784 = vpop.f32.mrb[0].mxu0
        %v1785 = vadd.f32 0.0, %v1784
        %v1786 = vpop.f32.mrb[0].mxu0
        %v1787 = vpop.f32.mrb[0].mxu0
        %v1788 = vadd.f32 0.0, %v1787
        %v1789 = vpop.f32.mrb[0].mxu0
        %1790 = vdwg.mxu0
        %v1791 = vpack.c.bf16 %v1788, %v1785
        %v1792 = vld [vmem:[%s2 + $0x70] sm:$0xf]
        %v1793 = vpack.c.bf16 %v1700, %v1699
        %v1794 = vpack.c.bf16 %v1169, %v1166
        %v1796 = vsel %vm451, %v1793, 0
        %1798 = vmatprep.subr.bf16.mxu0 0
        %1799 = vmatpush1.bf16.msra.mxu0 %v1794
        %1800 = vmatprep.subr.bf16.mxu0 0
        %1801 = vmatpush1.bf16.msra.mxu0 0
        %1802 = vmatprep.subr.bf16.mxu0 0
        %1803 = vmatpush1.bf16.msra.mxu0 0
        %1804 = vmatprep.subr.bf16.mxu0 0
        %1805 = vmatpush1.bf16.msra.mxu0 0
        %1806 = vmatprep.subr.bf16.mxu0 0
        %1807 = vmatpush1.bf16.msra.mxu0 0
        %1808 = vmatprep.subr.bf16.mxu0 0
        %1809 = vmatpush1.bf16.msra.mxu0 0
        %1810 = vmatprep.subr.bf16.mxu0 0
        %1811 = vmatpush1.bf16.msra.mxu0 0
        %1812 = vmatprep.subr.bf16.mxu0 0
        %1813 = vmatpush1.bf16.msra.mxu0 0
        %1814 = vmatprep.subr.bf16.mxu0 0
        %1815 = vmatpush1.bf16.msra.mxu0 0
        %1816 = vmatprep.subr.bf16.mxu0 0
        %1817 = vmatpush1.bf16.msra.mxu0 0
        %1818 = vmatprep.subr.bf16.mxu0 0
        %1819 = vmatpush1.bf16.msra.mxu0 0
        %1820 = vmatprep.subr.bf16.mxu0 0
        %1821 = vmatpush1.bf16.msra.mxu0 0
        %1822 = vmatprep.subr.bf16.mxu0 0
        %1823 = vmatpush1.bf16.msra.mxu0 0
        %1824 = vmatprep.subr.bf16.mxu0 0
        %1825 = vmatpush1.bf16.msra.mxu0 0
        %1826 = vmatprep.subr.bf16.mxu0 0
        %1827 = vmatpush1.bf16.msra.mxu0 0
        %1828 = vmatprep.subr.bf16.mxu0 0
        %1829 = vmatpush1.bf16.msra.mxu0 0
        %1830 = vmatprep.mubr.bf16.mxu0 0
        %1831 = vmatmul.mubr.bf16.gmra.mrb[0].mxu0 %v1796
        %v1832 = vpop.f32.mrb[0].mxu0
        %v1833 = vadd.f32 0.0, %v1832
        %v1834 = vpop.f32.mrb[0].mxu0
        %v1835 = vpop.f32.mrb[0].mxu0
        %v1836 = vadd.f32 0.0, %v1835
        %v1837 = vpop.f32.mrb[0].mxu0
        %1838 = vdwg.mxu0
        %v1839 = vpack.c.bf16 %v1836, %v1833
        %v1840 = vld [vmem:[%s2 + $0x74] sm:$0xf]
        %v1842 = vsel %vm1462, %v1839, 0
        %vm1844 = vcmask 1043456
        %v1846 = vsel %vm1844, %v1840, 0
        %1848 = vmatprep.subr.bf16.mxu0 0
        %1849 = vmatpush1.bf16.msra.mxu0 %v1846
        %1850 = vmatprep.subr.bf16.mxu0 0
        %1851 = vmatpush1.bf16.msra.mxu0 0
        %1852 = vmatprep.subr.bf16.mxu0 0
        %1853 = vmatpush1.bf16.msra.mxu0 0
        %1854 = vmatprep.subr.bf16.mxu0 0
        %1855 = vmatpush1.bf16.msra.mxu0 0
        %1856 = vmatprep.subr.bf16.mxu0 0
        %1857 = vmatpush1.bf16.msra.mxu0 0
        %1858 = vmatprep.subr.bf16.mxu0 0
        %1859 = vmatpush1.bf16.msra.mxu0 0
        %1860 = vmatprep.subr.bf16.mxu0 0
        %1861 = vmatpush1.bf16.msra.mxu0 0
        %1862 = vmatprep.subr.bf16.mxu0 0
        %1863 = vmatpush1.bf16.msra.mxu0 0
        %1864 = vmatprep.subr.bf16.mxu0 0
        %1865 = vmatpush1.bf16.msra.mxu0 0
        %1866 = vmatprep.subr.bf16.mxu0 0
        %1867 = vmatpush1.bf16.msra.mxu0 0
        %1868 = vmatprep.subr.bf16.mxu0 0
        %1869 = vmatpush1.bf16.msra.mxu0 0
        %1870 = vmatprep.subr.bf16.mxu0 0
        %1871 = vmatpush1.bf16.msra.mxu0 0
        %1872 = vmatprep.subr.bf16.mxu0 0
        %1873 = vmatpush1.bf16.msra.mxu0 0
        %1874 = vmatprep.subr.bf16.mxu0 0
        %1875 = vmatpush1.bf16.msra.mxu0 0
        %1876 = vmatprep.subr.bf16.mxu0 0
        %1877 = vmatpush1.bf16.msra.mxu0 0
        %1878 = vmatprep.subr.bf16.mxu0 0
        %1879 = vmatpush1.bf16.msra.mxu0 0
        %1880 = vmatprep.mubr.bf16.mxu0 0
        %1881 = vmatmul.mubr.bf16.gmra.mrb[0].mxu0 %v1842
        %v1882 = vpop.f32.mrb[0].mxu0
        %v1883 = vadd.f32 0.0, %v1882
        %v1884 = vpop.f32.mrb[0].mxu0
        %v1885 = vpop.f32.mrb[0].mxu0
        %v1886 = vadd.f32 0.0, %v1885
        %v1887 = vpop.f32.mrb[0].mxu0
        %1888 = vdwg.mxu0
        %v1890 = vsel %vm1462, %v1791, 0
        %v1893 = vsel %vm1844, %v1792, 0
        %1895 = vmatprep.subr.bf16.mxu0 0
        %1896 = vmatpush1.bf16.msra.mxu0 %v1893
        %1897 = vmatprep.subr.bf16.mxu0 0
        %1898 = vmatpush1.bf16.msra.mxu0 0
        %1899 = vmatprep.subr.bf16.mxu0 0
        %1900 = vmatpush1.bf16.msra.mxu0 0
        %1901 = vmatprep.subr.bf16.mxu0 0
        %1902 = vmatpush1.bf16.msra.mxu0 0
        %1903 = vmatprep.subr.bf16.mxu0 0
        %1904 = vmatpush1.bf16.msra.mxu0 0
        %1905 = vmatprep.subr.bf16.mxu0 0
        %1906 = vmatpush1.bf16.msra.mxu0 0
        %1907 = vmatprep.subr.bf16.mxu0 0
        %1908 = vmatpush1.bf16.msra.mxu0 0
        %1909 = vmatprep.subr.bf16.mxu0 0
        %1910 = vmatpush1.bf16.msra.mxu0 0
        %1911 = vmatprep.subr.bf16.mxu0 0
        %1912 = vmatpush1.bf16.msra.mxu0 0
        %1913 = vmatprep.subr.bf16.mxu0 0
        %1914 = vmatpush1.bf16.msra.mxu0 0
        %1915 = vmatprep.subr.bf16.mxu0 0
        %1916 = vmatpush1.bf16.msra.mxu0 0
        %1917 = vmatprep.subr.bf16.mxu0 0
        %1918 = vmatpush1.bf16.msra.mxu0 0
        %1919 = vmatprep.subr.bf16.mxu0 0
        %1920 = vmatpush1.bf16.msra.mxu0 0
        %1921 = vmatprep.subr.bf16.mxu0 0
        %1922 = vmatpush1.bf16.msra.mxu0 0
        %1923 = vmatprep.subr.bf16.mxu0 0
        %1924 = vmatpush1.bf16.msra.mxu0 0
        %1925 = vmatprep.subr.bf16.mxu0 0
        %1926 = vmatpush1.bf16.msra.mxu0 0
        %1927 = vmatprep.mubr.bf16.mxu0 0
        %1928 = vmatmul.mubr.bf16.gmra.mrb[0].mxu0 %v1890
        %v1929 = vpop.f32.mrb[0].mxu0
        %v1930 = vadd.f32 %v1883, %v1929
        %v1931 = vpop.f32.mrb[0].mxu0
        %v1932 = vpop.f32.mrb[0].mxu0
        %v1933 = vadd.f32 %v1886, %v1932
        %v1934 = vpop.f32.mrb[0].mxu0
        %1935 = vdwg.mxu0
        %v1936 = vpack.c.bf16 %v1722, %v1721
        %v1937 = vpack.c.bf16 %v1313, %v1310
        %v1939 = vsel %vm451, %v1936, 0
        %1941 = vmatprep.subr.bf16.mxu0 0
        %1942 = vmatpush1.bf16.msra.mxu0 %v1937
        %1943 = vmatprep.subr.bf16.mxu0 0
        %1944 = vmatpush1.bf16.msra.mxu0 0
        %1945 = vmatprep.subr.bf16.mxu0 0
        %1946 = vmatpush1.bf16.msra.mxu0 0
        %1947 = vmatprep.subr.bf16.mxu0 0
        %1948 = vmatpush1.bf16.msra.mxu0 0
        %1949 = vmatprep.subr.bf16.mxu0 0
        %1950 = vmatpush1.bf16.msra.mxu0 0
        %1951 = vmatprep.subr.bf16.mxu0 0
        %1952 = vmatpush1.bf16.msra.mxu0 0
        %1953 = vmatprep.subr.bf16.mxu0 0
        %1954 = vmatpush1.bf16.msra.mxu0 0
        %1955 = vmatprep.subr.bf16.mxu0 0
        %1956 = vmatpush1.bf16.msra.mxu0 0
        %1957 = vmatprep.subr.bf16.mxu0 0
        %1958 = vmatpush1.bf16.msra.mxu0 0
        %1959 = vmatprep.subr.bf16.mxu0 0
        %1960 = vmatpush1.bf16.msra.mxu0 0
        %1961 = vmatprep.subr.bf16.mxu0 0
        %1962 = vmatpush1.bf16.msra.mxu0 0
        %1963 = vmatprep.subr.bf16.mxu0 0
        %1964 = vmatpush1.bf16.msra.mxu0 0
        %1965 = vmatprep.subr.bf16.mxu0 0
        %1966 = vmatpush1.bf16.msra.mxu0 0
        %1967 = vmatprep.subr.bf16.mxu0 0
        %1968 = vmatpush1.bf16.msra.mxu0 0
        %1969 = vmatprep.subr.bf16.mxu0 0
        %1970 = vmatpush1.bf16.msra.mxu0 0
        %1971 = vmatprep.subr.bf16.mxu0 0
        %1972 = vmatpush1.bf16.msra.mxu0 0
        %1973 = vmatprep.mubr.bf16.mxu0 0
        %1974 = vmatmul.mubr.bf16.gmra.mrb[0].mxu0 %v1939
        %v1975 = vpop.f32.mrb[0].mxu0
        %v1976 = vadd.f32 0.0, %v1975
        %v1977 = vpop.f32.mrb[0].mxu0
        %v1978 = vpop.f32.mrb[0].mxu0
        %v1979 = vadd.f32 0.0, %v1978
        %v1980 = vpop.f32.mrb[0].mxu0
        %1981 = vdwg.mxu0
        %v1982 = vpack.c.bf16 %v1979, %v1976
        %v1983 = vld [vmem:[%s2 + $0x78] sm:$0xf]
        %v1985 = vsel %vm1462, %v1982, 0
        %v1988 = vsel %vm1844, %v1983, 0
        %1990 = vmatprep.subr.bf16.mxu0 0
        %1991 = vmatpush1.bf16.msra.mxu0 %v1988
        %1992 = vmatprep.subr.bf16.mxu0 0
        %1993 = vmatpush1.bf16.msra.mxu0 0
        %1994 = vmatprep.subr.bf16.mxu0 0
        %1995 = vmatpush1.bf16.msra.mxu0 0
        %1996 = vmatprep.subr.bf16.mxu0 0
        %1997 = vmatpush1.bf16.msra.mxu0 0
        %1998 = vmatprep.subr.bf16.mxu0 0
        %1999 = vmatpush1.bf16.msra.mxu0 0
        %2000 = vmatprep.subr.bf16.mxu0 0
        %2001 = vmatpush1.bf16.msra.mxu0 0
        %2002 = vmatprep.subr.bf16.mxu0 0
        %2003 = vmatpush1.bf16.msra.mxu0 0
        %2004 = vmatprep.subr.bf16.mxu0 0
        %2005 = vmatpush1.bf16.msra.mxu0 0
        %2006 = vmatprep.subr.bf16.mxu0 0
        %2007 = vmatpush1.bf16.msra.mxu0 0
        %2008 = vmatprep.subr.bf16.mxu0 0
        %2009 = vmatpush1.bf16.msra.mxu0 0
        %2010 = vmatprep.subr.bf16.mxu0 0
        %2011 = vmatpush1.bf16.msra.mxu0 0
        %2012 = vmatprep.subr.bf16.mxu0 0
        %2013 = vmatpush1.bf16.msra.mxu0 0
        %2014 = vmatprep.subr.bf16.mxu0 0
        %2015 = vmatpush1.bf16.msra.mxu0 0
        %2016 = vmatprep.subr.bf16.mxu0 0
        %2017 = vmatpush1.bf16.msra.mxu0 0
        %2018 = vmatprep.subr.bf16.mxu0 0
        %2019 = vmatpush1.bf16.msra.mxu0 0
        %2020 = vmatprep.subr.bf16.mxu0 0
        %2021 = vmatpush1.bf16.msra.mxu0 0
        %2022 = vmatprep.mubr.bf16.mxu0 0
        %2023 = vmatmul.mubr.bf16.gmra.mrb[0].mxu0 %v1985
        %v2024 = vpop.f32.mrb[0].mxu0
        %v2025 = vadd.f32 0.0, %v2024
        %v2026 = vpop.f32.mrb[0].mxu0
        %v2027 = vpop.f32.mrb[0].mxu0
        %v2028 = vadd.f32 0.0, %v2027
        %v2029 = vpop.f32.mrb[0].mxu0
        %2030 = vdwg.mxu0
        %v2031 = vadd.f32 %v1930, %v2025
        %v2032 = vadd.f32 %v1933, %v2028
        %v2033 = vpack.c.bf16 %v1744, %v1743
        %v2034 = vpack.c.bf16 %v1457, %v1454
        %v2036 = vsel %vm451, %v2033, 0
        %2038 = vmatprep.subr.bf16.mxu0 0
        %2039 = vmatpush1.bf16.msra.mxu0 %v2034
        %2040 = vmatprep.subr.bf16.mxu0 0
        %2041 = vmatpush1.bf16.msra.mxu0 0
        %2042 = vmatprep.subr.bf16.mxu0 0
        %2043 = vmatpush1.bf16.msra.mxu0 0
        %2044 = vmatprep.subr.bf16.mxu0 0
        %2045 = vmatpush1.bf16.msra.mxu0 0
        %2046 = vmatprep.subr.bf16.mxu0 0
        %2047 = vmatpush1.bf16.msra.mxu0 0
        %2048 = vmatprep.subr.bf16.mxu0 0
        %2049 = vmatpush1.bf16.msra.mxu0 0
        %2050 = vmatprep.subr.bf16.mxu0 0
        %2051 = vmatpush1.bf16.msra.mxu0 0
        %2052 = vmatprep.subr.bf16.mxu0 0
        %2053 = vmatpush1.bf16.msra.mxu0 0
        %2054 = vmatprep.subr.bf16.mxu0 0
        %2055 = vmatpush1.bf16.msra.mxu0 0
        %2056 = vmatprep.subr.bf16.mxu0 0
        %2057 = vmatpush1.bf16.msra.mxu0 0
        %2058 = vmatprep.subr.bf16.mxu0 0
        %2059 = vmatpush1.bf16.msra.mxu0 0
        %2060 = vmatprep.subr.bf16.mxu0 0
        %2061 = vmatpush1.bf16.msra.mxu0 0
        %2062 = vmatprep.subr.bf16.mxu0 0
        %2063 = vmatpush1.bf16.msra.mxu0 0
        %2064 = vmatprep.subr.bf16.mxu0 0
        %2065 = vmatpush1.bf16.msra.mxu0 0
        %2066 = vmatprep.subr.bf16.mxu0 0
        %2067 = vmatpush1.bf16.msra.mxu0 0
        %2068 = vmatprep.subr.bf16.mxu0 0
        %2069 = vmatpush1.bf16.msra.mxu0 0
        %2070 = vmatprep.mubr.bf16.mxu0 0
        %2071 = vmatmul.mubr.bf16.gmra.mrb[0].mxu0 %v2036
        %v2072 = vpop.f32.mrb[0].mxu0
        %v2073 = vadd.f32 0.0, %v2072
        %v2074 = vpop.f32.mrb[0].mxu0
        %v2075 = vpop.f32.mrb[0].mxu0
        %v2076 = vadd.f32 0.0, %v2075
        %v2077 = vpop.f32.mrb[0].mxu0
        %2078 = vdwg.mxu0
        %v2079 = vpack.c.bf16 %v2076, %v2073
        %v2080 = vld [vmem:[%s2 + $0x7c] sm:$0xf]
        %v2082 = vsel %vm1462, %v2079, 0
        %v2085 = vsel %vm1844, %v2080, 0
        %2087 = vmatprep.subr.bf16.mxu0 0
        %2088 = vmatpush1.bf16.msra.mxu0 %v2085
        %2089 = vmatprep.subr.bf16.mxu0 0
        %2090 = vmatpush1.bf16.msra.mxu0 0
        %2091 = vmatprep.subr.bf16.mxu0 0
        %2092 = vmatpush1.bf16.msra.mxu0 0
        %2093 = vmatprep.subr.bf16.mxu0 0
        %2094 = vmatpush1.bf16.msra.mxu0 0
        %2095 = vmatprep.subr.bf16.mxu0 0
        %2096 = vmatpush1.bf16.msra.mxu0 0
        %2097 = vmatprep.subr.bf16.mxu0 0
        %2098 = vmatpush1.bf16.msra.mxu0 0
        %2099 = vmatprep.subr.bf16.mxu0 0
        %2100 = vmatpush1.bf16.msra.mxu0 0
        %2101 = vmatprep.subr.bf16.mxu0 0
        %2102 = vmatpush1.bf16.msra.mxu0 0
        %2103 = vmatprep.subr.bf16.mxu0 0
        %2104 = vmatpush1.bf16.msra.mxu0 0
        %2105 = vmatprep.subr.bf16.mxu0 0
        %2106 = vmatpush1.bf16.msra.mxu0 0
        %2107 = vmatprep.subr.bf16.mxu0 0
        %2108 = vmatpush1.bf16.msra.mxu0 0
        %2109 = vmatprep.subr.bf16.mxu0 0
        %2110 = vmatpush1.bf16.msra.mxu0 0
        %2111 = vmatprep.subr.bf16.mxu0 0
        %2112 = vmatpush1.bf16.msra.mxu0 0
        %2113 = vmatprep.subr.bf16.mxu0 0
        %2114 = vmatpush1.bf16.msra.mxu0 0
        %2115 = vmatprep.subr.bf16.mxu0 0
        %2116 = vmatpush1.bf16.msra.mxu0 0
        %2117 = vmatprep.subr.bf16.mxu0 0
        %2118 = vmatpush1.bf16.msra.mxu0 0
        %2119 = vmatprep.mubr.bf16.mxu0 0
        %2120 = vmatmul.mubr.bf16.gmra.mrb[0].mxu0 %v2082
        %v2121 = vpop.f32.mrb[0].mxu0
        %v2122 = vadd.f32 0.0, %v2121
        %v2123 = vpop.f32.mrb[0].mxu0
        %v2124 = vpop.f32.mrb[0].mxu0
        %v2125 = vadd.f32 0.0, %v2124
        %v2126 = vpop.f32.mrb[0].mxu0
        %2127 = vdwg.mxu0
        %v2128 = vadd.f32 %v2031, %v2122
        %v2129 = vadd.f32 %v2032, %v2125
        %v2130 = vadd.f32 %v829, %v2128
        %v2131 = vadd.f32 %v830, %v2129
        %v2132 = vld [vmem:[#allocation4 + $0x10d] sm:$0x1]
        %v2133 = vlaneseq
        %v2134 = vshrl.u32 %v2133, 7
        %v2135 = vsub.s32 0, %v2134
        %v2136 = vrot.slane %v2132, %v2135
        %v2137 = vadd.f32 %v2130, %v2136
        %v2138 = vadd.f32 %v2131, %v2136
        %v2139 = vld [vmem:[#allocation4 + $0x10e] sm:$0x1]
        %v2140 = vld [vmem:[#allocation4 + $0x10f] sm:$0x1]
        %v2141 = vsel %vm430, %v2137, 0.0
        %2142 = vadd.xlane.f32.xlu0 %v2141
        %v2143 = vpop.xlane.xlu0 %2142
        %v2144 = vsel %vm430, %v2138, 0.0
        %2145 = vadd.xlane.f32.xlu0 %v2144
        %v2146 = vpop.xlane.xlu0 %2145
        %v2147 = vmul.f32 %v2143, %v501
        %v2148 = vmul.f32 %v2146, %v501
        %v2149 = vsub.f32 %v2137, %v2147
        %v2150 = vsub.f32 %v2138, %v2148
        %v2151 = vmul.f32 %v2149, %v2149
        %v2152 = vmul.f32 %v2150, %v2150
        %v2153 = vsel %vm430, %v2151, 0.0
        %2154 = vadd.xlane.f32.xlu0 %v2153
        %v2155 = vpop.xlane.xlu0 %2154
        %v2156 = vsel %vm430, %v2152, 0.0
        %2157 = vadd.xlane.f32.xlu0 %v2156
        %v2158 = vpop.xlane.xlu0 %2157
        %v2159 = vmul.f32 %v2155, %v501
        %v2160 = vmul.f32 %v2158, %v501
        %v2161 = vadd.f32 %v2159, 1e-05
        %v2162 = vadd.f32 %v2160, 1e-05
        %v2163 = vrsqrt.pop %v2161
        %v2164 = vrsqrt.pop %v2162
        %v2165 = vmul.f32 %v2149, %v2163
        %v2166 = vmul.f32 %v2150, %v2164
        %v2167 = vlaneseq
        %v2168 = vshrl.u32 %v2167, 7
        %v2169 = vsub.s32 0, %v2168
        %v2170 = vrot.slane %v2139, %v2169
        %v2171 = vmul.f32 %v2165, %v2170
        %v2172 = vmul.f32 %v2166, %v2170
        %v2173 = vlaneseq
        %v2174 = vshrl.u32 %v2173, 7
        %v2175 = vsub.s32 0, %v2174
        %v2176 = vrot.slane %v2140, %v2175
        %v2177 = vadd.f32 %v2171, %v2176
        %v2178 = vadd.f32 %v2172, %v2176
        %v2179 = vpack.c.bf16 %v2178, %v2177
        %v2180 = vld [vmem:[%s2 + $0x80] sm:$0xf]
        %v2181 = vld [vmem:[%s2 + $0x84] sm:$0xf]
        %v2182 = vld [vmem:[%s2 + $0x88] sm:$0xf]
        %v2183 = vld [vmem:[%s2 + $0x8c] sm:$0xf]
        %v2184 = vld [vmem:[#allocation4 + $0x110] sm:$0x1]
        %v2185 = vlaneseq
        %v2186 = vshrl.u32 %v2185, 7
        %v2187 = vsub.s32 0, %v2186
        %v2188 = vrot.slane %v2184, %v2187
        %v2193 = vunpack.c.l.b16 %v2180
        %v2194 = vunpack.c.l.b16 %v2181
        %v2195 = vunpack.c.l.b16 %v2182
        %v2196 = vunpack.c.l.b16 %v2183
        %v2197 = vpack.c.b16 %v2194, %v2193
        %v2198 = vpack.c.b16 %v2196, %v2195
        %v2202 = vsel %vm430, %v2179, 0
        %2204 = vmatprep.subr.bf16.mxu0 0
        %2205 = vmatpush1.bf16.msra.mxu0 %v2197
        %2206 = vmatprep.subr.bf16.mxu0 0
        %2207 = vmatpush1.bf16.msra.mxu0 %v2198
        %2208 = vmatprep.subr.bf16.mxu0 0
        %2209 = vmatpush1.bf16.msra.mxu0 0
        %2210 = vmatprep.subr.bf16.mxu0 0
        %2211 = vmatpush1.bf16.msra.mxu0 0
        %2212 = vmatprep.subr.bf16.mxu0 0
        %2213 = vmatpush1.bf16.msra.mxu0 0
        %2214 = vmatprep.subr.bf16.mxu0 0
        %2215 = vmatpush1.bf16.msra.mxu0 0
        %2216 = vmatprep.subr.bf16.mxu0 0
        %2217 = vmatpush1.bf16.msra.mxu0 0
        %2218 = vmatprep.subr.bf16.mxu0 0
        %2219 = vmatpush1.bf16.msra.mxu0 0
        %2220 = vmatprep.subr.bf16.mxu0 0
        %2221 = vmatpush1.bf16.msra.mxu0 0
        %2222 = vmatprep.subr.bf16.mxu0 0
        %2223 = vmatpush1.bf16.msra.mxu0 0
        %2224 = vmatprep.subr.bf16.mxu0 0
        %2225 = vmatpush1.bf16.msra.mxu0 0
        %2226 = vmatprep.subr.bf16.mxu0 0
        %2227 = vmatpush1.bf16.msra.mxu0 0
        %2228 = vmatprep.subr.bf16.mxu0 0
        %2229 = vmatpush1.bf16.msra.mxu0 0
        %2230 = vmatprep.subr.bf16.mxu0 0
        %2231 = vmatpush1.bf16.msra.mxu0 0
        %2232 = vmatprep.subr.bf16.mxu0 0
        %2233 = vmatpush1.bf16.msra.mxu0 0
        %2234 = vmatprep.subr.bf16.mxu0 0
        %2235 = vmatpush1.bf16.msra.mxu0 0
        %2236 = vmatprep.mubr.bf16.mxu0 0
        %2237 = vmatmul.mubr.bf16.gmra.mrb[0].mxu0 %v2202
        %v2238 = vpop.f32.mrb[0].mxu0
        %v2239 = vadd.f32 %v2188, %v2238
        %v2240 = vpop.f32.mrb[0].mxu0
        %v2241 = vpop.f32.mrb[0].mxu0
        %v2242 = vadd.f32 %v2188, %v2241
        %v2243 = vpop.f32.mrb[0].mxu0
        %2244 = vdwg.mxu0
        %v2245 = vld [vmem:[%s2 + $0x90] sm:$0xf]
        %v2246 = vld [vmem:[%s2 + $0x94] sm:$0xf]
        %v2247 = vld [vmem:[%s2 + $0x98] sm:$0xf]
        %v2248 = vld [vmem:[%s2 + $0x9c] sm:$0xf]
        %v2249 = vld [vmem:[#allocation4 + $0x111] sm:$0x1]
        %v2250 = vlaneseq
        %v2251 = vshrl.u32 %v2250, 7
        %v2252 = vsub.s32 0, %v2251
        %v2253 = vrot.slane %v2249, %v2252
        %v2258 = vunpack.c.l.b16 %v2245
        %v2259 = vunpack.c.l.b16 %v2246
        %v2260 = vunpack.c.l.b16 %v2247
        %v2261 = vunpack.c.l.b16 %v2248
        %v2262 = vpack.c.b16 %v2259, %v2258
        %v2263 = vpack.c.b16 %v2261, %v2260
        %2266 = vmatprep.subr.bf16.mxu0 0
        %2267 = vmatpush1.bf16.msra.mxu0 %v2262
        %2268 = vmatprep.subr.bf16.mxu0 0
        %2269 = vmatpush1.bf16.msra.mxu0 %v2263
        %2270 = vmatprep.subr.bf16.mxu0 0
        %2271 = vmatpush1.bf16.msra.mxu0 0
        %2272 = vmatprep.subr.bf16.mxu0 0
        %2273 = vmatpush1.bf16.msra.mxu0 0
        %2274 = vmatprep.subr.bf16.mxu0 0
        %2275 = vmatpush1.bf16.msra.mxu0 0
        %2276 = vmatprep.subr.bf16.mxu0 0
        %2277 = vmatpush1.bf16.msra.mxu0 0
        %2278 = vmatprep.subr.bf16.mxu0 0
        %2279 = vmatpush1.bf16.msra.mxu0 0
        %2280 = vmatprep.subr.bf16.mxu0 0
        %2281 = vmatpush1.bf16.msra.mxu0 0
        %2282 = vmatprep.subr.bf16.mxu0 0
        %2283 = vmatpush1.bf16.msra.mxu0 0
        %2284 = vmatprep.subr.bf16.mxu0 0
        %2285 = vmatpush1.bf16.msra.mxu0 0
        %2286 = vmatprep.subr.bf16.mxu0 0
        %2287 = vmatpush1.bf16.msra.mxu0 0
        %2288 = vmatprep.subr.bf16.mxu0 0
        %2289 = vmatpush1.bf16.msra.mxu0 0
        %2290 = vmatprep.subr.bf16.mxu0 0
        %2291 = vmatpush1.bf16.msra.mxu0 0
        %2292 = vmatprep.subr.bf16.mxu0 0
        %2293 = vmatpush1.bf16.msra.mxu0 0
        %2294 = vmatprep.subr.bf16.mxu0 0
        %2295 = vmatpush1.bf16.msra.mxu0 0
        %2296 = vmatprep.subr.bf16.mxu0 0
        %2297 = vmatpush1.bf16.msra.mxu0 0
        %2298 = vmatprep.mubr.bf16.mxu0 0
        %2299 = vmatmul.mubr.bf16.gmra.mrb[0].mxu0 %v2202
        %v2300 = vpop.f32.mrb[0].mxu0
        %v2301 = vadd.f32 %v2253, %v2300
        %v2302 = vpop.f32.mrb[0].mxu0
        %v2303 = vpop.f32.mrb[0].mxu0
        %v2304 = vadd.f32 %v2253, %v2303
        %v2305 = vpop.f32.mrb[0].mxu0
        %2306 = vdwg.mxu0
        %v2307 = vxor.u32 %v2301, 2147483648
        %v2308 = vxor.u32 %v2304, 2147483648
        %v2309 = vmul.f32 %v2307, 1.442695
        %v2310 = vpow.pop %v2309
        %v2311 = vmul.f32 %v2308, 1.442695
        %v2312 = vpow.pop %v2311
        %v2313 = vadd.f32 %v2310, 1.0
        %v2314 = vadd.f32 %v2312, 1.0
        %v2315 = vrcp.pop %v2313
        %v2316 = vmul.f32 1.0, %v2315
        %v2317 = vrcp.pop %v2314
        %v2318 = vmul.f32 1.0, %v2317
        %v2319 = vmul.f32 %v2239, %v2316
        %v2320 = vmul.f32 %v2242, %v2318
        %v2321 = vmul.f32 %v2319, %v209
        %v2322 = vmul.f32 %v2320, %v210
        %v2323 = vld [vmem:[#allocation4 + $0x112] sm:$0x1f]
        %v2324 = vlaneseq
        %v2325 = vshrl.u32 %v2324, 7
        %v2326 = vsub.s32 2, %v2325
        %v2327 = vrot.slane %v2323, %v2326
        %v2328 = vmul.f32 %v2321, %v2327
        %v2329 = vmul.f32 %v2322, %v2327
        %v2330 = vrot.slane %v2321, 6
        %v2331 = vrot.slane %v2322, 6
        %vm2332 = vcmp.lt.s32.totalorder %v196, 2
        %v2333 = vsel %vm2332, %v2330, %v2331
        %v2334 = vsel %vm2332, %v2331, %v2330
        %v2335 = vmul.f32 %v2334, %v606
        %v2336 = vmul.f32 %v2333, %v607
        %v2337 = vlaneseq
        %v2338 = vshrl.u32 %v2337, 7
        %v2339 = vsub.s32 0, %v2338
        %v2340 = vrot.slane %v2323, %v2339
        %v2341 = vmul.f32 %v2335, %v2340
        %v2342 = vmul.f32 %v2336, %v2340
        %v2343 = vadd.f32 %v2328, %v2341
        %v2344 = vadd.f32 %v2329, %v2342
        %v2345 = vrot.slane %v2321, 7
        %v2346 = vrot.slane %v2322, 7
        %vm2347 = vcmp.lt.s32.totalorder %v196, 1
        %v2348 = vsel %vm2347, %v2345, %v2346
        %v2349 = vsel %vm2347, %v2346, %v2345
        %v2350 = vmul.f32 %v2349, %v612
        %v2351 = vmul.f32 %v2348, %v613
        %v2352 = vlaneseq
        %v2353 = vshrl.u32 %v2352, 7
        %v2354 = vsub.s32 1, %v2353
        %v2355 = vrot.slane %v2323, %v2354
        %v2356 = vmul.f32 %v2350, %v2355
        %v2357 = vmul.f32 %v2351, %v2355
        %v2358 = vadd.f32 %v2343, %v2356
        %v2359 = vadd.f32 %v2344, %v2357
        %v2360 = vrot.slane %v2321, 1
        %v2361 = vrot.slane %v2322, 1
        %vm2362 = vcmp.lt.s32.totalorder %v196, 7
        %v2363 = vsel %vm2362, %v2360, %v2361
        %v2364 = vsel %vm2362, %v2361, %v2360
        %v2365 = vmul.f32 %v2363, %v618
        %v2366 = vmul.f32 %v2364, %v619
        %v2367 = vlaneseq
        %v2368 = vshrl.u32 %v2367, 7
        %v2369 = vsub.s32 3, %v2368
        %v2370 = vrot.slane %v2323, %v2369
        %v2371 = vmul.f32 %v2365, %v2370
        %v2372 = vmul.f32 %v2366, %v2370
        %v2373 = vadd.f32 %v2358, %v2371
        %v2374 = vadd.f32 %v2359, %v2372
        %v2375 = vrot.slane %v2321, 2
        %v2376 = vrot.slane %v2322, 2
        %vm2377 = vcmp.lt.s32.totalorder %v196, 6
        %v2378 = vsel %vm2377, %v2375, %v2376
        %v2379 = vsel %vm2377, %v2376, %v2375
        %v2380 = vmul.f32 %v2378, %v624
        %v2381 = vmul.f32 %v2379, %v625
        %v2382 = vlaneseq
        %v2383 = vshrl.u32 %v2382, 7
        %v2384 = vsub.s32 4, %v2383
        %v2385 = vrot.slane %v2323, %v2384
        %v2386 = vmul.f32 %v2380, %v2385
        %v2387 = vmul.f32 %v2381, %v2385
        %v2388 = vadd.f32 %v2373, %v2386
        %v2389 = vadd.f32 %v2374, %v2387
        %v2390 = vld [vmem:[#allocation4 + $0x117] sm:$0x1]
        %v2391 = vld [vmem:[#allocation4 + $0x118] sm:$0x1]
        %v2392 = vsel %vm430, %v2388, 0.0
        %2393 = vadd.xlane.f32.xlu0 %v2392
        %v2394 = vpop.xlane.xlu0 %2393
        %v2395 = vsel %vm430, %v2389, 0.0
        %2396 = vadd.xlane.f32.xlu0 %v2395
        %v2397 = vpop.xlane.xlu0 %2396
        %v2398 = vmul.f32 %v2394, %v501
        %v2399 = vmul.f32 %v2397, %v501
        %v2400 = vsub.f32 %v2388, %v2398
        %v2401 = vsub.f32 %v2389, %v2399
        %v2402 = vmul.f32 %v2400, %v2400
        %v2403 = vmul.f32 %v2401, %v2401
        %v2404 = vsel %vm430, %v2402, 0.0
        %2405 = vadd.xlane.f32.xlu0 %v2404
        %v2406 = vpop.xlane.xlu0 %2405
        %v2407 = vsel %vm430, %v2403, 0.0
        %2408 = vadd.xlane.f32.xlu0 %v2407
        %v2409 = vpop.xlane.xlu0 %2408
        %v2410 = vmul.f32 %v2406, %v501
        %v2411 = vmul.f32 %v2409, %v501
        %v2412 = vadd.f32 %v2410, 1e-05
        %v2413 = vadd.f32 %v2411, 1e-05
        %v2414 = vrsqrt.pop %v2412
        %v2415 = vrsqrt.pop %v2413
        %v2416 = vmul.f32 %v2400, %v2414
        %v2417 = vmul.f32 %v2401, %v2415
        %v2418 = vlaneseq
        %v2419 = vshrl.u32 %v2418, 7
        %v2420 = vsub.s32 0, %v2419
        %v2421 = vrot.slane %v2390, %v2420
        %v2422 = vmul.f32 %v2416, %v2421
        %v2423 = vmul.f32 %v2417, %v2421
        %v2424 = vlaneseq
        %v2425 = vshrl.u32 %v2424, 7
        %v2426 = vsub.s32 0, %v2425
        %v2427 = vrot.slane %v2391, %v2426
        %v2428 = vadd.f32 %v2422, %v2427
        %v2429 = vadd.f32 %v2423, %v2427
        %v2430 = vxor.u32 %v2428, 2147483648
        %v2431 = vxor.u32 %v2429, 2147483648
        %v2432 = vmul.f32 %v2430, 1.442695
        %v2433 = vpow.pop %v2432
        %v2434 = vmul.f32 %v2431, 1.442695
        %v2435 = vpow.pop %v2434
        %v2436 = vadd.f32 %v2433, 1.0
        %v2437 = vadd.f32 %v2435, 1.0
        %v2438 = vrcp.pop %v2436
        %v2439 = vmul.f32 1.0, %v2438
        %v2440 = vrcp.pop %v2437
        %v2441 = vmul.f32 1.0, %v2440
        %v2442 = vmul.f32 %v2428, %v2439
        %v2443 = vmul.f32 %v2429, %v2441
        %v2444 = vpack.c.bf16 %v2443, %v2442
        %v2445 = vld [vmem:[%s2 + $0xa0] sm:$0xf]
        %v2446 = vld [vmem:[%s2 + $0xa4] sm:$0xf]
        %v2447 = vld [vmem:[%s2 + $0xa8] sm:$0xf]
        %v2448 = vld [vmem:[%s2 + $0xac] sm:$0xf]
        %v2453 = vunpack.c.l.b16 %v2445
        %v2454 = vunpack.c.l.b16 %v2446
        %v2455 = vunpack.c.l.b16 %v2447
        %v2456 = vunpack.c.l.b16 %v2448
        %v2457 = vpack.c.b16 %v2454, %v2453
        %v2458 = vpack.c.b16 %v2456, %v2455
        %v2462 = vsel %vm430, %v2444, 0
        %2464 = vmatprep.subr.bf16.mxu0 0
        %2465 = vmatpush1.bf16.msra.mxu0 %v2457
        %2466 = vmatprep.subr.bf16.mxu0 0
        %2467 = vmatpush1.bf16.msra.mxu0 %v2458
        %2468 = vmatprep.subr.bf16.mxu0 0
        %2469 = vmatpush1.bf16.msra.mxu0 0
        %2470 = vmatprep.subr.bf16.mxu0 0
        %2471 = vmatpush1.bf16.msra.mxu0 0
        %2472 = vmatprep.subr.bf16.mxu0 0
        %2473 = vmatpush1.bf16.msra.mxu0 0
        %2474 = vmatprep.subr.bf16.mxu0 0
        %2475 = vmatpush1.bf16.msra.mxu0 0
        %2476 = vmatprep.subr.bf16.mxu0 0
        %2477 = vmatpush1.bf16.msra.mxu0 0
        %2478 = vmatprep.subr.bf16.mxu0 0
        %2479 = vmatpush1.bf16.msra.mxu0 0
        %2480 = vmatprep.subr.bf16.mxu0 0
        %2481 = vmatpush1.bf16.msra.mxu0 0
        %2482 = vmatprep.subr.bf16.mxu0 0
        %2483 = vmatpush1.bf16.msra.mxu0 0
        %2484 = vmatprep.subr.bf16.mxu0 0
        %2485 = vmatpush1.bf16.msra.mxu0 0
        %2486 = vmatprep.subr.bf16.mxu0 0
        %2487 = vmatpush1.bf16.msra.mxu0 0
        %2488 = vmatprep.subr.bf16.mxu0 0
        %2489 = vmatpush1.bf16.msra.mxu0 0
        %2490 = vmatprep.subr.bf16.mxu0 0
        %2491 = vmatpush1.bf16.msra.mxu0 0
        %2492 = vmatprep.subr.bf16.mxu0 0
        %2493 = vmatpush1.bf16.msra.mxu0 0
        %2494 = vmatprep.subr.bf16.mxu0 0
        %2495 = vmatpush1.bf16.msra.mxu0 0
        %2496 = vmatprep.mubr.bf16.mxu0 0
        %2497 = vmatmul.mubr.bf16.gmra.mrb[0].mxu0 %v2462
        %v2498 = vpop.f32.mrb[0].mxu0
        %v2499 = vadd.f32 0.0, %v2498
        %v2500 = vpop.f32.mrb[0].mxu0
        %v2501 = vpop.f32.mrb[0].mxu0
        %v2502 = vadd.f32 0.0, %v2501
        %v2503 = vpop.f32.mrb[0].mxu0
        %2504 = vdwg.mxu0
        %v2505 = vadd.f32 %v2137, %v2499
        %v2506 = vadd.f32 %v2138, %v2502
        %v2507 = vld [vmem:[#allocation4 + $0x119] sm:$0x1]
        %v2508 = vlaneseq
        %v2509 = vshrl.u32 %v2508, 7
        %v2510 = vsub.s32 0, %v2509
        %v2511 = vrot.slane %v2507, %v2510
        %v2512 = vadd.f32 %v2505, %v2511
        %v2513 = vadd.f32 %v2506, %v2511
        %v2514 = vld [vmem:[#allocation4 + $0x11a] sm:$0x1]
        %v2515 = vld [vmem:[#allocation4 + $0x11b] sm:$0x1]
        %v2516 = vsel %vm430, %v2512, 0.0
        %2517 = vadd.xlane.f32.xlu0 %v2516
        %v2518 = vpop.xlane.xlu0 %2517
        %v2519 = vsel %vm430, %v2513, 0.0
        %2520 = vadd.xlane.f32.xlu0 %v2519
        %v2521 = vpop.xlane.xlu0 %2520
        %v2522 = vmul.f32 %v2518, %v501
        %v2523 = vmul.f32 %v2521, %v501
        %v2524 = vsub.f32 %v2512, %v2522
        %v2525 = vsub.f32 %v2513, %v2523
        %v2526 = vmul.f32 %v2524, %v2524
        %v2527 = vmul.f32 %v2525, %v2525
        %v2528 = vsel %vm430, %v2526, 0.0
        %2529 = vadd.xlane.f32.xlu0 %v2528
        %v2530 = vpop.xlane.xlu0 %2529
        %v2531 = vsel %vm430, %v2527, 0.0
        %2532 = vadd.xlane.f32.xlu0 %v2531
        %v2533 = vpop.xlane.xlu0 %2532
        %v2534 = vmul.f32 %v2530, %v501
        %v2535 = vmul.f32 %v2533, %v501
        %v2536 = vadd.f32 %v2534, 1e-05
        %v2537 = vadd.f32 %v2535, 1e-05
        %v2538 = vrsqrt.pop %v2536
        %v2539 = vrsqrt.pop %v2537
        %v2540 = vmul.f32 %v2524, %v2538
        %v2541 = vmul.f32 %v2525, %v2539
        %v2542 = vlaneseq
        %v2543 = vshrl.u32 %v2542, 7
        %v2544 = vsub.s32 0, %v2543
        %v2545 = vrot.slane %v2514, %v2544
        %v2546 = vmul.f32 %v2540, %v2545
        %v2547 = vmul.f32 %v2541, %v2545
        %v2548 = vlaneseq
        %v2549 = vshrl.u32 %v2548, 7
        %v2550 = vsub.s32 0, %v2549
        %v2551 = vrot.slane %v2515, %v2550
        %v2552 = vadd.f32 %v2546, %v2551
        %v2553 = vadd.f32 %v2547, %v2551
        %v2554 = vpack.c.bf16 %v2553, %v2552
        %v2555 = vld [vmem:[%s2 + $0xb0] sm:$0xf]
        %v2556 = vld [vmem:[%s2 + $0xb4] sm:$0xf]
        %v2557 = vld [vmem:[%s2 + $0xb8] sm:$0xf]
        %v2558 = vld [vmem:[%s2 + $0xbc] sm:$0xf]
        %v2559 = vld [vmem:[#allocation4 + $0x11c] sm:$0x1]
        %v2560 = vlaneseq
        %v2561 = vshrl.u32 %v2560, 7
        %v2562 = vsub.s32 0, %v2561
        %v2563 = vrot.slane %v2559, %v2562
        %v2568 = vunpack.c.l.b16 %v2555
        %v2569 = vunpack.c.l.b16 %v2556
        %v2570 = vunpack.c.l.b16 %v2557
        %v2571 = vunpack.c.l.b16 %v2558
        %v2572 = vpack.c.b16 %v2569, %v2568
        %v2573 = vpack.c.b16 %v2571, %v2570
        %v2577 = vsel %vm430, %v2554, 0
        %2579 = vmatprep.subr.bf16.mxu0 0
        %2580 = vmatpush1.bf16.msra.mxu0 %v2572
        %2581 = vmatprep.subr.bf16.mxu0 0
        %2582 = vmatpush1.bf16.msra.mxu0 %v2573
        %2583 = vmatprep.subr.bf16.mxu0 0
        %2584 = vmatpush1.bf16.msra.mxu0 0
        %2585 = vmatprep.subr.bf16.mxu0 0
        %2586 = vmatpush1.bf16.msra.mxu0 0
        %2587 = vmatprep.subr.bf16.mxu0 0
        %2588 = vmatpush1.bf16.msra.mxu0 0
        %2589 = vmatprep.subr.bf16.mxu0 0
        %2590 = vmatpush1.bf16.msra.mxu0 0
        %2591 = vmatprep.subr.bf16.mxu0 0
        %2592 = vmatpush1.bf16.msra.mxu0 0
        %2593 = vmatprep.subr.bf16.mxu0 0
        %2594 = vmatpush1.bf16.msra.mxu0 0
        %2595 = vmatprep.subr.bf16.mxu0 0
        %2596 = vmatpush1.bf16.msra.mxu0 0
        %2597 = vmatprep.subr.bf16.mxu0 0
        %2598 = vmatpush1.bf16.msra.mxu0 0
        %2599 = vmatprep.subr.bf16.mxu0 0
        %2600 = vmatpush1.bf16.msra.mxu0 0
        %2601 = vmatprep.subr.bf16.mxu0 0
        %2602 = vmatpush1.bf16.msra.mxu0 0
        %2603 = vmatprep.subr.bf16.mxu0 0
        %2604 = vmatpush1.bf16.msra.mxu0 0
        %2605 = vmatprep.subr.bf16.mxu0 0
        %2606 = vmatpush1.bf16.msra.mxu0 0
        %2607 = vmatprep.subr.bf16.mxu0 0
        %2608 = vmatpush1.bf16.msra.mxu0 0
        %2609 = vmatprep.subr.bf16.mxu0 0
        %2610 = vmatpush1.bf16.msra.mxu0 0
        %2611 = vmatprep.mubr.bf16.mxu0 0
        %2612 = vmatmul.mubr.bf16.gmra.mrb[0].mxu0 %v2577
        %v2613 = vpop.f32.mrb[0].mxu0
        %v2614 = vadd.f32 %v2563, %v2613
        %v2615 = vpop.f32.mrb[0].mxu0
        %v2616 = vpop.f32.mrb[0].mxu0
        %v2617 = vadd.f32 %v2563, %v2616
        %v2618 = vpop.f32.mrb[0].mxu0
        %2619 = vdwg.mxu0
        %v2620 = vxor.u32 %v2614, 2147483648
        %v2621 = vxor.u32 %v2617, 2147483648
        %v2622 = vmul.f32 %v2620, 1.442695
        %v2623 = vpow.pop %v2622
        %v2624 = vmul.f32 %v2621, 1.442695
        %v2625 = vpow.pop %v2624
        %v2626 = vadd.f32 %v2623, 1.0
        %v2627 = vadd.f32 %v2625, 1.0
        %v2628 = vrcp.pop %v2626
        %v2629 = vmul.f32 1.0, %v2628
        %v2630 = vrcp.pop %v2627
        %v2631 = vmul.f32 1.0, %v2630
        %v2632 = vmul.f32 %v2614, %v2629
        %v2633 = vmul.f32 %v2617, %v2631
        %v2634 = vpack.c.bf16 %v2633, %v2632
        %v2635 = vld [vmem:[%s2 + $0xc0] sm:$0xf]
        %v2636 = vld [vmem:[%s2 + $0xc4] sm:$0xf]
        %v2637 = vld [vmem:[%s2 + $0xc8] sm:$0xf]
        %v2638 = vld [vmem:[%s2 + $0xcc] sm:$0xf]
        %v2639 = vld [vmem:[%s2 + $0xd0] sm:$0xf]
        %v2640 = vld [vmem:[%s2 + $0xd4] sm:$0xf]
        %v2641 = vld [vmem:[%s2 + $0xd8] sm:$0xf]
        %v2642 = vld [vmem:[%s2 + $0xdc] sm:$0xf]
        %v2643 = vld [vmem:[#allocation4 + $0x11d] sm:$0x1]
        %v2644 = vlaneseq
        %v2645 = vshrl.u32 %v2644, 7
        %v2646 = vsub.s32 0, %v2645
        %v2647 = vrot.slane %v2643, %v2646
        %v2656 = vunpack.c.l.b16 %v2635
        %v2657 = vunpack.c.l.b16 %v2636
        %v2658 = vunpack.c.l.b16 %v2637
        %v2659 = vunpack.c.l.b16 %v2638
        %v2660 = vunpack.c.l.b16 %v2639
        %v2661 = vunpack.c.l.b16 %v2640
        %v2662 = vunpack.c.l.b16 %v2641
        %v2663 = vunpack.c.l.b16 %v2642
        %v2664 = vpack.c.b16 %v2657, %v2656
        %v2665 = vpack.c.b16 %v2659, %v2658
        %v2666 = vpack.c.b16 %v2661, %v2660
        %v2667 = vpack.c.b16 %v2663, %v2662
        %v2673 = vsel %vm784, %v2634, 0
        %2675 = vmatprep.subr.bf16.mxu0 0
        %2676 = vmatpush1.bf16.msra.mxu0 %v2664
        %2677 = vmatprep.subr.bf16.mxu0 0
        %2678 = vmatpush1.bf16.msra.mxu0 %v2665
        %2679 = vmatprep.subr.bf16.mxu0 0
        %2680 = vmatpush1.bf16.msra.mxu0 %v2666
        %2681 = vmatprep.subr.bf16.mxu0 0
        %2682 = vmatpush1.bf16.msra.mxu0 %v2667
        %2683 = vmatprep.subr.bf16.mxu0 0
        %2684 = vmatpush1.bf16.msra.mxu0 0
        %2685 = vmatprep.subr.bf16.mxu0 0
        %2686 = vmatpush1.bf16.msra.mxu0 0
        %2687 = vmatprep.subr.bf16.mxu0 0
        %2688 = vmatpush1.bf16.msra.mxu0 0
        %2689 = vmatprep.subr.bf16.mxu0 0
        %2690 = vmatpush1.bf16.msra.mxu0 0
        %2691 = vmatprep.subr.bf16.mxu0 0
        %2692 = vmatpush1.bf16.msra.mxu0 0
        %2693 = vmatprep.subr.bf16.mxu0 0
        %2694 = vmatpush1.bf16.msra.mxu0 0
        %2695 = vmatprep.subr.bf16.mxu0 0
        %2696 = vmatpush1.bf16.msra.mxu0 0
        %2697 = vmatprep.subr.bf16.mxu0 0
        %2698 = vmatpush1.bf16.msra.mxu0 0
        %2699 = vmatprep.subr.bf16.mxu0 0
        %2700 = vmatpush1.bf16.msra.mxu0 0
        %2701 = vmatprep.subr.bf16.mxu0 0
        %2702 = vmatpush1.bf16.msra.mxu0 0
        %2703 = vmatprep.subr.bf16.mxu0 0
        %2704 = vmatpush1.bf16.msra.mxu0 0
        %2705 = vmatprep.subr.bf16.mxu0 0
        %2706 = vmatpush1.bf16.msra.mxu0 0
        %2707 = vmatprep.mubr.bf16.mxu0 0
        %2708 = vmatmul.mubr.bf16.gmra.mrb[0].mxu0 %v2673
        %v2709 = vpop.f32.mrb[0].mxu0
        %v2710 = vadd.f32 %v2647, %v2709
        %v2711 = vpop.f32.mrb[0].mxu0
        %v2712 = vpop.f32.mrb[0].mxu0
        %v2713 = vadd.f32 %v2647, %v2712
        %v2714 = vpop.f32.mrb[0].mxu0
        %2715 = vdwg.mxu0
        %v2716 = vadd.f32 %v2512, %v2710
        %v2717 = vadd.f32 %v2513, %v2713
        %v2718 = vld [vmem:[#allocation4 + $0x11e] sm:$0x1]
        %v2719 = vld [vmem:[#allocation4 + $0x11f] sm:$0x1]
        %v2720 = vsel %vm430, %v2716, 0.0
        %2721 = vadd.xlane.f32.xlu0 %v2720
        %v2722 = vpop.xlane.xlu0 %2721
        %v2723 = vsel %vm430, %v2717, 0.0
        %2724 = vadd.xlane.f32.xlu0 %v2723
        %v2725 = vpop.xlane.xlu0 %2724
        %v2726 = vmul.f32 %v2722, %v501
        %v2727 = vmul.f32 %v2725, %v501
        %v2728 = vsub.f32 %v2716, %v2726
        %v2729 = vsub.f32 %v2717, %v2727
        %v2730 = vmul.f32 %v2728, %v2728
        %v2731 = vmul.f32 %v2729, %v2729
        %v2732 = vsel %vm430, %v2730, 0.0
        %2733 = vadd.xlane.f32.xlu0 %v2732
        %v2734 = vpop.xlane.xlu0 %2733
        %v2735 = vsel %vm430, %v2731, 0.0
        %2736 = vadd.xlane.f32.xlu0 %v2735
        %v2737 = vpop.xlane.xlu0 %2736
        %v2738 = vmul.f32 %v2734, %v501
        %v2739 = vmul.f32 %v2737, %v501
        %v2740 = vadd.f32 %v2738, 1e-05
        %v2741 = vadd.f32 %v2739, 1e-05
        %v2742 = vrsqrt.pop %v2740
        %v2743 = vrsqrt.pop %v2741
        %v2744 = vmul.f32 %v2728, %v2742
        %v2745 = vmul.f32 %v2729, %v2743
        %v2746 = vlaneseq
        %v2747 = vshrl.u32 %v2746, 7
        %v2748 = vsub.s32 0, %v2747
        %v2749 = vrot.slane %v2718, %v2748
        %v2750 = vmul.f32 %v2744, %v2749
        %v2751 = vmul.f32 %v2745, %v2749
        %v2752 = vlaneseq
        %v2753 = vshrl.u32 %v2752, 7
        %v2754 = vsub.s32 0, %v2753
        %v2755 = vrot.slane %v2719, %v2754
        %v2756 = vadd.f32 %v2750, %v2755
        %v2757 = vadd.f32 %v2751, %v2755
        %v2758 = vld [vmem:[#allocation4 + $0x120] sm:$0x1]
        %v2759 = vld [vmem:[#allocation4 + $0x121] sm:$0x1]
        %v2760 = vsel %vm430, %v2756, 0.0
        %2761 = vadd.xlane.f32.xlu0 %v2760
        %v2762 = vpop.xlane.xlu0 %2761
        %v2763 = vsel %vm430, %v2757, 0.0
        %2764 = vadd.xlane.f32.xlu0 %v2763
        %v2765 = vpop.xlane.xlu0 %2764
        %v2766 = vmul.f32 %v2762, %v501
        %v2767 = vmul.f32 %v2765, %v501
        %v2768 = vsub.f32 %v2756, %v2766
        %v2769 = vsub.f32 %v2757, %v2767
        %v2770 = vmul.f32 %v2768, %v2768
        %v2771 = vmul.f32 %v2769, %v2769
        %v2772 = vsel %vm430, %v2770, 0.0
        %2773 = vadd.xlane.f32.xlu0 %v2772
        %v2774 = vpop.xlane.xlu0 %2773
        %v2775 = vsel %vm430, %v2771, 0.0
        %2776 = vadd.xlane.f32.xlu0 %v2775
        %v2777 = vpop.xlane.xlu0 %2776
        %v2778 = vmul.f32 %v2774, %v501
        %v2779 = vmul.f32 %v2777, %v501
        %v2780 = vadd.f32 %v2778, 1e-05
        %v2781 = vadd.f32 %v2779, 1e-05
        %v2782 = vrsqrt.pop %v2780
        %v2783 = vrsqrt.pop %v2781
        %v2784 = vmul.f32 %v2768, %v2782
        %v2785 = vmul.f32 %v2769, %v2783
        %v2786 = vlaneseq
        %v2787 = vshrl.u32 %v2786, 7
        %v2788 = vsub.s32 0, %v2787
        %v2789 = vrot.slane %v2758, %v2788
        %v2790 = vmul.f32 %v2784, %v2789
        %v2791 = vmul.f32 %v2785, %v2789
        %v2792 = vlaneseq
        %v2793 = vshrl.u32 %v2792, 7
        %v2794 = vsub.s32 0, %v2793
        %v2795 = vrot.slane %v2759, %v2794
        %v2796 = vadd.f32 %v2790, %v2795
        %v2797 = vadd.f32 %v2791, %v2795
        %v2798 = vpack.c.bf16 %v2797, %v2796
        %v2799 = vld [vmem:[%s2 + $0xe0] sm:$0xf]
        %v2800 = vld [vmem:[%s2 + $0xe4] sm:$0xf]
        %v2801 = vld [vmem:[%s2 + $0xe8] sm:$0xf]
        %v2802 = vld [vmem:[%s2 + $0xec] sm:$0xf]
        %v2803 = vld [vmem:[#allocation4 + $0x122] sm:$0x1]
        %v2804 = vlaneseq
        %v2805 = vshrl.u32 %v2804, 7
        %v2806 = vsub.s32 0, %v2805
        %v2807 = vrot.slane %v2803, %v2806
        %v2812 = vunpack.c.l.b16 %v2799
        %v2813 = vunpack.c.l.b16 %v2800
        %v2814 = vunpack.c.l.b16 %v2801
        %v2815 = vunpack.c.l.b16 %v2802
        %v2816 = vpack.c.b16 %v2813, %v2812
        %v2817 = vpack.c.b16 %v2815, %v2814
        %v2821 = vsel %vm430, %v2798, 0
        %2823 = vmatprep.subr.bf16.mxu0 0
        %2824 = vmatpush1.bf16.msra.mxu0 %v2816
        %2825 = vmatprep.subr.bf16.mxu0 0
        %2826 = vmatpush1.bf16.msra.mxu0 %v2817
        %2827 = vmatprep.subr.bf16.mxu0 0
        %2828 = vmatpush1.bf16.msra.mxu0 0
        %2829 = vmatprep.subr.bf16.mxu0 0
        %2830 = vmatpush1.bf16.msra.mxu0 0
        %2831 = vmatprep.subr.bf16.mxu0 0
        %2832 = vmatpush1.bf16.msra.mxu0 0
        %2833 = vmatprep.subr.bf16.mxu0 0
        %2834 = vmatpush1.bf16.msra.mxu0 0
        %2835 = vmatprep.subr.bf16.mxu0 0
        %2836 = vmatpush1.bf16.msra.mxu0 0
        %2837 = vmatprep.subr.bf16.mxu0 0
        %2838 = vmatpush1.bf16.msra.mxu0 0
        %2839 = vmatprep.subr.bf16.mxu0 0
        %2840 = vmatpush1.bf16.msra.mxu0 0
        %2841 = vmatprep.subr.bf16.mxu0 0
        %2842 = vmatpush1.bf16.msra.mxu0 0
        %2843 = vmatprep.subr.bf16.mxu0 0
        %2844 = vmatpush1.bf16.msra.mxu0 0
        %2845 = vmatprep.subr.bf16.mxu0 0
        %2846 = vmatpush1.bf16.msra.mxu0 0
        %2847 = vmatprep.subr.bf16.mxu0 0
        %2848 = vmatpush1.bf16.msra.mxu0 0
        %2849 = vmatprep.subr.bf16.mxu0 0
        %2850 = vmatpush1.bf16.msra.mxu0 0
        %2851 = vmatprep.subr.bf16.mxu0 0
        %2852 = vmatpush1.bf16.msra.mxu0 0
        %2853 = vmatprep.subr.bf16.mxu0 0
        %2854 = vmatpush1.bf16.msra.mxu0 0
        %2855 = vmatprep.mubr.bf16.mxu0 0
        %2856 = vmatmul.mubr.bf16.gmra.mrb[0].mxu0 %v2821
        %v2857 = vpop.f32.mrb[0].mxu0
        %v2858 = vadd.f32 %v2807, %v2857
        %v2859 = vpop.f32.mrb[0].mxu0
        %v2860 = vpop.f32.mrb[0].mxu0
        %v2861 = vadd.f32 %v2807, %v2860
        %v2862 = vpop.f32.mrb[0].mxu0
        %2863 = vdwg.mxu0
        %v2864 = vxor.u32 %v2858, 2147483648
        %v2865 = vxor.u32 %v2861, 2147483648
        %v2866 = vmul.f32 %v2864, 1.442695
        %v2867 = vpow.pop %v2866
        %v2868 = vmul.f32 %v2865, 1.442695
        %v2869 = vpow.pop %v2868
        %v2870 = vadd.f32 %v2867, 1.0
        %v2871 = vadd.f32 %v2869, 1.0
        %v2872 = vrcp.pop %v2870
        %v2873 = vmul.f32 1.0, %v2872
        %v2874 = vrcp.pop %v2871
        %v2875 = vmul.f32 1.0, %v2874
        %v2876 = vmul.f32 %v2858, %v2873
        %v2877 = vmul.f32 %v2861, %v2875
        %v2878 = vpack.c.bf16 %v2877, %v2876
        %v2879 = vld [vmem:[%s2 + $0xf0] sm:$0xf]
        %v2880 = vld [vmem:[%s2 + $0xf4] sm:$0xf]
        %v2881 = vld [vmem:[%s2 + $0xf8] sm:$0xf]
        %v2882 = vld [vmem:[%s2 + $0xfc] sm:$0xf]
        %v2883 = vld [vmem:[%s2 + $0x100] sm:$0xf]
        %v2884 = vld [vmem:[%s2 + $0x104] sm:$0xf]
        %v2885 = vld [vmem:[%s2 + $0x108] sm:$0xf]
        %v2886 = vld [vmem:[%s2 + $0x10c] sm:$0xf]
        %v2887 = vld [vmem:[#allocation4 + $0x123] sm:$0x1]
        %v2888 = vlaneseq
        %v2889 = vshrl.u32 %v2888, 7
        %v2890 = vsub.s32 0, %v2889
        %v2891 = vrot.slane %v2887, %v2890
        %v2900 = vunpack.c.l.b16 %v2879
        %v2901 = vunpack.c.l.b16 %v2880
        %v2902 = vunpack.c.l.b16 %v2881
        %v2903 = vunpack.c.l.b16 %v2882
        %v2904 = vunpack.c.l.b16 %v2883
        %v2905 = vunpack.c.l.b16 %v2884
        %v2906 = vunpack.c.l.b16 %v2885
        %v2907 = vunpack.c.l.b16 %v2886
        %v2908 = vpack.c.b16 %v2901, %v2900
        %v2909 = vpack.c.b16 %v2903, %v2902
        %v2910 = vpack.c.b16 %v2905, %v2904
        %v2911 = vpack.c.b16 %v2907, %v2906
        %v2917 = vsel %vm784, %v2878, 0
        %2919 = vmatprep.subr.bf16.mxu0 0
        %2920 = vmatpush1.bf16.msra.mxu0 %v2908
        %2921 = vmatprep.subr.bf16.mxu0 0
        %2922 = vmatpush1.bf16.msra.mxu0 %v2909
        %2923 = vmatprep.subr.bf16.mxu0 0
        %2924 = vmatpush1.bf16.msra.mxu0 %v2910
        %2925 = vmatprep.subr.bf16.mxu0 0
        %2926 = vmatpush1.bf16.msra.mxu0 %v2911
        %2927 = vmatprep.subr.bf16.mxu0 0
        %2928 = vmatpush1.bf16.msra.mxu0 0
        %2929 = vmatprep.subr.bf16.mxu0 0
        %2930 = vmatpush1.bf16.msra.mxu0 0
        %2931 = vmatprep.subr.bf16.mxu0 0
        %2932 = vmatpush1.bf16.msra.mxu0 0
        %2933 = vmatprep.subr.bf16.mxu0 0
        %2934 = vmatpush1.bf16.msra.mxu0 0
        %2935 = vmatprep.subr.bf16.mxu0 0
        %2936 = vmatpush1.bf16.msra.mxu0 0
        %2937 = vmatprep.subr.bf16.mxu0 0
        %2938 = vmatpush1.bf16.msra.mxu0 0
        %2939 = vmatprep.subr.bf16.mxu0 0
        %2940 = vmatpush1.bf16.msra.mxu0 0
        %2941 = vmatprep.subr.bf16.mxu0 0
        %2942 = vmatpush1.bf16.msra.mxu0 0
        %2943 = vmatprep.subr.bf16.mxu0 0
        %2944 = vmatpush1.bf16.msra.mxu0 0
        %2945 = vmatprep.subr.bf16.mxu0 0
        %2946 = vmatpush1.bf16.msra.mxu0 0
        %2947 = vmatprep.subr.bf16.mxu0 0
        %2948 = vmatpush1.bf16.msra.mxu0 0
        %2949 = vmatprep.subr.bf16.mxu0 0
        %2950 = vmatpush1.bf16.msra.mxu0 0
        %2951 = vmatprep.mubr.bf16.mxu0 0
        %2952 = vmatmul.mubr.bf16.gmra.mrb[0].mxu0 %v2917
        %v2953 = vpop.f32.mrb[0].mxu0
        %v2954 = vadd.f32 %v2891, %v2953
        %v2955 = vpop.f32.mrb[0].mxu0
        %v2956 = vpop.f32.mrb[0].mxu0
        %v2957 = vadd.f32 %v2891, %v2956
        %v2958 = vpop.f32.mrb[0].mxu0
        %2959 = vdwg.mxu0
        %v2960 = vadd.f32 %v2756, %v2954
        %v2961 = vadd.f32 %v2757, %v2957
        %v2962 = vld [vmem:[#allocation4 + $0x124] sm:$0x1]
        %v2963 = vld [vmem:[#allocation4 + $0x125] sm:$0x1]
        %v2964 = vsel %vm430, %v2960, 0.0
        %2965 = vadd.xlane.f32.xlu0 %v2964
        %v2966 = vpop.xlane.xlu0 %2965
        %v2967 = vsel %vm430, %v2961, 0.0
        %2968 = vadd.xlane.f32.xlu0 %v2967
        %v2969 = vpop.xlane.xlu0 %2968
        %v2970 = vmul.f32 %v2966, %v501
        %v2971 = vmul.f32 %v2969, %v501
        %v2972 = vsub.f32 %v2960, %v2970
        %v2973 = vsub.f32 %v2961, %v2971
        %v2974 = vmul.f32 %v2972, %v2972
        %v2975 = vmul.f32 %v2973, %v2973
        %v2976 = vsel %vm430, %v2974, 0.0
        %2977 = vadd.xlane.f32.xlu0 %v2976
        %v2978 = vpop.xlane.xlu0 %2977
        %v2979 = vsel %vm430, %v2975, 0.0
        %2980 = vadd.xlane.f32.xlu0 %v2979
        %v2981 = vpop.xlane.xlu0 %2980
        %v2982 = vmul.f32 %v2978, %v501
        %v2983 = vmul.f32 %v2981, %v501
        %v2984 = vadd.f32 %v2982, 1e-05
        %v2985 = vadd.f32 %v2983, 1e-05
        %v2986 = vrsqrt.pop %v2984
        %v2987 = vrsqrt.pop %v2985
        %v2988 = vmul.f32 %v2972, %v2986
        %v2989 = vmul.f32 %v2973, %v2987
        %v2990 = vlaneseq
        %v2991 = vshrl.u32 %v2990, 7
        %v2992 = vsub.s32 0, %v2991
        %v2993 = vrot.slane %v2962, %v2992
        %v2994 = vmul.f32 %v2988, %v2993
        %v2995 = vmul.f32 %v2989, %v2993
        %v2996 = vlaneseq
        %v2997 = vshrl.u32 %v2996, 7
        %v2998 = vsub.s32 0, %v2997
        %v2999 = vrot.slane %v2963, %v2998
        %v3000 = vadd.f32 %v2994, %v2999
        %v3001 = vadd.f32 %v2995, %v2999
        %v3002 = vpack.c.bf16 %v3001, %v3000
        %v3003 = vld [vmem:[#allocation4 + $0x126] sm:$0x1]
        %v3004 = vld [vmem:[#allocation4 + $0x127] sm:$0x1]
        %v3005 = vld [vmem:[#allocation4 + $0x128] sm:$0x1]
        %v3006 = vld [vmem:[%s2 + $0x110] sm:$0xf]
        %v3007 = vlaneseq
        %v3008 = vshrl.u32 %v3007, 7
        %v3009 = vsub.s32 0, %v3008
        %v3010 = vrot.slane %v3003, %v3009
        %v3012 = vsel %vm430, %v3002, 0
        %v3015 = vsel %vm430, %v3006, 0
        %3017 = vmatprep.subr.bf16.mxu0 0
        %3018 = vmatpush1.bf16.xpose.msra.mxu0 %v3015
        %3019 = vmatprep.subr.bf16.mxu0 0
        %3020 = vmatpush1.bf16.xpose.msra.mxu0 0
        %3021 = vmatprep.subr.bf16.mxu0 0
        %3022 = vmatpush1.bf16.xpose.msra.mxu0 0
        %3023 = vmatprep.subr.bf16.mxu0 0
        %3024 = vmatpush1.bf16.xpose.msra.mxu0 0
        %3025 = vmatprep.subr.bf16.mxu0 0
        %3026 = vmatpush1.bf16.xpose.msra.mxu0 0
        %3027 = vmatprep.subr.bf16.mxu0 0
        %3028 = vmatpush1.bf16.xpose.msra.mxu0 0
        %3029 = vmatprep.subr.bf16.mxu0 0
        %3030 = vmatpush1.bf16.xpose.msra.mxu0 0
        %3031 = vmatprep.subr.bf16.mxu0 0
        %3032 = vmatpush1.bf16.xpose.msra.mxu0 0
        %3033 = vmatprep.subr.bf16.mxu0 0
        %3034 = vmatpush1.bf16.xpose.msra.mxu0 0
        %3035 = vmatprep.subr.bf16.mxu0 0
        %3036 = vmatpush1.bf16.xpose.msra.mxu0 0
        %3037 = vmatprep.subr.bf16.mxu0 0
        %3038 = vmatpush1.bf16.xpose.msra.mxu0 0
        %3039 = vmatprep.subr.bf16.mxu0 0
        %3040 = vmatpush1.bf16.xpose.msra.mxu0 0
        %3041 = vmatprep.subr.bf16.mxu0 0
        %3042 = vmatpush1.bf16.xpose.msra.mxu0 0
        %3043 = vmatprep.subr.bf16.mxu0 0
        %3044 = vmatpush1.bf16.xpose.msra.mxu0 0
        %3045 = vmatprep.subr.bf16.mxu0 0
        %3046 = vmatpush1.bf16.xpose.msra.mxu0 0
        %3047 = vmatprep.subr.bf16.mxu0 0
        %3048 = vmatpush1.bf16.xpose.msra.mxu0 0
        %3049 = vmatprep.mubr.bf16.mxu0 0
        %3050 = vmatmul.mubr.bf16.gmra.mrb[0].mxu0 %v3012
        %v3051 = vpop.f32.mrb[0].mxu0
        %v3052 = vadd.f32 %v3010, %v3051
        %v3053 = vpop.f32.mrb[0].mxu0
        %v3054 = vpop.f32.mrb[0].mxu0
        %v3055 = vadd.f32 %v3010, %v3054
        %v3056 = vpop.f32.mrb[0].mxu0
        %3057 = vdwg.mxu0
        %v3058 = vld [vmem:[%s2 + $0x120] sm:$0xf]
        %v3059 = vlaneseq
        %v3060 = vshrl.u32 %v3059, 7
        %v3061 = vsub.s32 0, %v3060
        %v3062 = vrot.slane %v3004, %v3061
        %v3064 = vsel %vm430, %v3058, 0
        %3066 = vmatprep.subr.bf16.mxu0 0
        %3067 = vmatpush1.bf16.xpose.msra.mxu0 %v3064
        %3068 = vmatprep.subr.bf16.mxu0 0
        %3069 = vmatpush1.bf16.xpose.msra.mxu0 0
        %3070 = vmatprep.subr.bf16.mxu0 0
        %3071 = vmatpush1.bf16.xpose.msra.mxu0 0
        %3072 = vmatprep.subr.bf16.mxu0 0
        %3073 = vmatpush1.bf16.xpose.msra.mxu0 0
        %3074 = vmatprep.subr.bf16.mxu0 0
        %3075 = vmatpush1.bf16.xpose.msra.mxu0 0
        %3076 = vmatprep.subr.bf16.mxu0 0
        %3077 = vmatpush1.bf16.xpose.msra.mxu0 0
        %3078 = vmatprep.subr.bf16.mxu0 0
        %3079 = vmatpush1.bf16.xpose.msra.mxu0 0
        %3080 = vmatprep.subr.bf16.mxu0 0
        %3081 = vmatpush1.bf16.xpose.msra.mxu0 0
        %3082 = vmatprep.subr.bf16.mxu0 0
        %3083 = vmatpush1.bf16.xpose.msra.mxu0 0
        %3084 = vmatprep.subr.bf16.mxu0 0
        %3085 = vmatpush1.bf16.xpose.msra.mxu0 0
        %3086 = vmatprep.subr.bf16.mxu0 0
        %3087 = vmatpush1.bf16.xpose.msra.mxu0 0
        %3088 = vmatprep.subr.bf16.mxu0 0
        %3089 = vmatpush1.bf16.xpose.msra.mxu0 0
        %3090 = vmatprep.subr.bf16.mxu0 0
        %3091 = vmatpush1.bf16.xpose.msra.mxu0 0
        %3092 = vmatprep.subr.bf16.mxu0 0
        %3093 = vmatpush1.bf16.xpose.msra.mxu0 0
        %3094 = vmatprep.subr.bf16.mxu0 0
        %3095 = vmatpush1.bf16.xpose.msra.mxu0 0
        %3096 = vmatprep.subr.bf16.mxu0 0
        %3097 = vmatpush1.bf16.xpose.msra.mxu0 0
        %3098 = vmatprep.mubr.bf16.mxu0 0
        %3099 = vmatmul.mubr.bf16.gmra.mrb[0].mxu0 %v3012
        %v3100 = vpop.f32.mrb[0].mxu0
        %v3101 = vadd.f32 %v3062, %v3100
        %v3102 = vpop.f32.mrb[0].mxu0
        %v3103 = vpop.f32.mrb[0].mxu0
        %v3104 = vadd.f32 %v3062, %v3103
        %v3105 = vpop.f32.mrb[0].mxu0
        %3106 = vdwg.mxu0
        %v3107 = vld [vmem:[%s2 + $0x130] sm:$0xf]
        %v3108 = vlaneseq
        %v3109 = vshrl.u32 %v3108, 7
        %v3110 = vsub.s32 0, %v3109
        %v3111 = vrot.slane %v3005, %v3110
        %v3113 = vsel %vm430, %v3107, 0
        %3115 = vmatprep.subr.bf16.mxu0 0
        %3116 = vmatpush1.bf16.xpose.msra.mxu0 %v3113
        %3117 = vmatprep.subr.bf16.mxu0 0
        %3118 = vmatpush1.bf16.xpose.msra.mxu0 0
        %3119 = vmatprep.subr.bf16.mxu0 0
        %3120 = vmatpush1.bf16.xpose.msra.mxu0 0
        %3121 = vmatprep.subr.bf16.mxu0 0
        %3122 = vmatpush1.bf16.xpose.msra.mxu0 0
        %3123 = vmatprep.subr.bf16.mxu0 0
        %3124 = vmatpush1.bf16.xpose.msra.mxu0 0
        %3125 = vmatprep.subr.bf16.mxu0 0
        %3126 = vmatpush1.bf16.xpose.msra.mxu0 0
        %3127 = vmatprep.subr.bf16.mxu0 0
        %3128 = vmatpush1.bf16.xpose.msra.mxu0 0
        %3129 = vmatprep.subr.bf16.mxu0 0
        %3130 = vmatpush1.bf16.xpose.msra.mxu0 0
        %3131 = vmatprep.subr.bf16.mxu0 0
        %3132 = vmatpush1.bf16.xpose.msra.mxu0 0
        %3133 = vmatprep.subr.bf16.mxu0 0
        %3134 = vmatpush1.bf16.xpose.msra.mxu0 0
        %3135 = vmatprep.subr.bf16.mxu0 0
        %3136 = vmatpush1.bf16.xpose.msra.mxu0 0
        %3137 = vmatprep.subr.bf16.mxu0 0
        %3138 = vmatpush1.bf16.xpose.msra.mxu0 0
        %3139 = vmatprep.subr.bf16.mxu0 0
        %3140 = vmatpush1.bf16.xpose.msra.mxu0 0
        %3141 = vmatprep.subr.bf16.mxu0 0
        %3142 = vmatpush1.bf16.xpose.msra.mxu0 0
        %3143 = vmatprep.subr.bf16.mxu0 0
        %3144 = vmatpush1.bf16.xpose.msra.mxu0 0
        %3145 = vmatprep.subr.bf16.mxu0 0
        %3146 = vmatpush1.bf16.xpose.msra.mxu0 0
        %3147 = vmatprep.mubr.bf16.mxu0 0
        %3148 = vmatmul.mubr.bf16.gmra.mrb[0].mxu0 %v3012
        %v3149 = vpop.f32.mrb[0].mxu0
        %v3150 = vadd.f32 %v3111, %v3149
        %v3151 = vpop.f32.mrb[0].mxu0
        %v3152 = vpop.f32.mrb[0].mxu0
        %v3153 = vadd.f32 %v3111, %v3152
        %v3154 = vpop.f32.mrb[0].mxu0
        %3155 = vdwg.mxu0
        %v3156 = vld [vmem:[%s2 + $0x114] sm:$0xf]
        %3158 = vrot.lane.b32.xlu0 %v3010, 120
        %v3159 = vpop.permute.xlu0 %3158
        %v3162 = vsel %vm430, %v3156, 0
        %3164 = vmatprep.subr.bf16.mxu0 0
        %3165 = vmatpush1.bf16.xpose.msra.mxu0 %v3162
        %3166 = vmatprep.subr.bf16.mxu0 0
        %3167 = vmatpush1.bf16.xpose.msra.mxu0 0
        %3168 = vmatprep.subr.bf16.mxu0 0
        %3169 = vmatpush1.bf16.xpose.msra.mxu0 0
        %3170 = vmatprep.subr.bf16.mxu0 0
        %3171 = vmatpush1.bf16.xpose.msra.mxu0 0
        %3172 = vmatprep.subr.bf16.mxu0 0
        %3173 = vmatpush1.bf16.xpose.msra.mxu0 0
        %3174 = vmatprep.subr.bf16.mxu0 0
        %3175 = vmatpush1.bf16.xpose.msra.mxu0 0
        %3176 = vmatprep.subr.bf16.mxu0 0
        %3177 = vmatpush1.bf16.xpose.msra.mxu0 0
        %3178 = vmatprep.subr.bf16.mxu0 0
        %3179 = vmatpush1.bf16.xpose.msra.mxu0 0
        %3180 = vmatprep.subr.bf16.mxu0 0
        %3181 = vmatpush1.bf16.xpose.msra.mxu0 0
        %3182 = vmatprep.subr.bf16.mxu0 0
        %3183 = vmatpush1.bf16.xpose.msra.mxu0 0
        %3184 = vmatprep.subr.bf16.mxu0 0
        %3185 = vmatpush1.bf16.xpose.msra.mxu0 0
        %3186 = vmatprep.subr.bf16.mxu0 0
        %3187 = vmatpush1.bf16.xpose.msra.mxu0 0
        %3188 = vmatprep.subr.bf16.mxu0 0
        %3189 = vmatpush1.bf16.xpose.msra.mxu0 0
        %3190 = vmatprep.subr.bf16.mxu0 0
        %3191 = vmatpush1.bf16.xpose.msra.mxu0 0
        %3192 = vmatprep.subr.bf16.mxu0 0
        %3193 = vmatpush1.bf16.xpose.msra.mxu0 0
        %3194 = vmatprep.subr.bf16.mxu0 0
        %3195 = vmatpush1.bf16.xpose.msra.mxu0 0
        %3196 = vmatprep.mubr.bf16.mxu0 0
        %3197 = vmatmul.mubr.bf16.gmra.mrb[0].mxu0 %v3012
        %v3198 = vpop.f32.mrb[0].mxu0
        %v3199 = vadd.f32 %v3159, %v3198
        %v3200 = vpop.f32.mrb[0].mxu0
        %v3201 = vpop.f32.mrb[0].mxu0
        %v3202 = vadd.f32 %v3159, %v3201
        %v3203 = vpop.f32.mrb[0].mxu0
        %3204 = vdwg.mxu0
        %v3205 = vld [vmem:[%s2 + $0x124] sm:$0xf]
        %3207 = vrot.lane.b32.xlu0 %v3062, 120
        %v3208 = vpop.permute.xlu0 %3207
        %v3211 = vsel %vm430, %v3205, 0
        %3213 = vmatprep.subr.bf16.mxu0 0
        %3214 = vmatpush1.bf16.xpose.msra.mxu0 %v3211
        %3215 = vmatprep.subr.bf16.mxu0 0
        %3216 = vmatpush1.bf16.xpose.msra.mxu0 0
        %3217 = vmatprep.subr.bf16.mxu0 0
        %3218 = vmatpush1.bf16.xpose.msra.mxu0 0
        %3219 = vmatprep.subr.bf16.mxu0 0
        %3220 = vmatpush1.bf16.xpose.msra.mxu0 0
        %3221 = vmatprep.subr.bf16.mxu0 0
        %3222 = vmatpush1.bf16.xpose.msra.mxu0 0
        %3223 = vmatprep.subr.bf16.mxu0 0
        %3224 = vmatpush1.bf16.xpose.msra.mxu0 0
        %3225 = vmatprep.subr.bf16.mxu0 0
        %3226 = vmatpush1.bf16.xpose.msra.mxu0 0
        %3227 = vmatprep.subr.bf16.mxu0 0
        %3228 = vmatpush1.bf16.xpose.msra.mxu0 0
        %3229 = vmatprep.subr.bf16.mxu0 0
        %3230 = vmatpush1.bf16.xpose.msra.mxu0 0
        %3231 = vmatprep.subr.bf16.mxu0 0
        %3232 = vmatpush1.bf16.xpose.msra.mxu0 0
        %3233 = vmatprep.subr.bf16.mxu0 0
        %3234 = vmatpush1.bf16.xpose.msra.mxu0 0
        %3235 = vmatprep.subr.bf16.mxu0 0
        %3236 = vmatpush1.bf16.xpose.msra.mxu0 0
        %3237 = vmatprep.subr.bf16.mxu0 0
        %3238 = vmatpush1.bf16.xpose.msra.mxu0 0
        %3239 = vmatprep.subr.bf16.mxu0 0
        %3240 = vmatpush1.bf16.xpose.msra.mxu0 0
        %3241 = vmatprep.subr.bf16.mxu0 0
        %3242 = vmatpush1.bf16.xpose.msra.mxu0 0
        %3243 = vmatprep.subr.bf16.mxu0 0
        %3244 = vmatpush1.bf16.xpose.msra.mxu0 0
        %3245 = vmatprep.mubr.bf16.mxu0 0
        %3246 = vmatmul.mubr.bf16.gmra.mrb[0].mxu0 %v3012
        %v3247 = vpop.f32.mrb[0].mxu0
        %v3248 = vadd.f32 %v3208, %v3247
        %v3249 = vpop.f32.mrb[0].mxu0
        %v3250 = vpop.f32.mrb[0].mxu0
        %v3251 = vadd.f32 %v3208, %v3250
        %v3252 = vpop.f32.mrb[0].mxu0
        %3253 = vdwg.mxu0
        %v3254 = vld [vmem:[%s2 + $0x134] sm:$0xf]
        %3256 = vrot.lane.b32.xlu0 %v3111, 120
        %v3257 = vpop.permute.xlu0 %3256
        %v3260 = vsel %vm430, %v3254, 0
        %3262 = vmatprep.subr.bf16.mxu0 0
        %3263 = vmatpush1.bf16.xpose.msra.mxu0 %v3260
        %3264 = vmatprep.subr.bf16.mxu0 0
        %3265 = vmatpush1.bf16.xpose.msra.mxu0 0
        %3266 = vmatprep.subr.bf16.mxu0 0
        %3267 = vmatpush1.bf16.xpose.msra.mxu0 0
        %3268 = vmatprep.subr.bf16.mxu0 0
        %3269 = vmatpush1.bf16.xpose.msra.mxu0 0
        %3270 = vmatprep.subr.bf16.mxu0 0
        %3271 = vmatpush1.bf16.xpose.msra.mxu0 0
        %3272 = vmatprep.subr.bf16.mxu0 0
        %3273 = vmatpush1.bf16.xpose.msra.mxu0 0
        %3274 = vmatprep.subr.bf16.mxu0 0
        %3275 = vmatpush1.bf16.xpose.msra.mxu0 0
        %3276 = vmatprep.subr.bf16.mxu0 0
        %3277 = vmatpush1.bf16.xpose.msra.mxu0 0
        %3278 = vmatprep.subr.bf16.mxu0 0
        %3279 = vmatpush1.bf16.xpose.msra.mxu0 0
        %3280 = vmatprep.subr.bf16.mxu0 0
        %3281 = vmatpush1.bf16.xpose.msra.mxu0 0
        %3282 = vmatprep.subr.bf16.mxu0 0
        %3283 = vmatpush1.bf16.xpose.msra.mxu0 0
        %3284 = vmatprep.subr.bf16.mxu0 0
        %3285 = vmatpush1.bf16.xpose.msra.mxu0 0
        %3286 = vmatprep.subr.bf16.mxu0 0
        %3287 = vmatpush1.bf16.xpose.msra.mxu0 0
        %3288 = vmatprep.subr.bf16.mxu0 0
        %3289 = vmatpush1.bf16.xpose.msra.mxu0 0
        %3290 = vmatprep.subr.bf16.mxu0 0
        %3291 = vmatpush1.bf16.xpose.msra.mxu0 0
        %3292 = vmatprep.subr.bf16.mxu0 0
        %3293 = vmatpush1.bf16.xpose.msra.mxu0 0
        %3294 = vmatprep.mubr.bf16.mxu0 0
        %3295 = vmatmul.mubr.bf16.gmra.mrb[0].mxu0 %v3012
        %v3296 = vpop.f32.mrb[0].mxu0
        %v3297 = vadd.f32 %v3257, %v3296
        %v3298 = vpop.f32.mrb[0].mxu0
        %v3299 = vpop.f32.mrb[0].mxu0
        %v3300 = vadd.f32 %v3257, %v3299
        %v3301 = vpop.f32.mrb[0].mxu0
        %3302 = vdwg.mxu0
        %v3303 = vld [vmem:[%s2 + $0x118] sm:$0xf]
        %3304 = vrot.lane.b32.xlu0 %v3010, 112
        %v3305 = vpop.permute.xlu0 %3304
        %v3308 = vsel %vm430, %v3303, 0
        %3310 = vmatprep.subr.bf16.mxu0 0
        %3311 = vmatpush1.bf16.xpose.msra.mxu0 %v3308
        %3312 = vmatprep.subr.bf16.mxu0 0
        %3313 = vmatpush1.bf16.xpose.msra.mxu0 0
        %3314 = vmatprep.subr.bf16.mxu0 0
        %3315 = vmatpush1.bf16.xpose.msra.mxu0 0
        %3316 = vmatprep.subr.bf16.mxu0 0
        %3317 = vmatpush1.bf16.xpose.msra.mxu0 0
        %3318 = vmatprep.subr.bf16.mxu0 0
        %3319 = vmatpush1.bf16.xpose.msra.mxu0 0
        %3320 = vmatprep.subr.bf16.mxu0 0
        %3321 = vmatpush1.bf16.xpose.msra.mxu0 0
        %3322 = vmatprep.subr.bf16.mxu0 0
        %3323 = vmatpush1.bf16.xpose.msra.mxu0 0
        %3324 = vmatprep.subr.bf16.mxu0 0
        %3325 = vmatpush1.bf16.xpose.msra.mxu0 0
        %3326 = vmatprep.subr.bf16.mxu0 0
        %3327 = vmatpush1.bf16.xpose.msra.mxu0 0
        %3328 = vmatprep.subr.bf16.mxu0 0
        %3329 = vmatpush1.bf16.xpose.msra.mxu0 0
        %3330 = vmatprep.subr.bf16.mxu0 0
        %3331 = vmatpush1.bf16.xpose.msra.mxu0 0
        %3332 = vmatprep.subr.bf16.mxu0 0
        %3333 = vmatpush1.bf16.xpose.msra.mxu0 0
        %3334 = vmatprep.subr.bf16.mxu0 0
        %3335 = vmatpush1.bf16.xpose.msra.mxu0 0
        %3336 = vmatprep.subr.bf16.mxu0 0
        %3337 = vmatpush1.bf16.xpose.msra.mxu0 0
        %3338 = vmatprep.subr.bf16.mxu0 0
        %3339 = vmatpush1.bf16.xpose.msra.mxu0 0
        %3340 = vmatprep.subr.bf16.mxu0 0
        %3341 = vmatpush1.bf16.xpose.msra.mxu0 0
        %3342 = vmatprep.mubr.bf16.mxu0 0
        %3343 = vmatmul.mubr.bf16.gmra.mrb[0].mxu0 %v3012
        %v3344 = vpop.f32.mrb[0].mxu0
        %v3345 = vadd.f32 %v3305, %v3344
        %v3346 = vpop.f32.mrb[0].mxu0
        %v3347 = vpop.f32.mrb[0].mxu0
        %v3348 = vadd.f32 %v3305, %v3347
        %v3349 = vpop.f32.mrb[0].mxu0
        %3350 = vdwg.mxu0
        %v3351 = vld [vmem:[%s2 + $0x128] sm:$0xf]
        %3352 = vrot.lane.b32.xlu0 %v3062, 112
        %v3353 = vpop.permute.xlu0 %3352
        %v3356 = vsel %vm430, %v3351, 0
        %3358 = vmatprep.subr.bf16.mxu0 0
        %3359 = vmatpush1.bf16.xpose.msra.mxu0 %v3356
        %3360 = vmatprep.subr.bf16.mxu0 0
        %3361 = vmatpush1.bf16.xpose.msra.mxu0 0
        %3362 = vmatprep.subr.bf16.mxu0 0
        %3363 = vmatpush1.bf16.xpose.msra.mxu0 0
        %3364 = vmatprep.subr.bf16.mxu0 0
        %3365 = vmatpush1.bf16.xpose.msra.mxu0 0
        %3366 = vmatprep.subr.bf16.mxu0 0
        %3367 = vmatpush1.bf16.xpose.msra.mxu0 0
        %3368 = vmatprep.subr.bf16.mxu0 0
        %3369 = vmatpush1.bf16.xpose.msra.mxu0 0
        %3370 = vmatprep.subr.bf16.mxu0 0
        %3371 = vmatpush1.bf16.xpose.msra.mxu0 0
        %3372 = vmatprep.subr.bf16.mxu0 0
        %3373 = vmatpush1.bf16.xpose.msra.mxu0 0
        %3374 = vmatprep.subr.bf16.mxu0 0
        %3375 = vmatpush1.bf16.xpose.msra.mxu0 0
        %3376 = vmatprep.subr.bf16.mxu0 0
        %3377 = vmatpush1.bf16.xpose.msra.mxu0 0
        %3378 = vmatprep.subr.bf16.mxu0 0
        %3379 = vmatpush1.bf16.xpose.msra.mxu0 0
        %3380 = vmatprep.subr.bf16.mxu0 0
        %3381 = vmatpush1.bf16.xpose.msra.mxu0 0
        %3382 = vmatprep.subr.bf16.mxu0 0
        %3383 = vmatpush1.bf16.xpose.msra.mxu0 0
        %3384 = vmatprep.subr.bf16.mxu0 0
        %3385 = vmatpush1.bf16.xpose.msra.mxu0 0
        %3386 = vmatprep.subr.bf16.mxu0 0
        %3387 = vmatpush1.bf16.xpose.msra.mxu0 0
        %3388 = vmatprep.subr.bf16.mxu0 0
        %3389 = vmatpush1.bf16.xpose.msra.mxu0 0
        %3390 = vmatprep.mubr.bf16.mxu0 0
        %3391 = vmatmul.mubr.bf16.gmra.mrb[0].mxu0 %v3012
        %v3392 = vpop.f32.mrb[0].mxu0
        %v3393 = vadd.f32 %v3353, %v3392
        %v3394 = vpop.f32.mrb[0].mxu0
        %v3395 = vpop.f32.mrb[0].mxu0
        %v3396 = vadd.f32 %v3353, %v3395
        %v3397 = vpop.f32.mrb[0].mxu0
        %3398 = vdwg.mxu0
        %v3399 = vld [vmem:[%s2 + $0x138] sm:$0xf]
        %3400 = vrot.lane.b32.xlu0 %v3111, 112
        %v3401 = vpop.permute.xlu0 %3400
        %v3404 = vsel %vm430, %v3399, 0
        %3406 = vmatprep.subr.bf16.mxu0 0
        %3407 = vmatpush1.bf16.xpose.msra.mxu0 %v3404
        %3408 = vmatprep.subr.bf16.mxu0 0
        %3409 = vmatpush1.bf16.xpose.msra.mxu0 0
        %3410 = vmatprep.subr.bf16.mxu0 0
        %3411 = vmatpush1.bf16.xpose.msra.mxu0 0
        %3412 = vmatprep.subr.bf16.mxu0 0
        %3413 = vmatpush1.bf16.xpose.msra.mxu0 0
        %3414 = vmatprep.subr.bf16.mxu0 0
        %3415 = vmatpush1.bf16.xpose.msra.mxu0 0
        %3416 = vmatprep.subr.bf16.mxu0 0
        %3417 = vmatpush1.bf16.xpose.msra.mxu0 0
        %3418 = vmatprep.subr.bf16.mxu0 0
        %3419 = vmatpush1.bf16.xpose.msra.mxu0 0
        %3420 = vmatprep.subr.bf16.mxu0 0
        %3421 = vmatpush1.bf16.xpose.msra.mxu0 0
        %3422 = vmatprep.subr.bf16.mxu0 0
        %3423 = vmatpush1.bf16.xpose.msra.mxu0 0
        %3424 = vmatprep.subr.bf16.mxu0 0
        %3425 = vmatpush1.bf16.xpose.msra.mxu0 0
        %3426 = vmatprep.subr.bf16.mxu0 0
        %3427 = vmatpush1.bf16.xpose.msra.mxu0 0
        %3428 = vmatprep.subr.bf16.mxu0 0
        %3429 = vmatpush1.bf16.xpose.msra.mxu0 0
        %3430 = vmatprep.subr.bf16.mxu0 0
        %3431 = vmatpush1.bf16.xpose.msra.mxu0 0
        %3432 = vmatprep.subr.bf16.mxu0 0
        %3433 = vmatpush1.bf16.xpose.msra.mxu0 0
        %3434 = vmatprep.subr.bf16.mxu0 0
        %3435 = vmatpush1.bf16.xpose.msra.mxu0 0
        %3436 = vmatprep.subr.bf16.mxu0 0
        %3437 = vmatpush1.bf16.xpose.msra.mxu0 0
        %3438 = vmatprep.mubr.bf16.mxu0 0
        %3439 = vmatmul.mubr.bf16.gmra.mrb[0].mxu0 %v3012
        %v3440 = vpop.f32.mrb[0].mxu0
        %v3441 = vadd.f32 %v3401, %v3440
        %v3442 = vpop.f32.mrb[0].mxu0
        %v3443 = vpop.f32.mrb[0].mxu0
        %v3444 = vadd.f32 %v3401, %v3443
        %v3445 = vpop.f32.mrb[0].mxu0
        %3446 = vdwg.mxu0
        %v3447 = vld [vmem:[%s2 + $0x11c] sm:$0xf]
        %3448 = vrot.lane.b32.xlu0 %v3010, 104
        %v3449 = vpop.permute.xlu0 %3448
        %v3452 = vsel %vm430, %v3447, 0
        %3454 = vmatprep.subr.bf16.mxu0 0
        %3455 = vmatpush1.bf16.xpose.msra.mxu0 %v3452
        %3456 = vmatprep.subr.bf16.mxu0 0
        %3457 = vmatpush1.bf16.xpose.msra.mxu0 0
        %3458 = vmatprep.subr.bf16.mxu0 0
        %3459 = vmatpush1.bf16.xpose.msra.mxu0 0
        %3460 = vmatprep.subr.bf16.mxu0 0
        %3461 = vmatpush1.bf16.xpose.msra.mxu0 0
        %3462 = vmatprep.subr.bf16.mxu0 0
        %3463 = vmatpush1.bf16.xpose.msra.mxu0 0
        %3464 = vmatprep.subr.bf16.mxu0 0
        %3465 = vmatpush1.bf16.xpose.msra.mxu0 0
        %3466 = vmatprep.subr.bf16.mxu0 0
        %3467 = vmatpush1.bf16.xpose.msra.mxu0 0
        %3468 = vmatprep.subr.bf16.mxu0 0
        %3469 = vmatpush1.bf16.xpose.msra.mxu0 0
        %3470 = vmatprep.subr.bf16.mxu0 0
        %3471 = vmatpush1.bf16.xpose.msra.mxu0 0
        %3472 = vmatprep.subr.bf16.mxu0 0
        %3473 = vmatpush1.bf16.xpose.msra.mxu0 0
        %3474 = vmatprep.subr.bf16.mxu0 0
        %3475 = vmatpush1.bf16.xpose.msra.mxu0 0
        %3476 = vmatprep.subr.bf16.mxu0 0
        %3477 = vmatpush1.bf16.xpose.msra.mxu0 0
        %3478 = vmatprep.subr.bf16.mxu0 0
        %3479 = vmatpush1.bf16.xpose.msra.mxu0 0
        %3480 = vmatprep.subr.bf16.mxu0 0
        %3481 = vmatpush1.bf16.xpose.msra.mxu0 0
        %3482 = vmatprep.subr.bf16.mxu0 0
        %3483 = vmatpush1.bf16.xpose.msra.mxu0 0
        %3484 = vmatprep.subr.bf16.mxu0 0
        %3485 = vmatpush1.bf16.xpose.msra.mxu0 0
        %3486 = vmatprep.mubr.bf16.mxu0 0
        %3487 = vmatmul.mubr.bf16.gmra.mrb[0].mxu0 %v3012
        %v3488 = vpop.f32.mrb[0].mxu0
        %v3489 = vadd.f32 %v3449, %v3488
        %v3490 = vpop.f32.mrb[0].mxu0
        %v3491 = vpop.f32.mrb[0].mxu0
        %v3492 = vadd.f32 %v3449, %v3491
        %v3493 = vpop.f32.mrb[0].mxu0
        %3494 = vdwg.mxu0
        %v3495 = vld [vmem:[%s2 + $0x12c] sm:$0xf]
        %3496 = vrot.lane.b32.xlu0 %v3062, 104
        %v3497 = vpop.permute.xlu0 %3496
        %v3500 = vsel %vm430, %v3495, 0
        %3502 = vmatprep.subr.bf16.mxu0 0
        %3503 = vmatpush1.bf16.xpose.msra.mxu0 %v3500
        %3504 = vmatprep.subr.bf16.mxu0 0
        %3505 = vmatpush1.bf16.xpose.msra.mxu0 0
        %3506 = vmatprep.subr.bf16.mxu0 0
        %3507 = vmatpush1.bf16.xpose.msra.mxu0 0
        %3508 = vmatprep.subr.bf16.mxu0 0
        %3509 = vmatpush1.bf16.xpose.msra.mxu0 0
        %3510 = vmatprep.subr.bf16.mxu0 0
        %3511 = vmatpush1.bf16.xpose.msra.mxu0 0
        %3512 = vmatprep.subr.bf16.mxu0 0
        %3513 = vmatpush1.bf16.xpose.msra.mxu0 0
        %3514 = vmatprep.subr.bf16.mxu0 0
        %3515 = vmatpush1.bf16.xpose.msra.mxu0 0
        %3516 = vmatprep.subr.bf16.mxu0 0
        %3517 = vmatpush1.bf16.xpose.msra.mxu0 0
        %3518 = vmatprep.subr.bf16.mxu0 0
        %3519 = vmatpush1.bf16.xpose.msra.mxu0 0
        %3520 = vmatprep.subr.bf16.mxu0 0
        %3521 = vmatpush1.bf16.xpose.msra.mxu0 0
        %3522 = vmatprep.subr.bf16.mxu0 0
        %3523 = vmatpush1.bf16.xpose.msra.mxu0 0
        %3524 = vmatprep.subr.bf16.mxu0 0
        %3525 = vmatpush1.bf16.xpose.msra.mxu0 0
        %3526 = vmatprep.subr.bf16.mxu0 0
        %3527 = vmatpush1.bf16.xpose.msra.mxu0 0
        %3528 = vmatprep.subr.bf16.mxu0 0
        %3529 = vmatpush1.bf16.xpose.msra.mxu0 0
        %3530 = vmatprep.subr.bf16.mxu0 0
        %3531 = vmatpush1.bf16.xpose.msra.mxu0 0
        %3532 = vmatprep.subr.bf16.mxu0 0
        %3533 = vmatpush1.bf16.xpose.msra.mxu0 0
        %3534 = vmatprep.mubr.bf16.mxu0 0
        %3535 = vmatmul.mubr.bf16.gmra.mrb[0].mxu0 %v3012
        %v3536 = vpop.f32.mrb[0].mxu0
        %v3537 = vadd.f32 %v3497, %v3536
        %v3538 = vpop.f32.mrb[0].mxu0
        %v3539 = vpop.f32.mrb[0].mxu0
        %v3540 = vadd.f32 %v3497, %v3539
        %v3541 = vpop.f32.mrb[0].mxu0
        %3542 = vdwg.mxu0
        %v3543 = vld [vmem:[%s2 + $0x13c] sm:$0xf]
        %3544 = vrot.lane.b32.xlu0 %v3111, 104
        %v3545 = vpop.permute.xlu0 %3544
        %v3548 = vsel %vm430, %v3543, 0
        %3550 = vmatprep.subr.bf16.mxu0 0
        %3551 = vmatpush1.bf16.xpose.msra.mxu0 %v3548
        %3552 = vmatprep.subr.bf16.mxu0 0
        %3553 = vmatpush1.bf16.xpose.msra.mxu0 0
        %3554 = vmatprep.subr.bf16.mxu0 0
        %3555 = vmatpush1.bf16.xpose.msra.mxu0 0
        %3556 = vmatprep.subr.bf16.mxu0 0
        %3557 = vmatpush1.bf16.xpose.msra.mxu0 0
        %3558 = vmatprep.subr.bf16.mxu0 0
        %3559 = vmatpush1.bf16.xpose.msra.mxu0 0
        %3560 = vmatprep.subr.bf16.mxu0 0
        %3561 = vmatpush1.bf16.xpose.msra.mxu0 0
        %3562 = vmatprep.subr.bf16.mxu0 0
        %3563 = vmatpush1.bf16.xpose.msra.mxu0 0
        %3564 = vmatprep.subr.bf16.mxu0 0
        %3565 = vmatpush1.bf16.xpose.msra.mxu0 0
        %3566 = vmatprep.subr.bf16.mxu0 0
        %3567 = vmatpush1.bf16.xpose.msra.mxu0 0
        %3568 = vmatprep.subr.bf16.mxu0 0
        %3569 = vmatpush1.bf16.xpose.msra.mxu0 0
        %3570 = vmatprep.subr.bf16.mxu0 0
        %3571 = vmatpush1.bf16.xpose.msra.mxu0 0
        %3572 = vmatprep.subr.bf16.mxu0 0
        %3573 = vmatpush1.bf16.xpose.msra.mxu0 0
        %3574 = vmatprep.subr.bf16.mxu0 0
        %3575 = vmatpush1.bf16.xpose.msra.mxu0 0
        %3576 = vmatprep.subr.bf16.mxu0 0
        %3577 = vmatpush1.bf16.xpose.msra.mxu0 0
        %3578 = vmatprep.subr.bf16.mxu0 0
        %3579 = vmatpush1.bf16.xpose.msra.mxu0 0
        %3580 = vmatprep.subr.bf16.mxu0 0
        %3581 = vmatpush1.bf16.xpose.msra.mxu0 0
        %3582 = vmatprep.mubr.bf16.mxu0 0
        %3583 = vmatmul.mubr.bf16.gmra.mrb[0].mxu0 %v3012
        %v3584 = vpop.f32.mrb[0].mxu0
        %v3585 = vadd.f32 %v3545, %v3584
        %v3586 = vpop.f32.mrb[0].mxu0
        %v3587 = vpop.f32.mrb[0].mxu0
        %v3588 = vadd.f32 %v3545, %v3587
        %v3589 = vpop.f32.mrb[0].mxu0
        %3590 = vdwg.mxu0
        %v3591 = vpack.c.bf16 %v3055, %v3052
        %v3592 = vpack.c.bf16 %v3104, %v3101
        %v3594 = vsel %vm1462, %v3591, 0
        %v3597 = vsel %vm1462, %v3592, 0
        %3599 = vmatprep.subr.bf16.mxu0 0
        %3600 = vmatpush1.bf16.xpose.msra.mxu0 %v3597
        %3601 = vmatprep.subr.bf16.mxu0 0
        %3602 = vmatpush1.bf16.xpose.msra.mxu0 0
        %3603 = vmatprep.subr.bf16.mxu0 0
        %3604 = vmatpush1.bf16.xpose.msra.mxu0 0
        %3605 = vmatprep.subr.bf16.mxu0 0
        %3606 = vmatpush1.bf16.xpose.msra.mxu0 0
        %3607 = vmatprep.subr.bf16.mxu0 0
        %3608 = vmatpush1.bf16.xpose.msra.mxu0 0
        %3609 = vmatprep.subr.bf16.mxu0 0
        %3610 = vmatpush1.bf16.xpose.msra.mxu0 0
        %3611 = vmatprep.subr.bf16.mxu0 0
        %3612 = vmatpush1.bf16.xpose.msra.mxu0 0
        %3613 = vmatprep.subr.bf16.mxu0 0
        %3614 = vmatpush1.bf16.xpose.msra.mxu0 0
        %3615 = vmatprep.subr.bf16.mxu0 0
        %3616 = vmatpush1.bf16.xpose.msra.mxu0 0
        %3617 = vmatprep.subr.bf16.mxu0 0
        %3618 = vmatpush1.bf16.xpose.msra.mxu0 0
        %3619 = vmatprep.subr.bf16.mxu0 0
        %3620 = vmatpush1.bf16.xpose.msra.mxu0 0
        %3621 = vmatprep.subr.bf16.mxu0 0
        %3622 = vmatpush1.bf16.xpose.msra.mxu0 0
        %3623 = vmatprep.subr.bf16.mxu0 0
        %3624 = vmatpush1.bf16.xpose.msra.mxu0 0
        %3625 = vmatprep.subr.bf16.mxu0 0
        %3626 = vmatpush1.bf16.xpose.msra.mxu0 0
        %3627 = vmatprep.subr.bf16.mxu0 0
        %3628 = vmatpush1.bf16.xpose.msra.mxu0 0
        %3629 = vmatprep.subr.bf16.mxu0 0
        %3630 = vmatpush1.bf16.xpose.msra.mxu0 0
        %3631 = vmatprep.mubr.bf16.mxu0 0
        %3632 = vmatmul.mubr.bf16.gmra.mrb[0].mxu0 %v3594
        %v3633 = vpop.f32.mrb[0].mxu0
        %v3634 = vadd.f32 %v214, %v3633
        %v3635 = vpop.f32.mrb[0].mxu0
        %v3636 = vpop.f32.mrb[0].mxu0
        %v3637 = vadd.f32 %v214, %v3636
        %v3638 = vpop.f32.mrb[0].mxu0
        %3639 = vdwg.mxu0
        %v3640 = vpack.c.bf16 %v3202, %v3199
        %v3641 = vpack.c.bf16 %v3251, %v3248
        %v3643 = vsel %vm1462, %v3640, 0
        %v3646 = vsel %vm1462, %v3641, 0
        %3648 = vmatprep.subr.bf16.mxu0 0
        %3649 = vmatpush1.bf16.xpose.msra.mxu0 %v3646
        %3650 = vmatprep.subr.bf16.mxu0 0
        %3651 = vmatpush1.bf16.xpose.msra.mxu0 0
        %3652 = vmatprep.subr.bf16.mxu0 0
        %3653 = vmatpush1.bf16.xpose.msra.mxu0 0
        %3654 = vmatprep.subr.bf16.mxu0 0
        %3655 = vmatpush1.bf16.xpose.msra.mxu0 0
        %3656 = vmatprep.subr.bf16.mxu0 0
        %3657 = vmatpush1.bf16.xpose.msra.mxu0 0
        %3658 = vmatprep.subr.bf16.mxu0 0
        %3659 = vmatpush1.bf16.xpose.msra.mxu0 0
        %3660 = vmatprep.subr.bf16.mxu0 0
        %3661 = vmatpush1.bf16.xpose.msra.mxu0 0
        %3662 = vmatprep.subr.bf16.mxu0 0
        %3663 = vmatpush1.bf16.xpose.msra.mxu0 0
        %3664 = vmatprep.subr.bf16.mxu0 0
        %3665 = vmatpush1.bf16.xpose.msra.mxu0 0
        %3666 = vmatprep.subr.bf16.mxu0 0
        %3667 = vmatpush1.bf16.xpose.msra.mxu0 0
        %3668 = vmatprep.subr.bf16.mxu0 0
        %3669 = vmatpush1.bf16.xpose.msra.mxu0 0
        %3670 = vmatprep.subr.bf16.mxu0 0
        %3671 = vmatpush1.bf16.xpose.msra.mxu0 0
        %3672 = vmatprep.subr.bf16.mxu0 0
        %3673 = vmatpush1.bf16.xpose.msra.mxu0 0
        %3674 = vmatprep.subr.bf16.mxu0 0
        %3675 = vmatpush1.bf16.xpose.msra.mxu0 0
        %3676 = vmatprep.subr.bf16.mxu0 0
        %3677 = vmatpush1.bf16.xpose.msra.mxu0 0
        %3678 = vmatprep.subr.bf16.mxu0 0
        %3679 = vmatpush1.bf16.xpose.msra.mxu0 0
        %3680 = vmatprep.mubr.bf16.mxu0 0
        %3681 = vmatmul.mubr.bf16.gmra.mrb[0].mxu0 %v3643
        %v3682 = vpop.f32.mrb[0].mxu0
        %v3683 = vadd.f32 %v214, %v3682
        %v3684 = vpop.f32.mrb[0].mxu0
        %v3685 = vpop.f32.mrb[0].mxu0
        %v3686 = vadd.f32 %v214, %v3685
        %v3687 = vpop.f32.mrb[0].mxu0
        %3688 = vdwg.mxu0
        %v3689 = vpack.c.bf16 %v3348, %v3345
        %v3690 = vpack.c.bf16 %v3396, %v3393
        %v3692 = vsel %vm1462, %v3689, 0
        %v3695 = vsel %vm1462, %v3690, 0
        %3697 = vmatprep.subr.bf16.mxu0 0
        %3698 = vmatpush1.bf16.xpose.msra.mxu0 %v3695
        %3699 = vmatprep.subr.bf16.mxu0 0
        %3700 = vmatpush1.bf16.xpose.msra.mxu0 0
        %3701 = vmatprep.subr.bf16.mxu0 0
        %3702 = vmatpush1.bf16.xpose.msra.mxu0 0
        %3703 = vmatprep.subr.bf16.mxu0 0
        %3704 = vmatpush1.bf16.xpose.msra.mxu0 0
        %3705 = vmatprep.subr.bf16.mxu0 0
        %3706 = vmatpush1.bf16.xpose.msra.mxu0 0
        %3707 = vmatprep.subr.bf16.mxu0 0
        %3708 = vmatpush1.bf16.xpose.msra.mxu0 0
        %3709 = vmatprep.subr.bf16.mxu0 0
        %3710 = vmatpush1.bf16.xpose.msra.mxu0 0
        %3711 = vmatprep.subr.bf16.mxu0 0
        %3712 = vmatpush1.bf16.xpose.msra.mxu0 0
        %3713 = vmatprep.subr.bf16.mxu0 0
        %3714 = vmatpush1.bf16.xpose.msra.mxu0 0
        %3715 = vmatprep.subr.bf16.mxu0 0
        %3716 = vmatpush1.bf16.xpose.msra.mxu0 0
        %3717 = vmatprep.subr.bf16.mxu0 0
        %3718 = vmatpush1.bf16.xpose.msra.mxu0 0
        %3719 = vmatprep.subr.bf16.mxu0 0
        %3720 = vmatpush1.bf16.xpose.msra.mxu0 0
        %3721 = vmatprep.subr.bf16.mxu0 0
        %3722 = vmatpush1.bf16.xpose.msra.mxu0 0
        %3723 = vmatprep.subr.bf16.mxu0 0
        %3724 = vmatpush1.bf16.xpose.msra.mxu0 0
        %3725 = vmatprep.subr.bf16.mxu0 0
        %3726 = vmatpush1.bf16.xpose.msra.mxu0 0
        %3727 = vmatprep.subr.bf16.mxu0 0
        %3728 = vmatpush1.bf16.xpose.msra.mxu0 0
        %3729 = vmatprep.mubr.bf16.mxu0 0
        %3730 = vmatmul.mubr.bf16.gmra.mrb[0].mxu0 %v3692
        %v3731 = vpop.f32.mrb[0].mxu0
        %v3732 = vadd.f32 %v214, %v3731
        %v3733 = vpop.f32.mrb[0].mxu0
        %v3734 = vpop.f32.mrb[0].mxu0
        %v3735 = vadd.f32 %v214, %v3734
        %v3736 = vpop.f32.mrb[0].mxu0
        %3737 = vdwg.mxu0
        %v3738 = vpack.c.bf16 %v3492, %v3489
        %v3739 = vpack.c.bf16 %v3540, %v3537
        %v3741 = vsel %vm1462, %v3738, 0
        %v3744 = vsel %vm1462, %v3739, 0
        %3746 = vmatprep.subr.bf16.mxu0 0
        %3747 = vmatpush1.bf16.xpose.msra.mxu0 %v3744
        %3748 = vmatprep.subr.bf16.mxu0 0
        %3749 = vmatpush1.bf16.xpose.msra.mxu0 0
        %3750 = vmatprep.subr.bf16.mxu0 0
        %3751 = vmatpush1.bf16.xpose.msra.mxu0 0
        %3752 = vmatprep.subr.bf16.mxu0 0
        %3753 = vmatpush1.bf16.xpose.msra.mxu0 0
        %3754 = vmatprep.subr.bf16.mxu0 0
        %3755 = vmatpush1.bf16.xpose.msra.mxu0 0
        %3756 = vmatprep.subr.bf16.mxu0 0
        %3757 = vmatpush1.bf16.xpose.msra.mxu0 0
        %3758 = vmatprep.subr.bf16.mxu0 0
        %3759 = vmatpush1.bf16.xpose.msra.mxu0 0
        %3760 = vmatprep.subr.bf16.mxu0 0
        %3761 = vmatpush1.bf16.xpose.msra.mxu0 0
        %3762 = vmatprep.subr.bf16.mxu0 0
        %3763 = vmatpush1.bf16.xpose.msra.mxu0 0
        %3764 = vmatprep.subr.bf16.mxu0 0
        %3765 = vmatpush1.bf16.xpose.msra.mxu0 0
        %3766 = vmatprep.subr.bf16.mxu0 0
        %3767 = vmatpush1.bf16.xpose.msra.mxu0 0
        %3768 = vmatprep.subr.bf16.mxu0 0
        %3769 = vmatpush1.bf16.xpose.msra.mxu0 0
        %3770 = vmatprep.subr.bf16.mxu0 0
        %3771 = vmatpush1.bf16.xpose.msra.mxu0 0
        %3772 = vmatprep.subr.bf16.mxu0 0
        %3773 = vmatpush1.bf16.xpose.msra.mxu0 0
        %3774 = vmatprep.subr.bf16.mxu0 0
        %3775 = vmatpush1.bf16.xpose.msra.mxu0 0
        %3776 = vmatprep.subr.bf16.mxu0 0
        %3777 = vmatpush1.bf16.xpose.msra.mxu0 0
        %3778 = vmatprep.mubr.bf16.mxu0 0
        %3779 = vmatmul.mubr.bf16.gmra.mrb[0].mxu0 %v3741
        %v3780 = vpop.f32.mrb[0].mxu0
        %v3781 = vadd.f32 %v214, %v3780
        %v3782 = vpop.f32.mrb[0].mxu0
        %v3783 = vpop.f32.mrb[0].mxu0
        %v3784 = vadd.f32 %v214, %v3783
        %v3785 = vpop.f32.mrb[0].mxu0
        %3786 = vdwg.mxu0
        %v3787 = vsel %vm451, %v3634, -inf
        %3788 = vmax.xlane.f32.xlu0 %v3787
        %v3789 = vpop.xlane.xlu0 %3788
        %v3790 = vsel %vm451, %v3637, -inf
        %3791 = vmax.xlane.f32.xlu0 %v3790
        %v3792 = vpop.xlane.xlu0 %3791
        %v3793 = vsub.f32 %v3634, %v3789
        %v3794 = vsub.f32 %v3637, %v3792
        %v3795 = vmul.f32 %v3793, 1.442695
        %v3796 = vpow.pop %v3795
        %v3797 = vmul.f32 %v3794, 1.442695
        %v3798 = vpow.pop %v3797
        %v3799 = vsel %vm451, %v3796, 0.0
        %3800 = vadd.xlane.f32.xlu0 %v3799
        %v3801 = vpop.xlane.xlu0 %3800
        %v3802 = vsel %vm451, %v3798, 0.0
        %3803 = vadd.xlane.f32.xlu0 %v3802
        %v3804 = vpop.xlane.xlu0 %3803
        %v3805 = vrcp.pop %v3801
        %v3806 = vrcp.pop %v3804
        %v3807 = vmul.f32 %v3796, %v3805
        %v3808 = vmul.f32 %v3798, %v3806
        %v3809 = vsel %vm451, %v3683, -inf
        %3810 = vmax.xlane.f32.xlu0 %v3809
        %v3811 = vpop.xlane.xlu0 %3810
        %v3812 = vsel %vm451, %v3686, -inf
        %3813 = vmax.xlane.f32.xlu0 %v3812
        %v3814 = vpop.xlane.xlu0 %3813
        %v3815 = vsub.f32 %v3683, %v3811
        %v3816 = vsub.f32 %v3686, %v3814
        %v3817 = vmul.f32 %v3815, 1.442695
        %v3818 = vpow.pop %v3817
        %v3819 = vmul.f32 %v3816, 1.442695
        %v3820 = vpow.pop %v3819
        %v3821 = vsel %vm451, %v3818, 0.0
        %3822 = vadd.xlane.f32.xlu0 %v3821
        %v3823 = vpop.xlane.xlu0 %3822
        %v3824 = vsel %vm451, %v3820, 0.0
        %3825 = vadd.xlane.f32.xlu0 %v3824
        %v3826 = vpop.xlane.xlu0 %3825
        %v3827 = vrcp.pop %v3823
        %v3828 = vrcp.pop %v3826
        %v3829 = vmul.f32 %v3818, %v3827
        %v3830 = vmul.f32 %v3820, %v3828
        %v3831 = vsel %vm451, %v3732, -inf
        %3832 = vmax.xlane.f32.xlu0 %v3831
        %v3833 = vpop.xlane.xlu0 %3832
        %v3834 = vsel %vm451, %v3735, -inf
        %3835 = vmax.xlane.f32.xlu0 %v3834
        %v3836 = vpop.xlane.xlu0 %3835
        %v3837 = vsub.f32 %v3732, %v3833
        %v3838 = vsub.f32 %v3735, %v3836
        %v3839 = vmul.f32 %v3837, 1.442695
        %v3840 = vpow.pop %v3839
        %v3841 = vmul.f32 %v3838, 1.442695
        %v3842 = vpow.pop %v3841
        %v3843 = vsel %vm451, %v3840, 0.0
        %3844 = vadd.xlane.f32.xlu0 %v3843
        %v3845 = vpop.xlane.xlu0 %3844
        %v3846 = vsel %vm451, %v3842, 0.0
        %3847 = vadd.xlane.f32.xlu0 %v3846
        %v3848 = vpop.xlane.xlu0 %3847
        %v3849 = vrcp.pop %v3845
        %v3850 = vrcp.pop %v3848
        %v3851 = vmul.f32 %v3840, %v3849
        %v3852 = vmul.f32 %v3842, %v3850
        %v3853 = vsel %vm451, %v3781, -inf
        %3854 = vmax.xlane.f32.xlu0 %v3853
        %v3855 = vpop.xlane.xlu0 %3854
        %v3856 = vsel %vm451, %v3784, -inf
        %3857 = vmax.xlane.f32.xlu0 %v3856
        %v3858 = vpop.xlane.xlu0 %3857
        %v3859 = vsub.f32 %v3781, %v3855
        %v3860 = vsub.f32 %v3784, %v3858
        %v3861 = vmul.f32 %v3859, 1.442695
        %v3862 = vpow.pop %v3861
        %v3863 = vmul.f32 %v3860, 1.442695
        %v3864 = vpow.pop %v3863
        %v3865 = vsel %vm451, %v3862, 0.0
        %3866 = vadd.xlane.f32.xlu0 %v3865
        %v3867 = vpop.xlane.xlu0 %3866
        %v3868 = vsel %vm451, %v3864, 0.0
        %3869 = vadd.xlane.f32.xlu0 %v3868
        %v3870 = vpop.xlane.xlu0 %3869
        %v3871 = vrcp.pop %v3867
        %v3872 = vrcp.pop %v3870
        %v3873 = vmul.f32 %v3862, %v3871
        %v3874 = vmul.f32 %v3864, %v3872
        %v3875 = vpack.c.bf16 %v3808, %v3807
        %v3876 = vpack.c.bf16 %v3153, %v3150
        %v3878 = vsel %vm451, %v3875, 0
        %3880 = vmatprep.subr.bf16.mxu0 0
        %3881 = vmatpush1.bf16.msra.mxu0 %v3876
        %3882 = vmatprep.subr.bf16.mxu0 0
        %3883 = vmatpush1.bf16.msra.mxu0 0
        %3884 = vmatprep.subr.bf16.mxu0 0
        %3885 = vmatpush1.bf16.msra.mxu0 0
        %3886 = vmatprep.subr.bf16.mxu0 0
        %3887 = vmatpush1.bf16.msra.mxu0 0
        %3888 = vmatprep.subr.bf16.mxu0 0
        %3889 = vmatpush1.bf16.msra.mxu0 0
        %3890 = vmatprep.subr.bf16.mxu0 0
        %3891 = vmatpush1.bf16.msra.mxu0 0
        %3892 = vmatprep.subr.bf16.mxu0 0
        %3893 = vmatpush1.bf16.msra.mxu0 0
        %3894 = vmatprep.subr.bf16.mxu0 0
        %3895 = vmatpush1.bf16.msra.mxu0 0
        %3896 = vmatprep.subr.bf16.mxu0 0
        %3897 = vmatpush1.bf16.msra.mxu0 0
        %3898 = vmatprep.subr.bf16.mxu0 0
        %3899 = vmatpush1.bf16.msra.mxu0 0
        %3900 = vmatprep.subr.bf16.mxu0 0
        %3901 = vmatpush1.bf16.msra.mxu0 0
        %3902 = vmatprep.subr.bf16.mxu0 0
        %3903 = vmatpush1.bf16.msra.mxu0 0
        %3904 = vmatprep.subr.bf16.mxu0 0
        %3905 = vmatpush1.bf16.msra.mxu0 0
        %3906 = vmatprep.subr.bf16.mxu0 0
        %3907 = vmatpush1.bf16.msra.mxu0 0
        %3908 = vmatprep.subr.bf16.mxu0 0
        %3909 = vmatpush1.bf16.msra.mxu0 0
        %3910 = vmatprep.subr.bf16.mxu0 0
        %3911 = vmatpush1.bf16.msra.mxu0 0
        %3912 = vmatprep.mubr.bf16.mxu0 0
        %3913 = vmatmul.mubr.bf16.gmra.mrb[0].mxu0 %v3878
        %v3914 = vpop.f32.mrb[0].mxu0
        %v3915 = vadd.f32 0.0, %v3914
        %v3916 = vpop.f32.mrb[0].mxu0
        %v3917 = vpop.f32.mrb[0].mxu0
        %v3918 = vadd.f32 0.0, %v3917
        %v3919 = vpop.f32.mrb[0].mxu0
        %3920 = vdwg.mxu0
        %v3921 = vpack.c.bf16 %v3918, %v3915
        %v3922 = vld [vmem:[%s2 + $0x140] sm:$0xf]
        %v3923 = vpack.c.bf16 %v3830, %v3829
        %v3924 = vpack.c.bf16 %v3300, %v3297
        %v3926 = vsel %vm451, %v3923, 0
        %3928 = vmatprep.subr.bf16.mxu0 0
        %3929 = vmatpush1.bf16.msra.mxu0 %v3924
        %3930 = vmatprep.subr.bf16.mxu0 0
        %3931 = vmatpush1.bf16.msra.mxu0 0
        %3932 = vmatprep.subr.bf16.mxu0 0
        %3933 = vmatpush1.bf16.msra.mxu0 0
        %3934 = vmatprep.subr.bf16.mxu0 0
        %3935 = vmatpush1.bf16.msra.mxu0 0
        %3936 = vmatprep.subr.bf16.mxu0 0
        %3937 = vmatpush1.bf16.msra.mxu0 0
        %3938 = vmatprep.subr.bf16.mxu0 0
        %3939 = vmatpush1.bf16.msra.mxu0 0
        %3940 = vmatprep.subr.bf16.mxu0 0
        %3941 = vmatpush1.bf16.msra.mxu0 0
        %3942 = vmatprep.subr.bf16.mxu0 0
        %3943 = vmatpush1.bf16.msra.mxu0 0
        %3944 = vmatprep.subr.bf16.mxu0 0
        %3945 = vmatpush1.bf16.msra.mxu0 0
        %3946 = vmatprep.subr.bf16.mxu0 0
        %3947 = vmatpush1.bf16.msra.mxu0 0
        %3948 = vmatprep.subr.bf16.mxu0 0
        %3949 = vmatpush1.bf16.msra.mxu0 0
        %3950 = vmatprep.subr.bf16.mxu0 0
        %3951 = vmatpush1.bf16.msra.mxu0 0
        %3952 = vmatprep.subr.bf16.mxu0 0
        %3953 = vmatpush1.bf16.msra.mxu0 0
        %3954 = vmatprep.subr.bf16.mxu0 0
        %3955 = vmatpush1.bf16.msra.mxu0 0
        %3956 = vmatprep.subr.bf16.mxu0 0
        %3957 = vmatpush1.bf16.msra.mxu0 0
        %3958 = vmatprep.subr.bf16.mxu0 0
        %3959 = vmatpush1.bf16.msra.mxu0 0
        %3960 = vmatprep.mubr.bf16.mxu0 0
        %3961 = vmatmul.mubr.bf16.gmra.mrb[0].mxu0 %v3926
        %v3962 = vpop.f32.mrb[0].mxu0
        %v3963 = vadd.f32 0.0, %v3962
        %v3964 = vpop.f32.mrb[0].mxu0
        %v3965 = vpop.f32.mrb[0].mxu0
        %v3966 = vadd.f32 0.0, %v3965
        %v3967 = vpop.f32.mrb[0].mxu0
        %3968 = vdwg.mxu0
        %v3969 = vpack.c.bf16 %v3966, %v3963
        %v3970 = vld [vmem:[%s2 + $0x144] sm:$0xf]
        %v3972 = vsel %vm1462, %v3969, 0
        %v3975 = vsel %vm1844, %v3970, 0
        %3977 = vmatprep.subr.bf16.mxu0 0
        %3978 = vmatpush1.bf16.msra.mxu0 %v3975
        %3979 = vmatprep.subr.bf16.mxu0 0
        %3980 = vmatpush1.bf16.msra.mxu0 0
        %3981 = vmatprep.subr.bf16.mxu0 0
        %3982 = vmatpush1.bf16.msra.mxu0 0
        %3983 = vmatprep.subr.bf16.mxu0 0
        %3984 = vmatpush1.bf16.msra.mxu0 0
        %3985 = vmatprep.subr.bf16.mxu0 0
        %3986 = vmatpush1.bf16.msra.mxu0 0
        %3987 = vmatprep.subr.bf16.mxu0 0
        %3988 = vmatpush1.bf16.msra.mxu0 0
        %3989 = vmatprep.subr.bf16.mxu0 0
        %3990 = vmatpush1.bf16.msra.mxu0 0
        %3991 = vmatprep.subr.bf16.mxu0 0
        %3992 = vmatpush1.bf16.msra.mxu0 0
        %3993 = vmatprep.subr.bf16.mxu0 0
        %3994 = vmatpush1.bf16.msra.mxu0 0
        %3995 = vmatprep.subr.bf16.mxu0 0
        %3996 = vmatpush1.bf16.msra.mxu0 0
        %3997 = vmatprep.subr.bf16.mxu0 0
        %3998 = vmatpush1.bf16.msra.mxu0 0
        %3999 = vmatprep.subr.bf16.mxu0 0
        %4000 = vmatpush1.bf16.msra.mxu0 0
        %4001 = vmatprep.subr.bf16.mxu0 0
        %4002 = vmatpush1.bf16.msra.mxu0 0
        %4003 = vmatprep.subr.bf16.mxu0 0
        %4004 = vmatpush1.bf16.msra.mxu0 0
        %4005 = vmatprep.subr.bf16.mxu0 0
        %4006 = vmatpush1.bf16.msra.mxu0 0
        %4007 = vmatprep.subr.bf16.mxu0 0
        %4008 = vmatpush1.bf16.msra.mxu0 0
        %4009 = vmatprep.mubr.bf16.mxu0 0
        %4010 = vmatmul.mubr.bf16.gmra.mrb[0].mxu0 %v3972
        %v4011 = vpop.f32.mrb[0].mxu0
        %v4012 = vadd.f32 0.0, %v4011
        %v4013 = vpop.f32.mrb[0].mxu0
        %v4014 = vpop.f32.mrb[0].mxu0
        %v4015 = vadd.f32 0.0, %v4014
        %v4016 = vpop.f32.mrb[0].mxu0
        %4017 = vdwg.mxu0
        %v4019 = vsel %vm1462, %v3921, 0
        %v4022 = vsel %vm1844, %v3922, 0
        %4024 = vmatprep.subr.bf16.mxu0 0
        %4025 = vmatpush1.bf16.msra.mxu0 %v4022
        %4026 = vmatprep.subr.bf16.mxu0 0
        %4027 = vmatpush1.bf16.msra.mxu0 0
        %4028 = vmatprep.subr.bf16.mxu0 0
        %4029 = vmatpush1.bf16.msra.mxu0 0
        %4030 = vmatprep.subr.bf16.mxu0 0
        %4031 = vmatpush1.bf16.msra.mxu0 0
        %4032 = vmatprep.subr.bf16.mxu0 0
        %4033 = vmatpush1.bf16.msra.mxu0 0
        %4034 = vmatprep.subr.bf16.mxu0 0
        %4035 = vmatpush1.bf16.msra.mxu0 0
        %4036 = vmatprep.subr.bf16.mxu0 0
        %4037 = vmatpush1.bf16.msra.mxu0 0
        %4038 = vmatprep.subr.bf16.mxu0 0
        %4039 = vmatpush1.bf16.msra.mxu0 0
        %4040 = vmatprep.subr.bf16.mxu0 0
        %4041 = vmatpush1.bf16.msra.mxu0 0
        %4042 = vmatprep.subr.bf16.mxu0 0
        %4043 = vmatpush1.bf16.msra.mxu0 0
        %4044 = vmatprep.subr.bf16.mxu0 0
        %4045 = vmatpush1.bf16.msra.mxu0 0
        %4046 = vmatprep.subr.bf16.mxu0 0
        %4047 = vmatpush1.bf16.msra.mxu0 0
        %4048 = vmatprep.subr.bf16.mxu0 0
        %4049 = vmatpush1.bf16.msra.mxu0 0
        %4050 = vmatprep.subr.bf16.mxu0 0
        %4051 = vmatpush1.bf16.msra.mxu0 0
        %4052 = vmatprep.subr.bf16.mxu0 0
        %4053 = vmatpush1.bf16.msra.mxu0 0
        %4054 = vmatprep.subr.bf16.mxu0 0
        %4055 = vmatpush1.bf16.msra.mxu0 0
        %4056 = vmatprep.mubr.bf16.mxu0 0
        %4057 = vmatmul.mubr.bf16.gmra.mrb[0].mxu0 %v4019
        %v4058 = vpop.f32.mrb[0].mxu0
        %v4059 = vadd.f32 %v4012, %v4058
        %v4060 = vpop.f32.mrb[0].mxu0
        %v4061 = vpop.f32.mrb[0].mxu0
        %v4062 = vadd.f32 %v4015, %v4061
        %v4063 = vpop.f32.mrb[0].mxu0
        %4064 = vdwg.mxu0
        %v4065 = vpack.c.bf16 %v3852, %v3851
        %v4066 = vpack.c.bf16 %v3444, %v3441
        %v4068 = vsel %vm451, %v4065, 0
        %4070 = vmatprep.subr.bf16.mxu0 0
        %4071 = vmatpush1.bf16.msra.mxu0 %v4066
        %4072 = vmatprep.subr.bf16.mxu0 0
        %4073 = vmatpush1.bf16.msra.mxu0 0
        %4074 = vmatprep.subr.bf16.mxu0 0
        %4075 = vmatpush1.bf16.msra.mxu0 0
        %4076 = vmatprep.subr.bf16.mxu0 0
        %4077 = vmatpush1.bf16.msra.mxu0 0
        %4078 = vmatprep.subr.bf16.mxu0 0
        %4079 = vmatpush1.bf16.msra.mxu0 0
        %4080 = vmatprep.subr.bf16.mxu0 0
        %4081 = vmatpush1.bf16.msra.mxu0 0
        %4082 = vmatprep.subr.bf16.mxu0 0
        %4083 = vmatpush1.bf16.msra.mxu0 0
        %4084 = vmatprep.subr.bf16.mxu0 0
        %4085 = vmatpush1.bf16.msra.mxu0 0
        %4086 = vmatprep.subr.bf16.mxu0 0
        %4087 = vmatpush1.bf16.msra.mxu0 0
        %4088 = vmatprep.subr.bf16.mxu0 0
        %4089 = vmatpush1.bf16.msra.mxu0 0
        %4090 = vmatprep.subr.bf16.mxu0 0
        %4091 = vmatpush1.bf16.msra.mxu0 0
        %4092 = vmatprep.subr.bf16.mxu0 0
        %4093 = vmatpush1.bf16.msra.mxu0 0
        %4094 = vmatprep.subr.bf16.mxu0 0
        %4095 = vmatpush1.bf16.msra.mxu0 0
        %4096 = vmatprep.subr.bf16.mxu0 0
        %4097 = vmatpush1.bf16.msra.mxu0 0
        %4098 = vmatprep.subr.bf16.mxu0 0
        %4099 = vmatpush1.bf16.msra.mxu0 0
        %4100 = vmatprep.subr.bf16.mxu0 0
        %4101 = vmatpush1.bf16.msra.mxu0 0
        %4102 = vmatprep.mubr.bf16.mxu0 0
        %4103 = vmatmul.mubr.bf16.gmra.mrb[0].mxu0 %v4068
        %v4104 = vpop.f32.mrb[0].mxu0
        %v4105 = vadd.f32 0.0, %v4104
        %v4106 = vpop.f32.mrb[0].mxu0
        %v4107 = vpop.f32.mrb[0].mxu0
        %v4108 = vadd.f32 0.0, %v4107
        %v4109 = vpop.f32.mrb[0].mxu0
        %4110 = vdwg.mxu0
        %v4111 = vpack.c.bf16 %v4108, %v4105
        %v4112 = vld [vmem:[%s2 + $0x148] sm:$0xf]
        %v4114 = vsel %vm1462, %v4111, 0
        %v4117 = vsel %vm1844, %v4112, 0
        %4119 = vmatprep.subr.bf16.mxu0 0
        %4120 = vmatpush1.bf16.msra.mxu0 %v4117
        %4121 = vmatprep.subr.bf16.mxu0 0
        %4122 = vmatpush1.bf16.msra.mxu0 0
        %4123 = vmatprep.subr.bf16.mxu0 0
        %4124 = vmatpush1.bf16.msra.mxu0 0
        %4125 = vmatprep.subr.bf16.mxu0 0
        %4126 = vmatpush1.bf16.msra.mxu0 0
        %4127 = vmatprep.subr.bf16.mxu0 0
        %4128 = vmatpush1.bf16.msra.mxu0 0
        %4129 = vmatprep.subr.bf16.mxu0 0
        %4130 = vmatpush1.bf16.msra.mxu0 0
        %4131 = vmatprep.subr.bf16.mxu0 0
        %4132 = vmatpush1.bf16.msra.mxu0 0
        %4133 = vmatprep.subr.bf16.mxu0 0
        %4134 = vmatpush1.bf16.msra.mxu0 0
        %4135 = vmatprep.subr.bf16.mxu0 0
        %4136 = vmatpush1.bf16.msra.mxu0 0
        %4137 = vmatprep.subr.bf16.mxu0 0
        %4138 = vmatpush1.bf16.msra.mxu0 0
        %4139 = vmatprep.subr.bf16.mxu0 0
        %4140 = vmatpush1.bf16.msra.mxu0 0
        %4141 = vmatprep.subr.bf16.mxu0 0
        %4142 = vmatpush1.bf16.msra.mxu0 0
        %4143 = vmatprep.subr.bf16.mxu0 0
        %4144 = vmatpush1.bf16.msra.mxu0 0
        %4145 = vmatprep.subr.bf16.mxu0 0
        %4146 = vmatpush1.bf16.msra.mxu0 0
        %4147 = vmatprep.subr.bf16.mxu0 0
        %4148 = vmatpush1.bf16.msra.mxu0 0
        %4149 = vmatprep.subr.bf16.mxu0 0
        %4150 = vmatpush1.bf16.msra.mxu0 0
        %4151 = vmatprep.mubr.bf16.mxu0 0
        %4152 = vmatmul.mubr.bf16.gmra.mrb[0].mxu0 %v4114
        %v4153 = vpop.f32.mrb[0].mxu0
        %v4154 = vadd.f32 0.0, %v4153
        %v4155 = vpop.f32.mrb[0].mxu0
        %v4156 = vpop.f32.mrb[0].mxu0
        %v4157 = vadd.f32 0.0, %v4156
        %v4158 = vpop.f32.mrb[0].mxu0
        %4159 = vdwg.mxu0
        %v4160 = vadd.f32 %v4059, %v4154
        %v4161 = vadd.f32 %v4062, %v4157
        %v4162 = vpack.c.bf16 %v3874, %v3873
        %v4163 = vpack.c.bf16 %v3588, %v3585
        %v4165 = vsel %vm451, %v4162, 0
        %4167 = vmatprep.subr.bf16.mxu0 0
        %4168 = vmatpush1.bf16.msra.mxu0 %v4163
        %4169 = vmatprep.subr.bf16.mxu0 0
        %4170 = vmatpush1.bf16.msra.mxu0 0
        %4171 = vmatprep.subr.bf16.mxu0 0
        %4172 = vmatpush1.bf16.msra.mxu0 0
        %4173 = vmatprep.subr.bf16.mxu0 0
        %4174 = vmatpush1.bf16.msra.mxu0 0
        %4175 = vmatprep.subr.bf16.mxu0 0
        %4176 = vmatpush1.bf16.msra.mxu0 0
        %4177 = vmatprep.subr.bf16.mxu0 0
        %4178 = vmatpush1.bf16.msra.mxu0 0
        %4179 = vmatprep.subr.bf16.mxu0 0
        %4180 = vmatpush1.bf16.msra.mxu0 0
        %4181 = vmatprep.subr.bf16.mxu0 0
        %4182 = vmatpush1.bf16.msra.mxu0 0
        %4183 = vmatprep.subr.bf16.mxu0 0
        %4184 = vmatpush1.bf16.msra.mxu0 0
        %4185 = vmatprep.subr.bf16.mxu0 0
        %4186 = vmatpush1.bf16.msra.mxu0 0
        %4187 = vmatprep.subr.bf16.mxu0 0
        %4188 = vmatpush1.bf16.msra.mxu0 0
        %4189 = vmatprep.subr.bf16.mxu0 0
        %4190 = vmatpush1.bf16.msra.mxu0 0
        %4191 = vmatprep.subr.bf16.mxu0 0
        %4192 = vmatpush1.bf16.msra.mxu0 0
        %4193 = vmatprep.subr.bf16.mxu0 0
        %4194 = vmatpush1.bf16.msra.mxu0 0
        %4195 = vmatprep.subr.bf16.mxu0 0
        %4196 = vmatpush1.bf16.msra.mxu0 0
        %4197 = vmatprep.subr.bf16.mxu0 0
        %4198 = vmatpush1.bf16.msra.mxu0 0
        %4199 = vmatprep.mubr.bf16.mxu0 0
        %4200 = vmatmul.mubr.bf16.gmra.mrb[0].mxu0 %v4165
        %v4201 = vpop.f32.mrb[0].mxu0
        %v4202 = vadd.f32 0.0, %v4201
        %v4203 = vpop.f32.mrb[0].mxu0
        %v4204 = vpop.f32.mrb[0].mxu0
        %v4205 = vadd.f32 0.0, %v4204
        %v4206 = vpop.f32.mrb[0].mxu0
        %4207 = vdwg.mxu0
        %v4208 = vpack.c.bf16 %v4205, %v4202
        %v4209 = vld [vmem:[%s2 + $0x14c] sm:$0xf]
        %v4211 = vsel %vm1462, %v4208, 0
        %v4214 = vsel %vm1844, %v4209, 0
        %4216 = vmatprep.subr.bf16.mxu0 0
        %4217 = vmatpush1.bf16.msra.mxu0 %v4214
        %4218 = vmatprep.subr.bf16.mxu0 0
        %4219 = vmatpush1.bf16.msra.mxu0 0
        %4220 = vmatprep.subr.bf16.mxu0 0
        %4221 = vmatpush1.bf16.msra.mxu0 0
        %4222 = vmatprep.subr.bf16.mxu0 0
        %4223 = vmatpush1.bf16.msra.mxu0 0
        %4224 = vmatprep.subr.bf16.mxu0 0
        %4225 = vmatpush1.bf16.msra.mxu0 0
        %4226 = vmatprep.subr.bf16.mxu0 0
        %4227 = vmatpush1.bf16.msra.mxu0 0
        %4228 = vmatprep.subr.bf16.mxu0 0
        %4229 = vmatpush1.bf16.msra.mxu0 0
        %4230 = vmatprep.subr.bf16.mxu0 0
        %4231 = vmatpush1.bf16.msra.mxu0 0
        %4232 = vmatprep.subr.bf16.mxu0 0
        %4233 = vmatpush1.bf16.msra.mxu0 0
        %4234 = vmatprep.subr.bf16.mxu0 0
        %4235 = vmatpush1.bf16.msra.mxu0 0
        %4236 = vmatprep.subr.bf16.mxu0 0
        %4237 = vmatpush1.bf16.msra.mxu0 0
        %4238 = vmatprep.subr.bf16.mxu0 0
        %4239 = vmatpush1.bf16.msra.mxu0 0
        %4240 = vmatprep.subr.bf16.mxu0 0
        %4241 = vmatpush1.bf16.msra.mxu0 0
        %4242 = vmatprep.subr.bf16.mxu0 0
        %4243 = vmatpush1.bf16.msra.mxu0 0
        %4244 = vmatprep.subr.bf16.mxu0 0
        %4245 = vmatpush1.bf16.msra.mxu0 0
        %4246 = vmatprep.subr.bf16.mxu0 0
        %4247 = vmatpush1.bf16.msra.mxu0 0
        %4248 = vmatprep.mubr.bf16.mxu0 0
        %4249 = vmatmul.mubr.bf16.gmra.mrb[0].mxu0 %v4211
        %v4250 = vpop.f32.mrb[0].mxu0
        %v4251 = vadd.f32 0.0, %v4250
        %v4252 = vpop.f32.mrb[0].mxu0
        %v4253 = vpop.f32.mrb[0].mxu0
        %v4254 = vadd.f32 0.0, %v4253
        %v4255 = vpop.f32.mrb[0].mxu0
        %4256 = vdwg.mxu0
        %v4257 = vadd.f32 %v4160, %v4251
        %v4258 = vadd.f32 %v4161, %v4254
        %v4259 = vadd.f32 %v2960, %v4257
        %v4260 = vadd.f32 %v2961, %v4258
        %v4261 = vld [vmem:[#allocation4 + $0x129] sm:$0x1]
        %v4262 = vlaneseq
        %v4263 = vshrl.u32 %v4262, 7
        %v4264 = vsub.s32 0, %v4263
        %v4265 = vrot.slane %v4261, %v4264
        %v4266 = vadd.f32 %v4259, %v4265
        %v4267 = vadd.f32 %v4260, %v4265
        %v4268 = vld [vmem:[#allocation4 + $0x12a] sm:$0x1]
        %v4269 = vld [vmem:[#allocation4 + $0x12b] sm:$0x1]
        %v4270 = vsel %vm430, %v4266, 0.0
        %4271 = vadd.xlane.f32.xlu0 %v4270
        %v4272 = vpop.xlane.xlu0 %4271
        %v4273 = vsel %vm430, %v4267, 0.0
        %4274 = vadd.xlane.f32.xlu0 %v4273
        %v4275 = vpop.xlane.xlu0 %4274
        %v4276 = vmul.f32 %v4272, %v501
        %v4277 = vmul.f32 %v4275, %v501
        %v4278 = vsub.f32 %v4266, %v4276
        %v4279 = vsub.f32 %v4267, %v4277
        %v4280 = vmul.f32 %v4278, %v4278
        %v4281 = vmul.f32 %v4279, %v4279
        %v4282 = vsel %vm430, %v4280, 0.0
        %4283 = vadd.xlane.f32.xlu0 %v4282
        %v4284 = vpop.xlane.xlu0 %4283
        %v4285 = vsel %vm430, %v4281, 0.0
        %4286 = vadd.xlane.f32.xlu0 %v4285
        %v4287 = vpop.xlane.xlu0 %4286
        %v4288 = vmul.f32 %v4284, %v501
        %v4289 = vmul.f32 %v4287, %v501
        %v4290 = vadd.f32 %v4288, 1e-05
        %v4291 = vadd.f32 %v4289, 1e-05
        %v4292 = vrsqrt.pop %v4290
        %v4293 = vrsqrt.pop %v4291
        %v4294 = vmul.f32 %v4278, %v4292
        %v4295 = vmul.f32 %v4279, %v4293
        %v4296 = vlaneseq
        %v4297 = vshrl.u32 %v4296, 7
        %v4298 = vsub.s32 0, %v4297
        %v4299 = vrot.slane %v4268, %v4298
        %v4300 = vmul.f32 %v4294, %v4299
        %v4301 = vmul.f32 %v4295, %v4299
        %v4302 = vlaneseq
        %v4303 = vshrl.u32 %v4302, 7
        %v4304 = vsub.s32 0, %v4303
        %v4305 = vrot.slane %v4269, %v4304
        %v4306 = vadd.f32 %v4300, %v4305
        %v4307 = vadd.f32 %v4301, %v4305
        %v4308 = vpack.c.bf16 %v4307, %v4306
        %v4309 = vld [vmem:[%s2 + $0x150] sm:$0xf]
        %v4310 = vld [vmem:[%s2 + $0x154] sm:$0xf]
        %v4311 = vld [vmem:[%s2 + $0x158] sm:$0xf]
        %v4312 = vld [vmem:[%s2 + $0x15c] sm:$0xf]
        %v4313 = vld [vmem:[#allocation4 + $0x12c] sm:$0x1]
        %v4314 = vlaneseq
        %v4315 = vshrl.u32 %v4314, 7
        %v4316 = vsub.s32 0, %v4315
        %v4317 = vrot.slane %v4313, %v4316
        %v4322 = vunpack.c.l.b16 %v4309
        %v4323 = vunpack.c.l.b16 %v4310
        %v4324 = vunpack.c.l.b16 %v4311
        %v4325 = vunpack.c.l.b16 %v4312
        %v4326 = vpack.c.b16 %v4323, %v4322
        %v4327 = vpack.c.b16 %v4325, %v4324
        %v4331 = vsel %vm430, %v4308, 0
        %4333 = vmatprep.subr.bf16.mxu0 0
        %4334 = vmatpush1.bf16.msra.mxu0 %v4326
        %4335 = vmatprep.subr.bf16.mxu0 0
        %4336 = vmatpush1.bf16.msra.mxu0 %v4327
        %4337 = vmatprep.subr.bf16.mxu0 0
        %4338 = vmatpush1.bf16.msra.mxu0 0
        %4339 = vmatprep.subr.bf16.mxu0 0
        %4340 = vmatpush1.bf16.msra.mxu0 0
        %4341 = vmatprep.subr.bf16.mxu0 0
        %4342 = vmatpush1.bf16.msra.mxu0 0
        %4343 = vmatprep.subr.bf16.mxu0 0
        %4344 = vmatpush1.bf16.msra.mxu0 0
        %4345 = vmatprep.subr.bf16.mxu0 0
        %4346 = vmatpush1.bf16.msra.mxu0 0
        %4347 = vmatprep.subr.bf16.mxu0 0
        %4348 = vmatpush1.bf16.msra.mxu0 0
        %4349 = vmatprep.subr.bf16.mxu0 0
        %4350 = vmatpush1.bf16.msra.mxu0 0
        %4351 = vmatprep.subr.bf16.mxu0 0
        %4352 = vmatpush1.bf16.msra.mxu0 0
        %4353 = vmatprep.subr.bf16.mxu0 0
        %4354 = vmatpush1.bf16.msra.mxu0 0
        %4355 = vmatprep.subr.bf16.mxu0 0
        %4356 = vmatpush1.bf16.msra.mxu0 0
        %4357 = vmatprep.subr.bf16.mxu0 0
        %4358 = vmatpush1.bf16.msra.mxu0 0
        %4359 = vmatprep.subr.bf16.mxu0 0
        %4360 = vmatpush1.bf16.msra.mxu0 0
        %4361 = vmatprep.subr.bf16.mxu0 0
        %4362 = vmatpush1.bf16.msra.mxu0 0
        %4363 = vmatprep.subr.bf16.mxu0 0
        %4364 = vmatpush1.bf16.msra.mxu0 0
        %4365 = vmatprep.mubr.bf16.mxu0 0
        %4366 = vmatmul.mubr.bf16.gmra.mrb[0].mxu0 %v4331
        %v4367 = vpop.f32.mrb[0].mxu0
        %v4368 = vadd.f32 %v4317, %v4367
        %v4369 = vpop.f32.mrb[0].mxu0
        %v4370 = vpop.f32.mrb[0].mxu0
        %v4371 = vadd.f32 %v4317, %v4370
        %v4372 = vpop.f32.mrb[0].mxu0
        %4373 = vdwg.mxu0
        %v4374 = vld [vmem:[%s2 + $0x160] sm:$0xf]
        %v4375 = vld [vmem:[%s2 + $0x164] sm:$0xf]
        %v4376 = vld [vmem:[%s2 + $0x168] sm:$0xf]
        %v4377 = vld [vmem:[%s2 + $0x16c] sm:$0xf]
        %v4378 = vld [vmem:[#allocation4 + $0x12d] sm:$0x1]
        %v4379 = vlaneseq
        %v4380 = vshrl.u32 %v4379, 7
        %v4381 = vsub.s32 0, %v4380
        %v4382 = vrot.slane %v4378, %v4381
        %v4387 = vunpack.c.l.b16 %v4374
        %v4388 = vunpack.c.l.b16 %v4375
        %v4389 = vunpack.c.l.b16 %v4376
        %v4390 = vunpack.c.l.b16 %v4377
        %v4391 = vpack.c.b16 %v4388, %v4387
        %v4392 = vpack.c.b16 %v4390, %v4389
        %4395 = vmatprep.subr.bf16.mxu0 0
        %4396 = vmatpush1.bf16.msra.mxu0 %v4391
        %4397 = vmatprep.subr.bf16.mxu0 0
        %4398 = vmatpush1.bf16.msra.mxu0 %v4392
        %4399 = vmatprep.subr.bf16.mxu0 0
        %4400 = vmatpush1.bf16.msra.mxu0 0
        %4401 = vmatprep.subr.bf16.mxu0 0
        %4402 = vmatpush1.bf16.msra.mxu0 0
        %4403 = vmatprep.subr.bf16.mxu0 0
        %4404 = vmatpush1.bf16.msra.mxu0 0
        %4405 = vmatprep.subr.bf16.mxu0 0
        %4406 = vmatpush1.bf16.msra.mxu0 0
        %4407 = vmatprep.subr.bf16.mxu0 0
        %4408 = vmatpush1.bf16.msra.mxu0 0
        %4409 = vmatprep.subr.bf16.mxu0 0
        %4410 = vmatpush1.bf16.msra.mxu0 0
        %4411 = vmatprep.subr.bf16.mxu0 0
        %4412 = vmatpush1.bf16.msra.mxu0 0
        %4413 = vmatprep.subr.bf16.mxu0 0
        %4414 = vmatpush1.bf16.msra.mxu0 0
        %4415 = vmatprep.subr.bf16.mxu0 0
        %4416 = vmatpush1.bf16.msra.mxu0 0
        %4417 = vmatprep.subr.bf16.mxu0 0
        %4418 = vmatpush1.bf16.msra.mxu0 0
        %4419 = vmatprep.subr.bf16.mxu0 0
        %4420 = vmatpush1.bf16.msra.mxu0 0
        %4421 = vmatprep.subr.bf16.mxu0 0
        %4422 = vmatpush1.bf16.msra.mxu0 0
        %4423 = vmatprep.subr.bf16.mxu0 0
        %4424 = vmatpush1.bf16.msra.mxu0 0
        %4425 = vmatprep.subr.bf16.mxu0 0
        %4426 = vmatpush1.bf16.msra.mxu0 0
        %4427 = vmatprep.mubr.bf16.mxu0 0
        %4428 = vmatmul.mubr.bf16.gmra.mrb[0].mxu0 %v4331
        %v4429 = vpop.f32.mrb[0].mxu0
        %v4430 = vadd.f32 %v4382, %v4429
        %v4431 = vpop.f32.mrb[0].mxu0
        %v4432 = vpop.f32.mrb[0].mxu0
        %v4433 = vadd.f32 %v4382, %v4432
        %v4434 = vpop.f32.mrb[0].mxu0
        %4435 = vdwg.mxu0
        %v4436 = vxor.u32 %v4430, 2147483648
        %v4437 = vxor.u32 %v4433, 2147483648
        %v4438 = vmul.f32 %v4436, 1.442695
        %v4439 = vpow.pop %v4438
        %v4440 = vmul.f32 %v4437, 1.442695
        %v4441 = vpow.pop %v4440
        %v4442 = vadd.f32 %v4439, 1.0
        %v4443 = vadd.f32 %v4441, 1.0
        %v4444 = vrcp.pop %v4442
        %v4445 = vmul.f32 1.0, %v4444
        %v4446 = vrcp.pop %v4443
        %v4447 = vmul.f32 1.0, %v4446
        %v4448 = vmul.f32 %v4368, %v4445
        %v4449 = vmul.f32 %v4371, %v4447
        %v4450 = vmul.f32 %v4448, %v209
        %v4451 = vmul.f32 %v4449, %v210
        %v4452 = vld [vmem:[#allocation4 + $0x12e] sm:$0x1f]
        %v4453 = vlaneseq
        %v4454 = vshrl.u32 %v4453, 7
        %v4455 = vsub.s32 2, %v4454
        %v4456 = vrot.slane %v4452, %v4455
        %v4457 = vmul.f32 %v4450, %v4456
        %v4458 = vmul.f32 %v4451, %v4456
        %v4459 = vrot.slane %v4450, 6
        %v4460 = vrot.slane %v4451, 6
        %v4461 = vsel %vm2332, %v4459, %v4460
        %v4462 = vsel %vm2332, %v4460, %v4459
        %v4463 = vmul.f32 %v4462, %v606
        %v4464 = vmul.f32 %v4461, %v607
        %v4465 = vlaneseq
        %v4466 = vshrl.u32 %v4465, 7
        %v4467 = vsub.s32 0, %v4466
        %v4468 = vrot.slane %v4452, %v4467
        %v4469 = vmul.f32 %v4463, %v4468
        %v4470 = vmul.f32 %v4464, %v4468
        %v4471 = vadd.f32 %v4457, %v4469
        %v4472 = vadd.f32 %v4458, %v4470
        %v4473 = vrot.slane %v4450, 7
        %v4474 = vrot.slane %v4451, 7
        %v4475 = vsel %vm2347, %v4473, %v4474
        %v4476 = vsel %vm2347, %v4474, %v4473
        %v4477 = vmul.f32 %v4476, %v612
        %v4478 = vmul.f32 %v4475, %v613
        %v4479 = vlaneseq
        %v4480 = vshrl.u32 %v4479, 7
        %v4481 = vsub.s32 1, %v4480
        %v4482 = vrot.slane %v4452, %v4481
        %v4483 = vmul.f32 %v4477, %v4482
        %v4484 = vmul.f32 %v4478, %v4482
        %v4485 = vadd.f32 %v4471, %v4483
        %v4486 = vadd.f32 %v4472, %v4484
        %v4487 = vrot.slane %v4450, 1
        %v4488 = vrot.slane %v4451, 1
        %v4489 = vsel %vm2362, %v4487, %v4488
        %v4490 = vsel %vm2362, %v4488, %v4487
        %v4491 = vmul.f32 %v4489, %v618
        %v4492 = vmul.f32 %v4490, %v619
        %v4493 = vlaneseq
        %v4494 = vshrl.u32 %v4493, 7
        %v4495 = vsub.s32 3, %v4494
        %v4496 = vrot.slane %v4452, %v4495
        %v4497 = vmul.f32 %v4491, %v4496
        %v4498 = vmul.f32 %v4492, %v4496
        %v4499 = vadd.f32 %v4485, %v4497
        %v4500 = vadd.f32 %v4486, %v4498
        %v4501 = vrot.slane %v4450, 2
        %v4502 = vrot.slane %v4451, 2
        %v4503 = vsel %vm2377, %v4501, %v4502
        %v4504 = vsel %vm2377, %v4502, %v4501
        %v4505 = vmul.f32 %v4503, %v624
        %v4506 = vmul.f32 %v4504, %v625
        %v4507 = vlaneseq
        %v4508 = vshrl.u32 %v4507, 7
        %v4509 = vsub.s32 4, %v4508
        %v4510 = vrot.slane %v4452, %v4509
        %v4511 = vmul.f32 %v4505, %v4510
        %v4512 = vmul.f32 %v4506, %v4510
        %v4513 = vadd.f32 %v4499, %v4511
        %v4514 = vadd.f32 %v4500, %v4512
        %v4515 = vld [vmem:[#allocation4 + $0x133] sm:$0x1]
        %v4516 = vld [vmem:[#allocation4 + $0x134] sm:$0x1]
        %v4517 = vsel %vm430, %v4513, 0.0
        %4518 = vadd.xlane.f32.xlu0 %v4517
        %v4519 = vpop.xlane.xlu0 %4518
        %v4520 = vsel %vm430, %v4514, 0.0
        %4521 = vadd.xlane.f32.xlu0 %v4520
        %v4522 = vpop.xlane.xlu0 %4521
        %v4523 = vmul.f32 %v4519, %v501
        %v4524 = vmul.f32 %v4522, %v501
        %v4525 = vsub.f32 %v4513, %v4523
        %v4526 = vsub.f32 %v4514, %v4524
        %v4527 = vmul.f32 %v4525, %v4525
        %v4528 = vmul.f32 %v4526, %v4526
        %v4529 = vsel %vm430, %v4527, 0.0
        %4530 = vadd.xlane.f32.xlu0 %v4529
        %v4531 = vpop.xlane.xlu0 %4530
        %v4532 = vsel %vm430, %v4528, 0.0
        %4533 = vadd.xlane.f32.xlu0 %v4532
        %v4534 = vpop.xlane.xlu0 %4533
        %v4535 = vmul.f32 %v4531, %v501
        %v4536 = vmul.f32 %v4534, %v501
        %v4537 = vadd.f32 %v4535, 1e-05
        %v4538 = vadd.f32 %v4536, 1e-05
        %v4539 = vrsqrt.pop %v4537
        %v4540 = vrsqrt.pop %v4538
        %v4541 = vmul.f32 %v4525, %v4539
        %v4542 = vmul.f32 %v4526, %v4540
        %v4543 = vlaneseq
        %v4544 = vshrl.u32 %v4543, 7
        %v4545 = vsub.s32 0, %v4544
        %v4546 = vrot.slane %v4515, %v4545
        %v4547 = vmul.f32 %v4541, %v4546
        %v4548 = vmul.f32 %v4542, %v4546
        %v4549 = vlaneseq
        %v4550 = vshrl.u32 %v4549, 7
        %v4551 = vsub.s32 0, %v4550
        %v4552 = vrot.slane %v4516, %v4551
        %v4553 = vadd.f32 %v4547, %v4552
        %v4554 = vadd.f32 %v4548, %v4552
        %v4555 = vxor.u32 %v4553, 2147483648
        %v4556 = vxor.u32 %v4554, 2147483648
        %v4557 = vmul.f32 %v4555, 1.442695
        %v4558 = vpow.pop %v4557
        %v4559 = vmul.f32 %v4556, 1.442695
        %v4560 = vpow.pop %v4559
        %v4561 = vadd.f32 %v4558, 1.0
        %v4562 = vadd.f32 %v4560, 1.0
        %v4563 = vrcp.pop %v4561
        %v4564 = vmul.f32 1.0, %v4563
        %v4565 = vrcp.pop %v4562
        %v4566 = vmul.f32 1.0, %v4565
        %v4567 = vmul.f32 %v4553, %v4564
        %v4568 = vmul.f32 %v4554, %v4566
        %v4569 = vpack.c.bf16 %v4568, %v4567
        %v4570 = vld [vmem:[%s2 + $0x170] sm:$0xf]
        %v4571 = vld [vmem:[%s2 + $0x174] sm:$0xf]
        %v4572 = vld [vmem:[%s2 + $0x178] sm:$0xf]
        %v4573 = vld [vmem:[%s2 + $0x17c] sm:$0xf]
        %v4578 = vunpack.c.l.b16 %v4570
        %v4579 = vunpack.c.l.b16 %v4571
        %v4580 = vunpack.c.l.b16 %v4572
        %v4581 = vunpack.c.l.b16 %v4573
        %v4582 = vpack.c.b16 %v4579, %v4578
        %v4583 = vpack.c.b16 %v4581, %v4580
        %v4587 = vsel %vm430, %v4569, 0
        %4589 = vmatprep.subr.bf16.mxu0 0
        %4590 = vmatpush1.bf16.msra.mxu0 %v4582
        %4591 = vmatprep.subr.bf16.mxu0 0
        %4592 = vmatpush1.bf16.msra.mxu0 %v4583
        %4593 = vmatprep.subr.bf16.mxu0 0
        %4594 = vmatpush1.bf16.msra.mxu0 0
        %4595 = vmatprep.subr.bf16.mxu0 0
        %4596 = vmatpush1.bf16.msra.mxu0 0
        %4597 = vmatprep.subr.bf16.mxu0 0
        %4598 = vmatpush1.bf16.msra.mxu0 0
        %4599 = vmatprep.subr.bf16.mxu0 0
        %4600 = vmatpush1.bf16.msra.mxu0 0
        %4601 = vmatprep.subr.bf16.mxu0 0
        %4602 = vmatpush1.bf16.msra.mxu0 0
        %4603 = vmatprep.subr.bf16.mxu0 0
        %4604 = vmatpush1.bf16.msra.mxu0 0
        %4605 = vmatprep.subr.bf16.mxu0 0
        %4606 = vmatpush1.bf16.msra.mxu0 0
        %4607 = vmatprep.subr.bf16.mxu0 0
        %4608 = vmatpush1.bf16.msra.mxu0 0
        %4609 = vmatprep.subr.bf16.mxu0 0
        %4610 = vmatpush1.bf16.msra.mxu0 0
        %4611 = vmatprep.subr.bf16.mxu0 0
        %4612 = vmatpush1.bf16.msra.mxu0 0
        %4613 = vmatprep.subr.bf16.mxu0 0
        %4614 = vmatpush1.bf16.msra.mxu0 0
        %4615 = vmatprep.subr.bf16.mxu0 0
        %4616 = vmatpush1.bf16.msra.mxu0 0
        %4617 = vmatprep.subr.bf16.mxu0 0
        %4618 = vmatpush1.bf16.msra.mxu0 0
        %4619 = vmatprep.subr.bf16.mxu0 0
        %4620 = vmatpush1.bf16.msra.mxu0 0
        %4621 = vmatprep.mubr.bf16.mxu0 0
        %4622 = vmatmul.mubr.bf16.gmra.mrb[0].mxu0 %v4587
        %v4623 = vpop.f32.mrb[0].mxu0
        %v4624 = vadd.f32 0.0, %v4623
        %v4625 = vpop.f32.mrb[0].mxu0
        %v4626 = vpop.f32.mrb[0].mxu0
        %v4627 = vadd.f32 0.0, %v4626
        %v4628 = vpop.f32.mrb[0].mxu0
        %4629 = vdwg.mxu0
        %v4630 = vadd.f32 %v4266, %v4624
        %v4631 = vadd.f32 %v4267, %v4627
        %v4632 = vld [vmem:[#allocation4 + $0x135] sm:$0x1]
        %v4633 = vlaneseq
        %v4634 = vshrl.u32 %v4633, 7
        %v4635 = vsub.s32 0, %v4634
        %v4636 = vrot.slane %v4632, %v4635
        %v4637 = vadd.f32 %v4630, %v4636
        %v4638 = vadd.f32 %v4631, %v4636
        %v4639 = vld [vmem:[#allocation4 + $0x136] sm:$0x1]
        %v4640 = vld [vmem:[#allocation4 + $0x137] sm:$0x1]
        %v4641 = vsel %vm430, %v4637, 0.0
        %4642 = vadd.xlane.f32.xlu0 %v4641
        %v4643 = vpop.xlane.xlu0 %4642
        %v4644 = vsel %vm430, %v4638, 0.0
        %4645 = vadd.xlane.f32.xlu0 %v4644
        %v4646 = vpop.xlane.xlu0 %4645
        %v4647 = vmul.f32 %v4643, %v501
        %v4648 = vmul.f32 %v4646, %v501
        %v4649 = vsub.f32 %v4637, %v4647
        %v4650 = vsub.f32 %v4638, %v4648
        %v4651 = vmul.f32 %v4649, %v4649
        %v4652 = vmul.f32 %v4650, %v4650
        %v4653 = vsel %vm430, %v4651, 0.0
        %4654 = vadd.xlane.f32.xlu0 %v4653
        %v4655 = vpop.xlane.xlu0 %4654
        %v4656 = vsel %vm430, %v4652, 0.0
        %4657 = vadd.xlane.f32.xlu0 %v4656
        %v4658 = vpop.xlane.xlu0 %4657
        %v4659 = vmul.f32 %v4655, %v501
        %v4660 = vmul.f32 %v4658, %v501
        %v4661 = vadd.f32 %v4659, 1e-05
        %v4662 = vadd.f32 %v4660, 1e-05
        %v4663 = vrsqrt.pop %v4661
        %v4664 = vrsqrt.pop %v4662
        %v4665 = vmul.f32 %v4649, %v4663
        %v4666 = vmul.f32 %v4650, %v4664
        %v4667 = vlaneseq
        %v4668 = vshrl.u32 %v4667, 7
        %v4669 = vsub.s32 0, %v4668
        %v4670 = vrot.slane %v4639, %v4669
        %v4671 = vmul.f32 %v4665, %v4670
        %v4672 = vmul.f32 %v4666, %v4670
        %v4673 = vlaneseq
        %v4674 = vshrl.u32 %v4673, 7
        %v4675 = vsub.s32 0, %v4674
        %v4676 = vrot.slane %v4640, %v4675
        %v4677 = vadd.f32 %v4671, %v4676
        %v4678 = vadd.f32 %v4672, %v4676
        %v4679 = vpack.c.bf16 %v4678, %v4677
        %v4680 = vld [vmem:[%s2 + $0x180] sm:$0xf]
        %v4681 = vld [vmem:[%s2 + $0x184] sm:$0xf]
        %v4682 = vld [vmem:[%s2 + $0x188] sm:$0xf]
        %v4683 = vld [vmem:[%s2 + $0x18c] sm:$0xf]
        %v4684 = vld [vmem:[#allocation4 + $0x138] sm:$0x1]
        %v4685 = vlaneseq
        %v4686 = vshrl.u32 %v4685, 7
        %v4687 = vsub.s32 0, %v4686
        %v4688 = vrot.slane %v4684, %v4687
        %v4693 = vunpack.c.l.b16 %v4680
        %v4694 = vunpack.c.l.b16 %v4681
        %v4695 = vunpack.c.l.b16 %v4682
        %v4696 = vunpack.c.l.b16 %v4683
        %v4697 = vpack.c.b16 %v4694, %v4693
        %v4698 = vpack.c.b16 %v4696, %v4695
        %v4702 = vsel %vm430, %v4679, 0
        %4704 = vmatprep.subr.bf16.mxu0 0
        %4705 = vmatpush1.bf16.msra.mxu0 %v4697
        %4706 = vmatprep.subr.bf16.mxu0 0
        %4707 = vmatpush1.bf16.msra.mxu0 %v4698
        %4708 = vmatprep.subr.bf16.mxu0 0
        %4709 = vmatpush1.bf16.msra.mxu0 0
        %4710 = vmatprep.subr.bf16.mxu0 0
        %4711 = vmatpush1.bf16.msra.mxu0 0
        %4712 = vmatprep.subr.bf16.mxu0 0
        %4713 = vmatpush1.bf16.msra.mxu0 0
        %4714 = vmatprep.subr.bf16.mxu0 0
        %4715 = vmatpush1.bf16.msra.mxu0 0
        %4716 = vmatprep.subr.bf16.mxu0 0
        %4717 = vmatpush1.bf16.msra.mxu0 0
        %4718 = vmatprep.subr.bf16.mxu0 0
        %4719 = vmatpush1.bf16.msra.mxu0 0
        %4720 = vmatprep.subr.bf16.mxu0 0
        %4721 = vmatpush1.bf16.msra.mxu0 0
        %4722 = vmatprep.subr.bf16.mxu0 0
        %4723 = vmatpush1.bf16.msra.mxu0 0
        %4724 = vmatprep.subr.bf16.mxu0 0
        %4725 = vmatpush1.bf16.msra.mxu0 0
        %4726 = vmatprep.subr.bf16.mxu0 0
        %4727 = vmatpush1.bf16.msra.mxu0 0
        %4728 = vmatprep.subr.bf16.mxu0 0
        %4729 = vmatpush1.bf16.msra.mxu0 0
        %4730 = vmatprep.subr.bf16.mxu0 0
        %4731 = vmatpush1.bf16.msra.mxu0 0
        %4732 = vmatprep.subr.bf16.mxu0 0
        %4733 = vmatpush1.bf16.msra.mxu0 0
        %4734 = vmatprep.subr.bf16.mxu0 0
        %4735 = vmatpush1.bf16.msra.mxu0 0
        %4736 = vmatprep.mubr.bf16.mxu0 0
        %4737 = vmatmul.mubr.bf16.gmra.mrb[0].mxu0 %v4702
        %v4738 = vpop.f32.mrb[0].mxu0
        %v4739 = vadd.f32 %v4688, %v4738
        %v4740 = vpop.f32.mrb[0].mxu0
        %v4741 = vpop.f32.mrb[0].mxu0
        %v4742 = vadd.f32 %v4688, %v4741
        %v4743 = vpop.f32.mrb[0].mxu0
        %4744 = vdwg.mxu0
        %v4745 = vxor.u32 %v4739, 2147483648
        %v4746 = vxor.u32 %v4742, 2147483648
        %v4747 = vmul.f32 %v4745, 1.442695
        %v4748 = vpow.pop %v4747
        %v4749 = vmul.f32 %v4746, 1.442695
        %v4750 = vpow.pop %v4749
        %v4751 = vadd.f32 %v4748, 1.0
        %v4752 = vadd.f32 %v4750, 1.0
        %v4753 = vrcp.pop %v4751
        %v4754 = vmul.f32 1.0, %v4753
        %v4755 = vrcp.pop %v4752
        %v4756 = vmul.f32 1.0, %v4755
        %v4757 = vmul.f32 %v4739, %v4754
        %v4758 = vmul.f32 %v4742, %v4756
        %v4759 = vpack.c.bf16 %v4758, %v4757
        %v4760 = vld [vmem:[%s2 + $0x190] sm:$0xf]
        %v4761 = vld [vmem:[%s2 + $0x194] sm:$0xf]
        %v4762 = vld [vmem:[%s2 + $0x198] sm:$0xf]
        %v4763 = vld [vmem:[%s2 + $0x19c] sm:$0xf]
        %v4764 = vld [vmem:[%s2 + $0x1a0] sm:$0xf]
        %v4765 = vld [vmem:[%s2 + $0x1a4] sm:$0xf]
        %v4766 = vld [vmem:[%s2 + $0x1a8] sm:$0xf]
        %v4767 = vld [vmem:[%s2 + $0x1ac] sm:$0xf]
        %v4768 = vld [vmem:[#allocation4 + $0x139] sm:$0x1]
        %v4769 = vlaneseq
        %v4770 = vshrl.u32 %v4769, 7
        %v4771 = vsub.s32 0, %v4770
        %v4772 = vrot.slane %v4768, %v4771
        %v4781 = vunpack.c.l.b16 %v4760
        %v4782 = vunpack.c.l.b16 %v4761
        %v4783 = vunpack.c.l.b16 %v4762
        %v4784 = vunpack.c.l.b16 %v4763
        %v4785 = vunpack.c.l.b16 %v4764
        %v4786 = vunpack.c.l.b16 %v4765
        %v4787 = vunpack.c.l.b16 %v4766
        %v4788 = vunpack.c.l.b16 %v4767
        %v4789 = vpack.c.b16 %v4782, %v4781
        %v4790 = vpack.c.b16 %v4784, %v4783
        %v4791 = vpack.c.b16 %v4786, %v4785
        %v4792 = vpack.c.b16 %v4788, %v4787
        %v4798 = vsel %vm784, %v4759, 0
        %4800 = vmatprep.subr.bf16.mxu0 0
        %4801 = vmatpush1.bf16.msra.mxu0 %v4789
        %4802 = vmatprep.subr.bf16.mxu0 0
        %4803 = vmatpush1.bf16.msra.mxu0 %v4790
        %4804 = vmatprep.subr.bf16.mxu0 0
        %4805 = vmatpush1.bf16.msra.mxu0 %v4791
        %4806 = vmatprep.subr.bf16.mxu0 0
        %4807 = vmatpush1.bf16.msra.mxu0 %v4792
        %4808 = vmatprep.subr.bf16.mxu0 0
        %4809 = vmatpush1.bf16.msra.mxu0 0
        %4810 = vmatprep.subr.bf16.mxu0 0
        %4811 = vmatpush1.bf16.msra.mxu0 0
        %4812 = vmatprep.subr.bf16.mxu0 0
        %4813 = vmatpush1.bf16.msra.mxu0 0
        %4814 = vmatprep.subr.bf16.mxu0 0
        %4815 = vmatpush1.bf16.msra.mxu0 0
        %4816 = vmatprep.subr.bf16.mxu0 0
        %4817 = vmatpush1.bf16.msra.mxu0 0
        %4818 = vmatprep.subr.bf16.mxu0 0
        %4819 = vmatpush1.bf16.msra.mxu0 0
        %4820 = vmatprep.subr.bf16.mxu0 0
        %4821 = vmatpush1.bf16.msra.mxu0 0
        %4822 = vmatprep.subr.bf16.mxu0 0
        %4823 = vmatpush1.bf16.msra.mxu0 0
        %4824 = vmatprep.subr.bf16.mxu0 0
        %4825 = vmatpush1.bf16.msra.mxu0 0
        %4826 = vmatprep.subr.bf16.mxu0 0
        %4827 = vmatpush1.bf16.msra.mxu0 0
        %4828 = vmatprep.subr.bf16.mxu0 0
        %4829 = vmatpush1.bf16.msra.mxu0 0
        %4830 = vmatprep.subr.bf16.mxu0 0
        %4831 = vmatpush1.bf16.msra.mxu0 0
        %4832 = vmatprep.mubr.bf16.mxu0 0
        %4833 = vmatmul.mubr.bf16.gmra.mrb[0].mxu0 %v4798
        %v4834 = vpop.f32.mrb[0].mxu0
        %v4835 = vadd.f32 %v4772, %v4834
        %v4836 = vpop.f32.mrb[0].mxu0
        %v4837 = vpop.f32.mrb[0].mxu0
        %v4838 = vadd.f32 %v4772, %v4837
        %v4839 = vpop.f32.mrb[0].mxu0
        %4840 = vdwg.mxu0
        %v4841 = vadd.f32 %v4637, %v4835
        %v4842 = vadd.f32 %v4638, %v4838
        %v4843 = vld [vmem:[#allocation4 + $0x13a] sm:$0x1]
        %v4844 = vld [vmem:[#allocation4 + $0x13b] sm:$0x1]
        %v4845 = vsel %vm430, %v4841, 0.0
        %4846 = vadd.xlane.f32.xlu0 %v4845
        %v4847 = vpop.xlane.xlu0 %4846
        %v4848 = vsel %vm430, %v4842, 0.0
        %4849 = vadd.xlane.f32.xlu0 %v4848
        %v4850 = vpop.xlane.xlu0 %4849
        %v4851 = vmul.f32 %v4847, %v501
        %v4852 = vmul.f32 %v4850, %v501
        %v4853 = vsub.f32 %v4841, %v4851
        %v4854 = vsub.f32 %v4842, %v4852
        %v4855 = vmul.f32 %v4853, %v4853
        %v4856 = vmul.f32 %v4854, %v4854
        %v4857 = vsel %vm430, %v4855, 0.0
        %4858 = vadd.xlane.f32.xlu0 %v4857
        %v4859 = vpop.xlane.xlu0 %4858
        %v4860 = vsel %vm430, %v4856, 0.0
        %4861 = vadd.xlane.f32.xlu0 %v4860
        %v4862 = vpop.xlane.xlu0 %4861
        %v4863 = vmul.f32 %v4859, %v501
        %v4864 = vmul.f32 %v4862, %v501
        %v4865 = vadd.f32 %v4863, 1e-05
        %v4866 = vadd.f32 %v4864, 1e-05
        %v4867 = vrsqrt.pop %v4865
        %v4868 = vrsqrt.pop %v4866
        %v4869 = vmul.f32 %v4853, %v4867
        %v4870 = vmul.f32 %v4854, %v4868
        %v4871 = vlaneseq
        %v4872 = vshrl.u32 %v4871, 7
        %v4873 = vsub.s32 0, %v4872
        %v4874 = vrot.slane %v4843, %v4873
        %v4875 = vmul.f32 %v4869, %v4874
        %v4876 = vmul.f32 %v4870, %v4874
        %v4877 = vlaneseq
        %v4878 = vshrl.u32 %v4877, 7
        %v4879 = vsub.s32 0, %v4878
        %v4880 = vrot.slane %v4844, %v4879
        %v4881 = vadd.f32 %v4875, %v4880
        %v4882 = vadd.f32 %v4876, %v4880
        %4883 = vst.msk [vmem:[%s185] sm:$0xff] %vm430, %v4881
        %4884 = vst.msk [vmem:[%s185 + $0x8] sm:$0xff] %vm430, %v4882
        %s4885 = sand.u32 %s101, 1
        %s4886 = scalar_lea.sflag [#allocation6], %s4885
        %s4887 = sand.u32 %s101, 1
        %s4888 = smul.addr %s4887, 16
        %s4889 = scalar_lea.vmem [#allocation7], %s4888
        // Predicated region
        $region37: #{_forward_impl.1} parent=31 // pred_check
          %p4890 = pneg %p111
        $region38: #{_forward_impl.1} parent=31 // pred_check_branch
          %4892 = sbr.rel (%p4890) target = $region40
        $region39: #{_forward_impl.1} parent=31 // pred_region
          %s4894 = ssub.s32 256, 256
          %4895 = vsyncadd %s4886, %s4894
          %s4896 = smul.addr %s25, 2
          %s4897 = smul.addr %s4896, 128
          %s4898 = scalar_lea.hbm %s4, %s4897
          %s4899 = sshll.u32 %s4889, 4
          %s4900 = int_to_ptr.vmem [resolvable:$true] %s4899
          %4905 = dma.vmem_to_hbm [thread:$0]  %s4900, 256, %s4898, %s4886, 128, 128, 8
        $region40: #{_forward_impl.1} parent=31 // pred_fallthru
          _
      $region32: #{_forward_impl.1} parent=5 // pred_fallthru
        _
      %p4906 = scmp.le.s32.totalorder 2, %s20
      // Predicated region
      $region41: #{_forward_impl.1} parent=5 // pred_check
        %p4907 = pneg %p4906
      $region42: #{_forward_impl.1} parent=5 // pred_check_branch
        %4909 = sbr.rel (%p4907) target = $region44
      $region43: #{_forward_impl.1} parent=5 // pred_region
        %s4910 = ssub.s32 %s20, 2
        // Predicated region
        $region45: #{_forward_impl.1} parent=43 // pred_check
          %p4911 = pneg %p117
        $region46: #{_forward_impl.1} parent=43 // pred_check_branch
          %4913 = sbr.rel (%p4911) target = $region48
        $region47: #{_forward_impl.1} parent=43 // pred_region
          %s4914 = sand.u32 %s102, 1
          %s4915 = scalar_lea.sflag [#allocation6], %s4914
          %s4916 = sand.u32 %s102, 1
          %s4917 = smul.addr %s4916, 16
          %s4918 = scalar_lea.vmem [#allocation7], %s4917
          %4919 = dma.done %s4915, 256
        $region48: #{_forward_impl.1} parent=43 // pred_fallthru
          _
      $region44: #{_forward_impl.1} parent=5 // pred_fallthru
        _
    $region6: #{_forward_impl.1} parent=1 // loop_footer
      %s24 = sadd.s32 1, %s20
    $region7: #{_forward_impl.1} parent=1 // loop_footer_branch
      %19 = sbr.rel target = $region3
    $region8: #{_forward_impl.1} parent=1 // loop_exit
      _
    %4920 = vsyncpa [#allocation5], 1
    %s4921 = scalar_lea.sflag [#allocation5], 1
    %4922 = vsyncpa %s4921, 1
    %4923 = vsyncpa [#allocation6], 1
    %s4924 = scalar_lea.sflag [#allocation6], 1
    %4925 = vsyncpa %s4924, 1

</llo_original>
